<compile_context>
chip_gen: v5e
topology: v5e:2x2
jax: 0.10.0
libtpu: 0.0.40
codegen_flags: <defaults>
</compile_context>

<pallas_src>
import math
import functools
from types import SimpleNamespace

import jax
import jax.numpy as jnp
from jax import lax
from jax.experimental import pallas as pl
from jax.experimental.pallas import tpu as pltpu

_EPS = 1e-5
_ROW_TILES = (1024, 512, 256, 128, 64, 32, 16, 8)


def _pick_row_tile(r):
    for t in _ROW_TILES:
        if r % t == 0:
            return t
    return r


def _parallel(n):
    return pltpu.CompilerParams(dimension_semantics=("parallel",) * n)


# =============================================================================
# Flexible fused row kernel:  y = act(LN?(x) @ W + b) [*gate] [*mask] [+res] [*post]
# =============================================================================

def _fused_linear_kernel(*refs, act, has_ln, has_gate, has_mask, has_res,
                         has_post, eps):
    idx = 0
    x = refs[idx][...]
    idx += 1
    if has_ln:
        g_ln = refs[idx][...]
        b_ln = refs[idx + 1][...]
        idx += 2
        mu = jnp.mean(x, axis=-1, keepdims=True)
        var = jnp.mean((x - mu) ** 2, axis=-1, keepdims=True)
        x = (x - mu) * lax.rsqrt(var + eps) * g_ln + b_ln
    w = refs[idx][...]
    b = refs[idx + 1][...]
    idx += 2
    y = jnp.dot(x.astype(jnp.bfloat16), w, preferred_element_type=jnp.float32) + b
    if act == "relu":
        y = jnp.maximum(y, 0.0)
    elif act == "sigmoid":
        y = jax.nn.sigmoid(y)
    if has_gate:
        y = y * refs[idx][...]
        idx += 1
    if has_mask:
        y = y * refs[idx][...]
        idx += 1
    if has_res:
        y = y + refs[idx][...]
        idx += 1
    if has_post:
        y = y * refs[idx][...]
        idx += 1
    refs[idx][...] = y


def fused_linear(x, w, b, *, act="none", ln=None, gate=None, mask=None,
                 residual=None, post_mask=None):
    """Row-tiled fused kernel. x: [..., K], w: [K, C] (torch weight.T), b: [C]."""
    K = x.shape[-1]
    C = w.shape[1]
    lead = x.shape[:-1]
    R = math.prod(lead)
    TR = _pick_row_tile(R)

    def row_spec(width):
        return pl.BlockSpec((TR, width), lambda i: (i, 0))

    def full_spec(shape):
        return pl.BlockSpec(shape, lambda i: (0,) * len(shape))

    inputs = [x.reshape(R, K).astype(jnp.float32)]
    in_specs = [row_spec(K)]
    has_ln = ln is not None
    if has_ln:
        g_ln, b_ln = ln
        inputs += [g_ln.reshape(1, K).astype(jnp.float32),
                   b_ln.reshape(1, K).astype(jnp.float32)]
        in_specs += [full_spec((1, K)), full_spec((1, K))]
    inputs += [w.astype(jnp.bfloat16), b.reshape(1, C).astype(jnp.float32)]
    in_specs += [full_spec((K, C)), full_spec((1, C))]

    for opt in (gate, mask, residual, post_mask):
        if opt is not None:
            a2 = opt.reshape(R, -1).astype(jnp.float32)
            inputs.append(a2)
            in_specs.append(row_spec(a2.shape[1]))

    kern = functools.partial(
        _fused_linear_kernel, act=act, has_ln=has_ln, has_gate=gate is not None,
        has_mask=mask is not None, has_res=residual is not None,
        has_post=post_mask is not None, eps=_EPS)
    out = pl.pallas_call(
        kern,
        grid=(R // TR,),
        in_specs=in_specs,
        out_specs=row_spec(C),
        out_shape=jax.ShapeDtypeStruct((R, C), jnp.float32),
        compiler_params=_parallel(1),
    )(*inputs)
    return out.reshape(*lead, C)


# =============================================================================
# Fused residual-add + LayerNorm
# =============================================================================

def _add_ln_kernel(x_ref, r_ref, g_ref, b_ref, o_ref, *, eps):
    x = x_ref[...] + r_ref[...]
    mu = jnp.mean(x, axis=-1, keepdims=True)
    var = jnp.mean((x - mu) ** 2, axis=-1, keepdims=True)
    o_ref[...] = (x - mu) * lax.rsqrt(var + eps) * g_ref[...] + b_ref[...]


def pallas_add_ln(x, res, g, b):
    C = x.shape[-1]
    lead = x.shape[:-1]
    R = math.prod(lead)
    TR = _pick_row_tile(R)
    row = lambda w: pl.BlockSpec((TR, w), lambda i: (i, 0))
    full = lambda shp: pl.BlockSpec(shp, lambda i: (0,) * len(shp))
    out = pl.pallas_call(
        functools.partial(_add_ln_kernel, eps=_EPS),
        grid=(R // TR,),
        in_specs=[row(C), row(C), full((1, C)), full((1, C))],
        out_specs=row(C),
        out_shape=jax.ShapeDtypeStruct((R, C), jnp.float32),
        compiler_params=_parallel(1),
    )(x.reshape(R, C).astype(jnp.float32), res.reshape(R, C).astype(jnp.float32),
      g.reshape(1, C).astype(jnp.float32), b.reshape(1, C).astype(jnp.float32))
    return out.reshape(*lead, C)


# =============================================================================
# Triangle multiplication: fused LN + 5-way projection, MXU matmul, fused output
# =============================================================================

def _trimul_proj_kernel(z_ref, m_ref, g_ref, be_ref, w_ref, b_ref,
                        a_ref, bp_ref, gate_ref, *, ch, eps):
    x = z_ref[...]
    mu = jnp.mean(x, axis=-1, keepdims=True)
    var = jnp.mean((x - mu) ** 2, axis=-1, keepdims=True)
    xn = (x - mu) * lax.rsqrt(var + eps) * g_ref[...] + be_ref[...]
    y = jnp.dot(xn.astype(jnp.bfloat16), w_ref[...],
                preferred_element_type=jnp.float32) + b_ref[...]
    m = m_ref[...]
    a_ref[...] = m * y[:, :ch] * jax.nn.sigmoid(y[:, ch:2 * ch])
    bp_ref[...] = m * y[:, 2 * ch:3 * ch] * jax.nn.sigmoid(y[:, 3 * ch:4 * ch])
    gate_ref[...] = jax.nn.sigmoid(y[:, 4 * ch:])


def pallas_trimul_proj(p, p_mask, prm, ch):
    B, N, _, cp = p.shape
    R = B * N * N
    TR = _pick_row_tile(R)
    wdim = 4 * ch + cp
    w_cat = jnp.concatenate([prm["a_p"]["w"], prm["a_g"]["w"], prm["b_p"]["w"],
                             prm["b_g"]["w"], prm["g"]["w"]], axis=1).astype(jnp.bfloat16)
    b_cat = jnp.concatenate([prm["a_p"]["b"], prm["a_g"]["b"], prm["b_p"]["b"],
                             prm["b_g"]["b"], prm["g"]["b"]]).reshape(1, wdim).astype(jnp.float32)
    row = lambda w: pl.BlockSpec((TR, w), lambda i: (i, 0))
    full = lambda shp: pl.BlockSpec(shp, lambda i: (0,) * len(shp))
    a, bb, g = pl.pallas_call(
        functools.partial(_trimul_proj_kernel, ch=ch, eps=_EPS),
        grid=(R // TR,),
        in_specs=[row(cp), row(1), full((1, cp)), full((1, cp)),
                  full((cp, wdim)), full((1, wdim))],
        out_specs=(row(ch), row(ch), row(cp)),
        out_shape=(jax.ShapeDtypeStruct((R, ch), jnp.float32),
                   jax.ShapeDtypeStruct((R, ch), jnp.float32),
                   jax.ShapeDtypeStruct((R, cp), jnp.float32)),
        compiler_params=_parallel(1),
    )(p.reshape(R, cp).astype(jnp.float32), p_mask.reshape(R, 1).astype(jnp.float32),
      prm["ln_in"]["g"].reshape(1, cp).astype(jnp.float32),
      prm["ln_in"]["b"].reshape(1, cp).astype(jnp.float32), w_cat, b_cat)
    return a.reshape(B, N, N, ch), bb.reshape(B, N, N, ch), g.reshape(B, N, N, cp)


def _trimul_mm_kernel(a_ref, b_ref, o_ref, *, gt):
    # out[g, i, j] = sum_k a[g, i, k] * b[g, j, k]   (A @ B^T per channel, MXU)
    for g in range(gt):
        o_ref[g] = lax.dot_general(a_ref[g], b_ref[g], (((1,), (1,)), ((), ())),
                                   preferred_element_type=jnp.float32)


def pallas_triangle_mm(a, b, incoming):
    """out[b,i,j,c] = sum_k a'[b,i,k,c] * b'[b,j,k,c]  with a'=a (outgoing) or
    a'[i,k]=a[k,i] (incoming, handled purely by the wrapper-side permutation)."""
    B, N, _, C = a.shape
    perm = (0, 3, 2, 1) if incoming else (0, 3, 1, 2)
    a_cm = jnp.transpose(a, perm).reshape(B * C, N, N).astype(jnp.bfloat16)
    b_cm = jnp.transpose(b, perm).reshape(B * C, N, N).astype(jnp.bfloat16)
    G = B * C
    gt = 1
    for cand in (16, 8, 4, 2, 1):
        if G % cand == 0 and cand * N * N * 4 <= (2 << 20):
            gt = cand
            break
    out = pl.pallas_call(
        functools.partial(_trimul_mm_kernel, gt=gt),
        grid=(G // gt,),
        in_specs=[pl.BlockSpec((gt, N, N), lambda i: (i, 0, 0)),
                  pl.BlockSpec((gt, N, N), lambda i: (i, 0, 0))],
        out_specs=pl.BlockSpec((gt, N, N), lambda i: (i, 0, 0)),
        out_shape=jax.ShapeDtypeStruct((G, N, N), jnp.float32),
        compiler_params=_parallel(1),
    )(a_cm, b_cm)
    return jnp.transpose(out.reshape(B, C, N, N), (0, 2, 3, 1))


def trimul_block(prm, p, p_mask, outgoing, cfg):
    a, bb, g = pallas_trimul_proj(p, p_mask, prm, cfg.c_hidden_mul)
    x = pallas_triangle_mm(a, bb, incoming=not outgoing)
    # p_new = p + g * (LN(x) @ Wz + bz)   -- fused output + gate + residual
    return fused_linear(x, prm["z"]["w"], prm["z"]["b"],
                        ln=(prm["ln_out"]["g"], prm["ln_out"]["b"]),
                        gate=g, residual=p)


# =============================================================================
# Triangle attention: fused LN+QKV/bias/gate projection, fused attention kernel
# =============================================================================

def _triatt_proj_kernel(z_ref, g_ref, be_ref, w_ref, b_ref,
                        qkv_ref, bias_ref, gate_ref, *, hc, nh, eps):
    x = z_ref[...]
    mu = jnp.mean(x, axis=-1, keepdims=True)
    var = jnp.mean((x - mu) ** 2, axis=-1, keepdims=True)
    xn = (x - mu) * lax.rsqrt(var + eps) * g_ref[...] + be_ref[...]
    y = jnp.dot(xn.astype(jnp.bfloat16), w_ref[...],
                preferred_element_type=jnp.float32) + b_ref[...]
    qkv_ref[...] = y[:, :3 * hc]
    bias_ref[...] = y[:, 3 * hc:3 * hc + nh]
    gate_ref[...] = jax.nn.sigmoid(y[:, 3 * hc + nh:])


def pallas_triatt_proj(z, prm, H, Ch):
    B, N, _, cp = z.shape
    hc = H * Ch
    R = B * N * N
    TR = _pick_row_tile(R)
    wdim = 3 * hc + H + hc
    w_cat = jnp.concatenate([prm["q"]["w"], prm["k"]["w"], prm["v"]["w"],
                             prm["bias"]["w"], prm["g"]["w"]], axis=1).astype(jnp.bfloat16)
    b_cat = jnp.concatenate([prm["q"]["b"], prm["k"]["b"], prm["v"]["b"],
                             prm["bias"]["b"], prm["g"]["b"]]).reshape(1, wdim).astype(jnp.float32)
    row = lambda w: pl.BlockSpec((TR, w), lambda i: (i, 0))
    full = lambda shp: pl.BlockSpec(shp, lambda i: (0,) * len(shp))
    qkv, bias, gate = pl.pallas_call(
        functools.partial(_triatt_proj_kernel, hc=hc, nh=H, eps=_EPS),
        grid=(R // TR,),
        in_specs=[row(cp), full((1, cp)), full((1, cp)),
                  full((cp, wdim)), full((1, wdim))],
        out_specs=(row(3 * hc), row(H), row(hc)),
        out_shape=(jax.ShapeDtypeStruct((R, 3 * hc), jnp.float32),
                   jax.ShapeDtypeStruct((R, H), jnp.float32),
                   jax.ShapeDtypeStruct((R, hc), jnp.float32)),
        compiler_params=_parallel(1),
    )(z.reshape(R, cp).astype(jnp.float32),
      prm["ln"]["g"].reshape(1, cp).astype(jnp.float32),
      prm["ln"]["b"].reshape(1, cp).astype(jnp.float32), w_cat, b_cat)
    return (qkv.reshape(B, N, N, 3 * hc), bias.reshape(B, N, N, H),
            gate.reshape(B, N, N, hc))


def _triatt_attn_kernel(qkv_ref, gate_ref, bias_ref, maskb_ref, o_ref, *, h, ch):
    hc = h * ch
    qkv = qkv_ref[0, 0]          # [N, 3*HC]
    gate = gate_ref[0, 0]        # [N, HC]
    mb = maskb_ref[0, 0]         # [1, N]   (mask bias over the key axis)
    bias = bias_ref[0]           # [N, N, H]
    scale = 1.0 / math.sqrt(ch)
    for hh in range(h):
        q = qkv[:, hh * ch:(hh + 1) * ch]
        k = qkv[:, hc + hh * ch:hc + (hh + 1) * ch]
        v = qkv[:, 2 * hc + hh * ch:2 * hc + (hh + 1) * ch]
        logits = lax.dot_general(q.astype(jnp.bfloat16), k.astype(jnp.bfloat16),
                                 (((1,), (1,)), ((), ())),
                                 preferred_element_type=jnp.float32) * scale
        logits = logits + bias[:, :, hh] + mb
        m = jnp.max(logits, axis=-1, keepdims=True)
        e = jnp.exp(logits - m)
        a = (e / jnp.sum(e, axis=-1, keepdims=True)).astype(jnp.bfloat16)
        o = jnp.dot(a, v.astype(jnp.bfloat16), preferred_element_type=jnp.float32)
        o_ref[0, 0, :, hh * ch:(hh + 1) * ch] = o * gate[:, hh * ch:(hh + 1) * ch]


def pallas_triatt_attn(qkv, gate, bias, maskb, H, Ch):
    B, N = qkv.shape[0], qkv.shape[1]
    hc = H * Ch
    return pl.pallas_call(
        functools.partial(_triatt_attn_kernel, h=H, ch=Ch),
        grid=(B, N),
        in_specs=[pl.BlockSpec((1, 1, N, 3 * hc), lambda b, i: (b, i, 0, 0)),
                  pl.BlockSpec((1, 1, N, hc), lambda b, i: (b, i, 0, 0)),
                  pl.BlockSpec((1, N, N, H), lambda b, i: (b, 0, 0, 0)),
                  pl.BlockSpec((1, 1, 1, N), lambda b, i: (b, i, 0, 0))],
        out_specs=pl.BlockSpec((1, 1, N, hc), lambda b, i: (b, i, 0, 0)),
        out_shape=jax.ShapeDtypeStruct((B, N, N, hc), jnp.float32),
        compiler_params=_parallel(2),
    )(qkv, gate, bias, maskb.astype(jnp.float32))


def triatt_block(prm, p, p_mask, starting, cfg):
    B, N = p.shape[0], p.shape[1]
    H, Ch = cfg.n_head_tri, cfg.c_hidden_tri_att
    z = p if starting else jnp.swapaxes(p, 1, 2)
    pm = p_mask if starting else jnp.swapaxes(p_mask, 1, 2)
    qkv, bias, gate = pallas_triatt_proj(z, prm, H, Ch)
    maskb = ((pm - 1.0) * 1e9).reshape(B, N, 1, N)
    o = pallas_triatt_attn(qkv, gate, bias, maskb, H, Ch)
    if not starting:
        o = jnp.swapaxes(o, 1, 2)
    # p_new = p + Linear_o(o * g)   (gate already applied inside the attention kernel)
    return fused_linear(o, prm["o"]["w"], prm["o"]["b"], residual=p)


# =============================================================================
# Pair transition (LN -> relu-MLP -> masked residual), fully fused
# =============================================================================

def _pair_transition_kernel(p_ref, m_ref, g_ref, be_ref, w1_ref, b1_ref,
                            w2_ref, b2_ref, o_ref, *, eps):
    p = p_ref[...]
    mu = jnp.mean(p, axis=-1, keepdims=True)
    var = jnp.mean((p - mu) ** 2, axis=-1, keepdims=True)
    xn = (p - mu) * lax.rsqrt(var + eps) * g_ref[...] + be_ref[...]
    h = jnp.maximum(jnp.dot(xn.astype(jnp.bfloat16), w1_ref[...],
                            preferred_element_type=jnp.float32) + b1_ref[...], 0.0)
    t = jnp.dot(h.astype(jnp.bfloat16), w2_ref[...],
                preferred_element_type=jnp.float32) + b2_ref[...]
    m = m_ref[...]
    o_ref[...] = (p + t * m) * m     # fuses the trailing `p * p_mask` of the layer


def pair_transition_block(prm, p, p_mask, cfg):
    B, N, _, cp = p.shape
    R = B * N * N
    TR = _pick_row_tile(R)
    hidden = cp * cfg.pair_transition_n
    row = lambda w: pl.BlockSpec((TR, w), lambda i: (i, 0))
    full = lambda shp: pl.BlockSpec(shp, lambda i: (0,) * len(shp))
    out = pl.pallas_call(
        functools.partial(_pair_transition_kernel, eps=_EPS),
        grid=(R // TR,),
        in_specs=[row(cp), row(1), full((1, cp)), full((1, cp)),
                  full((cp, hidden)), full((1, hidden)),
                  full((hidden, cp)), full((1, cp))],
        out_specs=row(cp),
        out_shape=jax.ShapeDtypeStruct((R, cp), jnp.float32),
        compiler_params=_parallel(1),
    )(p.reshape(R, cp).astype(jnp.float32), p_mask.reshape(R, 1).astype(jnp.float32),
      prm["ln"]["g"].reshape(1, cp).astype(jnp.float32),
      prm["ln"]["b"].reshape(1, cp).astype(jnp.float32),
      prm["l1"]["w"].astype(jnp.bfloat16), prm["l1"]["b"].reshape(1, hidden).astype(jnp.float32),
      prm["l2"]["w"].astype(jnp.bfloat16), prm["l2"]["b"].reshape(1, cp).astype(jnp.float32))
    return out.reshape(B, N, N, cp)


# =============================================================================
# Structure transition (3 linears + residual + LN), fully fused
# =============================================================================

def _transition_kernel(s_ref, w1_ref, b1_ref, w2_ref, b2_ref, w3_ref, b3_ref,
                       g_ref, be_ref, o_ref, *, eps):
    s = s_ref[...]
    h = jnp.maximum(jnp.dot(s.astype(jnp.bfloat16), w1_ref[...],
                            preferred_element_type=jnp.float32) + b1_ref[...], 0.0)
    h = jnp.maximum(jnp.dot(h.astype(jnp.bfloat16), w2_ref[...],
                            preferred_element_type=jnp.float32) + b2_ref[...], 0.0)
    h = jnp.dot(h.astype(jnp.bfloat16), w3_ref[...],
                preferred_element_type=jnp.float32) + b3_ref[...]
    x = s + h
    mu = jnp.mean(x, axis=-1, keepdims=True)
    var = jnp.mean((x - mu) ** 2, axis=-1, keepdims=True)
    o_ref[...] = (x - mu) * lax.rsqrt(var + eps) * g_ref[...] + be_ref[...]


def transition_block(prm, s):
    B, N, cs = s.shape
    R = B * N
    TR = _pick_row_tile(R)
    row = lambda w: pl.BlockSpec((TR, w), lambda i: (i, 0))
    full = lambda shp: pl.BlockSpec(shp, lambda i: (0,) * len(shp))
    out = pl.pallas_call(
        functools.partial(_transition_kernel, eps=_EPS),
        grid=(R // TR,),
        in_specs=[row(cs),
                  full((cs, cs)), full((1, cs)),
                  full((cs, cs)), full((1, cs)),
                  full((cs, cs)), full((1, cs)),
                  full((1, cs)), full((1, cs))],
        out_specs=row(cs),
        out_shape=jax.ShapeDtypeStruct((R, cs), jnp.float32),
        compiler_params=_parallel(1),
    )(s.reshape(R, cs).astype(jnp.float32),
      prm["l1"]["w"].astype(jnp.bfloat16), prm["l1"]["b"].reshape(1, cs).astype(jnp.float32),
      prm["l2"]["w"].astype(jnp.bfloat16), prm["l2"]["b"].reshape(1, cs).astype(jnp.float32),
      prm["l3"]["w"].astype(jnp.bfloat16), prm["l3"]["b"].reshape(1, cs).astype(jnp.float32),
      prm["ln"]["g"].reshape(1, cs).astype(jnp.float32),
      prm["ln"]["b"].reshape(1, cs).astype(jnp.float32))
    return out.reshape(B, N, cs)


# =============================================================================
# Invariant Point Attention: one fused per-batch attention kernel
# =============================================================================

def _ipa_attn_kernel(q_ref, k_ref, v_ref, qp_ref, kp_ref, vp_ref, bias_ref, z_ref,
                     o_ref, opt_ref, opair_ref, *, h, c, pq, pv, cz):
    scale_qk = math.sqrt(1.0 / (3.0 * c))
    z = z_ref[0]                                    # [N, N, cz]
    pdim = pq * 3
    vdim = pv * 3
    for hh in range(h):
        q = q_ref[0, :, hh * c:(hh + 1) * c]
        k = k_ref[0, :, hh * c:(hh + 1) * c]
        v = v_ref[0, :, hh * c:(hh + 1) * c]
        qp = qp_ref[0, :, hh * pdim:(hh + 1) * pdim]
        kp = kp_ref[0, :, hh * pdim:(hh + 1) * pdim]
        vp = vp_ref[0, :, hh * vdim:(hh + 1) * vdim]
        b2 = bias_ref[0, :, :, hh]                  # [N, N] (pair bias + mask bias)

        logits = lax.dot_general(q.astype(jnp.bfloat16), k.astype(jnp.bfloat16),
                                 (((1,), (1,)), ((), ())),
                                 preferred_element_type=jnp.float32) * scale_qk
        # point-attention term: -sum_p ||q'_p - k'_p||^2 with the head weight
        # already folded into q'/k' by the wrapper.  Expanded so the cross term
        # runs on the MXU.
        q_sq = jnp.sum(qp * qp, axis=-1, keepdims=True)                      # [N, 1]
        ones_row = jnp.ones((1, pdim), jnp.float32)
        k_sq_row = lax.dot_general(ones_row, kp * kp, (((1,), (1,)), ((), ())),
                                   preferred_element_type=jnp.float32)       # [1, N]
        cross = lax.dot_general(qp, kp, (((1,), (1,)), ((), ())),
                                preferred_element_type=jnp.float32)          # [N, N]
        logits = logits + b2 - (q_sq + k_sq_row - 2.0 * cross)

        m = jnp.max(logits, axis=-1, keepdims=True)
        e = jnp.exp(logits - m)
        a = e / jnp.sum(e, axis=-1, keepdims=True)                           # [N, N] f32
        ab = a.astype(jnp.bfloat16)

        o_ref[0, :, hh * c:(hh + 1) * c] = jnp.dot(
            ab, v.astype(jnp.bfloat16), preferred_element_type=jnp.float32)
        opt_ref[0, :, hh * vdim:(hh + 1) * vdim] = jnp.dot(
            ab, vp.astype(jnp.bfloat16), preferred_element_type=jnp.float32)
        opair_ref[0, :, hh * cz:(hh + 1) * cz] = jnp.sum(a[:, :, None] * z, axis=1)


def pallas_ipa_attention(q, k, v, qp, kp, vp, bias, z, *, H, C, Pq, Pv, cz):
    B, N = q.shape[0], q.shape[1]
    HC = H * C

    def rspec(width):
        return pl.BlockSpec((1, N, width), lambda b: (b, 0, 0))

    o, o_pt, o_pair = pl.pallas_call(
        functools.partial(_ipa_attn_kernel, h=H, c=C, pq=Pq, pv=Pv, cz=cz),
        grid=(B,),
        in_specs=[rspec(HC), rspec(HC), rspec(HC),
                  rspec(H * Pq * 3), rspec(H * Pq * 3), rspec(H * Pv * 3),
                  pl.BlockSpec((1, N, N, H), lambda b: (b, 0, 0, 0)),
                  pl.BlockSpec((1, N, N, cz), lambda b: (b, 0, 0, 0))],
        out_specs=(rspec(HC), rspec(H * Pv * 3), rspec(H * cz)),
        out_shape=(jax.ShapeDtypeStruct((B, N, HC), jnp.float32),
                   jax.ShapeDtypeStruct((B, N, H * Pv * 3), jnp.float32),
                   jax.ShapeDtypeStruct((B, N, H * cz), jnp.float32)),
        compiler_params=_parallel(1),
    )(q.astype(jnp.float32), k.astype(jnp.float32), v.astype(jnp.float32),
      qp.astype(jnp.float32), kp.astype(jnp.float32), vp.astype(jnp.float32),
      bias.astype(jnp.float32), z.astype(jnp.float32))
    return o, o_pt, o_pair


# =============================================================================
# Embedding / frame helpers (glue, plain JAX)
# =============================================================================

def get_index_embedding(indices, embed_size, max_len):
    k = jnp.arange(embed_size // 2, dtype=jnp.float32)
    w = indices[..., None].astype(jnp.float32) * math.pi / (max_len ** (2.0 * k / embed_size))
    return jnp.concatenate([jnp.sin(w), jnp.cos(w)], axis=-1)


def get_time_embedding(timesteps, embed_dim, max_positions):
    half = embed_dim // 2
    emb = math.log(max_positions) / (half - 1)
    emb = jnp.exp(jnp.arange(half, dtype=jnp.float32) * -emb)
    emb = timesteps.astype(jnp.float32)[:, None] * emb[None, :]
    return jnp.concatenate([jnp.sin(emb), jnp.cos(emb)], axis=-1)


def rigid_apply(ts, pts):      # pts: [B, N, P, 3] local -> global
    return jnp.einsum("bnij,bnpj->bnpi", ts["rots"], pts) + ts["trans"][:, :, None, :]


def rigid_invert_apply(ts, pts):  # global -> local
    return jnp.einsum("bnji,bnpj->bnpi", ts["rots"], pts - ts["trans"][:, :, None, :])


def quat_update_to_rot(bcd):
    ones = jnp.ones(bcd.shape[:-1] + (1,), jnp.float32)
    quat = jnp.concatenate([ones, bcd], axis=-1)
    quat = quat / jnp.sqrt(jnp.sum(quat ** 2, axis=-1, keepdims=True))
    a, b, c, d = (quat[..., i] for i in range(4))
    return jnp.stack([
        jnp.stack([a * a + b * b - c * c - d * d, 2 * (b * c - a * d), 2 * (b * d + a * c)], -1),
        jnp.stack([2 * (b * c + a * d), a * a - b * b + c * c - d * d, 2 * (c * d - a * b)], -1),
        jnp.stack([2 * (b * d - a * c), 2 * (c * d + a * b), a * a - b * b - c * c + d * d], -1),
    ], axis=-2)


# =============================================================================
# Modules
# =============================================================================

def single_feature_net(prm, ts, timesteps, features, cfg):
    B, N = features["residue_mask"].shape
    m = features["residue_mask"][..., None]
    pos = get_index_embedding(features["residue_index"], cfg.c_pos_emb, cfg.max_n_res) * m
    chn = get_index_embedding(features["chain_index"], cfg.c_chain_emb, cfg.max_n_chain) * m
    tim = get_time_embedding(timesteps, cfg.c_timestep_emb, cfg.n_timestep)
    tim = jnp.broadcast_to(tim[:, None, :], (B, N, cfg.c_timestep_emb)) * m
    feat = jnp.concatenate(
        [pos, chn, tim, features["aatype"],
         features["fixed_sequence_mask"][..., None],
         features["interface_mask"][..., None]], axis=-1)
    return fused_linear(feat, prm["linear"]["w"], prm["linear"]["b"])


def pair_feature_net(prm, s, ts, timesteps, features, cfg):
    B, N, _ = s.shape
    mask = features["residue_mask"]
    p_mask = mask[:, :, None] * mask[:, None, :]

    # fused p_i / p_j projection (one matmul, lane-denser output)
    w_ij = jnp.concatenate([prm["linear_s_p_i"]["w"], prm["linear_s_p_j"]["w"]], axis=1)
    b_ij = jnp.concatenate([prm["linear_s_p_i"]["b"], prm["linear_s_p_j"]["b"]], axis=0)
    pij = fused_linear(s, w_ij, b_ij)
    p_i, p_j = pij[..., :cfg.c_p], pij[..., cfg.c_p:]
    p = p_i[:, :, None, :] + p_j[:, None, :, :]

    # relative position encoding (AF2 Alg. 4/5), fused mask + residual
    r = features["residue_index"].astype(jnp.float32)
    d = r[:, :, None] - r[:, None, :]
    v = jnp.arange(-cfg.relpos_k, cfg.relpos_k + 1, dtype=jnp.float32)
    oh = jax.nn.one_hot(jnp.argmin(jnp.abs(d[..., None] - v), axis=-1), v.shape[0], dtype=jnp.float32)
    p = fused_linear(oh, prm["linear_relpos"]["w"], prm["linear_relpos"]["b"],
                     mask=p_mask, residual=p)

    # template distogram of the (fixed) conditional structure, fused mask + residual + p_mask
    trans = ts["trans"]
    dist = jnp.sqrt(jnp.sum((trans[:, :, None, :] - trans[:, None, :, :]) ** 2, axis=-1) + 1e-10)
    bins = cfg.template_dist_min + cfg.template_dist_step * jnp.arange(cfg.template_dist_n_bin, dtype=jnp.float32)
    dgram = jax.nn.one_hot(jnp.argmin(jnp.abs(dist[..., None] - bins), axis=-1),
                           cfg.template_dist_n_bin, dtype=jnp.float32)
    fsm = features["fixed_structure_mask"].astype(jnp.float32)
    tfeat = jnp.concatenate([dgram, fsm[..., None]], axis=-1)
    p = fused_linear(tfeat, prm["linear_template"]["w"], prm["linear_template"]["b"],
                     mask=fsm, residual=p, post_mask=p_mask)
    return p


def pair_transform_net(prm_layers, p, features, cfg):
    mask = features["residue_mask"]
    p_mask = mask[:, :, None] * mask[:, None, :]
    for prm in prm_layers:
        if cfg.include_mul_update:
            p = trimul_block(prm["tri_mul_out"], p, p_mask, True, cfg)
            p = trimul_block(prm["tri_mul_in"], p, p_mask, False, cfg)
        if cfg.include_tri_att:
            p = triatt_block(prm["tri_att_start"], p, p_mask, True, cfg)
            p = triatt_block(prm["tri_att_end"], p, p_mask, False, cfg)
        p = pair_transition_block(prm["pair_transition"], p, p_mask, cfg)
    return p


def invariant_point_attention(prm, s, z, ts, mask, cfg):
    B, N, _ = s.shape
    H, C, Pq, Pv = cfg.n_head_ipa, cfg.c_hidden_ipa, cfg.n_qk_point, cfg.n_v_point
    cz = cfg.c_p
    HC = H * C

    # fused q / kv / q_pts / kv_pts projection (single MXU matmul)
    w_cat = jnp.concatenate([prm["q"]["w"], prm["kv"]["w"],
                             prm["q_pts"]["w"], prm["kv_pts"]["w"]], axis=1)
    b_cat = jnp.concatenate([prm["q"]["b"], prm["kv"]["b"],
                             prm["q_pts"]["b"], prm["kv_pts"]["b"]], axis=0)
    proj = fused_linear(s, w_cat, b_cat)
    o0 = 0
    q = proj[..., o0:o0 + HC]; o0 += HC
    kv = proj[..., o0:o0 + 2 * HC]; o0 += 2 * HC
    q_pts_flat = proj[..., o0:o0 + H * Pq * 3]; o0 += H * Pq * 3
    kv_pts_flat = proj[..., o0:]

    kv4 = kv.reshape(B, N, H, 2 * C)
    k = kv4[..., :C].reshape(B, N, HC)
    v = kv4[..., C:].reshape(B, N, HC)

    # points to global frame (glue)
    q_pts = jnp.stack(jnp.split(q_pts_flat, 3, axis=-1), axis=-1)       # [B,N,H*Pq,3]
    q_pts = rigid_apply(ts, q_pts).reshape(B, N, H, Pq, 3)
    kv_pts = jnp.stack(jnp.split(kv_pts_flat, 3, axis=-1), axis=-1)     # [B,N,H*(Pq+Pv),3]
    kv_pts = rigid_apply(ts, kv_pts).reshape(B, N, H, Pq + Pv, 3)
    k_pts, v_pts = kv_pts[..., :Pq, :], kv_pts[..., Pq:, :]

    # fold per-head softplus weight (and -0.5 factor) into the q/k points
    head_w = jax.nn.softplus(prm["head_weights"]) * math.sqrt(1.0 / (3.0 * (Pq * 9.0 / 2.0)))
    pt_scale = jnp.sqrt(0.5 * head_w)                                   # [H]
    q_pts_s = (q_pts * pt_scale[None, None, :, None, None]).reshape(B, N, H * Pq * 3)
    k_pts_s = (k_pts * pt_scale[None, None, :, None, None]).reshape(B, N, H * Pq * 3)
    v_pts_f = v_pts.reshape(B, N, H * Pv * 3)

    # pair bias: sqrt(1/3) folded into weights, mask bias fused as residual
    maskb = (mask[:, :, None] * mask[:, None, :] - 1.0) * 1e5           # [B,N,N]
    sq3 = math.sqrt(1.0 / 3.0)
    bias = fused_linear(z, prm["bias"]["w"] * sq3, prm["bias"]["b"] * sq3,
                        residual=maskb)                                  # [B,N,N,H]

    o, o_pt, o_pair = pallas_ipa_attention(q, k, v, q_pts_s, k_pts_s, v_pts_f,
                                           bias, z, H=H, C=C, Pq=Pq, Pv=Pv, cz=cz)

    o_pt = o_pt.reshape(B, N, H * Pv, 3)
    o_pt = rigid_invert_apply(ts, o_pt)
    o_pt_norm = jnp.sqrt(jnp.sum(o_pt ** 2, axis=-1) + 1e-8)            # [B,N,H*Pv]
    cat = jnp.concatenate([o, o_pt[..., 0], o_pt[..., 1], o_pt[..., 2],
                           o_pt_norm, o_pair], axis=-1)
    return fused_linear(cat, prm["out"]["w"], prm["out"]["b"])


def structure_layer(prm, s, p, ts, features, cfg):
    mask = features["residue_mask"].astype(jnp.float32)
    ipa_out = invariant_point_attention(prm["ipa"], s, p, ts, mask, cfg)
    s = pallas_add_ln(ipa_out, s, prm["ipa_ln"]["g"], prm["ipa_ln"]["b"])   # LN(s + ipa)
    for t in prm["transition"]:
        s = transition_block(t, s)
    upd = fused_linear(s, prm["bb_update"]["w"], prm["bb_update"]["b"])      # [B,N,6]
    upd_rot = quat_update_to_rot(upd[..., :3])
    upd_trans = upd[..., 3:]
    new_rots = jnp.einsum("bnij,bnjk->bnik", ts["rots"], upd_rot)
    new_trans = jnp.einsum("bnij,bnj->bni", ts["rots"], upd_trans) + ts["trans"]
    return s, p, {"rots": new_rots, "trans": new_trans}


def structure_net(prm_layers, s, p, ts, features, cfg):
    for _ in range(cfg.n_structure_block):
        for prm in prm_layers:
            s, p, ts = structure_layer(prm, s, p, ts, features, cfg)
    return s, ts


# =============================================================================
# Parameter init (deterministic, synthetic)
# =============================================================================

def _init_linear(key, d_in, d_out, scale=0.02):
    return {"w": scale * jax.random.normal(key, (d_in, d_out), dtype=jnp.float32),
            "b": jnp.zeros((d_out,), jnp.float32)}


def _init_layernorm(c):
    return {"g": jnp.ones((c,), jnp.float32), "b": jnp.zeros((c,), jnp.float32)}


def init_params(key, cfg):
    keys = iter(jax.random.split(key, 512))
    nk = lambda: next(keys)
    p = {}
    c_single_in = cfg.c_pos_emb + cfg.c_chain_emb + cfg.c_timestep_emb + 20 + 2
    p["single"] = {"linear": _init_linear(nk(), c_single_in, cfg.c_s)}
    p["pair"] = {
        "linear_s_p_i": _init_linear(nk(), cfg.c_s, cfg.c_p),
        "linear_s_p_j": _init_linear(nk(), cfg.c_s, cfg.c_p),
        "linear_relpos": _init_linear(nk(), 2 * cfg.relpos_k + 1, cfg.c_p),
        "linear_template": _init_linear(nk(), cfg.template_dist_n_bin + 1, cfg.c_p),
    }

    def init_tri_mul():
        return {"ln_in": _init_layernorm(cfg.c_p),
                "a_p": _init_linear(nk(), cfg.c_p, cfg.c_hidden_mul),
                "a_g": _init_linear(nk(), cfg.c_p, cfg.c_hidden_mul),
                "b_p": _init_linear(nk(), cfg.c_p, cfg.c_hidden_mul),
                "b_g": _init_linear(nk(), cfg.c_p, cfg.c_hidden_mul),
                "ln_out": _init_layernorm(cfg.c_hidden_mul),
                "z": _init_linear(nk(), cfg.c_hidden_mul, cfg.c_p),
                "g": _init_linear(nk(), cfg.c_p, cfg.c_p)}

    def init_tri_att():
        hc = cfg.n_head_tri * cfg.c_hidden_tri_att
        return {"ln": _init_layernorm(cfg.c_p),
                "q": _init_linear(nk(), cfg.c_p, hc),
                "k": _init_linear(nk(), cfg.c_p, hc),
                "v": _init_linear(nk(), cfg.c_p, hc),
                "bias": _init_linear(nk(), cfg.c_p, cfg.n_head_tri),
                "g": _init_linear(nk(), cfg.c_p, hc),
                "o": _init_linear(nk(), hc, cfg.c_p)}

    def init_pair_transition():
        return {"ln": _init_layernorm(cfg.c_p),
                "l1": _init_linear(nk(), cfg.c_p, cfg.c_p * cfg.pair_transition_n),
                "l2": _init_linear(nk(), cfg.c_p * cfg.pair_transition_n, cfg.c_p)}

    p["pair_transform"] = []
    for _ in range(cfg.n_pair_transform_layer):
        layer = {"pair_transition": init_pair_transition()}
        if cfg.include_mul_update:
            layer["tri_mul_out"] = init_tri_mul()
            layer["tri_mul_in"] = init_tri_mul()
        if cfg.include_tri_att:
            layer["tri_att_start"] = init_tri_att()
            layer["tri_att_end"] = init_tri_att()
        p["pair_transform"].append(layer)

    def init_ipa():
        H, C, Pq, Pv = cfg.n_head_ipa, cfg.c_hidden_ipa, cfg.n_qk_point, cfg.n_v_point
        return {"q": _init_linear(nk(), cfg.c_s, H * C),
                "kv": _init_linear(nk(), cfg.c_s, 2 * H * C),
                "q_pts": _init_linear(nk(), cfg.c_s, H * Pq * 3),
                "kv_pts": _init_linear(nk(), cfg.c_s, H * (Pq + Pv) * 3),
                "bias": _init_linear(nk(), cfg.c_p, H),
                "head_weights": jnp.zeros((H,), jnp.float32),
                "out": _init_linear(nk(), H * (cfg.c_p + C + Pv * 4), cfg.c_s)}

    def init_structure_layer():
        return {"ipa": init_ipa(),
                "ipa_ln": _init_layernorm(cfg.c_s),
                "transition": [{"l1": _init_linear(nk(), cfg.c_s, cfg.c_s),
                                "l2": _init_linear(nk(), cfg.c_s, cfg.c_s),
                                "l3": _init_linear(nk(), cfg.c_s, cfg.c_s),
                                "ln": _init_layernorm(cfg.c_s)}
                               for _ in range(cfg.n_structure_transition_layer)],
                "bb_update": _init_linear(nk(), cfg.c_s, 6)}

    p["structure"] = [init_structure_layer() for _ in range(cfg.n_structure_layer)]
    return p


# =============================================================================
# Denoiser forward
# =============================================================================

def make_denoiser(cfg, params):
    def forward(rots, trans, timesteps, features):
        trans0 = trans
        ts = {"rots": rots, "trans": trans * cfg.rescale}                 # scale_translation(rescale)
        s = single_feature_net(params["single"], ts, timesteps, features, cfg)
        p = pair_feature_net(params["pair"], s, ts, timesteps, features, cfg)
        if cfg.n_pair_transform_layer > 0:
            p = pair_transform_net(params["pair_transform"], p, features, cfg)
        s, ts = structure_net(params["structure"], s, p, ts, features, cfg)
        final_trans = ts["trans"] * (1.0 / cfg.rescale)                   # scale_translation(1/rescale)
        return {"z": trans0 - final_trans}
    return jax.jit(forward)


CFG = dict(
    c_s=32, c_p=16, n_timestep=100, rescale=10.0,
    c_pos_emb=16, c_chain_emb=8, c_timestep_emb=8,
    max_n_res=32, max_n_chain=4,
    relpos_k=4, template_dist_min=2.0, template_dist_step=0.5, template_dist_n_bin=8,
    n_pair_transform_layer=1, include_mul_update=True, include_tri_att=True,
    c_hidden_mul=8, c_hidden_tri_att=8, n_head_tri=2, tri_dropout=0.1,
    pair_transition_n=2,
    n_structure_layer=2, n_structure_block=1,
    c_hidden_ipa=8, n_head_ipa=2, n_qk_point=4, n_v_point=4,
    ipa_dropout=0.1, n_structure_transition_layer=1, structure_transition_dropout=0.1,
)


if __name__ == "__main__":
    cfg = SimpleNamespace(**CFG)
    B, N = 2, 8

    key = jax.random.PRNGKey(0)
    k_param, k_trans, k_aa, k_t = jax.random.split(key, 4)
    params = init_params(k_param, cfg)

    rots = jnp.broadcast_to(jnp.eye(3, dtype=jnp.float32), (B, N, 3, 3))
    trans = 4.0 * jax.random.normal(k_trans, (B, N, 3), dtype=jnp.float32)
    timesteps = jax.random.randint(k_t, (B,), 0, cfg.n_timestep)

    fixed_sequence_mask = (jnp.broadcast_to(jnp.arange(N), (B, N)) < 3).astype(jnp.float32)
    features = {
        "aatype": jax.nn.one_hot(jax.random.randint(k_aa, (B, N), 0, 20), 20, dtype=jnp.float32),
        "residue_mask": jnp.ones((B, N), jnp.float32),
        "residue_index": jnp.broadcast_to(jnp.arange(N, dtype=jnp.float32), (B, N)),
        "chain_index": jnp.concatenate(
            [jnp.zeros((B, N // 2), jnp.float32), jnp.ones((B, N - N // 2), jnp.float32)], axis=-1),
        "fixed_sequence_mask": fixed_sequence_mask,
        "fixed_structure_mask": fixed_sequence_mask[:, :, None] * fixed_sequence_mask[:, None, :],
        "interface_mask": jnp.zeros((B, N), jnp.float32),
    }

    fwd = make_denoiser(cfg, params)
    out = fwd(rots, trans, timesteps, features)
    z = jax.block_until_ready(out["z"])
    assert z.shape == (B, N, 3)
    assert bool(jnp.all(jnp.isfinite(z)))
    print("KERNEL_OK")
</pallas_src>

<mosaic_0001>
module attributes {stable_mosaic.version = 11 : i64} {
  func.func @_fused_linear_kernel(%arg0: i32, %arg1: memref<16x32xf32, #tpu.memory_space<vmem>>, %arg2: memref<32x32xbf16, #tpu.memory_space<vmem>>, %arg3: memref<1x32xf32, #tpu.memory_space<vmem>>, %arg4: memref<16x32xf32, #tpu.memory_space<vmem>>) attributes {dimension_semantics = [#tpu.dimension_semantics<parallel>], iteration_bounds = array<i64: 1>, scalar_prefetch = 0 : i64, scratch_operands = 0 : i64, tpu.core_type = #tpu.core_type<tc>, window_params = [{transform_indices = @transform_0, window_bounds = array<i64: 16, 32>}, {pipeline_mode = #tpu.pipeline_mode<synchronous>, transform_indices = @transform_1, window_bounds = array<i64: 32, 32>}, {pipeline_mode = #tpu.pipeline_mode<synchronous>, transform_indices = @transform_2, window_bounds = array<i64: 1, 32>}, {transform_indices = @transform_3, window_bounds = array<i64: 16, 32>}]} {
    %c0 = arith.constant 0 : index
    %c0_0 = arith.constant 0 : index
    %0 = vector.load %arg1[%c0, %c0_0] : memref<16x32xf32, #tpu.memory_space<vmem>>, vector<16x32xf32>
    %c0_1 = arith.constant 0 : index
    %c0_2 = arith.constant 0 : index
    %1 = vector.load %arg2[%c0_1, %c0_2] : memref<32x32xbf16, #tpu.memory_space<vmem>>, vector<32x32xbf16>
    %c0_3 = arith.constant 0 : index
    %c0_4 = arith.constant 0 : index
    %2 = vector.load %arg3[%c0_3, %c0_4] : memref<1x32xf32, #tpu.memory_space<vmem>>, vector<1x32xf32>
    %3 = arith.truncf %0 : vector<16x32xf32> to vector<16x32xbf16>
    %cst = arith.constant dense<0.000000e+00> : vector<16x32xf32>
    %4 = tpu.matmul %3, %1, %cst {dimension_numbers = #tpu.dot_dimension_numbers<[1], [0], [0], [1], [0, 0, 1, 1], [], []>} : vector<16x32xbf16>, vector<32x32xbf16>, vector<16x32xf32> -> vector<16x32xf32>
    %5 = vector.broadcast %2 : vector<1x32xf32> to vector<16x32xf32>
    %6 = arith.addf %4, %5 : vector<16x32xf32>
    %c0_5 = arith.constant 0 : index
    %c0_6 = arith.constant 0 : index
    %7 = vector.load %arg4[%c0_5, %c0_6] : memref<16x32xf32, #tpu.memory_space<vmem>>, vector<16x32xf32>
    tpu.vector_store %arg4[%c0_5, %c0_6], %6 {strides = array<i32>} : memref<16x32xf32, #tpu.memory_space<vmem>>, vector<16x32xf32>,
    return
  }
  func.func @transform_0(%arg0: i32) -> (i32, i32) {
    %c0_i32 = arith.constant 0 : i32
    %c0_i32_0 = arith.constant 0 : i32
    return %arg0, %c0_i32 : i32, i32
  }
  func.func @transform_1(%arg0: i32) -> (i32, i32) {
    %c0_i32 = arith.constant 0 : i32
    %c0_i32_0 = arith.constant 0 : i32
    %c0_i32_1 = arith.constant 0 : i32
    return %c0_i32, %c0_i32_0 : i32, i32
  }
  func.func @transform_2(%arg0: i32) -> (i32, i32) {
    %c0_i32 = arith.constant 0 : i32
    %c0_i32_0 = arith.constant 0 : i32
    %c0_i32_1 = arith.constant 0 : i32
    return %c0_i32, %c0_i32_0 : i32, i32
  }
  func.func @transform_3(%arg0: i32) -> (i32, i32) {
    %c0_i32 = arith.constant 0 : i32
    %c0_i32_0 = arith.constant 0 : i32
    return %arg0, %c0_i32 : i32, i32
  }
}

module attributes {stable_mosaic.version = 11 : i64} {
  func.func @_fused_linear_kernel(%arg0: i32, %arg1: memref<16x54xf32, #tpu.memory_space<vmem>>, %arg2: memref<54x32xbf16, #tpu.memory_space<vmem>>, %arg3: memref<1x32xf32, #tpu.memory_space<vmem>>, %arg4: memref<16x32xf32, #tpu.memory_space<vmem>>) attributes {dimension_semantics = [#tpu.dimension_semantics<parallel>], iteration_bounds = array<i64: 1>, scalar_prefetch = 0 : i64, scratch_operands = 0 : i64, tpu.core_type = #tpu.core_type<tc>, window_params = [{transform_indices = @transform_0, window_bounds = array<i64: 16, 54>}, {pipeline_mode = #tpu.pipeline_mode<synchronous>, transform_indices = @transform_1, window_bounds = array<i64: 54, 32>}, {pipeline_mode = #tpu.pipeline_mode<synchronous>, transform_indices = @transform_2, window_bounds = array<i64: 1, 32>}, {transform_indices = @transform_3, window_bounds = array<i64: 16, 32>}]} {
    %c0 = arith.constant 0 : index
    %c0_0 = arith.constant 0 : index
    %0 = vector.load %arg1[%c0, %c0_0] : memref<16x54xf32, #tpu.memory_space<vmem>>, vector<16x54xf32>
    %c0_1 = arith.constant 0 : index
    %c0_2 = arith.constant 0 : index
    %1 = vector.load %arg2[%c0_1, %c0_2] : memref<54x32xbf16, #tpu.memory_space<vmem>>, vector<54x32xbf16>
    %c0_3 = arith.constant 0 : index
    %c0_4 = arith.constant 0 : index
    %2 = vector.load %arg3[%c0_3, %c0_4] : memref<1x32xf32, #tpu.memory_space<vmem>>, vector<1x32xf32>
    %3 = arith.truncf %0 : vector<16x54xf32> to vector<16x54xbf16>
    %cst = arith.constant dense<0.000000e+00> : vector<16x32xf32>
    %4 = tpu.matmul %3, %1, %cst {dimension_numbers = #tpu.dot_dimension_numbers<[1], [0], [0], [1], [0, 0, 1, 1], [], []>} : vector<16x54xbf16>, vector<54x32xbf16>, vector<16x32xf32> -> vector<16x32xf32>
    %5 = vector.broadcast %2 : vector<1x32xf32> to vector<16x32xf32>
    %6 = arith.addf %4, %5 : vector<16x32xf32>
    %c0_5 = arith.constant 0 : index
    %c0_6 = arith.constant 0 : index
    %7 = vector.load %arg4[%c0_5, %c0_6] : memref<16x32xf32, #tpu.memory_space<vmem>>, vector<16x32xf32>
    tpu.vector_store %arg4[%c0_5, %c0_6], %6 {strides = array<i32>} : memref<16x32xf32, #tpu.memory_space<vmem>>, vector<16x32xf32>,
    return
  }
  func.func @transform_0(%arg0: i32) -> (i32, i32) {
    %c0_i32 = arith.constant 0 : i32
    %c0_i32_0 = arith.constant 0 : i32
    return %arg0, %c0_i32 : i32, i32
  }
  func.func @transform_1(%arg0: i32) -> (i32, i32) {
    %c0_i32 = arith.constant 0 : i32
    %c0_i32_0 = arith.constant 0 : i32
    %c0_i32_1 = arith.constant 0 : i32
    return %c0_i32, %c0_i32_0 : i32, i32
  }
  func.func @transform_2(%arg0: i32) -> (i32, i32) {
    %c0_i32 = arith.constant 0 : i32
    %c0_i32_0 = arith.constant 0 : i32
    %c0_i32_1 = arith.constant 0 : i32
    return %c0_i32, %c0_i32_0 : i32, i32
  }
  func.func @transform_3(%arg0: i32) -> (i32, i32) {
    %c0_i32 = arith.constant 0 : i32
    %c0_i32_0 = arith.constant 0 : i32
    return %arg0, %c0_i32 : i32, i32
  }
}

module attributes {stable_mosaic.version = 11 : i64} {
  func.func @_fused_linear_kernel(%arg0: i32, %arg1: memref<128x9xf32, #tpu.memory_space<vmem>>, %arg2: memref<9x16xbf16, #tpu.memory_space<vmem>>, %arg3: memref<1x16xf32, #tpu.memory_space<vmem>>, %arg4: memref<128x1xf32, #tpu.memory_space<vmem>>, %arg5: memref<128x16xf32, #tpu.memory_space<vmem>>, %arg6: memref<128x16xf32, #tpu.memory_space<vmem>>) attributes {dimension_semantics = [#tpu.dimension_semantics<parallel>], iteration_bounds = array<i64: 1>, scalar_prefetch = 0 : i64, scratch_operands = 0 : i64, tpu.core_type = #tpu.core_type<tc>, window_params = [{transform_indices = @transform_0, window_bounds = array<i64: 128, 9>}, {pipeline_mode = #tpu.pipeline_mode<synchronous>, transform_indices = @transform_1, window_bounds = array<i64: 9, 16>}, {pipeline_mode = #tpu.pipeline_mode<synchronous>, transform_indices = @transform_2, window_bounds = array<i64: 1, 16>}, {transform_indices = @transform_3, window_bounds = array<i64: 128, 1>}, {transform_indices = @transform_4, window_bounds = array<i64: 128, 16>}, {transform_indices = @transform_5, window_bounds = array<i64: 128, 16>}]} {
    %c0 = arith.constant 0 : index
    %c0_0 = arith.constant 0 : index
    %0 = vector.load %arg1[%c0, %c0_0] : memref<128x9xf32, #tpu.memory_space<vmem>>, vector<128x9xf32>
    %c0_1 = arith.constant 0 : index
    %c0_2 = arith.constant 0 : index
    %1 = vector.load %arg2[%c0_1, %c0_2] : memref<9x16xbf16, #tpu.memory_space<vmem>>, vector<9x16xbf16>
    %c0_3 = arith.constant 0 : index
    %c0_4 = arith.constant 0 : index
    %2 = vector.load %arg3[%c0_3, %c0_4] : memref<1x16xf32, #tpu.memory_space<vmem>>, vector<1x16xf32>
    %3 = arith.truncf %0 : vector<128x9xf32> to vector<128x9xbf16>
    %cst = arith.constant dense<0.000000e+00> : vector<128x16xf32>
    %4 = tpu.matmul %3, %1, %cst {dimension_numbers = #tpu.dot_dimension_numbers<[1], [0], [0], [1], [0, 0, 1, 1], [], []>} : vector<128x9xbf16>, vector<9x16xbf16>, vector<128x16xf32> -> vector<128x16xf32>
    %5 = vector.broadcast %2 : vector<1x16xf32> to vector<128x16xf32>
    %6 = arith.addf %4, %5 : vector<128x16xf32>
    %c0_5 = arith.constant 0 : index
    %c0_6 = arith.constant 0 : index
    %7 = vector.load %arg4[%c0_5, %c0_6] : memref<128x1xf32, #tpu.memory_space<vmem>>, vector<128x1xf32>
    %8 = vector.broadcast %7 : vector<128x1xf32> to vector<128x16xf32>
    %9 = arith.mulf %6, %8 : vector<128x16xf32>
    %c0_7 = arith.constant 0 : index
    %c0_8 = arith.constant 0 : index
    %10 = vector.load %arg5[%c0_7, %c0_8] : memref<128x16xf32, #tpu.memory_space<vmem>>, vector<128x16xf32>
    %11 = arith.addf %9, %10 : vector<128x16xf32>
    %c0_9 = arith.constant 0 : index
    %c0_10 = arith.constant 0 : index
    %12 = vector.load %arg6[%c0_9, %c0_10] : memref<128x16xf32, #tpu.memory_space<vmem>>, vector<128x16xf32>
    tpu.vector_store %arg6[%c0_9, %c0_10], %11 {strides = array<i32>} : memref<128x16xf32, #tpu.memory_space<vmem>>, vector<128x16xf32>,
    return
  }
  func.func @transform_0(%arg0: i32) -> (i32, i32) {
    %c0_i32 = arith.constant 0 : i32
    %c0_i32_0 = arith.constant 0 : i32
    return %arg0, %c0_i32 : i32, i32
  }
  func.func @transform_1(%arg0: i32) -> (i32, i32) {
    %c0_i32 = arith.constant 0 : i32
    %c0_i32_0 = arith.constant 0 : i32
    %c0_i32_1 = arith.constant 0 : i32
    return %c0_i32, %c0_i32_0 : i32, i32
  }
  func.func @transform_2(%arg0: i32) -> (i32, i32) {
    %c0_i32 = arith.constant 0 : i32
    %c0_i32_0 = arith.constant 0 : i32
    %c0_i32_1 = arith.constant 0 : i32
    return %c0_i32, %c0_i32_0 : i32, i32
  }
  func.func @transform_3(%arg0: i32) -> (i32, i32) {
    %c0_i32 = arith.constant 0 : i32
    %c0_i32_0 = arith.constant 0 : i32
    return %arg0, %c0_i32 : i32, i32
  }
  func.func @transform_4(%arg0: i32) -> (i32, i32) {
    %c0_i32 = arith.constant 0 : i32
    %c0_i32_0 = arith.constant 0 : i32
    return %arg0, %c0_i32 : i32, i32
  }
  func.func @transform_5(%arg0: i32) -> (i32, i32) {
    %c0_i32 = arith.constant 0 : i32
    %c0_i32_0 = arith.constant 0 : i32
    return %arg0, %c0_i32 : i32, i32
  }
}

module attributes {stable_mosaic.version = 11 : i64} {
  func.func @_fused_linear_kernel(%arg0: i32, %arg1: memref<128x9xf32, #tpu.memory_space<vmem>>, %arg2: memref<9x16xbf16, #tpu.memory_space<vmem>>, %arg3: memref<1x16xf32, #tpu.memory_space<vmem>>, %arg4: memref<128x1xf32, #tpu.memory_space<vmem>>, %arg5: memref<128x16xf32, #tpu.memory_space<vmem>>, %arg6: memref<128x1xf32, #tpu.memory_space<vmem>>, %arg7: memref<128x16xf32, #tpu.memory_space<vmem>>) attributes {dimension_semantics = [#tpu.dimension_semantics<parallel>], iteration_bounds = array<i64: 1>, scalar_prefetch = 0 : i64, scratch_operands = 0 : i64, tpu.core_type = #tpu.core_type<tc>, window_params = [{transform_indices = @transform_0, window_bounds = array<i64: 128, 9>}, {pipeline_mode = #tpu.pipeline_mode<synchronous>, transform_indices = @transform_1, window_bounds = array<i64: 9, 16>}, {pipeline_mode = #tpu.pipeline_mode<synchronous>, transform_indices = @transform_2, window_bounds = array<i64: 1, 16>}, {transform_indices = @transform_3, window_bounds = array<i64: 128, 1>}, {transform_indices = @transform_4, window_bounds = array<i64: 128, 16>}, {transform_indices = @transform_5, window_bounds = array<i64: 128, 1>}, {transform_indices = @transform_6, window_bounds = array<i64: 128, 16>}]} {
    %c0 = arith.constant 0 : index
    %c0_0 = arith.constant 0 : index
    %0 = vector.load %arg1[%c0, %c0_0] : memref<128x9xf32, #tpu.memory_space<vmem>>, vector<128x9xf32>
    %c0_1 = arith.constant 0 : index
    %c0_2 = arith.constant 0 : index
    %1 = vector.load %arg2[%c0_1, %c0_2] : memref<9x16xbf16, #tpu.memory_space<vmem>>, vector<9x16xbf16>
    %c0_3 = arith.constant 0 : index
    %c0_4 = arith.constant 0 : index
    %2 = vector.load %arg3[%c0_3, %c0_4] : memref<1x16xf32, #tpu.memory_space<vmem>>, vector<1x16xf32>
    %3 = arith.truncf %0 : vector<128x9xf32> to vector<128x9xbf16>
    %cst = arith.constant dense<0.000000e+00> : vector<128x16xf32>
    %4 = tpu.matmul %3, %1, %cst {dimension_numbers = #tpu.dot_dimension_numbers<[1], [0], [0], [1], [0, 0, 1, 1], [], []>} : vector<128x9xbf16>, vector<9x16xbf16>, vector<128x16xf32> -> vector<128x16xf32>
    %5 = vector.broadcast %2 : vector<1x16xf32> to vector<128x16xf32>
    %6 = arith.addf %4, %5 : vector<128x16xf32>
    %c0_5 = arith.constant 0 : index
    %c0_6 = arith.constant 0 : index
    %7 = vector.load %arg4[%c0_5, %c0_6] : memref<128x1xf32, #tpu.memory_space<vmem>>, vector<128x1xf32>
    %8 = vector.broadcast %7 : vector<128x1xf32> to vector<128x16xf32>
    %9 = arith.mulf %6, %8 : vector<128x16xf32>
    %c0_7 = arith.constant 0 : index
    %c0_8 = arith.constant 0 : index
    %10 = vector.load %arg5[%c0_7, %c0_8] : memref<128x16xf32, #tpu.memory_space<vmem>>, vector<128x16xf32>
    %11 = arith.addf %9, %10 : vector<128x16xf32>
    %c0_9 = arith.constant 0 : index
    %c0_10 = arith.constant 0 : index
    %12 = vector.load %arg6[%c0_9, %c0_10] : memref<128x1xf32, #tpu.memory_space<vmem>>, vector<128x1xf32>
    %13 = vector.broadcast %12 : vector<128x1xf32> to vector<128x16xf32>
    %14 = arith.mulf %11, %13 : vector<128x16xf32>
    %c0_11 = arith.constant 0 : index
    %c0_12 = arith.constant 0 : index
    %15 = vector.load %arg7[%c0_11, %c0_12] : memref<128x16xf32, #tpu.memory_space<vmem>>, vector<128x16xf32>
    tpu.vector_store %arg7[%c0_11, %c0_12], %14 {strides = array<i32>} : memref<128x16xf32, #tpu.memory_space<vmem>>, vector<128x16xf32>,
    return
  }
  func.func @transform_0(%arg0: i32) -> (i32, i32) {
    %c0_i32 = arith.constant 0 : i32
    %c0_i32_0 = arith.constant 0 : i32
    return %arg0, %c0_i32 : i32, i32
  }
  func.func @transform_1(%arg0: i32) -> (i32, i32) {
    %c0_i32 = arith.constant 0 : i32
    %c0_i32_0 = arith.constant 0 : i32
    %c0_i32_1 = arith.constant 0 : i32
    return %c0_i32, %c0_i32_0 : i32, i32
  }
  func.func @transform_2(%arg0: i32) -> (i32, i32) {
    %c0_i32 = arith.constant 0 : i32
    %c0_i32_0 = arith.constant 0 : i32
    %c0_i32_1 = arith.constant 0 : i32
    return %c0_i32, %c0_i32_0 : i32, i32
  }
  func.func @transform_3(%arg0: i32) -> (i32, i32) {
    %c0_i32 = arith.constant 0 : i32
    %c0_i32_0 = arith.constant 0 : i32
    return %arg0, %c0_i32 : i32, i32
  }
  func.func @transform_4(%arg0: i32) -> (i32, i32) {
    %c0_i32 = arith.constant 0 : i32
    %c0_i32_0 = arith.constant 0 : i32
    return %arg0, %c0_i32 : i32, i32
  }
  func.func @transform_5(%arg0: i32) -> (i32, i32) {
    %c0_i32 = arith.constant 0 : i32
    %c0_i32_0 = arith.constant 0 : i32
    return %arg0, %c0_i32 : i32, i32
  }
  func.func @transform_6(%arg0: i32) -> (i32, i32) {
    %c0_i32 = arith.constant 0 : i32
    %c0_i32_0 = arith.constant 0 : i32
    return %arg0, %c0_i32 : i32, i32
  }
}

module attributes {stable_mosaic.version = 11 : i64} {
  func.func @_trimul_proj_kernel(%arg0: i32, %arg1: memref<128x16xf32, #tpu.memory_space<vmem>>, %arg2: memref<128x1xf32, #tpu.memory_space<vmem>>, %arg3: memref<1x16xf32, #tpu.memory_space<vmem>>, %arg4: memref<1x16xf32, #tpu.memory_space<vmem>>, %arg5: memref<16x48xbf16, #tpu.memory_space<vmem>>, %arg6: memref<1x48xf32, #tpu.memory_space<vmem>>, %arg7: memref<128x8xf32, #tpu.memory_space<vmem>>, %arg8: memref<128x8xf32, #tpu.memory_space<vmem>>, %arg9: memref<128x16xf32, #tpu.memory_space<vmem>>) attributes {dimension_semantics = [#tpu.dimension_semantics<parallel>], iteration_bounds = array<i64: 1>, scalar_prefetch = 0 : i64, scratch_operands = 0 : i64, tpu.core_type = #tpu.core_type<tc>, window_params = [{transform_indices = @transform_0, window_bounds = array<i64: 128, 16>}, {transform_indices = @transform_1, window_bounds = array<i64: 128, 1>}, {pipeline_mode = #tpu.pipeline_mode<synchronous>, transform_indices = @transform_2, window_bounds = array<i64: 1, 16>}, {pipeline_mode = #tpu.pipeline_mode<synchronous>, transform_indices = @transform_3, window_bounds = array<i64: 1, 16>}, {pipeline_mode = #tpu.pipeline_mode<synchronous>, transform_indices = @transform_4, window_bounds = array<i64: 16, 48>}, {pipeline_mode = #tpu.pipeline_mode<synchronous>, transform_indices = @transform_5, window_bounds = array<i64: 1, 48>}, {transform_indices = @transform_6, window_bounds = array<i64: 128, 8>}, {transform_indices = @transform_7, window_bounds = array<i64: 128, 8>}, {transform_indices = @transform_8, window_bounds = array<i64: 128, 16>}]} {
    %c0 = arith.constant 0 : index
    %c0_0 = arith.constant 0 : index
    %0 = vector.load %arg1[%c0, %c0_0] : memref<128x16xf32, #tpu.memory_space<vmem>>, vector<128x16xf32>
    %cst = arith.constant dense<0.000000e+00> : vector<128xf32>
    %1 = vector.multi_reduction <add>, %0, %cst [1] : vector<128x16xf32> to vector<128xf32>
    %2 = vector.shape_cast %1 : vector<128xf32> to vector<128x1xf32>
    %cst_1 = arith.constant 1.600000e+01 : f32
    %3 = vector.broadcast %cst_1 : f32 to vector<128x1xf32>
    %4 = arith.divf %2, %3 : vector<128x1xf32>
    %5 = vector.broadcast %4 : vector<128x1xf32> to vector<128x16xf32>
    %6 = arith.subf %0, %5 : vector<128x16xf32>
    %7 = arith.mulf %6, %6 : vector<128x16xf32>
    %cst_2 = arith.constant dense<0.000000e+00> : vector<128xf32>
    %8 = vector.multi_reduction <add>, %7, %cst_2 [1] : vector<128x16xf32> to vector<128xf32>
    %9 = vector.shape_cast %8 : vector<128xf32> to vector<128x1xf32>
    %cst_3 = arith.constant 1.600000e+01 : f32
    %10 = vector.broadcast %cst_3 : f32 to vector<128x1xf32>
    %11 = arith.divf %9, %10 : vector<128x1xf32>
    %12 = vector.broadcast %4 : vector<128x1xf32> to vector<128x16xf32>
    %13 = arith.subf %0, %12 : vector<128x16xf32>
    %cst_4 = arith.constant 9.99999974E-6 : f32
    %14 = vector.broadcast %cst_4 : f32 to vector<128x1xf32>
    %15 = arith.addf %11, %14 : vector<128x1xf32>
    %16 = math.rsqrt %15 : vector<128x1xf32>
    %17 = vector.broadcast %16 : vector<128x1xf32> to vector<128x16xf32>
    %18 = arith.mulf %13, %17 : vector<128x16xf32>
    %c0_5 = arith.constant 0 : index
    %c0_6 = arith.constant 0 : index
    %19 = vector.load %arg3[%c0_5, %c0_6] : memref<1x16xf32, #tpu.memory_space<vmem>>, vector<1x16xf32>
    %20 = vector.broadcast %19 : vector<1x16xf32> to vector<128x16xf32>
    %21 = arith.mulf %18, %20 : vector<128x16xf32>
    %c0_7 = arith.constant 0 : index
    %c0_8 = arith.constant 0 : index
    %22 = vector.load %arg4[%c0_7, %c0_8] : memref<1x16xf32, #tpu.memory_space<vmem>>, vector<1x16xf32>
    %23 = vector.broadcast %22 : vector<1x16xf32> to vector<128x16xf32>
    %24 = arith.addf %21, %23 : vector<128x16xf32>
    %25 = arith.truncf %24 : vector<128x16xf32> to vector<128x16xbf16>
    %c0_9 = arith.constant 0 : index
    %c0_10 = arith.constant 0 : index
    %26 = vector.load %arg5[%c0_9, %c0_10] : memref<16x48xbf16, #tpu.memory_space<vmem>>, vector<16x48xbf16>
    %cst_11 = arith.constant dense<0.000000e+00> : vector<128x48xf32>
    %27 = tpu.matmul %25, %26, %cst_11 {dimension_numbers = #tpu.dot_dimension_numbers<[1], [0], [0], [1], [0, 0, 1, 1], [], []>} : vector<128x16xbf16>, vector<16x48xbf16>, vector<128x48xf32> -> vector<128x48xf32>
    %c0_12 = arith.constant 0 : index
    %c0_13 = arith.constant 0 : index
    %28 = vector.load %arg6[%c0_12, %c0_13] : memref<1x48xf32, #tpu.memory_space<vmem>>, vector<1x48xf32>
    %29 = vector.broadcast %28 : vector<1x48xf32> to vector<128x48xf32>
    %30 = arith.addf %27, %29 : vector<128x48xf32>
    %c0_14 = arith.constant 0 : index
    %c0_15 = arith.constant 0 : index
    %31 = vector.load %arg2[%c0_14, %c0_15] : memref<128x1xf32, #tpu.memory_space<vmem>>, vector<128x1xf32>
    %32 = vector.extract_strided_slice %30 {offsets = [0, 0], sizes = [128, 8], strides = [1, 1]} : vector<128x48xf32> to vector<128x8xf32>
    %33 = vector.broadcast %31 : vector<128x1xf32> to vector<128x8xf32>
    %34 = arith.mulf %33, %32 : vector<128x8xf32>
    %35 = vector.extract_strided_slice %30 {offsets = [0, 8], sizes = [128, 8], strides = [1, 1]} : vector<128x48xf32> to vector<128x8xf32>
    %36 = arith.negf %35 : vector<128x8xf32>
    %37 = math.exp %36 : vector<128x8xf32>
    %cst_16 = arith.constant 1.000000e+00 : f32
    %38 = vector.broadcast %cst_16 : f32 to vector<128x8xf32>
    %39 = arith.addf %38, %37 : vector<128x8xf32>
    %40 = arith.divf %38, %39 : vector<128x8xf32>
    %41 = arith.mulf %34, %40 : vector<128x8xf32>
    %c0_17 = arith.constant 0 : index
    %c0_18 = arith.constant 0 : index
    %42 = vector.load %arg7[%c0_17, %c0_18] : memref<128x8xf32, #tpu.memory_space<vmem>>, vector<128x8xf32>
    tpu.vector_store %arg7[%c0_17, %c0_18], %41 {strides = array<i32>} : memref<128x8xf32, #tpu.memory_space<vmem>>, vector<128x8xf32>,
    %43 = vector.extract_strided_slice %30 {offsets = [0, 16], sizes = [128, 8], strides = [1, 1]} : vector<128x48xf32> to vector<128x8xf32>
    %44 = vector.broadcast %31 : vector<128x1xf32> to vector<128x8xf32>
    %45 = arith.mulf %44, %43 : vector<128x8xf32>
    %46 = vector.extract_strided_slice %30 {offsets = [0, 24], sizes = [128, 8], strides = [1, 1]} : vector<128x48xf32> to vector<128x8xf32>
    %47 = arith.negf %46 : vector<128x8xf32>
    %48 = math.exp %47 : vector<128x8xf32>
    %cst_19 = arith.constant 1.000000e+00 : f32
    %49 = vector.broadcast %cst_19 : f32 to vector<128x8xf32>
    %50 = arith.addf %49, %48 : vector<128x8xf32>
    %51 = arith.divf %49, %50 : vector<128x8xf32>
    %52 = arith.mulf %45, %51 : vector<128x8xf32>
    %c0_20 = arith.constant 0 : index
    %c0_21 = arith.constant 0 : index
    %53 = vector.load %arg8[%c0_20, %c0_21] : memref<128x8xf32, #tpu.memory_space<vmem>>, vector<128x8xf32>
    tpu.vector_store %arg8[%c0_20, %c0_21], %52 {strides = array<i32>} : memref<128x8xf32, #tpu.memory_space<vmem>>, vector<128x8xf32>,
    %54 = vector.extract_strided_slice %30 {offsets = [0, 32], sizes = [128, 16], strides = [1, 1]} : vector<128x48xf32> to vector<128x16xf32>
    %55 = arith.negf %54 : vector<128x16xf32>
    %56 = math.exp %55 : vector<128x16xf32>
    %cst_22 = arith.constant 1.000000e+00 : f32
    %57 = vector.broadcast %cst_22 : f32 to vector<128x16xf32>
    %58 = arith.addf %57, %56 : vector<128x16xf32>
    %59 = arith.divf %57, %58 : vector<128x16xf32>
    %c0_23 = arith.constant 0 : index
    %c0_24 = arith.constant 0 : index
    %60 = vector.load %arg9[%c0_23, %c0_24] : memref<128x16xf32, #tpu.memory_space<vmem>>, vector<128x16xf32>
    tpu.vector_store %arg9[%c0_23, %c0_24], %59 {strides = array<i32>} : memref<128x16xf32, #tpu.memory_space<vmem>>, vector<128x16xf32>,
    return
  }
  func.func @transform_0(%arg0: i32) -> (i32, i32) {
    %c0_i32 = arith.constant 0 : i32
    %c0_i32_0 = arith.constant 0 : i32
    return %arg0, %c0_i32 : i32, i32
  }
  func.func @transform_1(%arg0: i32) -> (i32, i32) {
    %c0_i32 = arith.constant 0 : i32
    %c0_i32_0 = arith.constant 0 : i32
    return %arg0, %c0_i32 : i32, i32
  }
  func.func @transform_2(%arg0: i32) -> (i32, i32) {
    %c0_i32 = arith.constant 0 : i32
    %c0_i32_0 = arith.constant 0 : i32
    %c0_i32_1 = arith.constant 0 : i32
    return %c0_i32, %c0_i32_0 : i32, i32
  }
  func.func @transform_3(%arg0: i32) -> (i32, i32) {
    %c0_i32 = arith.constant 0 : i32
    %c0_i32_0 = arith.constant 0 : i32
    %c0_i32_1 = arith.constant 0 : i32
    return %c0_i32, %c0_i32_0 : i32, i32
  }
  func.func @transform_4(%arg0: i32) -> (i32, i32) {
    %c0_i32 = arith.constant 0 : i32
    %c0_i32_0 = arith.constant 0 : i32
    %c0_i32_1 = arith.constant 0 : i32
    return %c0_i32, %c0_i32_0 : i32, i32
  }
  func.func @transform_5(%arg0: i32) -> (i32, i32) {
    %c0_i32 = arith.constant 0 : i32
    %c0_i32_0 = arith.constant 0 : i32
    %c0_i32_1 = arith.constant 0 : i32
    return %c0_i32, %c0_i32_0 : i32, i32
  }
  func.func @transform_6(%arg0: i32) -> (i32, i32) {
    %c0_i32 = arith.constant 0 : i32
    %c0_i32_0 = arith.constant 0 : i32
    return %arg0, %c0_i32 : i32, i32
  }
  func.func @transform_7(%arg0: i32) -> (i32, i32) {
    %c0_i32 = arith.constant 0 : i32
    %c0_i32_0 = arith.constant 0 : i32
    return %arg0, %c0_i32 : i32, i32
  }
  func.func @transform_8(%arg0: i32) -> (i32, i32) {
    %c0_i32 = arith.constant 0 : i32
    %c0_i32_0 = arith.constant 0 : i32
    return %arg0, %c0_i32 : i32, i32
  }
}

module attributes {stable_mosaic.version = 11 : i64} {
  func.func @_trimul_mm_kernel(%arg0: i32, %arg1: memref<16x8x8xbf16, #tpu.memory_space<vmem>>, %arg2: memref<16x8x8xbf16, #tpu.memory_space<vmem>>, %arg3: memref<16x8x8xf32, #tpu.memory_space<vmem>>) attributes {dimension_semantics = [#tpu.dimension_semantics<parallel>], iteration_bounds = array<i64: 1>, scalar_prefetch = 0 : i64, scratch_operands = 0 : i64, tpu.core_type = #tpu.core_type<tc>, window_params = [{transform_indices = @transform_0, window_bounds = array<i64: 16, 8, 8>}, {transform_indices = @transform_1, window_bounds = array<i64: 16, 8, 8>}, {transform_indices = @transform_2, window_bounds = array<i64: 16, 8, 8>}]} {
    %c0 = arith.constant 0 : index
    %c0_0 = arith.constant 0 : index
    %c0_1 = arith.constant 0 : index
    %0 = vector.load %arg1[%c0, %c0_0, %c0_1] : memref<16x8x8xbf16, #tpu.memory_space<vmem>>, vector<1x8x8xbf16>
    %1 = vector.shape_cast %0 : vector<1x8x8xbf16> to vector<8x8xbf16>
    %c0_2 = arith.constant 0 : index
    %c0_3 = arith.constant 0 : index
    %c0_4 = arith.constant 0 : index
    %2 = vector.load %arg2[%c0_2, %c0_3, %c0_4] : memref<16x8x8xbf16, #tpu.memory_space<vmem>>, vector<1x8x8xbf16>
    %3 = vector.shape_cast %2 : vector<1x8x8xbf16> to vector<8x8xbf16>
    %cst = arith.constant dense<0.000000e+00> : vector<8x8xf32>
    %4 = tpu.matmul %1, %3, %cst {dimension_numbers = #tpu.dot_dimension_numbers<[1], [1], [0], [0], [0, 0, 1, 0], [], []>} : vector<8x8xbf16>, vector<8x8xbf16>, vector<8x8xf32> -> vector<8x8xf32>
    %c0_5 = arith.constant 0 : index
    %c0_6 = arith.constant 0 : index
    %c0_7 = arith.constant 0 : index
    %5 = vector.load %arg3[%c0_5, %c0_6, %c0_7] : memref<16x8x8xf32, #tpu.memory_space<vmem>>, vector<1x8x8xf32>
    %6 = vector.shape_cast %5 : vector<1x8x8xf32> to vector<8x8xf32>
    %7 = vector.shape_cast %4 : vector<8x8xf32> to vector<1x8x8xf32>
    tpu.vector_store %arg3[%c0_5, %c0_6, %c0_7], %7 {strides = array<i32>} : memref<16x8x8xf32, #tpu.memory_space<vmem>>, vector<1x8x8xf32>,
    %c1 = arith.constant 1 : index
    %c0_8 = arith.constant 0 : index
    %c0_9 = arith.constant 0 : index
    %8 = vector.load %arg1[%c1, %c0_8, %c0_9] : memref<16x8x8xbf16, #tpu.memory_space<vmem>>, vector<1x8x8xbf16>
    %9 = vector.shape_cast %8 : vector<1x8x8xbf16> to vector<8x8xbf16>
    %c1_10 = arith.constant 1 : index
    %c0_11 = arith.constant 0 : index
    %c0_12 = arith.constant 0 : index
    %10 = vector.load %arg2[%c1_10, %c0_11, %c0_12] : memref<16x8x8xbf16, #tpu.memory_space<vmem>>, vector<1x8x8xbf16>
    %11 = vector.shape_cast %10 : vector<1x8x8xbf16> to vector<8x8xbf16>
    %cst_13 = arith.constant dense<0.000000e+00> : vector<8x8xf32>
    %12 = tpu.matmul %9, %11, %cst_13 {dimension_numbers = #tpu.dot_dimension_numbers<[1], [1], [0], [0], [0, 0, 1, 0], [], []>} : vector<8x8xbf16>, vector<8x8xbf16>, vector<8x8xf32> -> vector<8x8xf32>
    %c1_14 = arith.constant 1 : index
    %c0_15 = arith.constant 0 : index
    %c0_16 = arith.constant 0 : index
    %13 = vector.load %arg3[%c1_14, %c0_15, %c0_16] : memref<16x8x8xf32, #tpu.memory_space<vmem>>, vector<1x8x8xf32>
    %14 = vector.shape_cast %13 : vector<1x8x8xf32> to vector<8x8xf32>
    %15 = vector.shape_cast %12 : vector<8x8xf32> to vector<1x8x8xf32>
    tpu.vector_store %arg3[%c1_14, %c0_15, %c0_16], %15 {strides = array<i32>} : memref<16x8x8xf32, #tpu.memory_space<vmem>>, vector<1x8x8xf32>,
    %c2 = arith.constant 2 : index
    %c0_17 = arith.constant 0 : index
    %c0_18 = arith.constant 0 : index
    %16 = vector.load %arg1[%c2, %c0_17, %c0_18] : memref<16x8x8xbf16, #tpu.memory_space<vmem>>, vector<1x8x8xbf16>
    %17 = vector.shape_cast %16 : vector<1x8x8xbf16> to vector<8x8xbf16>
    %c2_19 = arith.constant 2 : index
    %c0_20 = arith.constant 0 : index
    %c0_21 = arith.constant 0 : index
    %18 = vector.load %arg2[%c2_19, %c0_20, %c0_21] : memref<16x8x8xbf16, #tpu.memory_space<vmem>>, vector<1x8x8xbf16>
    %19 = vector.shape_cast %18 : vector<1x8x8xbf16> to vector<8x8xbf16>
    %cst_22 = arith.constant dense<0.000000e+00> : vector<8x8xf32>
    %20 = tpu.matmul %17, %19, %cst_22 {dimension_numbers = #tpu.dot_dimension_numbers<[1], [1], [0], [0], [0, 0, 1, 0], [], []>} : vector<8x8xbf16>, vector<8x8xbf16>, vector<8x8xf32> -> vector<8x8xf32>
    %c2_23 = arith.constant 2 : index
    %c0_24 = arith.constant 0 : index
    %c0_25 = arith.constant 0 : index
    %21 = vector.load %arg3[%c2_23, %c0_24, %c0_25] : memref<16x8x8xf32, #tpu.memory_space<vmem>>, vector<1x8x8xf32>
    %22 = vector.shape_cast %21 : vector<1x8x8xf32> to vector<8x8xf32>
    %23 = vector.shape_cast %20 : vector<8x8xf32> to vector<1x8x8xf32>
    tpu.vector_store %arg3[%c2_23, %c0_24, %c0_25], %23 {strides = array<i32>} : memref<16x8x8xf32, #tpu.memory_space<vmem>>, vector<1x8x8xf32>,
    %c3 = arith.constant 3 : index
    %c0_26 = arith.constant 0 : index
    %c0_27 = arith.constant 0 : index
    %24 = vector.load %arg1[%c3, %c0_26, %c0_27] : memref<16x8x8xbf16, #tpu.memory_space<vmem>>, vector<1x8x8xbf16>
    %25 = vector.shape_cast %24 : vector<1x8x8xbf16> to vector<8x8xbf16>
    %c3_28 = arith.constant 3 : index
    %c0_29 = arith.constant 0 : index
    %c0_30 = arith.constant 0 : index
    %26 = vector.load %arg2[%c3_28, %c0_29, %c0_30] : memref<16x8x8xbf16, #tpu.memory_space<vmem>>, vector<1x8x8xbf16>
    %27 = vector.shape_cast %26 : vector<1x8x8xbf16> to vector<8x8xbf16>
    %cst_31 = arith.constant dense<0.000000e+00> : vector<8x8xf32>
    %28 = tpu.matmul %25, %27, %cst_31 {dimension_numbers = #tpu.dot_dimension_numbers<[1], [1], [0], [0], [0, 0, 1, 0], [], []>} : vector<8x8xbf16>, vector<8x8xbf16>, vector<8x8xf32> -> vector<8x8xf32>
    %c3_32 = arith.constant 3 : index
    %c0_33 = arith.constant 0 : index
    %c0_34 = arith.constant 0 : index
    %29 = vector.load %arg3[%c3_32, %c0_33, %c0_34] : memref<16x8x8xf32, #tpu.memory_space<vmem>>, vector<1x8x8xf32>
    %30 = vector.shape_cast %29 : vector<1x8x8xf32> to vector<8x8xf32>
    %31 = vector.shape_cast %28 : vector<8x8xf32> to vector<1x8x8xf32>
    tpu.vector_store %arg3[%c3_32, %c0_33, %c0_34], %31 {strides = array<i32>} : memref<16x8x8xf32, #tpu.memory_space<vmem>>, vector<1x8x8xf32>,
    %c4 = arith.constant 4 : index
    %c0_35 = arith.constant 0 : index
    %c0_36 = arith.constant 0 : index
    %32 = vector.load %arg1[%c4, %c0_35, %c0_36] : memref<16x8x8xbf16, #tpu.memory_space<vmem>>, vector<1x8x8xbf16>
    %33 = vector.shape_cast %32 : vector<1x8x8xbf16> to vector<8x8xbf16>
    %c4_37 = arith.constant 4 : index
    %c0_38 = arith.constant 0 : index
    %c0_39 = arith.constant 0 : index
    %34 = vector.load %arg2[%c4_37, %c0_38, %c0_39] : memref<16x8x8xbf16, #tpu.memory_space<vmem>>, vector<1x8x8xbf16>
    %35 = vector.shape_cast %34 : vector<1x8x8xbf16> to vector<8x8xbf16>
    %cst_40 = arith.constant dense<0.000000e+00> : vector<8x8xf32>
    %36 = tpu.matmul %33, %35, %cst_40 {dimension_numbers = #tpu.dot_dimension_numbers<[1], [1], [0], [0], [0, 0, 1, 0], [], []>} : vector<8x8xbf16>, vector<8x8xbf16>, vector<8x8xf32> -> vector<8x8xf32>
    %c4_41 = arith.constant 4 : index
    %c0_42 = arith.constant 0 : index
    %c0_43 = arith.constant 0 : index
    %37 = vector.load %arg3[%c4_41, %c0_42, %c0_43] : memref<16x8x8xf32, #tpu.memory_space<vmem>>, vector<1x8x8xf32>
    %38 = vector.shape_cast %37 : vector<1x8x8xf32> to vector<8x8xf32>
    %39 = vector.shape_cast %36 : vector<8x8xf32> to vector<1x8x8xf32>
    tpu.vector_store %arg3[%c4_41, %c0_42, %c0_43], %39 {strides = array<i32>} : memref<16x8x8xf32, #tpu.memory_space<vmem>>, vector<1x8x8xf32>,
    %c5 = arith.constant 5 : index
    %c0_44 = arith.constant 0 : index
    %c0_45 = arith.constant 0 : index
    %40 = vector.load %arg1[%c5, %c0_44, %c0_45] : memref<16x8x8xbf16, #tpu.memory_space<vmem>>, vector<1x8x8xbf16>
    %41 = vector.shape_cast %40 : vector<1x8x8xbf16> to vector<8x8xbf16>
    %c5_46 = arith.constant 5 : index
    %c0_47 = arith.constant 0 : index
    %c0_48 = arith.constant 0 : index
    %42 = vector.load %arg2[%c5_46, %c0_47, %c0_48] : memref<16x8x8xbf16, #tpu.memory_space<vmem>>, vector<1x8x8xbf16>
    %43 = vector.shape_cast %42 : vector<1x8x8xbf16> to vector<8x8xbf16>
    %cst_49 = arith.constant dense<0.000000e+00> : vector<8x8xf32>
    %44 = tpu.matmul %41, %43, %cst_49 {dimension_numbers = #tpu.dot_dimension_numbers<[1], [1], [0], [0], [0, 0, 1, 0], [], []>} : vector<8x8xbf16>, vector<8x8xbf16>, vector<8x8xf32> -> vector<8x8xf32>
    %c5_50 = arith.constant 5 : index
    %c0_51 = arith.constant 0 : index
    %c0_52 = arith.constant 0 : index
    %45 = vector.load %arg3[%c5_50, %c0_51, %c0_52] : memref<16x8x8xf32, #tpu.memory_space<vmem>>, vector<1x8x8xf32>
    %46 = vector.shape_cast %45 : vector<1x8x8xf32> to vector<8x8xf32>
    %47 = vector.shape_cast %44 : vector<8x8xf32> to vector<1x8x8xf32>
    tpu.vector_store %arg3[%c5_50, %c0_51, %c0_52], %47 {strides = array<i32>} : memref<16x8x8xf32, #tpu.memory_space<vmem>>, vector<1x8x8xf32>,
    %c6 = arith.constant 6 : index
    %c0_53 = arith.constant 0 : index
    %c0_54 = arith.constant 0 : index
    %48 = vector.load %arg1[%c6, %c0_53, %c0_54] : memref<16x8x8xbf16, #tpu.memory_space<vmem>>, vector<1x8x8xbf16>
    %49 = vector.shape_cast %48 : vector<1x8x8xbf16> to vector<8x8xbf16>
    %c6_55 = arith.constant 6 : index
    %c0_56 = arith.constant 0 : index
    %c0_57 = arith.constant 0 : index
    %50 = vector.load %arg2[%c6_55, %c0_56, %c0_57] : memref<16x8x8xbf16, #tpu.memory_space<vmem>>, vector<1x8x8xbf16>
    %51 = vector.shape_cast %50 : vector<1x8x8xbf16> to vector<8x8xbf16>
    %cst_58 = arith.constant dense<0.000000e+00> : vector<8x8xf32>
    %52 = tpu.matmul %49, %51, %cst_58 {dimension_numbers = #tpu.dot_dimension_numbers<[1], [1], [0], [0], [0, 0, 1, 0], [], []>} : vector<8x8xbf16>, vector<8x8xbf16>, vector<8x8xf32> -> vector<8x8xf32>
    %c6_59 = arith.constant 6 : index
    %c0_60 = arith.constant 0 : index
    %c0_61 = arith.constant 0 : index
    %53 = vector.load %arg3[%c6_59, %c0_60, %c0_61] : memref<16x8x8xf32, #tpu.memory_space<vmem>>, vector<1x8x8xf32>
    %54 = vector.shape_cast %53 : vector<1x8x8xf32> to vector<8x8xf32>
    %55 = vector.shape_cast %52 : vector<8x8xf32> to vector<1x8x8xf32>
    tpu.vector_store %arg3[%c6_59, %c0_60, %c0_61], %55 {strides = array<i32>} : memref<16x8x8xf32, #tpu.memory_space<vmem>>, vector<1x8x8xf32>,
    %c7 = arith.constant 7 : index
    %c0_62 = arith.constant 0 : index
    %c0_63 = arith.constant 0 : index
    %56 = vector.load %arg1[%c7, %c0_62, %c0_63] : memref<16x8x8xbf16, #tpu.memory_space<vmem>>, vector<1x8x8xbf16>
    %57 = vector.shape_cast %56 : vector<1x8x8xbf16> to vector<8x8xbf16>
    %c7_64 = arith.constant 7 : index
    %c0_65 = arith.constant 0 : index
    %c0_66 = arith.constant 0 : index
    %58 = vector.load %arg2[%c7_64, %c0_65, %c0_66] : memref<16x8x8xbf16, #tpu.memory_space<vmem>>, vector<1x8x8xbf16>
    %59 = vector.shape_cast %58 : vector<1x8x8xbf16> to vector<8x8xbf16>
    %cst_67 = arith.constant dense<0.000000e+00> : vector<8x8xf32>
    %60 = tpu.matmul %57, %59, %cst_67 {dimension_numbers = #tpu.dot_dimension_numbers<[1], [1], [0], [0], [0, 0, 1, 0], [], []>} : vector<8x8xbf16>, vector<8x8xbf16>, vector<8x8xf32> -> vector<8x8xf32>
    %c7_68 = arith.constant 7 : index
    %c0_69 = arith.constant 0 : index
    %c0_70 = arith.constant 0 : index
    %61 = vector.load %arg3[%c7_68, %c0_69, %c0_70] : memref<16x8x8xf32, #tpu.memory_space<vmem>>, vector<1x8x8xf32>
    %62 = vector.shape_cast %61 : vector<1x8x8xf32> to vector<8x8xf32>
    %63 = vector.shape_cast %60 : vector<8x8xf32> to vector<1x8x8xf32>
    tpu.vector_store %arg3[%c7_68, %c0_69, %c0_70], %63 {strides = array<i32>} : memref<16x8x8xf32, #tpu.memory_space<vmem>>, vector<1x8x8xf32>,
    %c8 = arith.constant 8 : index
    %c0_71 = arith.constant 0 : index
    %c0_72 = arith.constant 0 : index
    %64 = vector.load %arg1[%c8, %c0_71, %c0_72] : memref<16x8x8xbf16, #tpu.memory_space<vmem>>, vector<1x8x8xbf16>
    %65 = vector.shape_cast %64 : vector<1x8x8xbf16> to vector<8x8xbf16>
    %c8_73 = arith.constant 8 : index
    %c0_74 = arith.constant 0 : index
    %c0_75 = arith.constant 0 : index
    %66 = vector.load %arg2[%c8_73, %c0_74, %c0_75] : memref<16x8x8xbf16, #tpu.memory_space<vmem>>, vector<1x8x8xbf16>
    %67 = vector.shape_cast %66 : vector<1x8x8xbf16> to vector<8x8xbf16>
    %cst_76 = arith.constant dense<0.000000e+00> : vector<8x8xf32>
    %68 = tpu.matmul %65, %67, %cst_76 {dimension_numbers = #tpu.dot_dimension_numbers<[1], [1], [0], [0], [0, 0, 1, 0], [], []>} : vector<8x8xbf16>, vector<8x8xbf16>, vector<8x8xf32> -> vector<8x8xf32>
    %c8_77 = arith.constant 8 : index
    %c0_78 = arith.constant 0 : index
    %c0_79 = arith.constant 0 : index
    %69 = vector.load %arg3[%c8_77, %c0_78, %c0_79] : memref<16x8x8xf32, #tpu.memory_space<vmem>>, vector<1x8x8xf32>
    %70 = vector.shape_cast %69 : vector<1x8x8xf32> to vector<8x8xf32>
    %71 = vector.shape_cast %68 : vector<8x8xf32> to vector<1x8x8xf32>
    tpu.vector_store %arg3[%c8_77, %c0_78, %c0_79], %71 {strides = array<i32>} : memref<16x8x8xf32, #tpu.memory_space<vmem>>, vector<1x8x8xf32>,
    %c9 = arith.constant 9 : index
    %c0_80 = arith.constant 0 : index
    %c0_81 = arith.constant 0 : index
    %72 = vector.load %arg1[%c9, %c0_80, %c0_81] : memref<16x8x8xbf16, #tpu.memory_space<vmem>>, vector<1x8x8xbf16>
    %73 = vector.shape_cast %72 : vector<1x8x8xbf16> to vector<8x8xbf16>
    %c9_82 = arith.constant 9 : index
    %c0_83 = arith.constant 0 : index
    %c0_84 = arith.constant 0 : index
    %74 = vector.load %arg2[%c9_82, %c0_83, %c0_84] : memref<16x8x8xbf16, #tpu.memory_space<vmem>>, vector<1x8x8xbf16>
    %75 = vector.shape_cast %74 : vector<1x8x8xbf16> to vector<8x8xbf16>
    %cst_85 = arith.constant dense<0.000000e+00> : vector<8x8xf32>
    %76 = tpu.matmul %73, %75, %cst_85 {dimension_numbers = #tpu.dot_dimension_numbers<[1], [1], [0], [0], [0, 0, 1, 0], [], []>} : vector<8x8xbf16>, vector<8x8xbf16>, vector<8x8xf32> -> vector<8x8xf32>
    %c9_86 = arith.constant 9 : index
    %c0_87 = arith.constant 0 : index
    %c0_88 = arith.constant 0 : index
    %77 = vector.load %arg3[%c9_86, %c0_87, %c0_88] : memref<16x8x8xf32, #tpu.memory_space<vmem>>, vector<1x8x8xf32>
    %78 = vector.shape_cast %77 : vector<1x8x8xf32> to vector<8x8xf32>
    %79 = vector.shape_cast %76 : vector<8x8xf32> to vector<1x8x8xf32>
    tpu.vector_store %arg3[%c9_86, %c0_87, %c0_88], %79 {strides = array<i32>} : memref<16x8x8xf32, #tpu.memory_space<vmem>>, vector<1x8x8xf32>,
    %c10 = arith.constant 10 : index
    %c0_89 = arith.constant 0 : index
    %c0_90 = arith.constant 0 : index
    %80 = vector.load %arg1[%c10, %c0_89, %c0_90] : memref<16x8x8xbf16, #tpu.memory_space<vmem>>, vector<1x8x8xbf16>
    %81 = vector.shape_cast %80 : vector<1x8x8xbf16> to vector<8x8xbf16>
    %c10_91 = arith.constant 10 : index
    %c0_92 = arith.constant 0 : index
    %c0_93 = arith.constant 0 : index
    %82 = vector.load %arg2[%c10_91, %c0_92, %c0_93] : memref<16x8x8xbf16, #tpu.memory_space<vmem>>, vector<1x8x8xbf16>
    %83 = vector.shape_cast %82 : vector<1x8x8xbf16> to vector<8x8xbf16>
    %cst_94 = arith.constant dense<0.000000e+00> : vector<8x8xf32>
    %84 = tpu.matmul %81, %83, %cst_94 {dimension_numbers = #tpu.dot_dimension_numbers<[1], [1], [0], [0], [0, 0, 1, 0], [], []>} : vector<8x8xbf16>, vector<8x8xbf16>, vector<8x8xf32> -> vector<8x8xf32>
    %c10_95 = arith.constant 10 : index
    %c0_96 = arith.constant 0 : index
    %c0_97 = arith.constant 0 : index
    %85 = vector.load %arg3[%c10_95, %c0_96, %c0_97] : memref<16x8x8xf32, #tpu.memory_space<vmem>>, vector<1x8x8xf32>
    %86 = vector.shape_cast %85 : vector<1x8x8xf32> to vector<8x8xf32>
    %87 = vector.shape_cast %84 : vector<8x8xf32> to vector<1x8x8xf32>
    tpu.vector_store %arg3[%c10_95, %c0_96, %c0_97], %87 {strides = array<i32>} : memref<16x8x8xf32, #tpu.memory_space<vmem>>, vector<1x8x8xf32>,
    %c11 = arith.constant 11 : index
    %c0_98 = arith.constant 0 : index
    %c0_99 = arith.constant 0 : index
    %88 = vector.load %arg1[%c11, %c0_98, %c0_99] : memref<16x8x8xbf16, #tpu.memory_space<vmem>>, vector<1x8x8xbf16>
    %89 = vector.shape_cast %88 : vector<1x8x8xbf16> to vector<8x8xbf16>
    %c11_100 = arith.constant 11 : index
    %c0_101 = arith.constant 0 : index
    %c0_102 = arith.constant 0 : index
    %90 = vector.load %arg2[%c11_100, %c0_101, %c0_102] : memref<16x8x8xbf16, #tpu.memory_space<vmem>>, vector<1x8x8xbf16>
    %91 = vector.shape_cast %90 : vector<1x8x8xbf16> to vector<8x8xbf16>
    %cst_103 = arith.constant dense<0.000000e+00> : vector<8x8xf32>
    %92 = tpu.matmul %89, %91, %cst_103 {dimension_numbers = #tpu.dot_dimension_numbers<[1], [1], [0], [0], [0, 0, 1, 0], [], []>} : vector<8x8xbf16>, vector<8x8xbf16>, vector<8x8xf32> -> vector<8x8xf32>
    %c11_104 = arith.constant 11 : index
    %c0_105 = arith.constant 0 : index
    %c0_106 = arith.constant 0 : index
    %93 = vector.load %arg3[%c11_104, %c0_105, %c0_106] : memref<16x8x8xf32, #tpu.memory_space<vmem>>, vector<1x8x8xf32>
    %94 = vector.shape_cast %93 : vector<1x8x8xf32> to vector<8x8xf32>
    %95 = vector.shape_cast %92 : vector<8x8xf32> to vector<1x8x8xf32>
    tpu.vector_store %arg3[%c11_104, %c0_105, %c0_106], %95 {strides = array<i32>} : memref<16x8x8xf32, #tpu.memory_space<vmem>>, vector<1x8x8xf32>,
    %c12 = arith.constant 12 : index
    %c0_107 = arith.constant 0 : index
    %c0_108 = arith.constant 0 : index
    %96 = vector.load %arg1[%c12, %c0_107, %c0_108] : memref<16x8x8xbf16, #tpu.memory_space<vmem>>, vector<1x8x8xbf16>
    %97 = vector.shape_cast %96 : vector<1x8x8xbf16> to vector<8x8xbf16>
    %c12_109 = arith.constant 12 : index
    %c0_110 = arith.constant 0 : index
    %c0_111 = arith.constant 0 : index
    %98 = vector.load %arg2[%c12_109, %c0_110, %c0_111] : memref<16x8x8xbf16, #tpu.memory_space<vmem>>, vector<1x8x8xbf16>
    %99 = vector.shape_cast %98 : vector<1x8x8xbf16> to vector<8x8xbf16>
    %cst_112 = arith.constant dense<0.000000e+00> : vector<8x8xf32>
    %100 = tpu.matmul %97, %99, %cst_112 {dimension_numbers = #tpu.dot_dimension_numbers<[1], [1], [0], [0], [0, 0, 1, 0], [], []>} : vector<8x8xbf16>, vector<8x8xbf16>, vector<8x8xf32> -> vector<8x8xf32>
    %c12_113 = arith.constant 12 : index
    %c0_114 = arith.constant 0 : index
    %c0_115 = arith.constant 0 : index
    %101 = vector.load %arg3[%c12_113, %c0_114, %c0_115] : memref<16x8x8xf32, #tpu.memory_space<vmem>>, vector<1x8x8xf32>
    %102 = vector.shape_cast %101 : vector<1x8x8xf32> to vector<8x8xf32>
    %103 = vector.shape_cast %100 : vector<8x8xf32> to vector<1x8x8xf32>
    tpu.vector_store %arg3[%c12_113, %c0_114, %c0_115], %103 {strides = array<i32>} : memref<16x8x8xf32, #tpu.memory_space<vmem>>, vector<1x8x8xf32>,
    %c13 = arith.constant 13 : index
    %c0_116 = arith.constant 0 : index
    %c0_117 = arith.constant 0 : index
    %104 = vector.load %arg1[%c13, %c0_116, %c0_117] : memref<16x8x8xbf16, #tpu.memory_space<vmem>>, vector<1x8x8xbf16>
    %105 = vector.shape_cast %104 : vector<1x8x8xbf16> to vector<8x8xbf16>
    %c13_118 = arith.constant 13 : index
    %c0_119 = arith.constant 0 : index
    %c0_120 = arith.constant 0 : index
    %106 = vector.load %arg2[%c13_118, %c0_119, %c0_120] : memref<16x8x8xbf16, #tpu.memory_space<vmem>>, vector<1x8x8xbf16>
    %107 = vector.shape_cast %106 : vector<1x8x8xbf16> to vector<8x8xbf16>
    %cst_121 = arith.constant dense<0.000000e+00> : vector<8x8xf32>
    %108 = tpu.matmul %105, %107, %cst_121 {dimension_numbers = #tpu.dot_dimension_numbers<[1], [1], [0], [0], [0, 0, 1, 0], [], []>} : vector<8x8xbf16>, vector<8x8xbf16>, vector<8x8xf32> -> vector<8x8xf32>
    %c13_122 = arith.constant 13 : index
    %c0_123 = arith.constant 0 : index
    %c0_124 = arith.constant 0 : index
    %109 = vector.load %arg3[%c13_122, %c0_123, %c0_124] : memref<16x8x8xf32, #tpu.memory_space<vmem>>, vector<1x8x8xf32>
    %110 = vector.shape_cast %109 : vector<1x8x8xf32> to vector<8x8xf32>
    %111 = vector.shape_cast %108 : vector<8x8xf32> to vector<1x8x8xf32>
    tpu.vector_store %arg3[%c13_122, %c0_123, %c0_124], %111 {strides = array<i32>} : memref<16x8x8xf32, #tpu.memory_space<vmem>>, vector<1x8x8xf32>,
    %c14 = arith.constant 14 : index
    %c0_125 = arith.constant 0 : index
    %c0_126 = arith.constant 0 : index
    %112 = vector.load %arg1[%c14, %c0_125, %c0_126] : memref<16x8x8xbf16, #tpu.memory_space<vmem>>, vector<1x8x8xbf16>
    %113 = vector.shape_cast %112 : vector<1x8x8xbf16> to vector<8x8xbf16>
    %c14_127 = arith.constant 14 : index
    %c0_128 = arith.constant 0 : index
    %c0_129 = arith.constant 0 : index
    %114 = vector.load %arg2[%c14_127, %c0_128, %c0_129] : memref<16x8x8xbf16, #tpu.memory_space<vmem>>, vector<1x8x8xbf16>
    %115 = vector.shape_cast %114 : vector<1x8x8xbf16> to vector<8x8xbf16>
    %cst_130 = arith.constant dense<0.000000e+00> : vector<8x8xf32>
    %116 = tpu.matmul %113, %115, %cst_130 {dimension_numbers = #tpu.dot_dimension_numbers<[1], [1], [0], [0], [0, 0, 1, 0], [], []>} : vector<8x8xbf16>, vector<8x8xbf16>, vector<8x8xf32> -> vector<8x8xf32>
    %c14_131 = arith.constant 14 : index
    %c0_132 = arith.constant 0 : index
    %c0_133 = arith.constant 0 : index
    %117 = vector.load %arg3[%c14_131, %c0_132, %c0_133] : memref<16x8x8xf32, #tpu.memory_space<vmem>>, vector<1x8x8xf32>
    %118 = vector.shape_cast %117 : vector<1x8x8xf32> to vector<8x8xf32>
    %119 = vector.shape_cast %116 : vector<8x8xf32> to vector<1x8x8xf32>
    tpu.vector_store %arg3[%c14_131, %c0_132, %c0_133], %119 {strides = array<i32>} : memref<16x8x8xf32, #tpu.memory_space<vmem>>, vector<1x8x8xf32>,
    %c15 = arith.constant 15 : index
    %c0_134 = arith.constant 0 : index
    %c0_135 = arith.constant 0 : index
    %120 = vector.load %arg1[%c15, %c0_134, %c0_135] : memref<16x8x8xbf16, #tpu.memory_space<vmem>>, vector<1x8x8xbf16>
    %121 = vector.shape_cast %120 : vector<1x8x8xbf16> to vector<8x8xbf16>
    %c15_136 = arith.constant 15 : index
    %c0_137 = arith.constant 0 : index
    %c0_138 = arith.constant 0 : index
    %122 = vector.load %arg2[%c15_136, %c0_137, %c0_138] : memref<16x8x8xbf16, #tpu.memory_space<vmem>>, vector<1x8x8xbf16>
    %123 = vector.shape_cast %122 : vector<1x8x8xbf16> to vector<8x8xbf16>
    %cst_139 = arith.constant dense<0.000000e+00> : vector<8x8xf32>
    %124 = tpu.matmul %121, %123, %cst_139 {dimension_numbers = #tpu.dot_dimension_numbers<[1], [1], [0], [0], [0, 0, 1, 0], [], []>} : vector<8x8xbf16>, vector<8x8xbf16>, vector<8x8xf32> -> vector<8x8xf32>
    %c15_140 = arith.constant 15 : index
    %c0_141 = arith.constant 0 : index
    %c0_142 = arith.constant 0 : index
    %125 = vector.load %arg3[%c15_140, %c0_141, %c0_142] : memref<16x8x8xf32, #tpu.memory_space<vmem>>, vector<1x8x8xf32>
    %126 = vector.shape_cast %125 : vector<1x8x8xf32> to vector<8x8xf32>
    %127 = vector.shape_cast %124 : vector<8x8xf32> to vector<1x8x8xf32>
    tpu.vector_store %arg3[%c15_140, %c0_141, %c0_142], %127 {strides = array<i32>} : memref<16x8x8xf32, #tpu.memory_space<vmem>>, vector<1x8x8xf32>,
    return
  }
  func.func @transform_0(%arg0: i32) -> (i32, i32, i32) {
    %c0_i32 = arith.constant 0 : i32
    %c0_i32_0 = arith.constant 0 : i32
    %c0_i32_1 = arith.constant 0 : i32
    return %arg0, %c0_i32, %c0_i32_0 : i32, i32, i32
  }
  func.func @transform_1(%arg0: i32) -> (i32, i32, i32) {
    %c0_i32 = arith.constant 0 : i32
    %c0_i32_0 = arith.constant 0 : i32
    %c0_i32_1 = arith.constant 0 : i32
    return %arg0, %c0_i32, %c0_i32_0 : i32, i32, i32
  }
  func.func @transform_2(%arg0: i32) -> (i32, i32, i32) {
    %c0_i32 = arith.constant 0 : i32
    %c0_i32_0 = arith.constant 0 : i32
    %c0_i32_1 = arith.constant 0 : i32
    return %arg0, %c0_i32, %c0_i32_0 : i32, i32, i32
  }
}

module attributes {stable_mosaic.version = 11 : i64} {
  func.func @_fused_linear_kernel(%arg0: i32, %arg1: memref<128x8xf32, #tpu.memory_space<vmem>>, %arg2: memref<1x8xf32, #tpu.memory_space<vmem>>, %arg3: memref<1x8xf32, #tpu.memory_space<vmem>>, %arg4: memref<8x16xbf16, #tpu.memory_space<vmem>>, %arg5: memref<1x16xf32, #tpu.memory_space<vmem>>, %arg6: memref<128x16xf32, #tpu.memory_space<vmem>>, %arg7: memref<128x16xf32, #tpu.memory_space<vmem>>, %arg8: memref<128x16xf32, #tpu.memory_space<vmem>>) attributes {dimension_semantics = [#tpu.dimension_semantics<parallel>], iteration_bounds = array<i64: 1>, scalar_prefetch = 0 : i64, scratch_operands = 0 : i64, tpu.core_type = #tpu.core_type<tc>, window_params = [{transform_indices = @transform_0, window_bounds = array<i64: 128, 8>}, {pipeline_mode = #tpu.pipeline_mode<synchronous>, transform_indices = @transform_1, window_bounds = array<i64: 1, 8>}, {pipeline_mode = #tpu.pipeline_mode<synchronous>, transform_indices = @transform_2, window_bounds = array<i64: 1, 8>}, {pipeline_mode = #tpu.pipeline_mode<synchronous>, transform_indices = @transform_3, window_bounds = array<i64: 8, 16>}, {pipeline_mode = #tpu.pipeline_mode<synchronous>, transform_indices = @transform_4, window_bounds = array<i64: 1, 16>}, {transform_indices = @transform_5, window_bounds = array<i64: 128, 16>}, {transform_indices = @transform_6, window_bounds = array<i64: 128, 16>}, {transform_indices = @transform_7, window_bounds = array<i64: 128, 16>}]} {
    %c0 = arith.constant 0 : index
    %c0_0 = arith.constant 0 : index
    %0 = vector.load %arg1[%c0, %c0_0] : memref<128x8xf32, #tpu.memory_space<vmem>>, vector<128x8xf32>
    %c0_1 = arith.constant 0 : index
    %c0_2 = arith.constant 0 : index
    %1 = vector.load %arg2[%c0_1, %c0_2] : memref<1x8xf32, #tpu.memory_space<vmem>>, vector<1x8xf32>
    %c0_3 = arith.constant 0 : index
    %c0_4 = arith.constant 0 : index
    %2 = vector.load %arg3[%c0_3, %c0_4] : memref<1x8xf32, #tpu.memory_space<vmem>>, vector<1x8xf32>
    %cst = arith.constant dense<0.000000e+00> : vector<128xf32>
    %3 = vector.multi_reduction <add>, %0, %cst [1] : vector<128x8xf32> to vector<128xf32>
    %4 = vector.shape_cast %3 : vector<128xf32> to vector<128x1xf32>
    %cst_5 = arith.constant 8.000000e+00 : f32
    %5 = vector.broadcast %cst_5 : f32 to vector<128x1xf32>
    %6 = arith.divf %4, %5 : vector<128x1xf32>
    %7 = vector.broadcast %6 : vector<128x1xf32> to vector<128x8xf32>
    %8 = arith.subf %0, %7 : vector<128x8xf32>
    %9 = arith.mulf %8, %8 : vector<128x8xf32>
    %cst_6 = arith.constant dense<0.000000e+00> : vector<128xf32>
    %10 = vector.multi_reduction <add>, %9, %cst_6 [1] : vector<128x8xf32> to vector<128xf32>
    %11 = vector.shape_cast %10 : vector<128xf32> to vector<128x1xf32>
    %cst_7 = arith.constant 8.000000e+00 : f32
    %12 = vector.broadcast %cst_7 : f32 to vector<128x1xf32>
    %13 = arith.divf %11, %12 : vector<128x1xf32>
    %14 = vector.broadcast %6 : vector<128x1xf32> to vector<128x8xf32>
    %15 = arith.subf %0, %14 : vector<128x8xf32>
    %cst_8 = arith.constant 9.99999974E-6 : f32
    %16 = vector.broadcast %cst_8 : f32 to vector<128x1xf32>
    %17 = arith.addf %13, %16 : vector<128x1xf32>
    %18 = math.rsqrt %17 : vector<128x1xf32>
    %19 = vector.broadcast %18 : vector<128x1xf32> to vector<128x8xf32>
    %20 = arith.mulf %15, %19 : vector<128x8xf32>
    %21 = vector.broadcast %1 : vector<1x8xf32> to vector<128x8xf32>
    %22 = arith.mulf %20, %21 : vector<128x8xf32>
    %23 = vector.broadcast %2 : vector<1x8xf32> to vector<128x8xf32>
    %24 = arith.addf %22, %23 : vector<128x8xf32>
    %c0_9 = arith.constant 0 : index
    %c0_10 = arith.constant 0 : index
    %25 = vector.load %arg4[%c0_9, %c0_10] : memref<8x16xbf16, #tpu.memory_space<vmem>>, vector<8x16xbf16>
    %c0_11 = arith.constant 0 : index
    %c0_12 = arith.constant 0 : index
    %26 = vector.load %arg5[%c0_11, %c0_12] : memref<1x16xf32, #tpu.memory_space<vmem>>, vector<1x16xf32>
    %27 = arith.truncf %24 : vector<128x8xf32> to vector<128x8xbf16>
    %cst_13 = arith.constant dense<0.000000e+00> : vector<128x16xf32>
    %28 = tpu.matmul %27, %25, %cst_13 {dimension_numbers = #tpu.dot_dimension_numbers<[1], [0], [0], [1], [0, 0, 1, 1], [], []>} : vector<128x8xbf16>, vector<8x16xbf16>, vector<128x16xf32> -> vector<128x16xf32>
    %29 = vector.broadcast %26 : vector<1x16xf32> to vector<128x16xf32>
    %30 = arith.addf %28, %29 : vector<128x16xf32>
    %c0_14 = arith.constant 0 : index
    %c0_15 = arith.constant 0 : index
    %31 = vector.load %arg6[%c0_14, %c0_15] : memref<128x16xf32, #tpu.memory_space<vmem>>, vector<128x16xf32>
    %32 = arith.mulf %30, %31 : vector<128x16xf32>
    %c0_16 = arith.constant 0 : index
    %c0_17 = arith.constant 0 : index
    %33 = vector.load %arg7[%c0_16, %c0_17] : memref<128x16xf32, #tpu.memory_space<vmem>>, vector<128x16xf32>
    %34 = arith.addf %32, %33 : vector<128x16xf32>
    %c0_18 = arith.constant 0 : index
    %c0_19 = arith.constant 0 : index
    %35 = vector.load %arg8[%c0_18, %c0_19] : memref<128x16xf32, #tpu.memory_space<vmem>>, vector<128x16xf32>
    tpu.vector_store %arg8[%c0_18, %c0_19], %34 {strides = array<i32>} : memref<128x16xf32, #tpu.memory_space<vmem>>, vector<128x16xf32>,
    return
  }
  func.func @transform_0(%arg0: i32) -> (i32, i32) {
    %c0_i32 = arith.constant 0 : i32
    %c0_i32_0 = arith.constant 0 : i32
    return %arg0, %c0_i32 : i32, i32
  }
  func.func @transform_1(%arg0: i32) -> (i32, i32) {
    %c0_i32 = arith.constant 0 : i32
    %c0_i32_0 = arith.constant 0 : i32
    %c0_i32_1 = arith.constant 0 : i32
    return %c0_i32, %c0_i32_0 : i32, i32
  }
  func.func @transform_2(%arg0: i32) -> (i32, i32) {
    %c0_i32 = arith.constant 0 : i32
    %c0_i32_0 = arith.constant 0 : i32
    %c0_i32_1 = arith.constant 0 : i32
    return %c0_i32, %c0_i32_0 : i32, i32
  }
  func.func @transform_3(%arg0: i32) -> (i32, i32) {
    %c0_i32 = arith.constant 0 : i32
    %c0_i32_0 = arith.constant 0 : i32
    %c0_i32_1 = arith.constant 0 : i32
    return %c0_i32, %c0_i32_0 : i32, i32
  }
  func.func @transform_4(%arg0: i32) -> (i32, i32) {
    %c0_i32 = arith.constant 0 : i32
    %c0_i32_0 = arith.constant 0 : i32
    %c0_i32_1 = arith.constant 0 : i32
    return %c0_i32, %c0_i32_0 : i32, i32
  }
  func.func @transform_5(%arg0: i32) -> (i32, i32) {
    %c0_i32 = arith.constant 0 : i32
    %c0_i32_0 = arith.constant 0 : i32
    return %arg0, %c0_i32 : i32, i32
  }
  func.func @transform_6(%arg0: i32) -> (i32, i32) {
    %c0_i32 = arith.constant 0 : i32
    %c0_i32_0 = arith.constant 0 : i32
    return %arg0, %c0_i32 : i32, i32
  }
  func.func @transform_7(%arg0: i32) -> (i32, i32) {
    %c0_i32 = arith.constant 0 : i32
    %c0_i32_0 = arith.constant 0 : i32
    return %arg0, %c0_i32 : i32, i32
  }
}

module attributes {stable_mosaic.version = 11 : i64} {
  func.func @_triatt_proj_kernel(%arg0: i32, %arg1: memref<128x16xf32, #tpu.memory_space<vmem>>, %arg2: memref<1x16xf32, #tpu.memory_space<vmem>>, %arg3: memref<1x16xf32, #tpu.memory_space<vmem>>, %arg4: memref<16x66xbf16, #tpu.memory_space<vmem>>, %arg5: memref<1x66xf32, #tpu.memory_space<vmem>>, %arg6: memref<128x48xf32, #tpu.memory_space<vmem>>, %arg7: memref<128x2xf32, #tpu.memory_space<vmem>>, %arg8: memref<128x16xf32, #tpu.memory_space<vmem>>) attributes {dimension_semantics = [#tpu.dimension_semantics<parallel>], iteration_bounds = array<i64: 1>, scalar_prefetch = 0 : i64, scratch_operands = 0 : i64, tpu.core_type = #tpu.core_type<tc>, window_params = [{transform_indices = @transform_0, window_bounds = array<i64: 128, 16>}, {pipeline_mode = #tpu.pipeline_mode<synchronous>, transform_indices = @transform_1, window_bounds = array<i64: 1, 16>}, {pipeline_mode = #tpu.pipeline_mode<synchronous>, transform_indices = @transform_2, window_bounds = array<i64: 1, 16>}, {pipeline_mode = #tpu.pipeline_mode<synchronous>, transform_indices = @transform_3, window_bounds = array<i64: 16, 66>}, {pipeline_mode = #tpu.pipeline_mode<synchronous>, transform_indices = @transform_4, window_bounds = array<i64: 1, 66>}, {transform_indices = @transform_5, window_bounds = array<i64: 128, 48>}, {transform_indices = @transform_6, window_bounds = array<i64: 128, 2>}, {transform_indices = @transform_7, window_bounds = array<i64: 128, 16>}]} {
    %c0 = arith.constant 0 : index
    %c0_0 = arith.constant 0 : index
    %0 = vector.load %arg1[%c0, %c0_0] : memref<128x16xf32, #tpu.memory_space<vmem>>, vector<128x16xf32>
    %cst = arith.constant dense<0.000000e+00> : vector<128xf32>
    %1 = vector.multi_reduction <add>, %0, %cst [1] : vector<128x16xf32> to vector<128xf32>
    %2 = vector.shape_cast %1 : vector<128xf32> to vector<128x1xf32>
    %cst_1 = arith.constant 1.600000e+01 : f32
    %3 = vector.broadcast %cst_1 : f32 to vector<128x1xf32>
    %4 = arith.divf %2, %3 : vector<128x1xf32>
    %5 = vector.broadcast %4 : vector<128x1xf32> to vector<128x16xf32>
    %6 = arith.subf %0, %5 : vector<128x16xf32>
    %7 = arith.mulf %6, %6 : vector<128x16xf32>
    %cst_2 = arith.constant dense<0.000000e+00> : vector<128xf32>
    %8 = vector.multi_reduction <add>, %7, %cst_2 [1] : vector<128x16xf32> to vector<128xf32>
    %9 = vector.shape_cast %8 : vector<128xf32> to vector<128x1xf32>
    %cst_3 = arith.constant 1.600000e+01 : f32
    %10 = vector.broadcast %cst_3 : f32 to vector<128x1xf32>
    %11 = arith.divf %9, %10 : vector<128x1xf32>
    %12 = vector.broadcast %4 : vector<128x1xf32> to vector<128x16xf32>
    %13 = arith.subf %0, %12 : vector<128x16xf32>
    %cst_4 = arith.constant 9.99999974E-6 : f32
    %14 = vector.broadcast %cst_4 : f32 to vector<128x1xf32>
    %15 = arith.addf %11, %14 : vector<128x1xf32>
    %16 = math.rsqrt %15 : vector<128x1xf32>
    %17 = vector.broadcast %16 : vector<128x1xf32> to vector<128x16xf32>
    %18 = arith.mulf %13, %17 : vector<128x16xf32>
    %c0_5 = arith.constant 0 : index
    %c0_6 = arith.constant 0 : index
    %19 = vector.load %arg2[%c0_5, %c0_6] : memref<1x16xf32, #tpu.memory_space<vmem>>, vector<1x16xf32>
    %20 = vector.broadcast %19 : vector<1x16xf32> to vector<128x16xf32>
    %21 = arith.mulf %18, %20 : vector<128x16xf32>
    %c0_7 = arith.constant 0 : index
    %c0_8 = arith.constant 0 : index
    %22 = vector.load %arg3[%c0_7, %c0_8] : memref<1x16xf32, #tpu.memory_space<vmem>>, vector<1x16xf32>
    %23 = vector.broadcast %22 : vector<1x16xf32> to vector<128x16xf32>
    %24 = arith.addf %21, %23 : vector<128x16xf32>
    %25 = arith.truncf %24 : vector<128x16xf32> to vector<128x16xbf16>
    %c0_9 = arith.constant 0 : index
    %c0_10 = arith.constant 0 : index
    %26 = vector.load %arg4[%c0_9, %c0_10] : memref<16x66xbf16, #tpu.memory_space<vmem>>, vector<16x66xbf16>
    %cst_11 = arith.constant dense<0.000000e+00> : vector<128x66xf32>
    %27 = tpu.matmul %25, %26, %cst_11 {dimension_numbers = #tpu.dot_dimension_numbers<[1], [0], [0], [1], [0, 0, 1, 1], [], []>} : vector<128x16xbf16>, vector<16x66xbf16>, vector<128x66xf32> -> vector<128x66xf32>
    %c0_12 = arith.constant 0 : index
    %c0_13 = arith.constant 0 : index
    %28 = vector.load %arg5[%c0_12, %c0_13] : memref<1x66xf32, #tpu.memory_space<vmem>>, vector<1x66xf32>
    %29 = vector.broadcast %28 : vector<1x66xf32> to vector<128x66xf32>
    %30 = arith.addf %27, %29 : vector<128x66xf32>
    %31 = vector.extract_strided_slice %30 {offsets = [0, 0], sizes = [128, 48], strides = [1, 1]} : vector<128x66xf32> to vector<128x48xf32>
    %c0_14 = arith.constant 0 : index
    %c0_15 = arith.constant 0 : index
    %32 = vector.load %arg6[%c0_14, %c0_15] : memref<128x48xf32, #tpu.memory_space<vmem>>, vector<128x48xf32>
    tpu.vector_store %arg6[%c0_14, %c0_15], %31 {strides = array<i32>} : memref<128x48xf32, #tpu.memory_space<vmem>>, vector<128x48xf32>,
    %33 = vector.extract_strided_slice %30 {offsets = [0, 48], sizes = [128, 2], strides = [1, 1]} : vector<128x66xf32> to vector<128x2xf32>
    %c0_16 = arith.constant 0 : index
    %c0_17 = arith.constant 0 : index
    %34 = vector.load %arg7[%c0_16, %c0_17] : memref<128x2xf32, #tpu.memory_space<vmem>>, vector<128x2xf32>
    tpu.vector_store %arg7[%c0_16, %c0_17], %33 {strides = array<i32>} : memref<128x2xf32, #tpu.memory_space<vmem>>, vector<128x2xf32>,
    %35 = vector.extract_strided_slice %30 {offsets = [0, 50], sizes = [128, 16], strides = [1, 1]} : vector<128x66xf32> to vector<128x16xf32>
    %36 = arith.negf %35 : vector<128x16xf32>
    %37 = math.exp %36 : vector<128x16xf32>
    %cst_18 = arith.constant 1.000000e+00 : f32
    %38 = vector.broadcast %cst_18 : f32 to vector<128x16xf32>
    %39 = arith.addf %38, %37 : vector<128x16xf32>
    %40 = arith.divf %38, %39 : vector<128x16xf32>
    %c0_19 = arith.constant 0 : index
    %c0_20 = arith.constant 0 : index
    %41 = vector.load %arg8[%c0_19, %c0_20] : memref<128x16xf32, #tpu.memory_space<vmem>>, vector<128x16xf32>
    tpu.vector_store %arg8[%c0_19, %c0_20], %40 {strides = array<i32>} : memref<128x16xf32, #tpu.memory_space<vmem>>, vector<128x16xf32>,
    return
  }
  func.func @transform_0(%arg0: i32) -> (i32, i32) {
    %c0_i32 = arith.constant 0 : i32
    %c0_i32_0 = arith.constant 0 : i32
    return %arg0, %c0_i32 : i32, i32
  }
  func.func @transform_1(%arg0: i32) -> (i32, i32) {
    %c0_i32 = arith.constant 0 : i32
    %c0_i32_0 = arith.constant 0 : i32
    %c0_i32_1 = arith.constant 0 : i32
    return %c0_i32, %c0_i32_0 : i32, i32
  }
  func.func @transform_2(%arg0: i32) -> (i32, i32) {
    %c0_i32 = arith.constant 0 : i32
    %c0_i32_0 = arith.constant 0 : i32
    %c0_i32_1 = arith.constant 0 : i32
    return %c0_i32, %c0_i32_0 : i32, i32
  }
  func.func @transform_3(%arg0: i32) -> (i32, i32) {
    %c0_i32 = arith.constant 0 : i32
    %c0_i32_0 = arith.constant 0 : i32
    %c0_i32_1 = arith.constant 0 : i32
    return %c0_i32, %c0_i32_0 : i32, i32
  }
  func.func @transform_4(%arg0: i32) -> (i32, i32) {
    %c0_i32 = arith.constant 0 : i32
    %c0_i32_0 = arith.constant 0 : i32
    %c0_i32_1 = arith.constant 0 : i32
    return %c0_i32, %c0_i32_0 : i32, i32
  }
  func.func @transform_5(%arg0: i32) -> (i32, i32) {
    %c0_i32 = arith.constant 0 : i32
    %c0_i32_0 = arith.constant 0 : i32
    return %arg0, %c0_i32 : i32, i32
  }
  func.func @transform_6(%arg0: i32) -> (i32, i32) {
    %c0_i32 = arith.constant 0 : i32
    %c0_i32_0 = arith.constant 0 : i32
    return %arg0, %c0_i32 : i32, i32
  }
  func.func @transform_7(%arg0: i32) -> (i32, i32) {
    %c0_i32 = arith.constant 0 : i32
    %c0_i32_0 = arith.constant 0 : i32
    return %arg0, %c0_i32 : i32, i32
  }
}

module attributes {stable_mosaic.version = 11 : i64} {
  func.func @_fused_linear_kernel(%arg0: i32, %arg1: memref<128x16xf32, #tpu.memory_space<vmem>>, %arg2: memref<16x16xbf16, #tpu.memory_space<vmem>>, %arg3: memref<1x16xf32, #tpu.memory_space<vmem>>, %arg4: memref<128x16xf32, #tpu.memory_space<vmem>>, %arg5: memref<128x16xf32, #tpu.memory_space<vmem>>) attributes {dimension_semantics = [#tpu.dimension_semantics<parallel>], iteration_bounds = array<i64: 1>, scalar_prefetch = 0 : i64, scratch_operands = 0 : i64, tpu.core_type = #tpu.core_type<tc>, window_params = [{transform_indices = @transform_0, window_bounds = array<i64: 128, 16>}, {pipeline_mode = #tpu.pipeline_mode<synchronous>, transform_indices = @transform_1, window_bounds = array<i64: 16, 16>}, {pipeline_mode = #tpu.pipeline_mode<synchronous>, transform_indices = @transform_2, window_bounds = array<i64: 1, 16>}, {transform_indices = @transform_3, window_bounds = array<i64: 128, 16>}, {transform_indices = @transform_4, window_bounds = array<i64: 128, 16>}]} {
    %c0 = arith.constant 0 : index
    %c0_0 = arith.constant 0 : index
    %0 = vector.load %arg1[%c0, %c0_0] : memref<128x16xf32, #tpu.memory_space<vmem>>, vector<128x16xf32>
    %c0_1 = arith.constant 0 : index
    %c0_2 = arith.constant 0 : index
    %1 = vector.load %arg2[%c0_1, %c0_2] : memref<16x16xbf16, #tpu.memory_space<vmem>>, vector<16x16xbf16>
    %c0_3 = arith.constant 0 : index
    %c0_4 = arith.constant 0 : index
    %2 = vector.load %arg3[%c0_3, %c0_4] : memref<1x16xf32, #tpu.memory_space<vmem>>, vector<1x16xf32>
    %3 = arith.truncf %0 : vector<128x16xf32> to vector<128x16xbf16>
    %cst = arith.constant dense<0.000000e+00> : vector<128x16xf32>
    %4 = tpu.matmul %3, %1, %cst {dimension_numbers = #tpu.dot_dimension_numbers<[1], [0], [0], [1], [0, 0, 1, 1], [], []>} : vector<128x16xbf16>, vector<16x16xbf16>, vector<128x16xf32> -> vector<128x16xf32>
    %5 = vector.broadcast %2 : vector<1x16xf32> to vector<128x16xf32>
    %6 = arith.addf %4, %5 : vector<128x16xf32>
    %c0_5 = arith.constant 0 : index
    %c0_6 = arith.constant 0 : index
    %7 = vector.load %arg4[%c0_5, %c0_6] : memref<128x16xf32, #tpu.memory_space<vmem>>, vector<128x16xf32>
    %8 = arith.addf %6, %7 : vector<128x16xf32>
    %c0_7 = arith.constant 0 : index
    %c0_8 = arith.constant 0 : index
    %9 = vector.load %arg5[%c0_7, %c0_8] : memref<128x16xf32, #tpu.memory_space<vmem>>, vector<128x16xf32>
    tpu.vector_store %arg5[%c0_7, %c0_8], %8 {strides = array<i32>} : memref<128x16xf32, #tpu.memory_space<vmem>>, vector<128x16xf32>,
    return
  }
  func.func @transform_0(%arg0: i32) -> (i32, i32) {
    %c0_i32 = arith.constant 0 : i32
    %c0_i32_0 = arith.constant 0 : i32
    return %arg0, %c0_i32 : i32, i32
  }
  func.func @transform_1(%arg0: i32) -> (i32, i32) {
    %c0_i32 = arith.constant 0 : i32
    %c0_i32_0 = arith.constant 0 : i32
    %c0_i32_1 = arith.constant 0 : i32
    return %c0_i32, %c0_i32_0 : i32, i32
  }
  func.func @transform_2(%arg0: i32) -> (i32, i32) {
    %c0_i32 = arith.constant 0 : i32
    %c0_i32_0 = arith.constant 0 : i32
    %c0_i32_1 = arith.constant 0 : i32
    return %c0_i32, %c0_i32_0 : i32, i32
  }
  func.func @transform_3(%arg0: i32) -> (i32, i32) {
    %c0_i32 = arith.constant 0 : i32
    %c0_i32_0 = arith.constant 0 : i32
    return %arg0, %c0_i32 : i32, i32
  }
  func.func @transform_4(%arg0: i32) -> (i32, i32) {
    %c0_i32 = arith.constant 0 : i32
    %c0_i32_0 = arith.constant 0 : i32
    return %arg0, %c0_i32 : i32, i32
  }
}

module attributes {stable_mosaic.version = 11 : i64} {
  func.func @_triatt_attn_kernel(%arg0: i32, %arg1: i32, %arg2: memref<1x1x8x48xf32, #tpu.memory_space<vmem>>, %arg3: memref<1x1x8x16xf32, #tpu.memory_space<vmem>>, %arg4: memref<1x8x8x2xf32, #tpu.memory_space<vmem>>, %arg5: memref<1x1x1x8xf32, #tpu.memory_space<vmem>>, %arg6: memref<1x1x8x16xf32, #tpu.memory_space<vmem>>) attributes {dimension_semantics = [#tpu.dimension_semantics<parallel>, #tpu.dimension_semantics<parallel>], iteration_bounds = array<i64: 2, 8>, scalar_prefetch = 0 : i64, scratch_operands = 0 : i64, tpu.core_type = #tpu.core_type<tc>, window_params = [{transform_indices = @transform_0, window_bounds = array<i64: 1, 1, 8, 48>}, {transform_indices = @transform_1, window_bounds = array<i64: 1, 1, 8, 16>}, {transform_indices = @transform_2, window_bounds = array<i64: 1, 8, 8, 2>}, {transform_indices = @transform_3, window_bounds = array<i64: 1, 1, 1, 8>}, {transform_indices = @transform_4, window_bounds = array<i64: 1, 1, 8, 16>}]} {
    %c0 = arith.constant 0 : index
    %c0_0 = arith.constant 0 : index
    %c0_1 = arith.constant 0 : index
    %c0_2 = arith.constant 0 : index
    %0 = vector.load %arg2[%c0, %c0_0, %c0_1, %c0_2] : memref<1x1x8x48xf32, #tpu.memory_space<vmem>>, vector<1x1x8x48xf32>
    %1 = vector.shape_cast %0 : vector<1x1x8x48xf32> to vector<8x48xf32>
    %c0_3 = arith.constant 0 : index
    %c0_4 = arith.constant 0 : index
    %c0_5 = arith.constant 0 : index
    %c0_6 = arith.constant 0 : index
    %2 = vector.load %arg3[%c0_3, %c0_4, %c0_5, %c0_6] : memref<1x1x8x16xf32, #tpu.memory_space<vmem>>, vector<1x1x8x16xf32>
    %3 = vector.shape_cast %2 : vector<1x1x8x16xf32> to vector<8x16xf32>
    %c0_7 = arith.constant 0 : index
    %c0_8 = arith.constant 0 : index
    %c0_9 = arith.constant 0 : index
    %c0_10 = arith.constant 0 : index
    %4 = vector.load %arg5[%c0_7, %c0_8, %c0_9, %c0_10] : memref<1x1x1x8xf32, #tpu.memory_space<vmem>>, vector<1x1x1x8xf32>
    %5 = vector.shape_cast %4 : vector<1x1x1x8xf32> to vector<1x8xf32>
    %c0_11 = arith.constant 0 : index
    %c0_12 = arith.constant 0 : index
    %c0_13 = arith.constant 0 : index
    %c0_14 = arith.constant 0 : index
    %6 = vector.load %arg4[%c0_11, %c0_12, %c0_13, %c0_14] : memref<1x8x8x2xf32, #tpu.memory_space<vmem>>, vector<1x8x8x2xf32>
    %7 = vector.shape_cast %6 : vector<1x8x8x2xf32> to vector<8x8x2xf32>
    %8 = vector.extract_strided_slice %1 {offsets = [0, 0], sizes = [8, 8], strides = [1, 1]} : vector<8x48xf32> to vector<8x8xf32>
    %9 = vector.extract_strided_slice %1 {offsets = [0, 16], sizes = [8, 8], strides = [1, 1]} : vector<8x48xf32> to vector<8x8xf32>
    %10 = vector.extract_strided_slice %1 {offsets = [0, 32], sizes = [8, 8], strides = [1, 1]} : vector<8x48xf32> to vector<8x8xf32>
    %11 = arith.truncf %8 : vector<8x8xf32> to vector<8x8xbf16>
    %12 = arith.truncf %9 : vector<8x8xf32> to vector<8x8xbf16>
    %cst = arith.constant dense<0.000000e+00> : vector<8x8xf32>
    %13 = tpu.matmul %11, %12, %cst {dimension_numbers = #tpu.dot_dimension_numbers<[1], [1], [0], [0], [0, 0, 1, 0], [], []>} : vector<8x8xbf16>, vector<8x8xbf16>, vector<8x8xf32> -> vector<8x8xf32>
    %cst_15 = arith.constant 0.353553385 : f32
    %14 = vector.broadcast %cst_15 : f32 to vector<8x8xf32>
    %15 = arith.mulf %13, %14 : vector<8x8xf32>
    %16 = vector.extract_strided_slice %7 {offsets = [0, 0, 0], sizes = [8, 8, 1], strides = [1, 1, 1]} : vector<8x8x2xf32> to vector<8x8x1xf32>
    %17 = vector.shape_cast %16 : vector<8x8x1xf32> to vector<8x8xf32>
    %18 = arith.addf %15, %17 : vector<8x8xf32>
    %19 = vector.broadcast %5 : vector<1x8xf32> to vector<8x8xf32>
    %20 = arith.addf %18, %19 : vector<8x8xf32>
    %cst_16 = arith.constant dense<0xFF800000> : vector<8xf32>
    %21 = vector.multi_reduction <maximumf>, %20, %cst_16 [1] : vector<8x8xf32> to vector<8xf32>
    %22 = vector.shape_cast %21 : vector<8xf32> to vector<8x1xf32>
    %23 = vector.broadcast %22 : vector<8x1xf32> to vector<8x8xf32>
    %24 = arith.subf %20, %23 : vector<8x8xf32>
    %25 = math.exp %24 : vector<8x8xf32>
    %cst_17 = arith.constant dense<0.000000e+00> : vector<8xf32>
    %26 = vector.multi_reduction <add>, %25, %cst_17 [1] : vector<8x8xf32> to vector<8xf32>
    %27 = vector.shape_cast %26 : vector<8xf32> to vector<8x1xf32>
    %28 = vector.broadcast %27 : vector<8x1xf32> to vector<8x8xf32>
    %29 = arith.divf %25, %28 : vector<8x8xf32>
    %30 = arith.truncf %29 : vector<8x8xf32> to vector<8x8xbf16>
    %31 = arith.truncf %10 : vector<8x8xf32> to vector<8x8xbf16>
    %cst_18 = arith.constant dense<0.000000e+00> : vector<8x8xf32>
    %32 = tpu.matmul %30, %31, %cst_18 {dimension_numbers = #tpu.dot_dimension_numbers<[1], [0], [0], [1], [0, 0, 1, 1], [], []>} : vector<8x8xbf16>, vector<8x8xbf16>, vector<8x8xf32> -> vector<8x8xf32>
    %33 = vector.extract_strided_slice %3 {offsets = [0, 0], sizes = [8, 8], strides = [1, 1]} : vector<8x16xf32> to vector<8x8xf32>
    %34 = arith.mulf %32, %33 : vector<8x8xf32>
    %c0_19 = arith.constant 0 : index
    %c0_20 = arith.constant 0 : index
    %c0_21 = arith.constant 0 : index
    %c0_22 = arith.constant 0 : index
    %35 = vector.load %arg6[%c0_19, %c0_20, %c0_21, %c0_22] : memref<1x1x8x16xf32, #tpu.memory_space<vmem>>, vector<1x1x8x8xf32>
    %36 = vector.shape_cast %35 : vector<1x1x8x8xf32> to vector<8x8xf32>
    %37 = vector.shape_cast %34 : vector<8x8xf32> to vector<1x1x8x8xf32>
    tpu.vector_store %arg6[%c0_19, %c0_20, %c0_21, %c0_22], %37 {strides = array<i32>} : memref<1x1x8x16xf32, #tpu.memory_space<vmem>>, vector<1x1x8x8xf32>,
    %38 = vector.extract_strided_slice %1 {offsets = [0, 8], sizes = [8, 8], strides = [1, 1]} : vector<8x48xf32> to vector<8x8xf32>
    %39 = vector.extract_strided_slice %1 {offsets = [0, 24], sizes = [8, 8], strides = [1, 1]} : vector<8x48xf32> to vector<8x8xf32>
    %40 = vector.extract_strided_slice %1 {offsets = [0, 40], sizes = [8, 8], strides = [1, 1]} : vector<8x48xf32> to vector<8x8xf32>
    %41 = arith.truncf %38 : vector<8x8xf32> to vector<8x8xbf16>
    %42 = arith.truncf %39 : vector<8x8xf32> to vector<8x8xbf16>
    %cst_23 = arith.constant dense<0.000000e+00> : vector<8x8xf32>
    %43 = tpu.matmul %41, %42, %cst_23 {dimension_numbers = #tpu.dot_dimension_numbers<[1], [1], [0], [0], [0, 0, 1, 0], [], []>} : vector<8x8xbf16>, vector<8x8xbf16>, vector<8x8xf32> -> vector<8x8xf32>
    %cst_24 = arith.constant 0.353553385 : f32
    %44 = vector.broadcast %cst_24 : f32 to vector<8x8xf32>
    %45 = arith.mulf %43, %44 : vector<8x8xf32>
    %46 = vector.extract_strided_slice %7 {offsets = [0, 0, 1], sizes = [8, 8, 1], strides = [1, 1, 1]} : vector<8x8x2xf32> to vector<8x8x1xf32>
    %47 = vector.shape_cast %46 : vector<8x8x1xf32> to vector<8x8xf32>
    %48 = arith.addf %45, %47 : vector<8x8xf32>
    %49 = vector.broadcast %5 : vector<1x8xf32> to vector<8x8xf32>
    %50 = arith.addf %48, %49 : vector<8x8xf32>
    %cst_25 = arith.constant dense<0xFF800000> : vector<8xf32>
    %51 = vector.multi_reduction <maximumf>, %50, %cst_25 [1] : vector<8x8xf32> to vector<8xf32>
    %52 = vector.shape_cast %51 : vector<8xf32> to vector<8x1xf32>
    %53 = vector.broadcast %52 : vector<8x1xf32> to vector<8x8xf32>
    %54 = arith.subf %50, %53 : vector<8x8xf32>
    %55 = math.exp %54 : vector<8x8xf32>
    %cst_26 = arith.constant dense<0.000000e+00> : vector<8xf32>
    %56 = vector.multi_reduction <add>, %55, %cst_26 [1] : vector<8x8xf32> to vector<8xf32>
    %57 = vector.shape_cast %56 : vector<8xf32> to vector<8x1xf32>
    %58 = vector.broadcast %57 : vector<8x1xf32> to vector<8x8xf32>
    %59 = arith.divf %55, %58 : vector<8x8xf32>
    %60 = arith.truncf %59 : vector<8x8xf32> to vector<8x8xbf16>
    %61 = arith.truncf %40 : vector<8x8xf32> to vector<8x8xbf16>
    %cst_27 = arith.constant dense<0.000000e+00> : vector<8x8xf32>
    %62 = tpu.matmul %60, %61, %cst_27 {dimension_numbers = #tpu.dot_dimension_numbers<[1], [0], [0], [1], [0, 0, 1, 1], [], []>} : vector<8x8xbf16>, vector<8x8xbf16>, vector<8x8xf32> -> vector<8x8xf32>
    %63 = vector.extract_strided_slice %3 {offsets = [0, 8], sizes = [8, 8], strides = [1, 1]} : vector<8x16xf32> to vector<8x8xf32>
    %64 = arith.mulf %62, %63 : vector<8x8xf32>
    %c0_28 = arith.constant 0 : index
    %c0_29 = arith.constant 0 : index
    %c0_30 = arith.constant 0 : index
    %c8 = arith.constant 8 : index
    %65 = vector.load %arg6[%c0_28, %c0_29, %c0_30, %c8] : memref<1x1x8x16xf32, #tpu.memory_space<vmem>>, vector<1x1x8x8xf32>
    %66 = vector.shape_cast %65 : vector<1x1x8x8xf32> to vector<8x8xf32>
    %67 = vector.shape_cast %64 : vector<8x8xf32> to vector<1x1x8x8xf32>
    tpu.vector_store %arg6[%c0_28, %c0_29, %c0_30, %c8], %67 {strides = array<i32>} : memref<1x1x8x16xf32, #tpu.memory_space<vmem>>, vector<1x1x8x8xf32>,
    return
  }
  func.func @transform_0(%arg0: i32, %arg1: i32) -> (i32, i32, i32, i32) {
    %c0_i32 = arith.constant 0 : i32
    %c0_i32_0 = arith.constant 0 : i32
    %c0_i32_1 = arith.constant 0 : i32
    return %arg0, %arg1, %c0_i32, %c0_i32_0 : i32, i32, i32, i32
  }
  func.func @transform_1(%arg0: i32, %arg1: i32) -> (i32, i32, i32, i32) {
    %c0_i32 = arith.constant 0 : i32
    %c0_i32_0 = arith.constant 0 : i32
    %c0_i32_1 = arith.constant 0 : i32
    return %arg0, %arg1, %c0_i32, %c0_i32_0 : i32, i32, i32, i32
  }
  func.func @transform_2(%arg0: i32, %arg1: i32) -> (i32, i32, i32, i32) {
    %c0_i32 = arith.constant 0 : i32
    %c0_i32_0 = arith.constant 0 : i32
    %c0_i32_1 = arith.constant 0 : i32
    %c0_i32_2 = arith.constant 0 : i32
    return %arg0, %c0_i32, %c0_i32_0, %c0_i32_1 : i32, i32, i32, i32
  }
  func.func @transform_3(%arg0: i32, %arg1: i32) -> (i32, i32, i32, i32) {
    %c0_i32 = arith.constant 0 : i32
    %c0_i32_0 = arith.constant 0 : i32
    %c0_i32_1 = arith.constant 0 : i32
    return %arg0, %arg1, %c0_i32, %c0_i32_0 : i32, i32, i32, i32
  }
  func.func @transform_4(%arg0: i32, %arg1: i32) -> (i32, i32, i32, i32) {
    %c0_i32 = arith.constant 0 : i32
    %c0_i32_0 = arith.constant 0 : i32
    %c0_i32_1 = arith.constant 0 : i32
    return %arg0, %arg1, %c0_i32, %c0_i32_0 : i32, i32, i32, i32
  }
}

module attributes {stable_mosaic.version = 11 : i64} {
  func.func @_pair_transition_kernel(%arg0: i32, %arg1: memref<128x16xf32, #tpu.memory_space<vmem>>, %arg2: memref<128x1xf32, #tpu.memory_space<vmem>>, %arg3: memref<1x16xf32, #tpu.memory_space<vmem>>, %arg4: memref<1x16xf32, #tpu.memory_space<vmem>>, %arg5: memref<16x32xbf16, #tpu.memory_space<vmem>>, %arg6: memref<1x32xf32, #tpu.memory_space<vmem>>, %arg7: memref<32x16xbf16, #tpu.memory_space<vmem>>, %arg8: memref<1x16xf32, #tpu.memory_space<vmem>>, %arg9: memref<128x16xf32, #tpu.memory_space<vmem>>) attributes {dimension_semantics = [#tpu.dimension_semantics<parallel>], iteration_bounds = array<i64: 1>, scalar_prefetch = 0 : i64, scratch_operands = 0 : i64, tpu.core_type = #tpu.core_type<tc>, window_params = [{transform_indices = @transform_0, window_bounds = array<i64: 128, 16>}, {transform_indices = @transform_1, window_bounds = array<i64: 128, 1>}, {pipeline_mode = #tpu.pipeline_mode<synchronous>, transform_indices = @transform_2, window_bounds = array<i64: 1, 16>}, {pipeline_mode = #tpu.pipeline_mode<synchronous>, transform_indices = @transform_3, window_bounds = array<i64: 1, 16>}, {pipeline_mode = #tpu.pipeline_mode<synchronous>, transform_indices = @transform_4, window_bounds = array<i64: 16, 32>}, {pipeline_mode = #tpu.pipeline_mode<synchronous>, transform_indices = @transform_5, window_bounds = array<i64: 1, 32>}, {pipeline_mode = #tpu.pipeline_mode<synchronous>, transform_indices = @transform_6, window_bounds = array<i64: 32, 16>}, {pipeline_mode = #tpu.pipeline_mode<synchronous>, transform_indices = @transform_7, window_bounds = array<i64: 1, 16>}, {transform_indices = @transform_8, window_bounds = array<i64: 128, 16>}]} {
    %c0 = arith.constant 0 : index
    %c0_0 = arith.constant 0 : index
    %0 = vector.load %arg1[%c0, %c0_0] : memref<128x16xf32, #tpu.memory_space<vmem>>, vector<128x16xf32>
    %cst = arith.constant dense<0.000000e+00> : vector<128xf32>
    %1 = vector.multi_reduction <add>, %0, %cst [1] : vector<128x16xf32> to vector<128xf32>
    %2 = vector.shape_cast %1 : vector<128xf32> to vector<128x1xf32>
    %cst_1 = arith.constant 1.600000e+01 : f32
    %3 = vector.broadcast %cst_1 : f32 to vector<128x1xf32>
    %4 = arith.divf %2, %3 : vector<128x1xf32>
    %5 = vector.broadcast %4 : vector<128x1xf32> to vector<128x16xf32>
    %6 = arith.subf %0, %5 : vector<128x16xf32>
    %7 = arith.mulf %6, %6 : vector<128x16xf32>
    %cst_2 = arith.constant dense<0.000000e+00> : vector<128xf32>
    %8 = vector.multi_reduction <add>, %7, %cst_2 [1] : vector<128x16xf32> to vector<128xf32>
    %9 = vector.shape_cast %8 : vector<128xf32> to vector<128x1xf32>
    %cst_3 = arith.constant 1.600000e+01 : f32
    %10 = vector.broadcast %cst_3 : f32 to vector<128x1xf32>
    %11 = arith.divf %9, %10 : vector<128x1xf32>
    %12 = vector.broadcast %4 : vector<128x1xf32> to vector<128x16xf32>
    %13 = arith.subf %0, %12 : vector<128x16xf32>
    %cst_4 = arith.constant 9.99999974E-6 : f32
    %14 = vector.broadcast %cst_4 : f32 to vector<128x1xf32>
    %15 = arith.addf %11, %14 : vector<128x1xf32>
    %16 = math.rsqrt %15 : vector<128x1xf32>
    %17 = vector.broadcast %16 : vector<128x1xf32> to vector<128x16xf32>
    %18 = arith.mulf %13, %17 : vector<128x16xf32>
    %c0_5 = arith.constant 0 : index
    %c0_6 = arith.constant 0 : index
    %19 = vector.load %arg3[%c0_5, %c0_6] : memref<1x16xf32, #tpu.memory_space<vmem>>, vector<1x16xf32>
    %20 = vector.broadcast %19 : vector<1x16xf32> to vector<128x16xf32>
    %21 = arith.mulf %18, %20 : vector<128x16xf32>
    %c0_7 = arith.constant 0 : index
    %c0_8 = arith.constant 0 : index
    %22 = vector.load %arg4[%c0_7, %c0_8] : memref<1x16xf32, #tpu.memory_space<vmem>>, vector<1x16xf32>
    %23 = vector.broadcast %22 : vector<1x16xf32> to vector<128x16xf32>
    %24 = arith.addf %21, %23 : vector<128x16xf32>
    %25 = arith.truncf %24 : vector<128x16xf32> to vector<128x16xbf16>
    %c0_9 = arith.constant 0 : index
    %c0_10 = arith.constant 0 : index
    %26 = vector.load %arg5[%c0_9, %c0_10] : memref<16x32xbf16, #tpu.memory_space<vmem>>, vector<16x32xbf16>
    %cst_11 = arith.constant dense<0.000000e+00> : vector<128x32xf32>
    %27 = tpu.matmul %25, %26, %cst_11 {dimension_numbers = #tpu.dot_dimension_numbers<[1], [0], [0], [1], [0, 0, 1, 1], [], []>} : vector<128x16xbf16>, vector<16x32xbf16>, vector<128x32xf32> -> vector<128x32xf32>
    %c0_12 = arith.constant 0 : index
    %c0_13 = arith.constant 0 : index
    %28 = vector.load %arg6[%c0_12, %c0_13] : memref<1x32xf32, #tpu.memory_space<vmem>>, vector<1x32xf32>
    %29 = vector.broadcast %28 : vector<1x32xf32> to vector<128x32xf32>
    %30 = arith.addf %27, %29 : vector<128x32xf32>
    %cst_14 = arith.constant 0.000000e+00 : f32
    %31 = vector.broadcast %cst_14 : f32 to vector<128x32xf32>
    %32 = arith.maximumf %30, %31 : vector<128x32xf32>
    %33 = arith.truncf %32 : vector<128x32xf32> to vector<128x32xbf16>
    %c0_15 = arith.constant 0 : index
    %c0_16 = arith.constant 0 : index
    %34 = vector.load %arg7[%c0_15, %c0_16] : memref<32x16xbf16, #tpu.memory_space<vmem>>, vector<32x16xbf16>
    %cst_17 = arith.constant dense<0.000000e+00> : vector<128x16xf32>
    %35 = tpu.matmul %33, %34, %cst_17 {dimension_numbers = #tpu.dot_dimension_numbers<[1], [0], [0], [1], [0, 0, 1, 1], [], []>} : vector<128x32xbf16>, vector<32x16xbf16>, vector<128x16xf32> -> vector<128x16xf32>
    %c0_18 = arith.constant 0 : index
    %c0_19 = arith.constant 0 : index
    %36 = vector.load %arg8[%c0_18, %c0_19] : memref<1x16xf32, #tpu.memory_space<vmem>>, vector<1x16xf32>
    %37 = vector.broadcast %36 : vector<1x16xf32> to vector<128x16xf32>
    %38 = arith.addf %35, %37 : vector<128x16xf32>
    %c0_20 = arith.constant 0 : index
    %c0_21 = arith.constant 0 : index
    %39 = vector.load %arg2[%c0_20, %c0_21] : memref<128x1xf32, #tpu.memory_space<vmem>>, vector<128x1xf32>
    %40 = vector.broadcast %39 : vector<128x1xf32> to vector<128x16xf32>
    %41 = arith.mulf %38, %40 : vector<128x16xf32>
    %42 = arith.addf %0, %41 : vector<128x16xf32>
    %43 = vector.broadcast %39 : vector<128x1xf32> to vector<128x16xf32>
    %44 = arith.mulf %42, %43 : vector<128x16xf32>
    %c0_22 = arith.constant 0 : index
    %c0_23 = arith.constant 0 : index
    %45 = vector.load %arg9[%c0_22, %c0_23] : memref<128x16xf32, #tpu.memory_space<vmem>>, vector<128x16xf32>
    tpu.vector_store %arg9[%c0_22, %c0_23], %44 {strides = array<i32>} : memref<128x16xf32, #tpu.memory_space<vmem>>, vector<128x16xf32>,
    return
  }
  func.func @transform_0(%arg0: i32) -> (i32, i32) {
    %c0_i32 = arith.constant 0 : i32
    %c0_i32_0 = arith.constant 0 : i32
    return %arg0, %c0_i32 : i32, i32
  }
  func.func @transform_1(%arg0: i32) -> (i32, i32) {
    %c0_i32 = arith.constant 0 : i32
    %c0_i32_0 = arith.constant 0 : i32
    return %arg0, %c0_i32 : i32, i32
  }
  func.func @transform_2(%arg0: i32) -> (i32, i32) {
    %c0_i32 = arith.constant 0 : i32
    %c0_i32_0 = arith.constant 0 : i32
    %c0_i32_1 = arith.constant 0 : i32
    return %c0_i32, %c0_i32_0 : i32, i32
  }
  func.func @transform_3(%arg0: i32) -> (i32, i32) {
    %c0_i32 = arith.constant 0 : i32
    %c0_i32_0 = arith.constant 0 : i32
    %c0_i32_1 = arith.constant 0 : i32
    return %c0_i32, %c0_i32_0 : i32, i32
  }
  func.func @transform_4(%arg0: i32) -> (i32, i32) {
    %c0_i32 = arith.constant 0 : i32
    %c0_i32_0 = arith.constant 0 : i32
    %c0_i32_1 = arith.constant 0 : i32
    return %c0_i32, %c0_i32_0 : i32, i32
  }
  func.func @transform_5(%arg0: i32) -> (i32, i32) {
    %c0_i32 = arith.constant 0 : i32
    %c0_i32_0 = arith.constant 0 : i32
    %c0_i32_1 = arith.constant 0 : i32
    return %c0_i32, %c0_i32_0 : i32, i32
  }
  func.func @transform_6(%arg0: i32) -> (i32, i32) {
    %c0_i32 = arith.constant 0 : i32
    %c0_i32_0 = arith.constant 0 : i32
    %c0_i32_1 = arith.constant 0 : i32
    return %c0_i32, %c0_i32_0 : i32, i32
  }
  func.func @transform_7(%arg0: i32) -> (i32, i32) {
    %c0_i32 = arith.constant 0 : i32
    %c0_i32_0 = arith.constant 0 : i32
    %c0_i32_1 = arith.constant 0 : i32
    return %c0_i32, %c0_i32_0 : i32, i32
  }
  func.func @transform_8(%arg0: i32) -> (i32, i32) {
    %c0_i32 = arith.constant 0 : i32
    %c0_i32_0 = arith.constant 0 : i32
    return %arg0, %c0_i32 : i32, i32
  }
}

module attributes {stable_mosaic.version = 11 : i64} {
  func.func @_fused_linear_kernel(%arg0: i32, %arg1: memref<128x16xf32, #tpu.memory_space<vmem>>, %arg2: memref<16x2xbf16, #tpu.memory_space<vmem>>, %arg3: memref<1x2xf32, #tpu.memory_space<vmem>>, %arg4: memref<128x1xf32, #tpu.memory_space<vmem>>, %arg5: memref<128x2xf32, #tpu.memory_space<vmem>>) attributes {dimension_semantics = [#tpu.dimension_semantics<parallel>], iteration_bounds = array<i64: 1>, scalar_prefetch = 0 : i64, scratch_operands = 0 : i64, tpu.core_type = #tpu.core_type<tc>, window_params = [{transform_indices = @transform_0, window_bounds = array<i64: 128, 16>}, {pipeline_mode = #tpu.pipeline_mode<synchronous>, transform_indices = @transform_1, window_bounds = array<i64: 16, 2>}, {pipeline_mode = #tpu.pipeline_mode<synchronous>, transform_indices = @transform_2, window_bounds = array<i64: 1, 2>}, {transform_indices = @transform_3, window_bounds = array<i64: 128, 1>}, {transform_indices = @transform_4, window_bounds = array<i64: 128, 2>}]} {
    %c0 = arith.constant 0 : index
    %c0_0 = arith.constant 0 : index
    %0 = vector.load %arg1[%c0, %c0_0] : memref<128x16xf32, #tpu.memory_space<vmem>>, vector<128x16xf32>
    %c0_1 = arith.constant 0 : index
    %c0_2 = arith.constant 0 : index
    %1 = vector.load %arg2[%c0_1, %c0_2] : memref<16x2xbf16, #tpu.memory_space<vmem>>, vector<16x2xbf16>
    %c0_3 = arith.constant 0 : index
    %c0_4 = arith.constant 0 : index
    %2 = vector.load %arg3[%c0_3, %c0_4] : memref<1x2xf32, #tpu.memory_space<vmem>>, vector<1x2xf32>
    %3 = arith.truncf %0 : vector<128x16xf32> to vector<128x16xbf16>
    %cst = arith.constant dense<0.000000e+00> : vector<128x2xf32>
    %4 = tpu.matmul %3, %1, %cst {dimension_numbers = #tpu.dot_dimension_numbers<[1], [0], [0], [1], [0, 0, 1, 1], [], []>} : vector<128x16xbf16>, vector<16x2xbf16>, vector<128x2xf32> -> vector<128x2xf32>
    %5 = vector.broadcast %2 : vector<1x2xf32> to vector<128x2xf32>
    %6 = arith.addf %4, %5 : vector<128x2xf32>
    %c0_5 = arith.constant 0 : index
    %c0_6 = arith.constant 0 : index
    %7 = vector.load %arg4[%c0_5, %c0_6] : memref<128x1xf32, #tpu.memory_space<vmem>>, vector<128x1xf32>
    %8 = vector.broadcast %7 : vector<128x1xf32> to vector<128x2xf32>
    %9 = arith.addf %6, %8 : vector<128x2xf32>
    %c0_7 = arith.constant 0 : index
    %c0_8 = arith.constant 0 : index
    %10 = vector.load %arg5[%c0_7, %c0_8] : memref<128x2xf32, #tpu.memory_space<vmem>>, vector<128x2xf32>
    tpu.vector_store %arg5[%c0_7, %c0_8], %9 {strides = array<i32>} : memref<128x2xf32, #tpu.memory_space<vmem>>, vector<128x2xf32>,
    return
  }
  func.func @transform_0(%arg0: i32) -> (i32, i32) {
    %c0_i32 = arith.constant 0 : i32
    %c0_i32_0 = arith.constant 0 : i32
    return %arg0, %c0_i32 : i32, i32
  }
  func.func @transform_1(%arg0: i32) -> (i32, i32) {
    %c0_i32 = arith.constant 0 : i32
    %c0_i32_0 = arith.constant 0 : i32
    %c0_i32_1 = arith.constant 0 : i32
    return %c0_i32, %c0_i32_0 : i32, i32
  }
  func.func @transform_2(%arg0: i32) -> (i32, i32) {
    %c0_i32 = arith.constant 0 : i32
    %c0_i32_0 = arith.constant 0 : i32
    %c0_i32_1 = arith.constant 0 : i32
    return %c0_i32, %c0_i32_0 : i32, i32
  }
  func.func @transform_3(%arg0: i32) -> (i32, i32) {
    %c0_i32 = arith.constant 0 : i32
    %c0_i32_0 = arith.constant 0 : i32
    return %arg0, %c0_i32 : i32, i32
  }
  func.func @transform_4(%arg0: i32) -> (i32, i32) {
    %c0_i32 = arith.constant 0 : i32
    %c0_i32_0 = arith.constant 0 : i32
    return %arg0, %c0_i32 : i32, i32
  }
}

module attributes {stable_mosaic.version = 11 : i64} {
  func.func @_fused_linear_kernel(%arg0: i32, %arg1: memref<16x32xf32, #tpu.memory_space<vmem>>, %arg2: memref<32x120xbf16, #tpu.memory_space<vmem>>, %arg3: memref<1x120xf32, #tpu.memory_space<vmem>>, %arg4: memref<16x120xf32, #tpu.memory_space<vmem>>) attributes {dimension_semantics = [#tpu.dimension_semantics<parallel>], iteration_bounds = array<i64: 1>, scalar_prefetch = 0 : i64, scratch_operands = 0 : i64, tpu.core_type = #tpu.core_type<tc>, window_params = [{transform_indices = @transform_0, window_bounds = array<i64: 16, 32>}, {pipeline_mode = #tpu.pipeline_mode<synchronous>, transform_indices = @transform_1, window_bounds = array<i64: 32, 120>}, {pipeline_mode = #tpu.pipeline_mode<synchronous>, transform_indices = @transform_2, window_bounds = array<i64: 1, 120>}, {transform_indices = @transform_3, window_bounds = array<i64: 16, 120>}]} {
    %c0 = arith.constant 0 : index
    %c0_0 = arith.constant 0 : index
    %0 = vector.load %arg1[%c0, %c0_0] : memref<16x32xf32, #tpu.memory_space<vmem>>, vector<16x32xf32>
    %c0_1 = arith.constant 0 : index
    %c0_2 = arith.constant 0 : index
    %1 = vector.load %arg2[%c0_1, %c0_2] : memref<32x120xbf16, #tpu.memory_space<vmem>>, vector<32x120xbf16>
    %c0_3 = arith.constant 0 : index
    %c0_4 = arith.constant 0 : index
    %2 = vector.load %arg3[%c0_3, %c0_4] : memref<1x120xf32, #tpu.memory_space<vmem>>, vector<1x120xf32>
    %3 = arith.truncf %0 : vector<16x32xf32> to vector<16x32xbf16>
    %cst = arith.constant dense<0.000000e+00> : vector<16x120xf32>
    %4 = tpu.matmul %3, %1, %cst {dimension_numbers = #tpu.dot_dimension_numbers<[1], [0], [0], [1], [0, 0, 1, 1], [], []>} : vector<16x32xbf16>, vector<32x120xbf16>, vector<16x120xf32> -> vector<16x120xf32>
    %5 = vector.broadcast %2 : vector<1x120xf32> to vector<16x120xf32>
    %6 = arith.addf %4, %5 : vector<16x120xf32>
    %c0_5 = arith.constant 0 : index
    %c0_6 = arith.constant 0 : index
    %7 = vector.load %arg4[%c0_5, %c0_6] : memref<16x120xf32, #tpu.memory_space<vmem>>, vector<16x120xf32>
    tpu.vector_store %arg4[%c0_5, %c0_6], %6 {strides = array<i32>} : memref<16x120xf32, #tpu.memory_space<vmem>>, vector<16x120xf32>,
    return
  }
  func.func @transform_0(%arg0: i32) -> (i32, i32) {
    %c0_i32 = arith.constant 0 : i32
    %c0_i32_0 = arith.constant 0 : i32
    return %arg0, %c0_i32 : i32, i32
  }
  func.func @transform_1(%arg0: i32) -> (i32, i32) {
    %c0_i32 = arith.constant 0 : i32
    %c0_i32_0 = arith.constant 0 : i32
    %c0_i32_1 = arith.constant 0 : i32
    return %c0_i32, %c0_i32_0 : i32, i32
  }
  func.func @transform_2(%arg0: i32) -> (i32, i32) {
    %c0_i32 = arith.constant 0 : i32
    %c0_i32_0 = arith.constant 0 : i32
    %c0_i32_1 = arith.constant 0 : i32
    return %c0_i32, %c0_i32_0 : i32, i32
  }
  func.func @transform_3(%arg0: i32) -> (i32, i32) {
    %c0_i32 = arith.constant 0 : i32
    %c0_i32_0 = arith.constant 0 : i32
    return %arg0, %c0_i32 : i32, i32
  }
}

module attributes {stable_mosaic.version = 11 : i64} {
  func.func @_ipa_attn_kernel(%arg0: i32, %arg1: memref<1x8x16xf32, #tpu.memory_space<vmem>>, %arg2: memref<1x8x16xf32, #tpu.memory_space<vmem>>, %arg3: memref<1x8x16xf32, #tpu.memory_space<vmem>>, %arg4: memref<1x8x24xf32, #tpu.memory_space<vmem>>, %arg5: memref<1x8x24xf32, #tpu.memory_space<vmem>>, %arg6: memref<1x8x24xf32, #tpu.memory_space<vmem>>, %arg7: memref<1x8x8x2xf32, #tpu.memory_space<vmem>>, %arg8: memref<1x8x8x16xf32, #tpu.memory_space<vmem>>, %arg9: memref<1x8x16xf32, #tpu.memory_space<vmem>>, %arg10: memref<1x8x24xf32, #tpu.memory_space<vmem>>, %arg11: memref<1x8x32xf32, #tpu.memory_space<vmem>>) attributes {dimension_semantics = [#tpu.dimension_semantics<parallel>], iteration_bounds = array<i64: 2>, scalar_prefetch = 0 : i64, scratch_operands = 0 : i64, tpu.core_type = #tpu.core_type<tc>, window_params = [{transform_indices = @transform_0, window_bounds = array<i64: 1, 8, 16>}, {transform_indices = @transform_1, window_bounds = array<i64: 1, 8, 16>}, {transform_indices = @transform_2, window_bounds = array<i64: 1, 8, 16>}, {transform_indices = @transform_3, window_bounds = array<i64: 1, 8, 24>}, {transform_indices = @transform_4, window_bounds = array<i64: 1, 8, 24>}, {transform_indices = @transform_5, window_bounds = array<i64: 1, 8, 24>}, {transform_indices = @transform_6, window_bounds = array<i64: 1, 8, 8, 2>}, {transform_indices = @transform_7, window_bounds = array<i64: 1, 8, 8, 16>}, {transform_indices = @transform_8, window_bounds = array<i64: 1, 8, 16>}, {transform_indices = @transform_9, window_bounds = array<i64: 1, 8, 24>}, {transform_indices = @transform_10, window_bounds = array<i64: 1, 8, 32>}]} {
    %c0 = arith.constant 0 : index
    %c0_0 = arith.constant 0 : index
    %c0_1 = arith.constant 0 : index
    %c0_2 = arith.constant 0 : index
    %0 = vector.load %arg8[%c0, %c0_0, %c0_1, %c0_2] : memref<1x8x8x16xf32, #tpu.memory_space<vmem>>, vector<1x8x8x16xf32>
    %1 = vector.shape_cast %0 : vector<1x8x8x16xf32> to vector<8x8x16xf32>
    %c0_3 = arith.constant 0 : index
    %c0_4 = arith.constant 0 : index
    %c0_5 = arith.constant 0 : index
    %2 = vector.load %arg1[%c0_3, %c0_4, %c0_5] : memref<1x8x16xf32, #tpu.memory_space<vmem>>, vector<1x8x8xf32>
    %3 = vector.shape_cast %2 : vector<1x8x8xf32> to vector<8x8xf32>
    %c0_6 = arith.constant 0 : index
    %c0_7 = arith.constant 0 : index
    %c0_8 = arith.constant 0 : index
    %4 = vector.load %arg2[%c0_6, %c0_7, %c0_8] : memref<1x8x16xf32, #tpu.memory_space<vmem>>, vector<1x8x8xf32>
    %5 = vector.shape_cast %4 : vector<1x8x8xf32> to vector<8x8xf32>
    %c0_9 = arith.constant 0 : index
    %c0_10 = arith.constant 0 : index
    %c0_11 = arith.constant 0 : index
    %6 = vector.load %arg3[%c0_9, %c0_10, %c0_11] : memref<1x8x16xf32, #tpu.memory_space<vmem>>, vector<1x8x8xf32>
    %7 = vector.shape_cast %6 : vector<1x8x8xf32> to vector<8x8xf32>
    %c0_12 = arith.constant 0 : index
    %c0_13 = arith.constant 0 : index
    %c0_14 = arith.constant 0 : index
    %8 = vector.load %arg4[%c0_12, %c0_13, %c0_14] : memref<1x8x24xf32, #tpu.memory_space<vmem>>, vector<1x8x12xf32>
    %9 = vector.shape_cast %8 : vector<1x8x12xf32> to vector<8x12xf32>
    %c0_15 = arith.constant 0 : index
    %c0_16 = arith.constant 0 : index
    %c0_17 = arith.constant 0 : index
    %10 = vector.load %arg5[%c0_15, %c0_16, %c0_17] : memref<1x8x24xf32, #tpu.memory_space<vmem>>, vector<1x8x12xf32>
    %11 = vector.shape_cast %10 : vector<1x8x12xf32> to vector<8x12xf32>
    %c0_18 = arith.constant 0 : index
    %c0_19 = arith.constant 0 : index
    %c0_20 = arith.constant 0 : index
    %12 = vector.load %arg6[%c0_18, %c0_19, %c0_20] : memref<1x8x24xf32, #tpu.memory_space<vmem>>, vector<1x8x12xf32>
    %13 = vector.shape_cast %12 : vector<1x8x12xf32> to vector<8x12xf32>
    %c0_21 = arith.constant 0 : index
    %c0_22 = arith.constant 0 : index
    %c0_23 = arith.constant 0 : index
    %c0_24 = arith.constant 0 : index
    %14 = vector.load %arg7[%c0_21, %c0_22, %c0_23, %c0_24] : memref<1x8x8x2xf32, #tpu.memory_space<vmem>>, vector<1x8x8x1xf32>
    %15 = vector.shape_cast %14 : vector<1x8x8x1xf32> to vector<8x8xf32>
    %16 = arith.truncf %3 : vector<8x8xf32> to vector<8x8xbf16>
    %17 = arith.truncf %5 : vector<8x8xf32> to vector<8x8xbf16>
    %cst = arith.constant dense<0.000000e+00> : vector<8x8xf32>
    %18 = tpu.matmul %16, %17, %cst {dimension_numbers = #tpu.dot_dimension_numbers<[1], [1], [0], [0], [0, 0, 1, 0], [], []>} : vector<8x8xbf16>, vector<8x8xbf16>, vector<8x8xf32> -> vector<8x8xf32>
    %cst_25 = arith.constant 0.204124153 : f32
    %19 = vector.broadcast %cst_25 : f32 to vector<8x8xf32>
    %20 = arith.mulf %18, %19 : vector<8x8xf32>
    %21 = arith.mulf %9, %9 : vector<8x12xf32>
    %cst_26 = arith.constant dense<0.000000e+00> : vector<8xf32>
    %22 = vector.multi_reduction <add>, %21, %cst_26 [1] : vector<8x12xf32> to vector<8xf32>
    %23 = vector.shape_cast %22 : vector<8xf32> to vector<8x1xf32>
    %cst_27 = arith.constant 1.000000e+00 : f32
    %24 = vector.broadcast %cst_27 : f32 to vector<1x12xf32>
    %25 = arith.mulf %11, %11 : vector<8x12xf32>
    %cst_28 = arith.constant dense<0.000000e+00> : vector<1x8xf32>
    %26 = tpu.matmul %24, %25, %cst_28 {dimension_numbers = #tpu.dot_dimension_numbers<[1], [1], [0], [0], [0, 0, 1, 0], [], []>} : vector<1x12xf32>, vector<8x12xf32>, vector<1x8xf32> -> vector<1x8xf32>
    %cst_29 = arith.constant dense<0.000000e+00> : vector<8x8xf32>
    %27 = tpu.matmul %9, %11, %cst_29 {dimension_numbers = #tpu.dot_dimension_numbers<[1], [1], [0], [0], [0, 0, 1, 0], [], []>} : vector<8x12xf32>, vector<8x12xf32>, vector<8x8xf32> -> vector<8x8xf32>
    %28 = arith.addf %20, %15 : vector<8x8xf32>
    %29 = vector.broadcast %23 : vector<8x1xf32> to vector<8x8xf32>
    %30 = vector.broadcast %26 : vector<1x8xf32> to vector<8x8xf32>
    %31 = arith.addf %29, %30 : vector<8x8xf32>
    %cst_30 = arith.constant 2.000000e+00 : f32
    %32 = vector.broadcast %cst_30 : f32 to vector<8x8xf32>
    %33 = arith.mulf %32, %27 : vector<8x8xf32>
    %34 = arith.subf %31, %33 : vector<8x8xf32>
    %35 = arith.subf %28, %34 : vector<8x8xf32>
    %cst_31 = arith.constant dense<0xFF800000> : vector<8xf32>
    %36 = vector.multi_reduction <maximumf>, %35, %cst_31 [1] : vector<8x8xf32> to vector<8xf32>
    %37 = vector.shape_cast %36 : vector<8xf32> to vector<8x1xf32>
    %38 = vector.broadcast %37 : vector<8x1xf32> to vector<8x8xf32>
    %39 = arith.subf %35, %38 : vector<8x8xf32>
    %40 = math.exp %39 : vector<8x8xf32>
    %cst_32 = arith.constant dense<0.000000e+00> : vector<8xf32>
    %41 = vector.multi_reduction <add>, %40, %cst_32 [1] : vector<8x8xf32> to vector<8xf32>
    %42 = vector.shape_cast %41 : vector<8xf32> to vector<8x1xf32>
    %43 = vector.broadcast %42 : vector<8x1xf32> to vector<8x8xf32>
    %44 = arith.divf %40, %43 : vector<8x8xf32>
    %45 = arith.truncf %44 : vector<8x8xf32> to vector<8x8xbf16>
    %46 = arith.truncf %7 : vector<8x8xf32> to vector<8x8xbf16>
    %cst_33 = arith.constant dense<0.000000e+00> : vector<8x8xf32>
    %47 = tpu.matmul %45, %46, %cst_33 {dimension_numbers = #tpu.dot_dimension_numbers<[1], [0], [0], [1], [0, 0, 1, 1], [], []>} : vector<8x8xbf16>, vector<8x8xbf16>, vector<8x8xf32> -> vector<8x8xf32>
    %c0_34 = arith.constant 0 : index
    %c0_35 = arith.constant 0 : index
    %c0_36 = arith.constant 0 : index
    %48 = vector.load %arg9[%c0_34, %c0_35, %c0_36] : memref<1x8x16xf32, #tpu.memory_space<vmem>>, vector<1x8x8xf32>
    %49 = vector.shape_cast %48 : vector<1x8x8xf32> to vector<8x8xf32>
    %50 = vector.shape_cast %47 : vector<8x8xf32> to vector<1x8x8xf32>
    tpu.vector_store %arg9[%c0_34, %c0_35, %c0_36], %50 {strides = array<i32>} : memref<1x8x16xf32, #tpu.memory_space<vmem>>, vector<1x8x8xf32>,
    %51 = arith.truncf %13 : vector<8x12xf32> to vector<8x12xbf16>
    %cst_37 = arith.constant dense<0.000000e+00> : vector<8x12xf32>
    %52 = tpu.matmul %45, %51, %cst_37 {dimension_numbers = #tpu.dot_dimension_numbers<[1], [0], [0], [1], [0, 0, 1, 1], [], []>} : vector<8x8xbf16>, vector<8x12xbf16>, vector<8x12xf32> -> vector<8x12xf32>
    %c0_38 = arith.constant 0 : index
    %c0_39 = arith.constant 0 : index
    %c0_40 = arith.constant 0 : index
    %53 = vector.load %arg10[%c0_38, %c0_39, %c0_40] : memref<1x8x24xf32, #tpu.memory_space<vmem>>, vector<1x8x12xf32>
    %54 = vector.shape_cast %53 : vector<1x8x12xf32> to vector<8x12xf32>
    %55 = vector.shape_cast %52 : vector<8x12xf32> to vector<1x8x12xf32>
    tpu.vector_store %arg10[%c0_38, %c0_39, %c0_40], %55 {strides = array<i32>} : memref<1x8x24xf32, #tpu.memory_space<vmem>>, vector<1x8x12xf32>,
    %56 = vector.shape_cast %44 : vector<8x8xf32> to vector<8x8x1xf32>
    %57 = vector.broadcast %56 : vector<8x8x1xf32> to vector<8x8x16xf32>
    %58 = arith.mulf %57, %1 : vector<8x8x16xf32>
    %cst_41 = arith.constant dense<0.000000e+00> : vector<8x16xf32>
    %59 = vector.multi_reduction <add>, %58, %cst_41 [1] : vector<8x8x16xf32> to vector<8x16xf32>
    %c0_42 = arith.constant 0 : index
    %c0_43 = arith.constant 0 : index
    %c0_44 = arith.constant 0 : index
    %60 = vector.load %arg11[%c0_42, %c0_43, %c0_44] : memref<1x8x32xf32, #tpu.memory_space<vmem>>, vector<1x8x16xf32>
    %61 = vector.shape_cast %60 : vector<1x8x16xf32> to vector<8x16xf32>
    %62 = vector.shape_cast %59 : vector<8x16xf32> to vector<1x8x16xf32>
    tpu.vector_store %arg11[%c0_42, %c0_43, %c0_44], %62 {strides = array<i32>} : memref<1x8x32xf32, #tpu.memory_space<vmem>>, vector<1x8x16xf32>,
    %c0_45 = arith.constant 0 : index
    %c0_46 = arith.constant 0 : index
    %c8 = arith.constant 8 : index
    %63 = vector.load %arg1[%c0_45, %c0_46, %c8] : memref<1x8x16xf32, #tpu.memory_space<vmem>>, vector<1x8x8xf32>
    %64 = vector.shape_cast %63 : vector<1x8x8xf32> to vector<8x8xf32>
    %c0_47 = arith.constant 0 : index
    %c0_48 = arith.constant 0 : index
    %c8_49 = arith.constant 8 : index
    %65 = vector.load %arg2[%c0_47, %c0_48, %c8_49] : memref<1x8x16xf32, #tpu.memory_space<vmem>>, vector<1x8x8xf32>
    %66 = vector.shape_cast %65 : vector<1x8x8xf32> to vector<8x8xf32>
    %c0_50 = arith.constant 0 : index
    %c0_51 = arith.constant 0 : index
    %c8_52 = arith.constant 8 : index
    %67 = vector.load %arg3[%c0_50, %c0_51, %c8_52] : memref<1x8x16xf32, #tpu.memory_space<vmem>>, vector<1x8x8xf32>
    %68 = vector.shape_cast %67 : vector<1x8x8xf32> to vector<8x8xf32>
    %c0_53 = arith.constant 0 : index
    %c0_54 = arith.constant 0 : index
    %c12 = arith.constant 12 : index
    %69 = vector.load %arg4[%c0_53, %c0_54, %c12] : memref<1x8x24xf32, #tpu.memory_space<vmem>>, vector<1x8x12xf32>
    %70 = vector.shape_cast %69 : vector<1x8x12xf32> to vector<8x12xf32>
    %c0_55 = arith.constant 0 : index
    %c0_56 = arith.constant 0 : index
    %c12_57 = arith.constant 12 : index
    %71 = vector.load %arg5[%c0_55, %c0_56, %c12_57] : memref<1x8x24xf32, #tpu.memory_space<vmem>>, vector<1x8x12xf32>
    %72 = vector.shape_cast %71 : vector<1x8x12xf32> to vector<8x12xf32>
    %c0_58 = arith.constant 0 : index
    %c0_59 = arith.constant 0 : index
    %c12_60 = arith.constant 12 : index
    %73 = vector.load %arg6[%c0_58, %c0_59, %c12_60] : memref<1x8x24xf32, #tpu.memory_space<vmem>>, vector<1x8x12xf32>
    %74 = vector.shape_cast %73 : vector<1x8x12xf32> to vector<8x12xf32>
    %c0_61 = arith.constant 0 : index
    %c0_62 = arith.constant 0 : index
    %c0_63 = arith.constant 0 : index
    %c1 = arith.constant 1 : index
    %75 = vector.load %arg7[%c0_61, %c0_62, %c0_63, %c1] : memref<1x8x8x2xf32, #tpu.memory_space<vmem>>, vector<1x8x8x1xf32>
    %76 = vector.shape_cast %75 : vector<1x8x8x1xf32> to vector<8x8xf32>
    %77 = arith.truncf %64 : vector<8x8xf32> to vector<8x8xbf16>
    %78 = arith.truncf %66 : vector<8x8xf32> to vector<8x8xbf16>
    %cst_64 = arith.constant dense<0.000000e+00> : vector<8x8xf32>
    %79 = tpu.matmul %77, %78, %cst_64 {dimension_numbers = #tpu.dot_dimension_numbers<[1], [1], [0], [0], [0, 0, 1, 0], [], []>} : vector<8x8xbf16>, vector<8x8xbf16>, vector<8x8xf32> -> vector<8x8xf32>
    %cst_65 = arith.constant 0.204124153 : f32
    %80 = vector.broadcast %cst_65 : f32 to vector<8x8xf32>
    %81 = arith.mulf %79, %80 : vector<8x8xf32>
    %82 = arith.mulf %70, %70 : vector<8x12xf32>
    %cst_66 = arith.constant dense<0.000000e+00> : vector<8xf32>
    %83 = vector.multi_reduction <add>, %82, %cst_66 [1] : vector<8x12xf32> to vector<8xf32>
    %84 = vector.shape_cast %83 : vector<8xf32> to vector<8x1xf32>
    %cst_67 = arith.constant 1.000000e+00 : f32
    %85 = vector.broadcast %cst_67 : f32 to vector<1x12xf32>
    %86 = arith.mulf %72, %72 : vector<8x12xf32>
    %cst_68 = arith.constant dense<0.000000e+00> : vector<1x8xf32>
    %87 = tpu.matmul %85, %86, %cst_68 {dimension_numbers = #tpu.dot_dimension_numbers<[1], [1], [0], [0], [0, 0, 1, 0], [], []>} : vector<1x12xf32>, vector<8x12xf32>, vector<1x8xf32> -> vector<1x8xf32>
    %cst_69 = arith.constant dense<0.000000e+00> : vector<8x8xf32>
    %88 = tpu.matmul %70, %72, %cst_69 {dimension_numbers = #tpu.dot_dimension_numbers<[1], [1], [0], [0], [0, 0, 1, 0], [], []>} : vector<8x12xf32>, vector<8x12xf32>, vector<8x8xf32> -> vector<8x8xf32>
    %89 = arith.addf %81, %76 : vector<8x8xf32>
    %90 = vector.broadcast %84 : vector<8x1xf32> to vector<8x8xf32>
    %91 = vector.broadcast %87 : vector<1x8xf32> to vector<8x8xf32>
    %92 = arith.addf %90, %91 : vector<8x8xf32>
    %cst_70 = arith.constant 2.000000e+00 : f32
    %93 = vector.broadcast %cst_70 : f32 to vector<8x8xf32>
    %94 = arith.mulf %93, %88 : vector<8x8xf32>
    %95 = arith.subf %92, %94 : vector<8x8xf32>
    %96 = arith.subf %89, %95 : vector<8x8xf32>
    %cst_71 = arith.constant dense<0xFF800000> : vector<8xf32>
    %97 = vector.multi_reduction <maximumf>, %96, %cst_71 [1] : vector<8x8xf32> to vector<8xf32>
    %98 = vector.shape_cast %97 : vector<8xf32> to vector<8x1xf32>
    %99 = vector.broadcast %98 : vector<8x1xf32> to vector<8x8xf32>
    %100 = arith.subf %96, %99 : vector<8x8xf32>
    %101 = math.exp %100 : vector<8x8xf32>
    %cst_72 = arith.constant dense<0.000000e+00> : vector<8xf32>
    %102 = vector.multi_reduction <add>, %101, %cst_72 [1] : vector<8x8xf32> to vector<8xf32>
    %103 = vector.shape_cast %102 : vector<8xf32> to vector<8x1xf32>
    %104 = vector.broadcast %103 : vector<8x1xf32> to vector<8x8xf32>
    %105 = arith.divf %101, %104 : vector<8x8xf32>
    %106 = arith.truncf %105 : vector<8x8xf32> to vector<8x8xbf16>
    %107 = arith.truncf %68 : vector<8x8xf32> to vector<8x8xbf16>
    %cst_73 = arith.constant dense<0.000000e+00> : vector<8x8xf32>
    %108 = tpu.matmul %106, %107, %cst_73 {dimension_numbers = #tpu.dot_dimension_numbers<[1], [0], [0], [1], [0, 0, 1, 1], [], []>} : vector<8x8xbf16>, vector<8x8xbf16>, vector<8x8xf32> -> vector<8x8xf32>
    %c0_74 = arith.constant 0 : index
    %c0_75 = arith.constant 0 : index
    %c8_76 = arith.constant 8 : index
    %109 = vector.load %arg9[%c0_74, %c0_75, %c8_76] : memref<1x8x16xf32, #tpu.memory_space<vmem>>, vector<1x8x8xf32>
    %110 = vector.shape_cast %109 : vector<1x8x8xf32> to vector<8x8xf32>
    %111 = vector.shape_cast %108 : vector<8x8xf32> to vector<1x8x8xf32>
    tpu.vector_store %arg9[%c0_74, %c0_75, %c8_76], %111 {strides = array<i32>} : memref<1x8x16xf32, #tpu.memory_space<vmem>>, vector<1x8x8xf32>,
    %112 = arith.truncf %74 : vector<8x12xf32> to vector<8x12xbf16>
    %cst_77 = arith.constant dense<0.000000e+00> : vector<8x12xf32>
    %113 = tpu.matmul %106, %112, %cst_77 {dimension_numbers = #tpu.dot_dimension_numbers<[1], [0], [0], [1], [0, 0, 1, 1], [], []>} : vector<8x8xbf16>, vector<8x12xbf16>, vector<8x12xf32> -> vector<8x12xf32>
    %c0_78 = arith.constant 0 : index
    %c0_79 = arith.constant 0 : index
    %c12_80 = arith.constant 12 : index
    %114 = vector.load %arg10[%c0_78, %c0_79, %c12_80] : memref<1x8x24xf32, #tpu.memory_space<vmem>>, vector<1x8x12xf32>
    %115 = vector.shape_cast %114 : vector<1x8x12xf32> to vector<8x12xf32>
    %116 = vector.shape_cast %113 : vector<8x12xf32> to vector<1x8x12xf32>
    tpu.vector_store %arg10[%c0_78, %c0_79, %c12_80], %116 {strides = array<i32>} : memref<1x8x24xf32, #tpu.memory_space<vmem>>, vector<1x8x12xf32>,
    %117 = vector.shape_cast %105 : vector<8x8xf32> to vector<8x8x1xf32>
    %118 = vector.broadcast %117 : vector<8x8x1xf32> to vector<8x8x16xf32>
    %119 = arith.mulf %118, %1 : vector<8x8x16xf32>
    %cst_81 = arith.constant dense<0.000000e+00> : vector<8x16xf32>
    %120 = vector.multi_reduction <add>, %119, %cst_81 [1] : vector<8x8x16xf32> to vector<8x16xf32>
    %c0_82 = arith.constant 0 : index
    %c0_83 = arith.constant 0 : index
    %c16 = arith.constant 16 : index
    %121 = vector.load %arg11[%c0_82, %c0_83, %c16] : memref<1x8x32xf32, #tpu.memory_space<vmem>>, vector<1x8x16xf32>
    %122 = vector.shape_cast %121 : vector<1x8x16xf32> to vector<8x16xf32>
    %123 = vector.shape_cast %120 : vector<8x16xf32> to vector<1x8x16xf32>
    tpu.vector_store %arg11[%c0_82, %c0_83, %c16], %123 {strides = array<i32>} : memref<1x8x32xf32, #tpu.memory_space<vmem>>, vector<1x8x16xf32>,
    return
  }
  func.func @transform_0(%arg0: i32) -> (i32, i32, i32) {
    %c0_i32 = arith.constant 0 : i32
    %c0_i32_0 = arith.constant 0 : i32
    %c0_i32_1 = arith.constant 0 : i32
    return %arg0, %c0_i32, %c0_i32_0 : i32, i32, i32
  }
  func.func @transform_1(%arg0: i32) -> (i32, i32, i32) {
    %c0_i32 = arith.constant 0 : i32
    %c0_i32_0 = arith.constant 0 : i32
    %c0_i32_1 = arith.constant 0 : i32
    return %arg0, %c0_i32, %c0_i32_0 : i32, i32, i32
  }
  func.func @transform_2(%arg0: i32) -> (i32, i32, i32) {
    %c0_i32 = arith.constant 0 : i32
    %c0_i32_0 = arith.constant 0 : i32
    %c0_i32_1 = arith.constant 0 : i32
    return %arg0, %c0_i32, %c0_i32_0 : i32, i32, i32
  }
  func.func @transform_3(%arg0: i32) -> (i32, i32, i32) {
    %c0_i32 = arith.constant 0 : i32
    %c0_i32_0 = arith.constant 0 : i32
    %c0_i32_1 = arith.constant 0 : i32
    return %arg0, %c0_i32, %c0_i32_0 : i32, i32, i32
  }
  func.func @transform_4(%arg0: i32) -> (i32, i32, i32) {
    %c0_i32 = arith.constant 0 : i32
    %c0_i32_0 = arith.constant 0 : i32
    %c0_i32_1 = arith.constant 0 : i32
    return %arg0, %c0_i32, %c0_i32_0 : i32, i32, i32
  }
  func.func @transform_5(%arg0: i32) -> (i32, i32, i32) {
    %c0_i32 = arith.constant 0 : i32
    %c0_i32_0 = arith.constant 0 : i32
    %c0_i32_1 = arith.constant 0 : i32
    return %arg0, %c0_i32, %c0_i32_0 : i32, i32, i32
  }
  func.func @transform_6(%arg0: i32) -> (i32, i32, i32, i32) {
    %c0_i32 = arith.constant 0 : i32
    %c0_i32_0 = arith.constant 0 : i32
    %c0_i32_1 = arith.constant 0 : i32
    %c0_i32_2 = arith.constant 0 : i32
    return %arg0, %c0_i32, %c0_i32_0, %c0_i32_1 : i32, i32, i32, i32
  }
  func.func @transform_7(%arg0: i32) -> (i32, i32, i32, i32) {
    %c0_i32 = arith.constant 0 : i32
    %c0_i32_0 = arith.constant 0 : i32
    %c0_i32_1 = arith.constant 0 : i32
    %c0_i32_2 = arith.constant 0 : i32
    return %arg0, %c0_i32, %c0_i32_0, %c0_i32_1 : i32, i32, i32, i32
  }
  func.func @transform_8(%arg0: i32) -> (i32, i32, i32) {
    %c0_i32 = arith.constant 0 : i32
    %c0_i32_0 = arith.constant 0 : i32
    %c0_i32_1 = arith.constant 0 : i32
    return %arg0, %c0_i32, %c0_i32_0 : i32, i32, i32
  }
  func.func @transform_9(%arg0: i32) -> (i32, i32, i32) {
    %c0_i32 = arith.constant 0 : i32
    %c0_i32_0 = arith.constant 0 : i32
    %c0_i32_1 = arith.constant 0 : i32
    return %arg0, %c0_i32, %c0_i32_0 : i32, i32, i32
  }
  func.func @transform_10(%arg0: i32) -> (i32, i32, i32) {
    %c0_i32 = arith.constant 0 : i32
    %c0_i32_0 = arith.constant 0 : i32
    %c0_i32_1 = arith.constant 0 : i32
    return %arg0, %c0_i32, %c0_i32_0 : i32, i32, i32
  }
}

module attributes {stable_mosaic.version = 11 : i64} {
  func.func @_fused_linear_kernel(%arg0: i32, %arg1: memref<16x80xf32, #tpu.memory_space<vmem>>, %arg2: memref<80x32xbf16, #tpu.memory_space<vmem>>, %arg3: memref<1x32xf32, #tpu.memory_space<vmem>>, %arg4: memref<16x32xf32, #tpu.memory_space<vmem>>) attributes {dimension_semantics = [#tpu.dimension_semantics<parallel>], iteration_bounds = array<i64: 1>, scalar_prefetch = 0 : i64, scratch_operands = 0 : i64, tpu.core_type = #tpu.core_type<tc>, window_params = [{transform_indices = @transform_0, window_bounds = array<i64: 16, 80>}, {pipeline_mode = #tpu.pipeline_mode<synchronous>, transform_indices = @transform_1, window_bounds = array<i64: 80, 32>}, {pipeline_mode = #tpu.pipeline_mode<synchronous>, transform_indices = @transform_2, window_bounds = array<i64: 1, 32>}, {transform_indices = @transform_3, window_bounds = array<i64: 16, 32>}]} {
    %c0 = arith.constant 0 : index
    %c0_0 = arith.constant 0 : index
    %0 = vector.load %arg1[%c0, %c0_0] : memref<16x80xf32, #tpu.memory_space<vmem>>, vector<16x80xf32>
    %c0_1 = arith.constant 0 : index
    %c0_2 = arith.constant 0 : index
    %1 = vector.load %arg2[%c0_1, %c0_2] : memref<80x32xbf16, #tpu.memory_space<vmem>>, vector<80x32xbf16>
    %c0_3 = arith.constant 0 : index
    %c0_4 = arith.constant 0 : index
    %2 = vector.load %arg3[%c0_3, %c0_4] : memref<1x32xf32, #tpu.memory_space<vmem>>, vector<1x32xf32>
    %3 = arith.truncf %0 : vector<16x80xf32> to vector<16x80xbf16>
    %cst = arith.constant dense<0.000000e+00> : vector<16x32xf32>
    %4 = tpu.matmul %3, %1, %cst {dimension_numbers = #tpu.dot_dimension_numbers<[1], [0], [0], [1], [0, 0, 1, 1], [], []>} : vector<16x80xbf16>, vector<80x32xbf16>, vector<16x32xf32> -> vector<16x32xf32>
    %5 = vector.broadcast %2 : vector<1x32xf32> to vector<16x32xf32>
    %6 = arith.addf %4, %5 : vector<16x32xf32>
    %c0_5 = arith.constant 0 : index
    %c0_6 = arith.constant 0 : index
    %7 = vector.load %arg4[%c0_5, %c0_6] : memref<16x32xf32, #tpu.memory_space<vmem>>, vector<16x32xf32>
    tpu.vector_store %arg4[%c0_5, %c0_6], %6 {strides = array<i32>} : memref<16x32xf32, #tpu.memory_space<vmem>>, vector<16x32xf32>,
    return
  }
  func.func @transform_0(%arg0: i32) -> (i32, i32) {
    %c0_i32 = arith.constant 0 : i32
    %c0_i32_0 = arith.constant 0 : i32
    return %arg0, %c0_i32 : i32, i32
  }
  func.func @transform_1(%arg0: i32) -> (i32, i32) {
    %c0_i32 = arith.constant 0 : i32
    %c0_i32_0 = arith.constant 0 : i32
    %c0_i32_1 = arith.constant 0 : i32
    return %c0_i32, %c0_i32_0 : i32, i32
  }
  func.func @transform_2(%arg0: i32) -> (i32, i32) {
    %c0_i32 = arith.constant 0 : i32
    %c0_i32_0 = arith.constant 0 : i32
    %c0_i32_1 = arith.constant 0 : i32
    return %c0_i32, %c0_i32_0 : i32, i32
  }
  func.func @transform_3(%arg0: i32) -> (i32, i32) {
    %c0_i32 = arith.constant 0 : i32
    %c0_i32_0 = arith.constant 0 : i32
    return %arg0, %c0_i32 : i32, i32
  }
}

module attributes {stable_mosaic.version = 11 : i64} {
  func.func @_add_ln_kernel(%arg0: i32, %arg1: memref<16x32xf32, #tpu.memory_space<vmem>>, %arg2: memref<16x32xf32, #tpu.memory_space<vmem>>, %arg3: memref<1x32xf32, #tpu.memory_space<vmem>>, %arg4: memref<1x32xf32, #tpu.memory_space<vmem>>, %arg5: memref<16x32xf32, #tpu.memory_space<vmem>>) attributes {dimension_semantics = [#tpu.dimension_semantics<parallel>], iteration_bounds = array<i64: 1>, scalar_prefetch = 0 : i64, scratch_operands = 0 : i64, tpu.core_type = #tpu.core_type<tc>, window_params = [{transform_indices = @transform_0, window_bounds = array<i64: 16, 32>}, {transform_indices = @transform_1, window_bounds = array<i64: 16, 32>}, {pipeline_mode = #tpu.pipeline_mode<synchronous>, transform_indices = @transform_2, window_bounds = array<i64: 1, 32>}, {pipeline_mode = #tpu.pipeline_mode<synchronous>, transform_indices = @transform_3, window_bounds = array<i64: 1, 32>}, {transform_indices = @transform_4, window_bounds = array<i64: 16, 32>}]} {
    %c0 = arith.constant 0 : index
    %c0_0 = arith.constant 0 : index
    %0 = vector.load %arg1[%c0, %c0_0] : memref<16x32xf32, #tpu.memory_space<vmem>>, vector<16x32xf32>
    %c0_1 = arith.constant 0 : index
    %c0_2 = arith.constant 0 : index
    %1 = vector.load %arg2[%c0_1, %c0_2] : memref<16x32xf32, #tpu.memory_space<vmem>>, vector<16x32xf32>
    %2 = arith.addf %0, %1 : vector<16x32xf32>
    %cst = arith.constant dense<0.000000e+00> : vector<16xf32>
    %3 = vector.multi_reduction <add>, %2, %cst [1] : vector<16x32xf32> to vector<16xf32>
    %4 = vector.shape_cast %3 : vector<16xf32> to vector<16x1xf32>
    %cst_3 = arith.constant 3.200000e+01 : f32
    %5 = vector.broadcast %cst_3 : f32 to vector<16x1xf32>
    %6 = arith.divf %4, %5 : vector<16x1xf32>
    %7 = vector.broadcast %6 : vector<16x1xf32> to vector<16x32xf32>
    %8 = arith.subf %2, %7 : vector<16x32xf32>
    %9 = arith.mulf %8, %8 : vector<16x32xf32>
    %cst_4 = arith.constant dense<0.000000e+00> : vector<16xf32>
    %10 = vector.multi_reduction <add>, %9, %cst_4 [1] : vector<16x32xf32> to vector<16xf32>
    %11 = vector.shape_cast %10 : vector<16xf32> to vector<16x1xf32>
    %cst_5 = arith.constant 3.200000e+01 : f32
    %12 = vector.broadcast %cst_5 : f32 to vector<16x1xf32>
    %13 = arith.divf %11, %12 : vector<16x1xf32>
    %14 = vector.broadcast %6 : vector<16x1xf32> to vector<16x32xf32>
    %15 = arith.subf %2, %14 : vector<16x32xf32>
    %cst_6 = arith.constant 9.99999974E-6 : f32
    %16 = vector.broadcast %cst_6 : f32 to vector<16x1xf32>
    %17 = arith.addf %13, %16 : vector<16x1xf32>
    %18 = math.rsqrt %17 : vector<16x1xf32>
    %19 = vector.broadcast %18 : vector<16x1xf32> to vector<16x32xf32>
    %20 = arith.mulf %15, %19 : vector<16x32xf32>
    %c0_7 = arith.constant 0 : index
    %c0_8 = arith.constant 0 : index
    %21 = vector.load %arg3[%c0_7, %c0_8] : memref<1x32xf32, #tpu.memory_space<vmem>>, vector<1x32xf32>
    %22 = vector.broadcast %21 : vector<1x32xf32> to vector<16x32xf32>
    %23 = arith.mulf %20, %22 : vector<16x32xf32>
    %c0_9 = arith.constant 0 : index
    %c0_10 = arith.constant 0 : index
    %24 = vector.load %arg4[%c0_9, %c0_10] : memref<1x32xf32, #tpu.memory_space<vmem>>, vector<1x32xf32>
    %25 = vector.broadcast %24 : vector<1x32xf32> to vector<16x32xf32>
    %26 = arith.addf %23, %25 : vector<16x32xf32>
    %c0_11 = arith.constant 0 : index
    %c0_12 = arith.constant 0 : index
    %27 = vector.load %arg5[%c0_11, %c0_12] : memref<16x32xf32, #tpu.memory_space<vmem>>, vector<16x32xf32>
    tpu.vector_store %arg5[%c0_11, %c0_12], %26 {strides = array<i32>} : memref<16x32xf32, #tpu.memory_space<vmem>>, vector<16x32xf32>,
    return
  }
  func.func @transform_0(%arg0: i32) -> (i32, i32) {
    %c0_i32 = arith.constant 0 : i32
    %c0_i32_0 = arith.constant 0 : i32
    return %arg0, %c0_i32 : i32, i32
  }
  func.func @transform_1(%arg0: i32) -> (i32, i32) {
    %c0_i32 = arith.constant 0 : i32
    %c0_i32_0 = arith.constant 0 : i32
    return %arg0, %c0_i32 : i32, i32
  }
  func.func @transform_2(%arg0: i32) -> (i32, i32) {
    %c0_i32 = arith.constant 0 : i32
    %c0_i32_0 = arith.constant 0 : i32
    %c0_i32_1 = arith.constant 0 : i32
    return %c0_i32, %c0_i32_0 : i32, i32
  }
  func.func @transform_3(%arg0: i32) -> (i32, i32) {
    %c0_i32 = arith.constant 0 : i32
    %c0_i32_0 = arith.constant 0 : i32
    %c0_i32_1 = arith.constant 0 : i32
    return %c0_i32, %c0_i32_0 : i32, i32
  }
  func.func @transform_4(%arg0: i32) -> (i32, i32) {
    %c0_i32 = arith.constant 0 : i32
    %c0_i32_0 = arith.constant 0 : i32
    return %arg0, %c0_i32 : i32, i32
  }
}

module attributes {stable_mosaic.version = 11 : i64} {
  func.func @_transition_kernel(%arg0: i32, %arg1: memref<16x32xf32, #tpu.memory_space<vmem>>, %arg2: memref<32x32xbf16, #tpu.memory_space<vmem>>, %arg3: memref<1x32xf32, #tpu.memory_space<vmem>>, %arg4: memref<32x32xbf16, #tpu.memory_space<vmem>>, %arg5: memref<1x32xf32, #tpu.memory_space<vmem>>, %arg6: memref<32x32xbf16, #tpu.memory_space<vmem>>, %arg7: memref<1x32xf32, #tpu.memory_space<vmem>>, %arg8: memref<1x32xf32, #tpu.memory_space<vmem>>, %arg9: memref<1x32xf32, #tpu.memory_space<vmem>>, %arg10: memref<16x32xf32, #tpu.memory_space<vmem>>) attributes {dimension_semantics = [#tpu.dimension_semantics<parallel>], iteration_bounds = array<i64: 1>, scalar_prefetch = 0 : i64, scratch_operands = 0 : i64, tpu.core_type = #tpu.core_type<tc>, window_params = [{transform_indices = @transform_0, window_bounds = array<i64: 16, 32>}, {pipeline_mode = #tpu.pipeline_mode<synchronous>, transform_indices = @transform_1, window_bounds = array<i64: 32, 32>}, {pipeline_mode = #tpu.pipeline_mode<synchronous>, transform_indices = @transform_2, window_bounds = array<i64: 1, 32>}, {pipeline_mode = #tpu.pipeline_mode<synchronous>, transform_indices = @transform_3, window_bounds = array<i64: 32, 32>}, {pipeline_mode = #tpu.pipeline_mode<synchronous>, transform_indices = @transform_4, window_bounds = array<i64: 1, 32>}, {pipeline_mode = #tpu.pipeline_mode<synchronous>, transform_indices = @transform_5, window_bounds = array<i64: 32, 32>}, {pipeline_mode = #tpu.pipeline_mode<synchronous>, transform_indices = @transform_6, window_bounds = array<i64: 1, 32>}, {pipeline_mode = #tpu.pipeline_mode<synchronous>, transform_indices = @transform_7, window_bounds = array<i64: 1, 32>}, {pipeline_mode = #tpu.pipeline_mode<synchronous>, transform_indices = @transform_8, window_bounds = array<i64: 1, 32>}, {transform_indices = @transform_9, window_bounds = array<i64: 16, 32>}]} {
    %c0 = arith.constant 0 : index
    %c0_0 = arith.constant 0 : index
    %0 = vector.load %arg1[%c0, %c0_0] : memref<16x32xf32, #tpu.memory_space<vmem>>, vector<16x32xf32>
    %1 = arith.truncf %0 : vector<16x32xf32> to vector<16x32xbf16>
    %c0_1 = arith.constant 0 : index
    %c0_2 = arith.constant 0 : index
    %2 = vector.load %arg2[%c0_1, %c0_2] : memref<32x32xbf16, #tpu.memory_space<vmem>>, vector<32x32xbf16>
    %cst = arith.constant dense<0.000000e+00> : vector<16x32xf32>
    %3 = tpu.matmul %1, %2, %cst {dimension_numbers = #tpu.dot_dimension_numbers<[1], [0], [0], [1], [0, 0, 1, 1], [], []>} : vector<16x32xbf16>, vector<32x32xbf16>, vector<16x32xf32> -> vector<16x32xf32>
    %c0_3 = arith.constant 0 : index
    %c0_4 = arith.constant 0 : index
    %4 = vector.load %arg3[%c0_3, %c0_4] : memref<1x32xf32, #tpu.memory_space<vmem>>, vector<1x32xf32>
    %5 = vector.broadcast %4 : vector<1x32xf32> to vector<16x32xf32>
    %6 = arith.addf %3, %5 : vector<16x32xf32>
    %cst_5 = arith.constant 0.000000e+00 : f32
    %7 = vector.broadcast %cst_5 : f32 to vector<16x32xf32>
    %8 = arith.maximumf %6, %7 : vector<16x32xf32>
    %9 = arith.truncf %8 : vector<16x32xf32> to vector<16x32xbf16>
    %c0_6 = arith.constant 0 : index
    %c0_7 = arith.constant 0 : index
    %10 = vector.load %arg4[%c0_6, %c0_7] : memref<32x32xbf16, #tpu.memory_space<vmem>>, vector<32x32xbf16>
    %cst_8 = arith.constant dense<0.000000e+00> : vector<16x32xf32>
    %11 = tpu.matmul %9, %10, %cst_8 {dimension_numbers = #tpu.dot_dimension_numbers<[1], [0], [0], [1], [0, 0, 1, 1], [], []>} : vector<16x32xbf16>, vector<32x32xbf16>, vector<16x32xf32> -> vector<16x32xf32>
    %c0_9 = arith.constant 0 : index
    %c0_10 = arith.constant 0 : index
    %12 = vector.load %arg5[%c0_9, %c0_10] : memref<1x32xf32, #tpu.memory_space<vmem>>, vector<1x32xf32>
    %13 = vector.broadcast %12 : vector<1x32xf32> to vector<16x32xf32>
    %14 = arith.addf %11, %13 : vector<16x32xf32>
    %cst_11 = arith.constant 0.000000e+00 : f32
    %15 = vector.broadcast %cst_11 : f32 to vector<16x32xf32>
    %16 = arith.maximumf %14, %15 : vector<16x32xf32>
    %17 = arith.truncf %16 : vector<16x32xf32> to vector<16x32xbf16>
    %c0_12 = arith.constant 0 : index
    %c0_13 = arith.constant 0 : index
    %18 = vector.load %arg6[%c0_12, %c0_13] : memref<32x32xbf16, #tpu.memory_space<vmem>>, vector<32x32xbf16>
    %cst_14 = arith.constant dense<0.000000e+00> : vector<16x32xf32>
    %19 = tpu.matmul %17, %18, %cst_14 {dimension_numbers = #tpu.dot_dimension_numbers<[1], [0], [0], [1], [0, 0, 1, 1], [], []>} : vector<16x32xbf16>, vector<32x32xbf16>, vector<16x32xf32> -> vector<16x32xf32>
    %c0_15 = arith.constant 0 : index
    %c0_16 = arith.constant 0 : index
    %20 = vector.load %arg7[%c0_15, %c0_16] : memref<1x32xf32, #tpu.memory_space<vmem>>, vector<1x32xf32>
    %21 = vector.broadcast %20 : vector<1x32xf32> to vector<16x32xf32>
    %22 = arith.addf %19, %21 : vector<16x32xf32>
    %23 = arith.addf %0, %22 : vector<16x32xf32>
    %cst_17 = arith.constant dense<0.000000e+00> : vector<16xf32>
    %24 = vector.multi_reduction <add>, %23, %cst_17 [1] : vector<16x32xf32> to vector<16xf32>
    %25 = vector.shape_cast %24 : vector<16xf32> to vector<16x1xf32>
    %cst_18 = arith.constant 3.200000e+01 : f32
    %26 = vector.broadcast %cst_18 : f32 to vector<16x1xf32>
    %27 = arith.divf %25, %26 : vector<16x1xf32>
    %28 = vector.broadcast %27 : vector<16x1xf32> to vector<16x32xf32>
    %29 = arith.subf %23, %28 : vector<16x32xf32>
    %30 = arith.mulf %29, %29 : vector<16x32xf32>
    %cst_19 = arith.constant dense<0.000000e+00> : vector<16xf32>
    %31 = vector.multi_reduction <add>, %30, %cst_19 [1] : vector<16x32xf32> to vector<16xf32>
    %32 = vector.shape_cast %31 : vector<16xf32> to vector<16x1xf32>
    %cst_20 = arith.constant 3.200000e+01 : f32
    %33 = vector.broadcast %cst_20 : f32 to vector<16x1xf32>
    %34 = arith.divf %32, %33 : vector<16x1xf32>
    %35 = vector.broadcast %27 : vector<16x1xf32> to vector<16x32xf32>
    %36 = arith.subf %23, %35 : vector<16x32xf32>
    %cst_21 = arith.constant 9.99999974E-6 : f32
    %37 = vector.broadcast %cst_21 : f32 to vector<16x1xf32>
    %38 = arith.addf %34, %37 : vector<16x1xf32>
    %39 = math.rsqrt %38 : vector<16x1xf32>
    %40 = vector.broadcast %39 : vector<16x1xf32> to vector<16x32xf32>
    %41 = arith.mulf %36, %40 : vector<16x32xf32>
    %c0_22 = arith.constant 0 : index
    %c0_23 = arith.constant 0 : index
    %42 = vector.load %arg8[%c0_22, %c0_23] : memref<1x32xf32, #tpu.memory_space<vmem>>, vector<1x32xf32>
    %43 = vector.broadcast %42 : vector<1x32xf32> to vector<16x32xf32>
    %44 = arith.mulf %41, %43 : vector<16x32xf32>
    %c0_24 = arith.constant 0 : index
    %c0_25 = arith.constant 0 : index
    %45 = vector.load %arg9[%c0_24, %c0_25] : memref<1x32xf32, #tpu.memory_space<vmem>>, vector<1x32xf32>
    %46 = vector.broadcast %45 : vector<1x32xf32> to vector<16x32xf32>
    %47 = arith.addf %44, %46 : vector<16x32xf32>
    %c0_26 = arith.constant 0 : index
    %c0_27 = arith.constant 0 : index
    %48 = vector.load %arg10[%c0_26, %c0_27] : memref<16x32xf32, #tpu.memory_space<vmem>>, vector<16x32xf32>
    tpu.vector_store %arg10[%c0_26, %c0_27], %47 {strides = array<i32>} : memref<16x32xf32, #tpu.memory_space<vmem>>, vector<16x32xf32>,
    return
  }
  func.func @transform_0(%arg0: i32) -> (i32, i32) {
    %c0_i32 = arith.constant 0 : i32
    %c0_i32_0 = arith.constant 0 : i32
    return %arg0, %c0_i32 : i32, i32
  }
  func.func @transform_1(%arg0: i32) -> (i32, i32) {
    %c0_i32 = arith.constant 0 : i32
    %c0_i32_0 = arith.constant 0 : i32
    %c0_i32_1 = arith.constant 0 : i32
    return %c0_i32, %c0_i32_0 : i32, i32
  }
  func.func @transform_2(%arg0: i32) -> (i32, i32) {
    %c0_i32 = arith.constant 0 : i32
    %c0_i32_0 = arith.constant 0 : i32
    %c0_i32_1 = arith.constant 0 : i32
    return %c0_i32, %c0_i32_0 : i32, i32
  }
  func.func @transform_3(%arg0: i32) -> (i32, i32) {
    %c0_i32 = arith.constant 0 : i32
    %c0_i32_0 = arith.constant 0 : i32
    %c0_i32_1 = arith.constant 0 : i32
    return %c0_i32, %c0_i32_0 : i32, i32
  }
  func.func @transform_4(%arg0: i32) -> (i32, i32) {
    %c0_i32 = arith.constant 0 : i32
    %c0_i32_0 = arith.constant 0 : i32
    %c0_i32_1 = arith.constant 0 : i32
    return %c0_i32, %c0_i32_0 : i32, i32
  }
  func.func @transform_5(%arg0: i32) -> (i32, i32) {
    %c0_i32 = arith.constant 0 : i32
    %c0_i32_0 = arith.constant 0 : i32
    %c0_i32_1 = arith.constant 0 : i32
    return %c0_i32, %c0_i32_0 : i32, i32
  }
  func.func @transform_6(%arg0: i32) -> (i32, i32) {
    %c0_i32 = arith.constant 0 : i32
    %c0_i32_0 = arith.constant 0 : i32
    %c0_i32_1 = arith.constant 0 : i32
    return %c0_i32, %c0_i32_0 : i32, i32
  }
  func.func @transform_7(%arg0: i32) -> (i32, i32) {
    %c0_i32 = arith.constant 0 : i32
    %c0_i32_0 = arith.constant 0 : i32
    %c0_i32_1 = arith.constant 0 : i32
    return %c0_i32, %c0_i32_0 : i32, i32
  }
  func.func @transform_8(%arg0: i32) -> (i32, i32) {
    %c0_i32 = arith.constant 0 : i32
    %c0_i32_0 = arith.constant 0 : i32
    %c0_i32_1 = arith.constant 0 : i32
    return %c0_i32, %c0_i32_0 : i32, i32
  }
  func.func @transform_9(%arg0: i32) -> (i32, i32) {
    %c0_i32 = arith.constant 0 : i32
    %c0_i32_0 = arith.constant 0 : i32
    return %arg0, %c0_i32 : i32, i32
  }
}

module attributes {stable_mosaic.version = 11 : i64} {
  func.func @_fused_linear_kernel(%arg0: i32, %arg1: memref<16x32xf32, #tpu.memory_space<vmem>>, %arg2: memref<32x6xbf16, #tpu.memory_space<vmem>>, %arg3: memref<1x6xf32, #tpu.memory_space<vmem>>, %arg4: memref<16x6xf32, #tpu.memory_space<vmem>>) attributes {dimension_semantics = [#tpu.dimension_semantics<parallel>], iteration_bounds = array<i64: 1>, scalar_prefetch = 0 : i64, scratch_operands = 0 : i64, tpu.core_type = #tpu.core_type<tc>, window_params = [{transform_indices = @transform_0, window_bounds = array<i64: 16, 32>}, {pipeline_mode = #tpu.pipeline_mode<synchronous>, transform_indices = @transform_1, window_bounds = array<i64: 32, 6>}, {pipeline_mode = #tpu.pipeline_mode<synchronous>, transform_indices = @transform_2, window_bounds = array<i64: 1, 6>}, {transform_indices = @transform_3, window_bounds = array<i64: 16, 6>}]} {
    %c0 = arith.constant 0 : index
    %c0_0 = arith.constant 0 : index
    %0 = vector.load %arg1[%c0, %c0_0] : memref<16x32xf32, #tpu.memory_space<vmem>>, vector<16x32xf32>
    %c0_1 = arith.constant 0 : index
    %c0_2 = arith.constant 0 : index
    %1 = vector.load %arg2[%c0_1, %c0_2] : memref<32x6xbf16, #tpu.memory_space<vmem>>, vector<32x6xbf16>
    %c0_3 = arith.constant 0 : index
    %c0_4 = arith.constant 0 : index
    %2 = vector.load %arg3[%c0_3, %c0_4] : memref<1x6xf32, #tpu.memory_space<vmem>>, vector<1x6xf32>
    %3 = arith.truncf %0 : vector<16x32xf32> to vector<16x32xbf16>
    %cst = arith.constant dense<0.000000e+00> : vector<16x6xf32>
    %4 = tpu.matmul %3, %1, %cst {dimension_numbers = #tpu.dot_dimension_numbers<[1], [0], [0], [1], [0, 0, 1, 1], [], []>} : vector<16x32xbf16>, vector<32x6xbf16>, vector<16x6xf32> -> vector<16x6xf32>
    %5 = vector.broadcast %2 : vector<1x6xf32> to vector<16x6xf32>
    %6 = arith.addf %4, %5 : vector<16x6xf32>
    %c0_5 = arith.constant 0 : index
    %c0_6 = arith.constant 0 : index
    %7 = vector.load %arg4[%c0_5, %c0_6] : memref<16x6xf32, #tpu.memory_space<vmem>>, vector<16x6xf32>
    tpu.vector_store %arg4[%c0_5, %c0_6], %6 {strides = array<i32>} : memref<16x6xf32, #tpu.memory_space<vmem>>, vector<16x6xf32>,
    return
  }
  func.func @transform_0(%arg0: i32) -> (i32, i32) {
    %c0_i32 = arith.constant 0 : i32
    %c0_i32_0 = arith.constant 0 : i32
    return %arg0, %c0_i32 : i32, i32
  }
  func.func @transform_1(%arg0: i32) -> (i32, i32) {
    %c0_i32 = arith.constant 0 : i32
    %c0_i32_0 = arith.constant 0 : i32
    %c0_i32_1 = arith.constant 0 : i32
    return %c0_i32, %c0_i32_0 : i32, i32
  }
  func.func @transform_2(%arg0: i32) -> (i32, i32) {
    %c0_i32 = arith.constant 0 : i32
    %c0_i32_0 = arith.constant 0 : i32
    %c0_i32_1 = arith.constant 0 : i32
    return %c0_i32, %c0_i32_0 : i32, i32
  }
  func.func @transform_3(%arg0: i32) -> (i32, i32) {
    %c0_i32 = arith.constant 0 : i32
    %c0_i32_0 = arith.constant 0 : i32
    return %arg0, %c0_i32 : i32, i32
  }
}

</mosaic_0001>

<llo_original>
// kernel: forward.32
$region0: #{forward.32}
  #allocation0 [shape = 'u32[]', space=smem, size = 0x4, offset = 0x4, fixed_abs, tag = 'smem constant byte address 0x4 - core index']
  #allocation1 [shape = 'u32[72,128]{1,0:T(1,128)}', space=vmem, size = 0x9000, scoped, tag = 'internal scratch']
  %s0 = inlined_call_operand.vmem [shape: f32[16,32], index: 0, kind: input, shape index: {}]
  %s1 = inlined_call_operand.vmem [shape: bf16[32,32], index: 1, kind: input, shape index: {}]
  %s2 = inlined_call_operand.vmem [shape: f32[1,32], index: 2, kind: input, shape index: {}]
  %s3 = inlined_call_operand.vmem [shape: f32[16,32], index: 3, kind: output, shape index: {}]
  %s4 = sld [smem:[#allocation0]]
  $region22: #{forward.32} parent=0
    _
  %s6 = ssub.s32 1, %s4
  %s7 = scalar_select 0, %s6, %s4
  // Predicated region
  $region2: #{forward.32} parent=0 // pred_check
    _
  $region3: #{forward.32} parent=0 // pred_check_branch
    %9 = sbr.rel (0) target = $region5
  $region4: #{forward.32} parent=0 // pred_region
    _
  $region5: #{forward.32} parent=0 // pred_fallthru
    _
  // Predicated region
  $region6: #{forward.32} parent=0 // pred_check
    _
  $region7: #{forward.32} parent=0 // pred_check_branch
    %11 = sbr.rel (0) target = $region9
  $region8: #{forward.32} parent=0 // pred_region
    _
  $region9: #{forward.32} parent=0 // pred_fallthru
    _
  // Predicated region
  $region10: #{forward.32} parent=0 // pred_check
    _
  $region11: #{forward.32} parent=0 // pred_check_branch
    %13 = sbr.rel (0) target = $region13
  $region12: #{forward.32} parent=0 // pred_region
    _
  $region13: #{forward.32} parent=0 // pred_fallthru
    _
  %v15 = vld [vmem:[%s0] sm:$0xff]
  %v16 = vld [vmem:[%s0 + $0x8] sm:$0xff]
  %v17 = vld [vmem:[%s1] sm:$0xf]
  %v18 = vld [vmem:[%s1 + $0x4] sm:$0xf]
  %v19 = vld [vmem:[%s1 + $0x8] sm:$0xf]
  %v20 = vld [vmem:[%s1 + $0xc] sm:$0xf]
  %v21 = vld [vmem:[%s2] sm:$0x1]
  %v22 = vpack.c.bf16 %v16, %v15
  %v24 = vperm.slane %v21, 0
  %v30 = vunpack.c.l.b16 %v17
  %v31 = vunpack.c.l.b16 %v18
  %v32 = vunpack.c.l.b16 %v19
  %v33 = vunpack.c.l.b16 %v20
  %v34 = vpack.c.b16 %v31, %v30
  %v35 = vpack.c.b16 %v33, %v32
  %vm38 = vcmask 261120
  %v40 = vsel %vm38, %v22, 0
  %42 = vmatpush.bf16.msra.mxu0 0
  %43 = vmatpush.bf16.msra.mxu0 0
  %44 = vmatpush.bf16.msra.mxu0 0
  %45 = vmatpush.bf16.msra.mxu0 0
  %46 = vmatpush.bf16.msra.mxu0 0
  %47 = vmatpush.bf16.msra.mxu0 0
  %48 = vmatpush.bf16.msra.mxu0 %v35
  %49 = vmatpush.bf16.msra.mxu0 %v34
  %50 = vmatmul.bf16.gmra.mxu0 %v40
  %v51 = vpop.f32.mrf.mxu0
  %v52 = vadd.f32 %v24, %v51
  %v53 = vpop.f32.mrf.mxu0
  %v54 = vadd.f32 %v24, %v53
  %55 = vdwg.mxu0
  %56 = vst.msk [vmem:[%s3] sm:$0xff] %vm38, %v52
  %57 = vst.msk [vmem:[%s3 + $0x8] sm:$0xff] %vm38, %v54
  // Predicated region
  $region14: #{forward.32} parent=0 // pred_check
    _
  $region15: #{forward.32} parent=0 // pred_check_branch
    %59 = sbr.rel (0) target = $region17
  $region16: #{forward.32} parent=0 // pred_region
    _
  $region17: #{forward.32} parent=0 // pred_fallthru
    _
  // Predicated region
  $region18: #{forward.32} parent=0 // pred_check
    _
  $region19: #{forward.32} parent=0 // pred_check_branch
    %61 = sbr.rel (0) target = $region21
  $region20: #{forward.32} parent=0 // pred_region
    _
  $region21: #{forward.32} parent=0 // pred_fallthru
    _

// kernel: forward.31
$region0: #{forward.31}
  #allocation0 [shape = 'u32[]', space=smem, size = 0x4, offset = 0x4, fixed_abs, tag = 'smem constant byte address 0x4 - core index']
  #allocation1 [shape = 'u32[72,128]{1,0:T(1,128)}', space=vmem, size = 0x9000, scoped, tag = 'internal scratch']
  %s0 = inlined_call_operand.vmem [shape: f32[16,54], index: 0, kind: input, shape index: {}]
  %s1 = inlined_call_operand.vmem [shape: bf16[54,32], index: 1, kind: input, shape index: {}]
  %s2 = inlined_call_operand.vmem [shape: f32[1,32], index: 2, kind: input, shape index: {}]
  %s3 = inlined_call_operand.vmem [shape: f32[16,32], index: 3, kind: output, shape index: {}]
  %s4 = sld [smem:[#allocation0]]
  $region22: #{forward.31} parent=0
    _
  %s6 = ssub.s32 1, %s4
  %s7 = scalar_select 0, %s6, %s4
  // Predicated region
  $region2: #{forward.31} parent=0 // pred_check
    _
  $region3: #{forward.31} parent=0 // pred_check_branch
    %9 = sbr.rel (0) target = $region5
  $region4: #{forward.31} parent=0 // pred_region
    _
  $region5: #{forward.31} parent=0 // pred_fallthru
    _
  // Predicated region
  $region6: #{forward.31} parent=0 // pred_check
    _
  $region7: #{forward.31} parent=0 // pred_check_branch
    %11 = sbr.rel (0) target = $region9
  $region8: #{forward.31} parent=0 // pred_region
    _
  $region9: #{forward.31} parent=0 // pred_fallthru
    _
  // Predicated region
  $region10: #{forward.31} parent=0 // pred_check
    _
  $region11: #{forward.31} parent=0 // pred_check_branch
    %13 = sbr.rel (0) target = $region13
  $region12: #{forward.31} parent=0 // pred_region
    _
  $region13: #{forward.31} parent=0 // pred_fallthru
    _
  %v15 = vld [vmem:[%s0] sm:$0xff]
  %v16 = vld [vmem:[%s0 + $0x8] sm:$0xff]
  %v17 = vld [vmem:[%s1] sm:$0xf]
  %v18 = vld [vmem:[%s1 + $0x4] sm:$0xf]
  %v19 = vld [vmem:[%s1 + $0x8] sm:$0xf]
  %v20 = vld [vmem:[%s1 + $0xc] sm:$0xf]
  %v21 = vld [vmem:[%s1 + $0x10] sm:$0xf]
  %v22 = vld [vmem:[%s1 + $0x14] sm:$0xf]
  %v23 = vld [vmem:[%s1 + $0x18] sm:$0x7]
  %v24 = vld [vmem:[%s2] sm:$0x1]
  %v25 = vpack.c.bf16 %v16, %v15
  %v27 = vperm.slane %v24, 0
  %v36 = vunpack.c.l.b16 %v17
  %v37 = vunpack.c.l.b16 %v18
  %v38 = vunpack.c.l.b16 %v19
  %v39 = vunpack.c.l.b16 %v20
  %v40 = vunpack.c.l.b16 %v21
  %v41 = vunpack.c.l.b16 %v22
  %v42 = vunpack.c.l.b16 %v23
  %v43 = vpack.c.b16 %v37, %v36
  %v44 = vpack.c.b16 %v39, %v38
  %v45 = vpack.c.b16 %v41, %v40
  %v46 = vpack.c.b16 %v42, %v42
  %vm50 = vcmask 441344
  %v52 = vsel %vm50, %v25, 0
  %vm54 = vcmask 1042432
  %v56 = vsel %vm54, %v46, 0
  %58 = vmatpush.bf16.msra.mxu0 0
  %59 = vmatpush.bf16.msra.mxu0 0
  %60 = vmatpush.bf16.msra.mxu0 0
  %61 = vmatpush.bf16.msra.mxu0 0
  %62 = vmatpush.bf16.msra.mxu0 %v56
  %63 = vmatpush.bf16.msra.mxu0 %v45
  %64 = vmatpush.bf16.msra.mxu0 %v44
  %65 = vmatpush.bf16.msra.mxu0 %v43
  %66 = vmatmul.bf16.gmra.mxu0 %v52
  %v67 = vpop.f32.mrf.mxu0
  %v68 = vadd.f32 %v27, %v67
  %v69 = vpop.f32.mrf.mxu0
  %v70 = vadd.f32 %v27, %v69
  %71 = vdwg.mxu0
  %vm72 = vcmask 261120
  %73 = vst.msk [vmem:[%s3] sm:$0xff] %vm72, %v68
  %74 = vst.msk [vmem:[%s3 + $0x8] sm:$0xff] %vm72, %v70
  // Predicated region
  $region14: #{forward.31} parent=0 // pred_check
    _
  $region15: #{forward.31} parent=0 // pred_check_branch
    %76 = sbr.rel (0) target = $region17
  $region16: #{forward.31} parent=0 // pred_region
    _
  $region17: #{forward.31} parent=0 // pred_fallthru
    _
  // Predicated region
  $region18: #{forward.31} parent=0 // pred_check
    _
  $region19: #{forward.31} parent=0 // pred_check_branch
    %78 = sbr.rel (0) target = $region21
  $region20: #{forward.31} parent=0 // pred_region
    _
  $region21: #{forward.31} parent=0 // pred_fallthru
    _

// kernel: forward.33
$region0: #{forward.33}
  #allocation0 [shape = 'u32[]', space=smem, size = 0x4, offset = 0x4, fixed_abs, tag = 'smem constant byte address 0x4 - core index']
  #allocation1 [shape = 'u32[72,128]{1,0:T(1,128)}', space=vmem, size = 0x9000, scoped, tag = 'internal scratch']
  %s0 = inlined_call_operand.vmem [shape: f32[128,9], index: 0, kind: input, shape index: {}]
  %s1 = inlined_call_operand.vmem [shape: bf16[9,16], index: 1, kind: input, shape index: {}]
  %s2 = inlined_call_operand.vmem [shape: f32[1,16], index: 2, kind: input, shape index: {}]
  %s3 = inlined_call_operand.vmem [shape: f32[128,1], index: 3, kind: input, shape index: {}]
  %s4 = inlined_call_operand.vmem [shape: f32[128,16], index: 4, kind: input, shape index: {}]
  %s5 = inlined_call_operand.vmem [shape: f32[128,16], index: 5, kind: output, shape index: {}]
  %s6 = sld [smem:[#allocation0]]
  $region30: #{forward.33} parent=0
    _
  %s8 = ssub.s32 1, %s6
  %s9 = scalar_select 0, %s8, %s6
  // Predicated region
  $region2: #{forward.33} parent=0 // pred_check
    _
  $region3: #{forward.33} parent=0 // pred_check_branch
    %11 = sbr.rel (0) target = $region5
  $region4: #{forward.33} parent=0 // pred_region
    _
  $region5: #{forward.33} parent=0 // pred_fallthru
    _
  // Predicated region
  $region6: #{forward.33} parent=0 // pred_check
    _
  $region7: #{forward.33} parent=0 // pred_check_branch
    %13 = sbr.rel (0) target = $region9
  $region8: #{forward.33} parent=0 // pred_region
    _
  $region9: #{forward.33} parent=0 // pred_fallthru
    _
  // Predicated region
  $region10: #{forward.33} parent=0 // pred_check
    _
  $region11: #{forward.33} parent=0 // pred_check_branch
    %15 = sbr.rel (0) target = $region13
  $region12: #{forward.33} parent=0 // pred_region
    _
  $region13: #{forward.33} parent=0 // pred_fallthru
    _
  // Predicated region
  $region14: #{forward.33} parent=0 // pred_check
    _
  $region15: #{forward.33} parent=0 // pred_check_branch
    %17 = sbr.rel (0) target = $region17
  $region16: #{forward.33} parent=0 // pred_region
    _
  $region17: #{forward.33} parent=0 // pred_fallthru
    _
  // Predicated region
  $region18: #{forward.33} parent=0 // pred_check
    _
  $region19: #{forward.33} parent=0 // pred_check_branch
    %19 = sbr.rel (0) target = $region21
  $region20: #{forward.33} parent=0 // pred_region
    _
  $region21: #{forward.33} parent=0 // pred_fallthru
    _
  %v21 = vld [vmem:[%s0] sm:$0xff]
  %v22 = vld [vmem:[%s0 + $0x8] sm:$0xff]
  %v23 = vld [vmem:[%s0 + $0x10] sm:$0xff]
  %v24 = vld [vmem:[%s0 + $0x18] sm:$0xff]
  %v25 = vld [vmem:[%s0 + $0x20] sm:$0xff]
  %v26 = vld [vmem:[%s0 + $0x28] sm:$0xff]
  %v27 = vld [vmem:[%s0 + $0x30] sm:$0xff]
  %v28 = vld [vmem:[%s0 + $0x38] sm:$0xff]
  %v29 = vld [vmem:[%s0 + $0x40] sm:$0xff]
  %v30 = vld [vmem:[%s0 + $0x48] sm:$0xff]
  %v31 = vld [vmem:[%s0 + $0x50] sm:$0xff]
  %v32 = vld [vmem:[%s0 + $0x58] sm:$0xff]
  %v33 = vld [vmem:[%s0 + $0x60] sm:$0xff]
  %v34 = vld [vmem:[%s0 + $0x68] sm:$0xff]
  %v35 = vld [vmem:[%s0 + $0x70] sm:$0xff]
  %v36 = vld [vmem:[%s0 + $0x78] sm:$0xff]
  %v37 = vld [vmem:[%s1] sm:$0xf]
  %v38 = vld [vmem:[%s1 + $0x4] sm:$0x1]
  %v39 = vld [vmem:[%s2] sm:$0x1]
  %v40 = vpack.c.bf16 %v22, %v21
  %v41 = vpack.c.bf16 %v24, %v23
  %v42 = vpack.c.bf16 %v26, %v25
  %v43 = vpack.c.bf16 %v28, %v27
  %v44 = vpack.c.bf16 %v30, %v29
  %v45 = vpack.c.bf16 %v32, %v31
  %v46 = vpack.c.bf16 %v34, %v33
  %v47 = vpack.c.bf16 %v36, %v35
  %v49 = vperm.slane %v39, 0
  %v53 = vunpack.c.l.b16 %v37
  %v54 = vunpack.c.l.b16 %v38
  %v55 = vpack.c.b16 %v54, %v53
  %vm56 = vcmask 72704
  %v58 = vsel %vm56, %v40, 0
  %v61 = vsel %vm56, %v41, 0
  %v64 = vsel %vm56, %v42, 0
  %v67 = vsel %vm56, %v43, 0
  %v70 = vsel %vm56, %v44, 0
  %v73 = vsel %vm56, %v45, 0
  %v76 = vsel %vm56, %v46, 0
  %v79 = vsel %vm56, %v47, 0
  %vm81 = vcmask 1043456
  %vm82 = vcmask 1044480
  %v83 = vsel %vm81, 4294967295, 65535
  %v84 = vsel %vm82, %v83, 0
  %v86 = vand.u32 %v55, %v84
  %88 = vmatpush.bf16.msra.mxu0 0
  %89 = vmatpush.bf16.msra.mxu0 0
  %90 = vmatpush.bf16.msra.mxu0 0
  %91 = vmatpush.bf16.msra.mxu0 0
  %92 = vmatpush.bf16.msra.mxu0 0
  %93 = vmatpush.bf16.msra.mxu0 0
  %94 = vmatpush.bf16.msra.mxu0 0
  %95 = vmatpush.bf16.msra.mxu0 %v86
  %96 = vmatmul.bf16.gmra.mxu0 %v58
  %v97 = vpop.f32.mrf.mxu0
  %v98 = vadd.f32 %v49, %v97
  %v99 = vpop.f32.mrf.mxu0
  %v100 = vadd.f32 %v49, %v99
  %101 = vmatmul.bf16.gmra.mxu0 %v61
  %v102 = vpop.f32.mrf.mxu0
  %v103 = vadd.f32 %v49, %v102
  %v104 = vpop.f32.mrf.mxu0
  %v105 = vadd.f32 %v49, %v104
  %106 = vmatmul.bf16.gmra.mxu0 %v64
  %v107 = vpop.f32.mrf.mxu0
  %v108 = vadd.f32 %v49, %v107
  %v109 = vpop.f32.mrf.mxu0
  %v110 = vadd.f32 %v49, %v109
  %111 = vmatmul.bf16.gmra.mxu0 %v67
  %v112 = vpop.f32.mrf.mxu0
  %v113 = vadd.f32 %v49, %v112
  %v114 = vpop.f32.mrf.mxu0
  %v115 = vadd.f32 %v49, %v114
  %116 = vmatmul.bf16.gmra.mxu0 %v70
  %v117 = vpop.f32.mrf.mxu0
  %v118 = vadd.f32 %v49, %v117
  %v119 = vpop.f32.mrf.mxu0
  %v120 = vadd.f32 %v49, %v119
  %121 = vmatmul.bf16.gmra.mxu0 %v73
  %v122 = vpop.f32.mrf.mxu0
  %v123 = vadd.f32 %v49, %v122
  %v124 = vpop.f32.mrf.mxu0
  %v125 = vadd.f32 %v49, %v124
  %126 = vmatmul.bf16.gmra.mxu0 %v76
  %v127 = vpop.f32.mrf.mxu0
  %v128 = vadd.f32 %v49, %v127
  %v129 = vpop.f32.mrf.mxu0
  %v130 = vadd.f32 %v49, %v129
  %131 = vmatmul.bf16.gmra.mxu0 %v79
  %v132 = vpop.f32.mrf.mxu0
  %v133 = vadd.f32 %v49, %v132
  %v134 = vpop.f32.mrf.mxu0
  %v135 = vadd.f32 %v49, %v134
  %136 = vdwg.mxu0
  %v137 = vld [vmem:[%s3] sm:$0xff]
  %v138 = vld [vmem:[%s3 + $0x8] sm:$0xff]
  %v139 = vld [vmem:[%s3 + $0x10] sm:$0xff]
  %v140 = vld [vmem:[%s3 + $0x18] sm:$0xff]
  %v141 = vld [vmem:[%s3 + $0x20] sm:$0xff]
  %v142 = vld [vmem:[%s3 + $0x28] sm:$0xff]
  %v143 = vld [vmem:[%s3 + $0x30] sm:$0xff]
  %v144 = vld [vmem:[%s3 + $0x38] sm:$0xff]
  %v145 = vld [vmem:[%s3 + $0x40] sm:$0xff]
  %v146 = vld [vmem:[%s3 + $0x48] sm:$0xff]
  %v147 = vld [vmem:[%s3 + $0x50] sm:$0xff]
  %v148 = vld [vmem:[%s3 + $0x58] sm:$0xff]
  %v149 = vld [vmem:[%s3 + $0x60] sm:$0xff]
  %v150 = vld [vmem:[%s3 + $0x68] sm:$0xff]
  %v151 = vld [vmem:[%s3 + $0x70] sm:$0xff]
  %v152 = vld [vmem:[%s3 + $0x78] sm:$0xff]
  %154 = vset.pattern.permute.xlu0 0
  %155 = vperm.xlu0 %154, %v137
  %v156 = vpop.permute.xlu0 %155
  %159 = vset.pattern.permute.xlu0 0
  %160 = vperm.xlu0 %159, %v138
  %v161 = vpop.permute.xlu0 %160
  %164 = vset.pattern.permute.xlu0 0
  %165 = vperm.xlu0 %164, %v139
  %v166 = vpop.permute.xlu0 %165
  %169 = vset.pattern.permute.xlu0 0
  %170 = vperm.xlu0 %169, %v140
  %v171 = vpop.permute.xlu0 %170
  %174 = vset.pattern.permute.xlu0 0
  %175 = vperm.xlu0 %174, %v141
  %v176 = vpop.permute.xlu0 %175
  %179 = vset.pattern.permute.xlu0 0
  %180 = vperm.xlu0 %179, %v142
  %v181 = vpop.permute.xlu0 %180
  %184 = vset.pattern.permute.xlu0 0
  %185 = vperm.xlu0 %184, %v143
  %v186 = vpop.permute.xlu0 %185
  %189 = vset.pattern.permute.xlu0 0
  %190 = vperm.xlu0 %189, %v144
  %v191 = vpop.permute.xlu0 %190
  %194 = vset.pattern.permute.xlu0 0
  %195 = vperm.xlu0 %194, %v145
  %v196 = vpop.permute.xlu0 %195
  %199 = vset.pattern.permute.xlu0 0
  %200 = vperm.xlu0 %199, %v146
  %v201 = vpop.permute.xlu0 %200
  %204 = vset.pattern.permute.xlu0 0
  %205 = vperm.xlu0 %204, %v147
  %v206 = vpop.permute.xlu0 %205
  %209 = vset.pattern.permute.xlu0 0
  %210 = vperm.xlu0 %209, %v148
  %v211 = vpop.permute.xlu0 %210
  %214 = vset.pattern.permute.xlu0 0
  %215 = vperm.xlu0 %214, %v149
  %v216 = vpop.permute.xlu0 %215
  %219 = vset.pattern.permute.xlu0 0
  %220 = vperm.xlu0 %219, %v150
  %v221 = vpop.permute.xlu0 %220
  %224 = vset.pattern.permute.xlu0 0
  %225 = vperm.xlu0 %224, %v151
  %v226 = vpop.permute.xlu0 %225
  %229 = vset.pattern.permute.xlu0 0
  %230 = vperm.xlu0 %229, %v152
  %v231 = vpop.permute.xlu0 %230
  %v233 = vmul.f32 %v98, %v156
  %v234 = vmul.f32 %v100, %v161
  %v235 = vmul.f32 %v103, %v166
  %v236 = vmul.f32 %v105, %v171
  %v237 = vmul.f32 %v108, %v176
  %v238 = vmul.f32 %v110, %v181
  %v239 = vmul.f32 %v113, %v186
  %v240 = vmul.f32 %v115, %v191
  %v241 = vmul.f32 %v118, %v196
  %v242 = vmul.f32 %v120, %v201
  %v243 = vmul.f32 %v123, %v206
  %v244 = vmul.f32 %v125, %v211
  %v245 = vmul.f32 %v128, %v216
  %v246 = vmul.f32 %v130, %v221
  %v247 = vmul.f32 %v133, %v226
  %v248 = vmul.f32 %v135, %v231
  %v249 = vld [vmem:[%s4] sm:$0xff]
  %v250 = vld [vmem:[%s4 + $0x8] sm:$0xff]
  %v251 = vld [vmem:[%s4 + $0x10] sm:$0xff]
  %v252 = vld [vmem:[%s4 + $0x18] sm:$0xff]
  %v253 = vld [vmem:[%s4 + $0x20] sm:$0xff]
  %v254 = vld [vmem:[%s4 + $0x28] sm:$0xff]
  %v255 = vld [vmem:[%s4 + $0x30] sm:$0xff]
  %v256 = vld [vmem:[%s4 + $0x38] sm:$0xff]
  %v257 = vld [vmem:[%s4 + $0x40] sm:$0xff]
  %v258 = vld [vmem:[%s4 + $0x48] sm:$0xff]
  %v259 = vld [vmem:[%s4 + $0x50] sm:$0xff]
  %v260 = vld [vmem:[%s4 + $0x58] sm:$0xff]
  %v261 = vld [vmem:[%s4 + $0x60] sm:$0xff]
  %v262 = vld [vmem:[%s4 + $0x68] sm:$0xff]
  %v263 = vld [vmem:[%s4 + $0x70] sm:$0xff]
  %v264 = vld [vmem:[%s4 + $0x78] sm:$0xff]
  %v265 = vadd.f32 %v233, %v249
  %v266 = vadd.f32 %v234, %v250
  %v267 = vadd.f32 %v235, %v251
  %v268 = vadd.f32 %v236, %v252
  %v269 = vadd.f32 %v237, %v253
  %v270 = vadd.f32 %v238, %v254
  %v271 = vadd.f32 %v239, %v255
  %v272 = vadd.f32 %v240, %v256
  %v273 = vadd.f32 %v241, %v257
  %v274 = vadd.f32 %v242, %v258
  %v275 = vadd.f32 %v243, %v259
  %v276 = vadd.f32 %v244, %v260
  %v277 = vadd.f32 %v245, %v261
  %v278 = vadd.f32 %v246, %v262
  %v279 = vadd.f32 %v247, %v263
  %v280 = vadd.f32 %v248, %v264
  %vm281 = vcmask 130048
  %282 = vst.msk [vmem:[%s5] sm:$0xff] %vm281, %v265
  %283 = vst.msk [vmem:[%s5 + $0x8] sm:$0xff] %vm281, %v266
  %284 = vst.msk [vmem:[%s5 + $0x10] sm:$0xff] %vm281, %v267
  %285 = vst.msk [vmem:[%s5 + $0x18] sm:$0xff] %vm281, %v268
  %286 = vst.msk [vmem:[%s5 + $0x20] sm:$0xff] %vm281, %v269
  %287 = vst.msk [vmem:[%s5 + $0x28] sm:$0xff] %vm281, %v270
  %288 = vst.msk [vmem:[%s5 + $0x30] sm:$0xff] %vm281, %v271
  %289 = vst.msk [vmem:[%s5 + $0x38] sm:$0xff] %vm281, %v272
  %290 = vst.msk [vmem:[%s5 + $0x40] sm:$0xff] %vm281, %v273
  %291 = vst.msk [vmem:[%s5 + $0x48] sm:$0xff] %vm281, %v274
  %292 = vst.msk [vmem:[%s5 + $0x50] sm:$0xff] %vm281, %v275
  %293 = vst.msk [vmem:[%s5 + $0x58] sm:$0xff] %vm281, %v276
  %294 = vst.msk [vmem:[%s5 + $0x60] sm:$0xff] %vm281, %v277
  %295 = vst.msk [vmem:[%s5 + $0x68] sm:$0xff] %vm281, %v278
  %296 = vst.msk [vmem:[%s5 + $0x70] sm:$0xff] %vm281, %v279
  %297 = vst.msk [vmem:[%s5 + $0x78] sm:$0xff] %vm281, %v280
  // Predicated region
  $region22: #{forward.33} parent=0 // pred_check
    _
  $region23: #{forward.33} parent=0 // pred_check_branch
    %299 = sbr.rel (0) target = $region25
  $region24: #{forward.33} parent=0 // pred_region
    _
  $region25: #{forward.33} parent=0 // pred_fallthru
    _
  // Predicated region
  $region26: #{forward.33} parent=0 // pred_check
    _
  $region27: #{forward.33} parent=0 // pred_check_branch
    %301 = sbr.rel (0) target = $region29
  $region28: #{forward.33} parent=0 // pred_region
    _
  $region29: #{forward.33} parent=0 // pred_fallthru
    _

// kernel: forward.34
$region0: #{forward.34}
  #allocation0 [shape = 'u32[]', space=smem, size = 0x4, offset = 0x4, fixed_abs, tag = 'smem constant byte address 0x4 - core index']
  #allocation1 [shape = 'u32[72,128]{1,0:T(1,128)}', space=vmem, size = 0x9000, scoped, tag = 'internal scratch']
  %s0 = inlined_call_operand.vmem [shape: f32[128,9], index: 0, kind: input, shape index: {}]
  %s1 = inlined_call_operand.vmem [shape: bf16[9,16], index: 1, kind: input, shape index: {}]
  %s2 = inlined_call_operand.vmem [shape: f32[1,16], index: 2, kind: input, shape index: {}]
  %s3 = inlined_call_operand.vmem [shape: f32[128,1], index: 3, kind: input, shape index: {}]
  %s4 = inlined_call_operand.vmem [shape: f32[128,16], index: 4, kind: input, shape index: {}]
  %s5 = inlined_call_operand.vmem [shape: f32[128,1], index: 5, kind: input, shape index: {}]
  %s6 = inlined_call_operand.vmem [shape: f32[128,16], index: 6, kind: output, shape index: {}]
  %s7 = sld [smem:[#allocation0]]
  $region34: #{forward.34} parent=0
    _
  %s9 = ssub.s32 1, %s7
  %s10 = scalar_select 0, %s9, %s7
  // Predicated region
  $region2: #{forward.34} parent=0 // pred_check
    _
  $region3: #{forward.34} parent=0 // pred_check_branch
    %12 = sbr.rel (0) target = $region5
  $region4: #{forward.34} parent=0 // pred_region
    _
  $region5: #{forward.34} parent=0 // pred_fallthru
    _
  // Predicated region
  $region6: #{forward.34} parent=0 // pred_check
    _
  $region7: #{forward.34} parent=0 // pred_check_branch
    %14 = sbr.rel (0) target = $region9
  $region8: #{forward.34} parent=0 // pred_region
    _
  $region9: #{forward.34} parent=0 // pred_fallthru
    _
  // Predicated region
  $region10: #{forward.34} parent=0 // pred_check
    _
  $region11: #{forward.34} parent=0 // pred_check_branch
    %16 = sbr.rel (0) target = $region13
  $region12: #{forward.34} parent=0 // pred_region
    _
  $region13: #{forward.34} parent=0 // pred_fallthru
    _
  // Predicated region
  $region14: #{forward.34} parent=0 // pred_check
    _
  $region15: #{forward.34} parent=0 // pred_check_branch
    %18 = sbr.rel (0) target = $region17
  $region16: #{forward.34} parent=0 // pred_region
    _
  $region17: #{forward.34} parent=0 // pred_fallthru
    _
  // Predicated region
  $region18: #{forward.34} parent=0 // pred_check
    _
  $region19: #{forward.34} parent=0 // pred_check_branch
    %20 = sbr.rel (0) target = $region21
  $region20: #{forward.34} parent=0 // pred_region
    _
  $region21: #{forward.34} parent=0 // pred_fallthru
    _
  // Predicated region
  $region22: #{forward.34} parent=0 // pred_check
    _
  $region23: #{forward.34} parent=0 // pred_check_branch
    %22 = sbr.rel (0) target = $region25
  $region24: #{forward.34} parent=0 // pred_region
    _
  $region25: #{forward.34} parent=0 // pred_fallthru
    _
  %v24 = vld [vmem:[%s0] sm:$0xff]
  %v25 = vld [vmem:[%s0 + $0x8] sm:$0xff]
  %v26 = vld [vmem:[%s0 + $0x10] sm:$0xff]
  %v27 = vld [vmem:[%s0 + $0x18] sm:$0xff]
  %v28 = vld [vmem:[%s0 + $0x20] sm:$0xff]
  %v29 = vld [vmem:[%s0 + $0x28] sm:$0xff]
  %v30 = vld [vmem:[%s0 + $0x30] sm:$0xff]
  %v31 = vld [vmem:[%s0 + $0x38] sm:$0xff]
  %v32 = vld [vmem:[%s0 + $0x40] sm:$0xff]
  %v33 = vld [vmem:[%s0 + $0x48] sm:$0xff]
  %v34 = vld [vmem:[%s0 + $0x50] sm:$0xff]
  %v35 = vld [vmem:[%s0 + $0x58] sm:$0xff]
  %v36 = vld [vmem:[%s0 + $0x60] sm:$0xff]
  %v37 = vld [vmem:[%s0 + $0x68] sm:$0xff]
  %v38 = vld [vmem:[%s0 + $0x70] sm:$0xff]
  %v39 = vld [vmem:[%s0 + $0x78] sm:$0xff]
  %v40 = vld [vmem:[%s1] sm:$0xf]
  %v41 = vld [vmem:[%s1 + $0x4] sm:$0x1]
  %v42 = vld [vmem:[%s2] sm:$0x1]
  %v43 = vpack.c.bf16 %v25, %v24
  %v44 = vpack.c.bf16 %v27, %v26
  %v45 = vpack.c.bf16 %v29, %v28
  %v46 = vpack.c.bf16 %v31, %v30
  %v47 = vpack.c.bf16 %v33, %v32
  %v48 = vpack.c.bf16 %v35, %v34
  %v49 = vpack.c.bf16 %v37, %v36
  %v50 = vpack.c.bf16 %v39, %v38
  %v52 = vperm.slane %v42, 0
  %v56 = vunpack.c.l.b16 %v40
  %v57 = vunpack.c.l.b16 %v41
  %v58 = vpack.c.b16 %v57, %v56
  %vm59 = vcmask 72704
  %v61 = vsel %vm59, %v43, 0
  %v64 = vsel %vm59, %v44, 0
  %v67 = vsel %vm59, %v45, 0
  %v70 = vsel %vm59, %v46, 0
  %v73 = vsel %vm59, %v47, 0
  %v76 = vsel %vm59, %v48, 0
  %v79 = vsel %vm59, %v49, 0
  %v82 = vsel %vm59, %v50, 0
  %vm84 = vcmask 1043456
  %vm85 = vcmask 1044480
  %v86 = vsel %vm84, 4294967295, 65535
  %v87 = vsel %vm85, %v86, 0
  %v89 = vand.u32 %v58, %v87
  %91 = vmatpush.bf16.msra.mxu0 0
  %92 = vmatpush.bf16.msra.mxu0 0
  %93 = vmatpush.bf16.msra.mxu0 0
  %94 = vmatpush.bf16.msra.mxu0 0
  %95 = vmatpush.bf16.msra.mxu0 0
  %96 = vmatpush.bf16.msra.mxu0 0
  %97 = vmatpush.bf16.msra.mxu0 0
  %98 = vmatpush.bf16.msra.mxu0 %v89
  %99 = vmatmul.bf16.gmra.mxu0 %v61
  %v100 = vpop.f32.mrf.mxu0
  %v101 = vadd.f32 %v52, %v100
  %v102 = vpop.f32.mrf.mxu0
  %v103 = vadd.f32 %v52, %v102
  %104 = vmatmul.bf16.gmra.mxu0 %v64
  %v105 = vpop.f32.mrf.mxu0
  %v106 = vadd.f32 %v52, %v105
  %v107 = vpop.f32.mrf.mxu0
  %v108 = vadd.f32 %v52, %v107
  %109 = vmatmul.bf16.gmra.mxu0 %v67
  %v110 = vpop.f32.mrf.mxu0
  %v111 = vadd.f32 %v52, %v110
  %v112 = vpop.f32.mrf.mxu0
  %v113 = vadd.f32 %v52, %v112
  %114 = vmatmul.bf16.gmra.mxu0 %v70
  %v115 = vpop.f32.mrf.mxu0
  %v116 = vadd.f32 %v52, %v115
  %v117 = vpop.f32.mrf.mxu0
  %v118 = vadd.f32 %v52, %v117
  %119 = vmatmul.bf16.gmra.mxu0 %v73
  %v120 = vpop.f32.mrf.mxu0
  %v121 = vadd.f32 %v52, %v120
  %v122 = vpop.f32.mrf.mxu0
  %v123 = vadd.f32 %v52, %v122
  %124 = vmatmul.bf16.gmra.mxu0 %v76
  %v125 = vpop.f32.mrf.mxu0
  %v126 = vadd.f32 %v52, %v125
  %v127 = vpop.f32.mrf.mxu0
  %v128 = vadd.f32 %v52, %v127
  %129 = vmatmul.bf16.gmra.mxu0 %v79
  %v130 = vpop.f32.mrf.mxu0
  %v131 = vadd.f32 %v52, %v130
  %v132 = vpop.f32.mrf.mxu0
  %v133 = vadd.f32 %v52, %v132
  %134 = vmatmul.bf16.gmra.mxu0 %v82
  %v135 = vpop.f32.mrf.mxu0
  %v136 = vadd.f32 %v52, %v135
  %v137 = vpop.f32.mrf.mxu0
  %v138 = vadd.f32 %v52, %v137
  %139 = vdwg.mxu0
  %v140 = vld [vmem:[%s3] sm:$0xff]
  %v141 = vld [vmem:[%s3 + $0x8] sm:$0xff]
  %v142 = vld [vmem:[%s3 + $0x10] sm:$0xff]
  %v143 = vld [vmem:[%s3 + $0x18] sm:$0xff]
  %v144 = vld [vmem:[%s3 + $0x20] sm:$0xff]
  %v145 = vld [vmem:[%s3 + $0x28] sm:$0xff]
  %v146 = vld [vmem:[%s3 + $0x30] sm:$0xff]
  %v147 = vld [vmem:[%s3 + $0x38] sm:$0xff]
  %v148 = vld [vmem:[%s3 + $0x40] sm:$0xff]
  %v149 = vld [vmem:[%s3 + $0x48] sm:$0xff]
  %v150 = vld [vmem:[%s3 + $0x50] sm:$0xff]
  %v151 = vld [vmem:[%s3 + $0x58] sm:$0xff]
  %v152 = vld [vmem:[%s3 + $0x60] sm:$0xff]
  %v153 = vld [vmem:[%s3 + $0x68] sm:$0xff]
  %v154 = vld [vmem:[%s3 + $0x70] sm:$0xff]
  %v155 = vld [vmem:[%s3 + $0x78] sm:$0xff]
  %157 = vset.pattern.permute.xlu0 0
  %158 = vperm.xlu0 %157, %v140
  %v159 = vpop.permute.xlu0 %158
  %162 = vset.pattern.permute.xlu0 0
  %163 = vperm.xlu0 %162, %v141
  %v164 = vpop.permute.xlu0 %163
  %167 = vset.pattern.permute.xlu0 0
  %168 = vperm.xlu0 %167, %v142
  %v169 = vpop.permute.xlu0 %168
  %172 = vset.pattern.permute.xlu0 0
  %173 = vperm.xlu0 %172, %v143
  %v174 = vpop.permute.xlu0 %173
  %177 = vset.pattern.permute.xlu0 0
  %178 = vperm.xlu0 %177, %v144
  %v179 = vpop.permute.xlu0 %178
  %182 = vset.pattern.permute.xlu0 0
  %183 = vperm.xlu0 %182, %v145
  %v184 = vpop.permute.xlu0 %183
  %187 = vset.pattern.permute.xlu0 0
  %188 = vperm.xlu0 %187, %v146
  %v189 = vpop.permute.xlu0 %188
  %192 = vset.pattern.permute.xlu0 0
  %193 = vperm.xlu0 %192, %v147
  %v194 = vpop.permute.xlu0 %193
  %197 = vset.pattern.permute.xlu0 0
  %198 = vperm.xlu0 %197, %v148
  %v199 = vpop.permute.xlu0 %198
  %202 = vset.pattern.permute.xlu0 0
  %203 = vperm.xlu0 %202, %v149
  %v204 = vpop.permute.xlu0 %203
  %207 = vset.pattern.permute.xlu0 0
  %208 = vperm.xlu0 %207, %v150
  %v209 = vpop.permute.xlu0 %208
  %212 = vset.pattern.permute.xlu0 0
  %213 = vperm.xlu0 %212, %v151
  %v214 = vpop.permute.xlu0 %213
  %217 = vset.pattern.permute.xlu0 0
  %218 = vperm.xlu0 %217, %v152
  %v219 = vpop.permute.xlu0 %218
  %222 = vset.pattern.permute.xlu0 0
  %223 = vperm.xlu0 %222, %v153
  %v224 = vpop.permute.xlu0 %223
  %227 = vset.pattern.permute.xlu0 0
  %228 = vperm.xlu0 %227, %v154
  %v229 = vpop.permute.xlu0 %228
  %232 = vset.pattern.permute.xlu0 0
  %233 = vperm.xlu0 %232, %v155
  %v234 = vpop.permute.xlu0 %233
  %v236 = vmul.f32 %v101, %v159
  %v237 = vmul.f32 %v103, %v164
  %v238 = vmul.f32 %v106, %v169
  %v239 = vmul.f32 %v108, %v174
  %v240 = vmul.f32 %v111, %v179
  %v241 = vmul.f32 %v113, %v184
  %v242 = vmul.f32 %v116, %v189
  %v243 = vmul.f32 %v118, %v194
  %v244 = vmul.f32 %v121, %v199
  %v245 = vmul.f32 %v123, %v204
  %v246 = vmul.f32 %v126, %v209
  %v247 = vmul.f32 %v128, %v214
  %v248 = vmul.f32 %v131, %v219
  %v249 = vmul.f32 %v133, %v224
  %v250 = vmul.f32 %v136, %v229
  %v251 = vmul.f32 %v138, %v234
  %v252 = vld [vmem:[%s4] sm:$0xff]
  %v253 = vld [vmem:[%s4 + $0x8] sm:$0xff]
  %v254 = vld [vmem:[%s4 + $0x10] sm:$0xff]
  %v255 = vld [vmem:[%s4 + $0x18] sm:$0xff]
  %v256 = vld [vmem:[%s4 + $0x20] sm:$0xff]
  %v257 = vld [vmem:[%s4 + $0x28] sm:$0xff]
  %v258 = vld [vmem:[%s4 + $0x30] sm:$0xff]
  %v259 = vld [vmem:[%s4 + $0x38] sm:$0xff]
  %v260 = vld [vmem:[%s4 + $0x40] sm:$0xff]
  %v261 = vld [vmem:[%s4 + $0x48] sm:$0xff]
  %v262 = vld [vmem:[%s4 + $0x50] sm:$0xff]
  %v263 = vld [vmem:[%s4 + $0x58] sm:$0xff]
  %v264 = vld [vmem:[%s4 + $0x60] sm:$0xff]
  %v265 = vld [vmem:[%s4 + $0x68] sm:$0xff]
  %v266 = vld [vmem:[%s4 + $0x70] sm:$0xff]
  %v267 = vld [vmem:[%s4 + $0x78] sm:$0xff]
  %v268 = vadd.f32 %v236, %v252
  %v269 = vadd.f32 %v237, %v253
  %v270 = vadd.f32 %v238, %v254
  %v271 = vadd.f32 %v239, %v255
  %v272 = vadd.f32 %v240, %v256
  %v273 = vadd.f32 %v241, %v257
  %v274 = vadd.f32 %v242, %v258
  %v275 = vadd.f32 %v243, %v259
  %v276 = vadd.f32 %v244, %v260
  %v277 = vadd.f32 %v245, %v261
  %v278 = vadd.f32 %v246, %v262
  %v279 = vadd.f32 %v247, %v263
  %v280 = vadd.f32 %v248, %v264
  %v281 = vadd.f32 %v249, %v265
  %v282 = vadd.f32 %v250, %v266
  %v283 = vadd.f32 %v251, %v267
  %v284 = vld [vmem:[%s5] sm:$0xff]
  %v285 = vld [vmem:[%s5 + $0x8] sm:$0xff]
  %v286 = vld [vmem:[%s5 + $0x10] sm:$0xff]
  %v287 = vld [vmem:[%s5 + $0x18] sm:$0xff]
  %v288 = vld [vmem:[%s5 + $0x20] sm:$0xff]
  %v289 = vld [vmem:[%s5 + $0x28] sm:$0xff]
  %v290 = vld [vmem:[%s5 + $0x30] sm:$0xff]
  %v291 = vld [vmem:[%s5 + $0x38] sm:$0xff]
  %v292 = vld [vmem:[%s5 + $0x40] sm:$0xff]
  %v293 = vld [vmem:[%s5 + $0x48] sm:$0xff]
  %v294 = vld [vmem:[%s5 + $0x50] sm:$0xff]
  %v295 = vld [vmem:[%s5 + $0x58] sm:$0xff]
  %v296 = vld [vmem:[%s5 + $0x60] sm:$0xff]
  %v297 = vld [vmem:[%s5 + $0x68] sm:$0xff]
  %v298 = vld [vmem:[%s5 + $0x70] sm:$0xff]
  %v299 = vld [vmem:[%s5 + $0x78] sm:$0xff]
  %301 = vset.pattern.permute.xlu0 0
  %302 = vperm.xlu0 %301, %v284
  %v303 = vpop.permute.xlu0 %302
  %306 = vset.pattern.permute.xlu0 0
  %307 = vperm.xlu0 %306, %v285
  %v308 = vpop.permute.xlu0 %307
  %311 = vset.pattern.permute.xlu0 0
  %312 = vperm.xlu0 %311, %v286
  %v313 = vpop.permute.xlu0 %312
  %316 = vset.pattern.permute.xlu0 0
  %317 = vperm.xlu0 %316, %v287
  %v318 = vpop.permute.xlu0 %317
  %321 = vset.pattern.permute.xlu0 0
  %322 = vperm.xlu0 %321, %v288
  %v323 = vpop.permute.xlu0 %322
  %326 = vset.pattern.permute.xlu0 0
  %327 = vperm.xlu0 %326, %v289
  %v328 = vpop.permute.xlu0 %327
  %331 = vset.pattern.permute.xlu0 0
  %332 = vperm.xlu0 %331, %v290
  %v333 = vpop.permute.xlu0 %332
  %336 = vset.pattern.permute.xlu0 0
  %337 = vperm.xlu0 %336, %v291
  %v338 = vpop.permute.xlu0 %337
  %341 = vset.pattern.permute.xlu0 0
  %342 = vperm.xlu0 %341, %v292
  %v343 = vpop.permute.xlu0 %342
  %346 = vset.pattern.permute.xlu0 0
  %347 = vperm.xlu0 %346, %v293
  %v348 = vpop.permute.xlu0 %347
  %351 = vset.pattern.permute.xlu0 0
  %352 = vperm.xlu0 %351, %v294
  %v353 = vpop.permute.xlu0 %352
  %356 = vset.pattern.permute.xlu0 0
  %357 = vperm.xlu0 %356, %v295
  %v358 = vpop.permute.xlu0 %357
  %361 = vset.pattern.permute.xlu0 0
  %362 = vperm.xlu0 %361, %v296
  %v363 = vpop.permute.xlu0 %362
  %366 = vset.pattern.permute.xlu0 0
  %367 = vperm.xlu0 %366, %v297
  %v368 = vpop.permute.xlu0 %367
  %371 = vset.pattern.permute.xlu0 0
  %372 = vperm.xlu0 %371, %v298
  %v373 = vpop.permute.xlu0 %372
  %376 = vset.pattern.permute.xlu0 0
  %377 = vperm.xlu0 %376, %v299
  %v378 = vpop.permute.xlu0 %377
  %v380 = vmul.f32 %v268, %v303
  %v381 = vmul.f32 %v269, %v308
  %v382 = vmul.f32 %v270, %v313
  %v383 = vmul.f32 %v271, %v318
  %v384 = vmul.f32 %v272, %v323
  %v385 = vmul.f32 %v273, %v328
  %v386 = vmul.f32 %v274, %v333
  %v387 = vmul.f32 %v275, %v338
  %v388 = vmul.f32 %v276, %v343
  %v389 = vmul.f32 %v277, %v348
  %v390 = vmul.f32 %v278, %v353
  %v391 = vmul.f32 %v279, %v358
  %v392 = vmul.f32 %v280, %v363
  %v393 = vmul.f32 %v281, %v368
  %v394 = vmul.f32 %v282, %v373
  %v395 = vmul.f32 %v283, %v378
  %vm396 = vcmask 130048
  %397 = vst.msk [vmem:[%s6] sm:$0xff] %vm396, %v380
  %398 = vst.msk [vmem:[%s6 + $0x8] sm:$0xff] %vm396, %v381
  %399 = vst.msk [vmem:[%s6 + $0x10] sm:$0xff] %vm396, %v382
  %400 = vst.msk [vmem:[%s6 + $0x18] sm:$0xff] %vm396, %v383
  %401 = vst.msk [vmem:[%s6 + $0x20] sm:$0xff] %vm396, %v384
  %402 = vst.msk [vmem:[%s6 + $0x28] sm:$0xff] %vm396, %v385
  %403 = vst.msk [vmem:[%s6 + $0x30] sm:$0xff] %vm396, %v386
  %404 = vst.msk [vmem:[%s6 + $0x38] sm:$0xff] %vm396, %v387
  %405 = vst.msk [vmem:[%s6 + $0x40] sm:$0xff] %vm396, %v388
  %406 = vst.msk [vmem:[%s6 + $0x48] sm:$0xff] %vm396, %v389
  %407 = vst.msk [vmem:[%s6 + $0x50] sm:$0xff] %vm396, %v390
  %408 = vst.msk [vmem:[%s6 + $0x58] sm:$0xff] %vm396, %v391
  %409 = vst.msk [vmem:[%s6 + $0x60] sm:$0xff] %vm396, %v392
  %410 = vst.msk [vmem:[%s6 + $0x68] sm:$0xff] %vm396, %v393
  %411 = vst.msk [vmem:[%s6 + $0x70] sm:$0xff] %vm396, %v394
  %412 = vst.msk [vmem:[%s6 + $0x78] sm:$0xff] %vm396, %v395
  // Predicated region
  $region26: #{forward.34} parent=0 // pred_check
    _
  $region27: #{forward.34} parent=0 // pred_check_branch
    %414 = sbr.rel (0) target = $region29
  $region28: #{forward.34} parent=0 // pred_region
    _
  $region29: #{forward.34} parent=0 // pred_fallthru
    _
  // Predicated region
  $region30: #{forward.34} parent=0 // pred_check
    _
  $region31: #{forward.34} parent=0 // pred_check_branch
    %416 = sbr.rel (0) target = $region33
  $region32: #{forward.34} parent=0 // pred_region
    _
  $region33: #{forward.34} parent=0 // pred_fallthru
    _

// kernel: forward.35
$region0: #{forward.35}
  #allocation0 [shape = 'u32[]', space=smem, size = 0x4, offset = 0x4, fixed_abs, tag = 'smem constant byte address 0x4 - core index']
  #allocation1 [shape = 'u32[72,128]{1,0:T(1,128)}', space=vmem, size = 0x9000, scoped, tag = 'internal scratch']
  %s0 = inlined_call_operand.vmem [shape: f32[128,16], index: 0, kind: input, shape index: {}]
  %s1 = inlined_call_operand.vmem [shape: f32[128,1], index: 1, kind: input, shape index: {}]
  %s2 = inlined_call_operand.vmem [shape: f32[1,16], index: 2, kind: input, shape index: {}]
  %s3 = inlined_call_operand.vmem [shape: f32[1,16], index: 3, kind: input, shape index: {}]
  %s4 = inlined_call_operand.vmem [shape: bf16[16,48], index: 4, kind: input, shape index: {}]
  %s5 = inlined_call_operand.vmem [shape: f32[1,48], index: 5, kind: input, shape index: {}]
  %s6 = inlined_call_operand.vmem [shape: f32[128,8], index: 6, kind: output, shape index: {0}]
  %s7 = inlined_call_operand.vmem [shape: f32[128,8], index: 7, kind: output, shape index: {1}]
  %s8 = inlined_call_operand.vmem [shape: f32[128,16], index: 8, kind: output, shape index: {2}]
  %9 = xla_tuple %s6, %s7, %s8
  %s10 = sld [smem:[#allocation0]]
  $region50: #{forward.35} parent=0
    _
  %s12 = ssub.s32 1, %s10
  %s13 = scalar_select 0, %s12, %s10
  // Predicated region
  $region2: #{forward.35} parent=0 // pred_check
    _
  $region3: #{forward.35} parent=0 // pred_check_branch
    %15 = sbr.rel (0) target = $region5
  $region4: #{forward.35} parent=0 // pred_region
    _
  $region5: #{forward.35} parent=0 // pred_fallthru
    _
  // Predicated region
  $region6: #{forward.35} parent=0 // pred_check
    _
  $region7: #{forward.35} parent=0 // pred_check_branch
    %17 = sbr.rel (0) target = $region9
  $region8: #{forward.35} parent=0 // pred_region
    _
  $region9: #{forward.35} parent=0 // pred_fallthru
    _
  // Predicated region
  $region10: #{forward.35} parent=0 // pred_check
    _
  $region11: #{forward.35} parent=0 // pred_check_branch
    %19 = sbr.rel (0) target = $region13
  $region12: #{forward.35} parent=0 // pred_region
    _
  $region13: #{forward.35} parent=0 // pred_fallthru
    _
  // Predicated region
  $region14: #{forward.35} parent=0 // pred_check
    _
  $region15: #{forward.35} parent=0 // pred_check_branch
    %21 = sbr.rel (0) target = $region17
  $region16: #{forward.35} parent=0 // pred_region
    _
  $region17: #{forward.35} parent=0 // pred_fallthru
    _
  // Predicated region
  $region18: #{forward.35} parent=0 // pred_check
    _
  $region19: #{forward.35} parent=0 // pred_check_branch
    %23 = sbr.rel (0) target = $region21
  $region20: #{forward.35} parent=0 // pred_region
    _
  $region21: #{forward.35} parent=0 // pred_fallthru
    _
  // Predicated region
  $region22: #{forward.35} parent=0 // pred_check
    _
  $region23: #{forward.35} parent=0 // pred_check_branch
    %25 = sbr.rel (0) target = $region25
  $region24: #{forward.35} parent=0 // pred_region
    _
  $region25: #{forward.35} parent=0 // pred_fallthru
    _
  %v27 = vld [vmem:[%s0] sm:$0xff]
  %v28 = vld [vmem:[%s0 + $0x8] sm:$0xff]
  %v29 = vld [vmem:[%s0 + $0x10] sm:$0xff]
  %v30 = vld [vmem:[%s0 + $0x18] sm:$0xff]
  %v31 = vld [vmem:[%s0 + $0x20] sm:$0xff]
  %v32 = vld [vmem:[%s0 + $0x28] sm:$0xff]
  %v33 = vld [vmem:[%s0 + $0x30] sm:$0xff]
  %v34 = vld [vmem:[%s0 + $0x38] sm:$0xff]
  %v35 = vld [vmem:[%s0 + $0x40] sm:$0xff]
  %v36 = vld [vmem:[%s0 + $0x48] sm:$0xff]
  %v37 = vld [vmem:[%s0 + $0x50] sm:$0xff]
  %v38 = vld [vmem:[%s0 + $0x58] sm:$0xff]
  %v39 = vld [vmem:[%s0 + $0x60] sm:$0xff]
  %v40 = vld [vmem:[%s0 + $0x68] sm:$0xff]
  %v41 = vld [vmem:[%s0 + $0x70] sm:$0xff]
  %v42 = vld [vmem:[%s0 + $0x78] sm:$0xff]
  %vm43 = vcmask 130048
  %v44 = vsel %vm43, %v27, 0.0
  %45 = vadd.xlane.f32.xlu0 %v44
  %v46 = vpop.xlane.xlu0 %45
  %v47 = vsel %vm43, %v28, 0.0
  %48 = vadd.xlane.f32.xlu0 %v47
  %v49 = vpop.xlane.xlu0 %48
  %v50 = vsel %vm43, %v29, 0.0
  %51 = vadd.xlane.f32.xlu0 %v50
  %v52 = vpop.xlane.xlu0 %51
  %v53 = vsel %vm43, %v30, 0.0
  %54 = vadd.xlane.f32.xlu0 %v53
  %v55 = vpop.xlane.xlu0 %54
  %v56 = vsel %vm43, %v31, 0.0
  %57 = vadd.xlane.f32.xlu0 %v56
  %v58 = vpop.xlane.xlu0 %57
  %v59 = vsel %vm43, %v32, 0.0
  %60 = vadd.xlane.f32.xlu0 %v59
  %v61 = vpop.xlane.xlu0 %60
  %v62 = vsel %vm43, %v33, 0.0
  %63 = vadd.xlane.f32.xlu0 %v62
  %v64 = vpop.xlane.xlu0 %63
  %v65 = vsel %vm43, %v34, 0.0
  %66 = vadd.xlane.f32.xlu0 %v65
  %v67 = vpop.xlane.xlu0 %66
  %v68 = vsel %vm43, %v35, 0.0
  %69 = vadd.xlane.f32.xlu0 %v68
  %v70 = vpop.xlane.xlu0 %69
  %v71 = vsel %vm43, %v36, 0.0
  %72 = vadd.xlane.f32.xlu0 %v71
  %v73 = vpop.xlane.xlu0 %72
  %v74 = vsel %vm43, %v37, 0.0
  %75 = vadd.xlane.f32.xlu0 %v74
  %v76 = vpop.xlane.xlu0 %75
  %v77 = vsel %vm43, %v38, 0.0
  %78 = vadd.xlane.f32.xlu0 %v77
  %v79 = vpop.xlane.xlu0 %78
  %v80 = vsel %vm43, %v39, 0.0
  %81 = vadd.xlane.f32.xlu0 %v80
  %v82 = vpop.xlane.xlu0 %81
  %v83 = vsel %vm43, %v40, 0.0
  %84 = vadd.xlane.f32.xlu0 %v83
  %v85 = vpop.xlane.xlu0 %84
  %v86 = vsel %vm43, %v41, 0.0
  %87 = vadd.xlane.f32.xlu0 %v86
  %v88 = vpop.xlane.xlu0 %87
  %v89 = vsel %vm43, %v42, 0.0
  %90 = vadd.xlane.f32.xlu0 %v89
  %v91 = vpop.xlane.xlu0 %90
  %v92 = vrcp.pop 16.0
  %v93 = vmul.f32 16.0, %v92
  %v94 = vsub.f32 1.0, %v93
  %v95 = vmul.f32 %v92, %v94
  %v96 = vadd.f32 %v92, %v95
  %vm97 = vweird.f32 %v92
  %v98 = vsel %vm97, %v92, %v96
  %v99 = vmul.f32 %v46, %v98
  %v100 = vmul.f32 %v49, %v98
  %v101 = vmul.f32 %v52, %v98
  %v102 = vmul.f32 %v55, %v98
  %v103 = vmul.f32 %v58, %v98
  %v104 = vmul.f32 %v61, %v98
  %v105 = vmul.f32 %v64, %v98
  %v106 = vmul.f32 %v67, %v98
  %v107 = vmul.f32 %v70, %v98
  %v108 = vmul.f32 %v73, %v98
  %v109 = vmul.f32 %v76, %v98
  %v110 = vmul.f32 %v79, %v98
  %v111 = vmul.f32 %v82, %v98
  %v112 = vmul.f32 %v85, %v98
  %v113 = vmul.f32 %v88, %v98
  %v114 = vmul.f32 %v91, %v98
  %v115 = vsub.f32 %v27, %v99
  %v116 = vsub.f32 %v28, %v100
  %v117 = vsub.f32 %v29, %v101
  %v118 = vsub.f32 %v30, %v102
  %v119 = vsub.f32 %v31, %v103
  %v120 = vsub.f32 %v32, %v104
  %v121 = vsub.f32 %v33, %v105
  %v122 = vsub.f32 %v34, %v106
  %v123 = vsub.f32 %v35, %v107
  %v124 = vsub.f32 %v36, %v108
  %v125 = vsub.f32 %v37, %v109
  %v126 = vsub.f32 %v38, %v110
  %v127 = vsub.f32 %v39, %v111
  %v128 = vsub.f32 %v40, %v112
  %v129 = vsub.f32 %v41, %v113
  %v130 = vsub.f32 %v42, %v114
  %v131 = vmul.f32 %v115, %v115
  %v132 = vmul.f32 %v116, %v116
  %v133 = vmul.f32 %v117, %v117
  %v134 = vmul.f32 %v118, %v118
  %v135 = vmul.f32 %v119, %v119
  %v136 = vmul.f32 %v120, %v120
  %v137 = vmul.f32 %v121, %v121
  %v138 = vmul.f32 %v122, %v122
  %v139 = vmul.f32 %v123, %v123
  %v140 = vmul.f32 %v124, %v124
  %v141 = vmul.f32 %v125, %v125
  %v142 = vmul.f32 %v126, %v126
  %v143 = vmul.f32 %v127, %v127
  %v144 = vmul.f32 %v128, %v128
  %v145 = vmul.f32 %v129, %v129
  %v146 = vmul.f32 %v130, %v130
  %v147 = vsel %vm43, %v131, 0.0
  %148 = vadd.xlane.f32.xlu0 %v147
  %v149 = vpop.xlane.xlu0 %148
  %v150 = vsel %vm43, %v132, 0.0
  %151 = vadd.xlane.f32.xlu0 %v150
  %v152 = vpop.xlane.xlu0 %151
  %v153 = vsel %vm43, %v133, 0.0
  %154 = vadd.xlane.f32.xlu0 %v153
  %v155 = vpop.xlane.xlu0 %154
  %v156 = vsel %vm43, %v134, 0.0
  %157 = vadd.xlane.f32.xlu0 %v156
  %v158 = vpop.xlane.xlu0 %157
  %v159 = vsel %vm43, %v135, 0.0
  %160 = vadd.xlane.f32.xlu0 %v159
  %v161 = vpop.xlane.xlu0 %160
  %v162 = vsel %vm43, %v136, 0.0
  %163 = vadd.xlane.f32.xlu0 %v162
  %v164 = vpop.xlane.xlu0 %163
  %v165 = vsel %vm43, %v137, 0.0
  %166 = vadd.xlane.f32.xlu0 %v165
  %v167 = vpop.xlane.xlu0 %166
  %v168 = vsel %vm43, %v138, 0.0
  %169 = vadd.xlane.f32.xlu0 %v168
  %v170 = vpop.xlane.xlu0 %169
  %v171 = vsel %vm43, %v139, 0.0
  %172 = vadd.xlane.f32.xlu0 %v171
  %v173 = vpop.xlane.xlu0 %172
  %v174 = vsel %vm43, %v140, 0.0
  %175 = vadd.xlane.f32.xlu0 %v174
  %v176 = vpop.xlane.xlu0 %175
  %v177 = vsel %vm43, %v141, 0.0
  %178 = vadd.xlane.f32.xlu0 %v177
  %v179 = vpop.xlane.xlu0 %178
  %v180 = vsel %vm43, %v142, 0.0
  %181 = vadd.xlane.f32.xlu0 %v180
  %v182 = vpop.xlane.xlu0 %181
  %v183 = vsel %vm43, %v143, 0.0
  %184 = vadd.xlane.f32.xlu0 %v183
  %v185 = vpop.xlane.xlu0 %184
  %v186 = vsel %vm43, %v144, 0.0
  %187 = vadd.xlane.f32.xlu0 %v186
  %v188 = vpop.xlane.xlu0 %187
  %v189 = vsel %vm43, %v145, 0.0
  %190 = vadd.xlane.f32.xlu0 %v189
  %v191 = vpop.xlane.xlu0 %190
  %v192 = vsel %vm43, %v146, 0.0
  %193 = vadd.xlane.f32.xlu0 %v192
  %v194 = vpop.xlane.xlu0 %193
  %v195 = vmul.f32 %v149, %v98
  %v196 = vmul.f32 %v152, %v98
  %v197 = vmul.f32 %v155, %v98
  %v198 = vmul.f32 %v158, %v98
  %v199 = vmul.f32 %v161, %v98
  %v200 = vmul.f32 %v164, %v98
  %v201 = vmul.f32 %v167, %v98
  %v202 = vmul.f32 %v170, %v98
  %v203 = vmul.f32 %v173, %v98
  %v204 = vmul.f32 %v176, %v98
  %v205 = vmul.f32 %v179, %v98
  %v206 = vmul.f32 %v182, %v98
  %v207 = vmul.f32 %v185, %v98
  %v208 = vmul.f32 %v188, %v98
  %v209 = vmul.f32 %v191, %v98
  %v210 = vmul.f32 %v194, %v98
  %v211 = vadd.f32 %v195, 1e-05
  %v212 = vadd.f32 %v196, 1e-05
  %v213 = vadd.f32 %v197, 1e-05
  %v214 = vadd.f32 %v198, 1e-05
  %v215 = vadd.f32 %v199, 1e-05
  %v216 = vadd.f32 %v200, 1e-05
  %v217 = vadd.f32 %v201, 1e-05
  %v218 = vadd.f32 %v202, 1e-05
  %v219 = vadd.f32 %v203, 1e-05
  %v220 = vadd.f32 %v204, 1e-05
  %v221 = vadd.f32 %v205, 1e-05
  %v222 = vadd.f32 %v206, 1e-05
  %v223 = vadd.f32 %v207, 1e-05
  %v224 = vadd.f32 %v208, 1e-05
  %v225 = vadd.f32 %v209, 1e-05
  %v226 = vadd.f32 %v210, 1e-05
  %v227 = vrsqrt.pop %v211
  %v228 = vmul.f32 %v227, %v211
  %v229 = vmul.f32 %v228, %v227
  %v230 = vmul.f32 0.5, %v229
  %v231 = vsub.f32 1.5, %v230
  %v232 = vmul.f32 %v227, %v231
  %vm233 = vweird.f32 %v211
  %vm234 = vweird.f32 %v227
  %vm235 = vmor %vm233, %vm234
  %v236 = vsel %vm235, %v227, %v232
  %v237 = vrsqrt.pop %v212
  %v238 = vmul.f32 %v237, %v212
  %v239 = vmul.f32 %v238, %v237
  %v240 = vmul.f32 0.5, %v239
  %v241 = vsub.f32 1.5, %v240
  %v242 = vmul.f32 %v237, %v241
  %vm243 = vweird.f32 %v212
  %vm244 = vweird.f32 %v237
  %vm245 = vmor %vm243, %vm244
  %v246 = vsel %vm245, %v237, %v242
  %v247 = vrsqrt.pop %v213
  %v248 = vmul.f32 %v247, %v213
  %v249 = vmul.f32 %v248, %v247
  %v250 = vmul.f32 0.5, %v249
  %v251 = vsub.f32 1.5, %v250
  %v252 = vmul.f32 %v247, %v251
  %vm253 = vweird.f32 %v213
  %vm254 = vweird.f32 %v247
  %vm255 = vmor %vm253, %vm254
  %v256 = vsel %vm255, %v247, %v252
  %v257 = vrsqrt.pop %v214
  %v258 = vmul.f32 %v257, %v214
  %v259 = vmul.f32 %v258, %v257
  %v260 = vmul.f32 0.5, %v259
  %v261 = vsub.f32 1.5, %v260
  %v262 = vmul.f32 %v257, %v261
  %vm263 = vweird.f32 %v214
  %vm264 = vweird.f32 %v257
  %vm265 = vmor %vm263, %vm264
  %v266 = vsel %vm265, %v257, %v262
  %v267 = vrsqrt.pop %v215
  %v268 = vmul.f32 %v267, %v215
  %v269 = vmul.f32 %v268, %v267
  %v270 = vmul.f32 0.5, %v269
  %v271 = vsub.f32 1.5, %v270
  %v272 = vmul.f32 %v267, %v271
  %vm273 = vweird.f32 %v215
  %vm274 = vweird.f32 %v267
  %vm275 = vmor %vm273, %vm274
  %v276 = vsel %vm275, %v267, %v272
  %v277 = vrsqrt.pop %v216
  %v278 = vmul.f32 %v277, %v216
  %v279 = vmul.f32 %v278, %v277
  %v280 = vmul.f32 0.5, %v279
  %v281 = vsub.f32 1.5, %v280
  %v282 = vmul.f32 %v277, %v281
  %vm283 = vweird.f32 %v216
  %vm284 = vweird.f32 %v277
  %vm285 = vmor %vm283, %vm284
  %v286 = vsel %vm285, %v277, %v282
  %v287 = vrsqrt.pop %v217
  %v288 = vmul.f32 %v287, %v217
  %v289 = vmul.f32 %v288, %v287
  %v290 = vmul.f32 0.5, %v289
  %v291 = vsub.f32 1.5, %v290
  %v292 = vmul.f32 %v287, %v291
  %vm293 = vweird.f32 %v217
  %vm294 = vweird.f32 %v287
  %vm295 = vmor %vm293, %vm294
  %v296 = vsel %vm295, %v287, %v292
  %v297 = vrsqrt.pop %v218
  %v298 = vmul.f32 %v297, %v218
  %v299 = vmul.f32 %v298, %v297
  %v300 = vmul.f32 0.5, %v299
  %v301 = vsub.f32 1.5, %v300
  %v302 = vmul.f32 %v297, %v301
  %vm303 = vweird.f32 %v218
  %vm304 = vweird.f32 %v297
  %vm305 = vmor %vm303, %vm304
  %v306 = vsel %vm305, %v297, %v302
  %v307 = vrsqrt.pop %v219
  %v308 = vmul.f32 %v307, %v219
  %v309 = vmul.f32 %v308, %v307
  %v310 = vmul.f32 0.5, %v309
  %v311 = vsub.f32 1.5, %v310
  %v312 = vmul.f32 %v307, %v311
  %vm313 = vweird.f32 %v219
  %vm314 = vweird.f32 %v307
  %vm315 = vmor %vm313, %vm314
  %v316 = vsel %vm315, %v307, %v312
  %v317 = vrsqrt.pop %v220
  %v318 = vmul.f32 %v317, %v220
  %v319 = vmul.f32 %v318, %v317
  %v320 = vmul.f32 0.5, %v319
  %v321 = vsub.f32 1.5, %v320
  %v322 = vmul.f32 %v317, %v321
  %vm323 = vweird.f32 %v220
  %vm324 = vweird.f32 %v317
  %vm325 = vmor %vm323, %vm324
  %v326 = vsel %vm325, %v317, %v322
  %v327 = vrsqrt.pop %v221
  %v328 = vmul.f32 %v327, %v221
  %v329 = vmul.f32 %v328, %v327
  %v330 = vmul.f32 0.5, %v329
  %v331 = vsub.f32 1.5, %v330
  %v332 = vmul.f32 %v327, %v331
  %vm333 = vweird.f32 %v221
  %vm334 = vweird.f32 %v327
  %vm335 = vmor %vm333, %vm334
  %v336 = vsel %vm335, %v327, %v332
  %v337 = vrsqrt.pop %v222
  %v338 = vmul.f32 %v337, %v222
  %v339 = vmul.f32 %v338, %v337
  %v340 = vmul.f32 0.5, %v339
  %v341 = vsub.f32 1.5, %v340
  %v342 = vmul.f32 %v337, %v341
  %vm343 = vweird.f32 %v222
  %vm344 = vweird.f32 %v337
  %vm345 = vmor %vm343, %vm344
  %v346 = vsel %vm345, %v337, %v342
  %v347 = vrsqrt.pop %v223
  %v348 = vmul.f32 %v347, %v223
  %v349 = vmul.f32 %v348, %v347
  %v350 = vmul.f32 0.5, %v349
  %v351 = vsub.f32 1.5, %v350
  %v352 = vmul.f32 %v347, %v351
  %vm353 = vweird.f32 %v223
  %vm354 = vweird.f32 %v347
  %vm355 = vmor %vm353, %vm354
  %v356 = vsel %vm355, %v347, %v352
  %v357 = vrsqrt.pop %v224
  %v358 = vmul.f32 %v357, %v224
  %v359 = vmul.f32 %v358, %v357
  %v360 = vmul.f32 0.5, %v359
  %v361 = vsub.f32 1.5, %v360
  %v362 = vmul.f32 %v357, %v361
  %vm363 = vweird.f32 %v224
  %vm364 = vweird.f32 %v357
  %vm365 = vmor %vm363, %vm364
  %v366 = vsel %vm365, %v357, %v362
  %v367 = vrsqrt.pop %v225
  %v368 = vmul.f32 %v367, %v225
  %v369 = vmul.f32 %v368, %v367
  %v370 = vmul.f32 0.5, %v369
  %v371 = vsub.f32 1.5, %v370
  %v372 = vmul.f32 %v367, %v371
  %vm373 = vweird.f32 %v225
  %vm374 = vweird.f32 %v367
  %vm375 = vmor %vm373, %vm374
  %v376 = vsel %vm375, %v367, %v372
  %v377 = vrsqrt.pop %v226
  %v378 = vmul.f32 %v377, %v226
  %v379 = vmul.f32 %v378, %v377
  %v380 = vmul.f32 0.5, %v379
  %v381 = vsub.f32 1.5, %v380
  %v382 = vmul.f32 %v377, %v381
  %vm383 = vweird.f32 %v226
  %vm384 = vweird.f32 %v377
  %vm385 = vmor %vm383, %vm384
  %v386 = vsel %vm385, %v377, %v382
  %v387 = vmul.f32 %v115, %v236
  %v388 = vmul.f32 %v116, %v246
  %v389 = vmul.f32 %v117, %v256
  %v390 = vmul.f32 %v118, %v266
  %v391 = vmul.f32 %v119, %v276
  %v392 = vmul.f32 %v120, %v286
  %v393 = vmul.f32 %v121, %v296
  %v394 = vmul.f32 %v122, %v306
  %v395 = vmul.f32 %v123, %v316
  %v396 = vmul.f32 %v124, %v326
  %v397 = vmul.f32 %v125, %v336
  %v398 = vmul.f32 %v126, %v346
  %v399 = vmul.f32 %v127, %v356
  %v400 = vmul.f32 %v128, %v366
  %v401 = vmul.f32 %v129, %v376
  %v402 = vmul.f32 %v130, %v386
  %v403 = vld [vmem:[%s2] sm:$0x1]
  %v405 = vperm.slane %v403, 0
  %v407 = vmul.f32 %v387, %v405
  %v408 = vmul.f32 %v388, %v405
  %v409 = vmul.f32 %v389, %v405
  %v410 = vmul.f32 %v390, %v405
  %v411 = vmul.f32 %v391, %v405
  %v412 = vmul.f32 %v392, %v405
  %v413 = vmul.f32 %v393, %v405
  %v414 = vmul.f32 %v394, %v405
  %v415 = vmul.f32 %v395, %v405
  %v416 = vmul.f32 %v396, %v405
  %v417 = vmul.f32 %v397, %v405
  %v418 = vmul.f32 %v398, %v405
  %v419 = vmul.f32 %v399, %v405
  %v420 = vmul.f32 %v400, %v405
  %v421 = vmul.f32 %v401, %v405
  %v422 = vmul.f32 %v402, %v405
  %v423 = vld [vmem:[%s3] sm:$0x1]
  %v425 = vperm.slane %v423, 0
  %v427 = vadd.f32 %v407, %v425
  %v428 = vadd.f32 %v408, %v425
  %v429 = vadd.f32 %v409, %v425
  %v430 = vadd.f32 %v410, %v425
  %v431 = vadd.f32 %v411, %v425
  %v432 = vadd.f32 %v412, %v425
  %v433 = vadd.f32 %v413, %v425
  %v434 = vadd.f32 %v414, %v425
  %v435 = vadd.f32 %v415, %v425
  %v436 = vadd.f32 %v416, %v425
  %v437 = vadd.f32 %v417, %v425
  %v438 = vadd.f32 %v418, %v425
  %v439 = vadd.f32 %v419, %v425
  %v440 = vadd.f32 %v420, %v425
  %v441 = vadd.f32 %v421, %v425
  %v442 = vadd.f32 %v422, %v425
  %v443 = vpack.c.bf16 %v428, %v427
  %v444 = vpack.c.bf16 %v430, %v429
  %v445 = vpack.c.bf16 %v432, %v431
  %v446 = vpack.c.bf16 %v434, %v433
  %v447 = vpack.c.bf16 %v436, %v435
  %v448 = vpack.c.bf16 %v438, %v437
  %v449 = vpack.c.bf16 %v440, %v439
  %v450 = vpack.c.bf16 %v442, %v441
  %v451 = vld [vmem:[%s4] sm:$0xf]
  %v452 = vld [vmem:[%s4 + $0x4] sm:$0xf]
  %v453 = vld [vmem:[%s5] sm:$0x1]
  %v455 = vperm.slane %v453, 0
  %v459 = vunpack.c.l.b16 %v451
  %v460 = vunpack.c.l.b16 %v452
  %v461 = vpack.c.b16 %v460, %v459
  %v464 = vsel %vm43, %v443, 0
  %v467 = vsel %vm43, %v444, 0
  %v470 = vsel %vm43, %v445, 0
  %v473 = vsel %vm43, %v446, 0
  %v476 = vsel %vm43, %v447, 0
  %v479 = vsel %vm43, %v448, 0
  %v482 = vsel %vm43, %v449, 0
  %v485 = vsel %vm43, %v450, 0
  %487 = vmatpush.bf16.msra.mxu0 0
  %488 = vmatpush.bf16.msra.mxu0 0
  %489 = vmatpush.bf16.msra.mxu0 0
  %490 = vmatpush.bf16.msra.mxu0 0
  %491 = vmatpush.bf16.msra.mxu0 0
  %492 = vmatpush.bf16.msra.mxu0 0
  %493 = vmatpush.bf16.msra.mxu0 0
  %494 = vmatpush.bf16.msra.mxu0 %v461
  %495 = vmatmul.bf16.gmra.mxu0 %v464
  %v496 = vpop.f32.mrf.mxu0
  %v497 = vadd.f32 %v455, %v496
  %v498 = vpop.f32.mrf.mxu0
  %v499 = vadd.f32 %v455, %v498
  %500 = vmatmul.bf16.gmra.mxu0 %v467
  %v501 = vpop.f32.mrf.mxu0
  %v502 = vadd.f32 %v455, %v501
  %v503 = vpop.f32.mrf.mxu0
  %v504 = vadd.f32 %v455, %v503
  %505 = vmatmul.bf16.gmra.mxu0 %v470
  %v506 = vpop.f32.mrf.mxu0
  %v507 = vadd.f32 %v455, %v506
  %v508 = vpop.f32.mrf.mxu0
  %v509 = vadd.f32 %v455, %v508
  %510 = vmatmul.bf16.gmra.mxu0 %v473
  %v511 = vpop.f32.mrf.mxu0
  %v512 = vadd.f32 %v455, %v511
  %v513 = vpop.f32.mrf.mxu0
  %v514 = vadd.f32 %v455, %v513
  %515 = vmatmul.bf16.gmra.mxu0 %v476
  %v516 = vpop.f32.mrf.mxu0
  %v517 = vadd.f32 %v455, %v516
  %v518 = vpop.f32.mrf.mxu0
  %v519 = vadd.f32 %v455, %v518
  %520 = vmatmul.bf16.gmra.mxu0 %v479
  %v521 = vpop.f32.mrf.mxu0
  %v522 = vadd.f32 %v455, %v521
  %v523 = vpop.f32.mrf.mxu0
  %v524 = vadd.f32 %v455, %v523
  %525 = vmatmul.bf16.gmra.mxu0 %v482
  %v526 = vpop.f32.mrf.mxu0
  %v527 = vadd.f32 %v455, %v526
  %v528 = vpop.f32.mrf.mxu0
  %v529 = vadd.f32 %v455, %v528
  %530 = vmatmul.bf16.gmra.mxu0 %v485
  %v531 = vpop.f32.mrf.mxu0
  %v532 = vadd.f32 %v455, %v531
  %v533 = vpop.f32.mrf.mxu0
  %v534 = vadd.f32 %v455, %v533
  %535 = vdwg.mxu0
  %v536 = vld [vmem:[%s1] sm:$0xff]
  %v537 = vld [vmem:[%s1 + $0x8] sm:$0xff]
  %v538 = vld [vmem:[%s1 + $0x10] sm:$0xff]
  %v539 = vld [vmem:[%s1 + $0x18] sm:$0xff]
  %v540 = vld [vmem:[%s1 + $0x20] sm:$0xff]
  %v541 = vld [vmem:[%s1 + $0x28] sm:$0xff]
  %v542 = vld [vmem:[%s1 + $0x30] sm:$0xff]
  %v543 = vld [vmem:[%s1 + $0x38] sm:$0xff]
  %v544 = vld [vmem:[%s1 + $0x40] sm:$0xff]
  %v545 = vld [vmem:[%s1 + $0x48] sm:$0xff]
  %v546 = vld [vmem:[%s1 + $0x50] sm:$0xff]
  %v547 = vld [vmem:[%s1 + $0x58] sm:$0xff]
  %v548 = vld [vmem:[%s1 + $0x60] sm:$0xff]
  %v549 = vld [vmem:[%s1 + $0x68] sm:$0xff]
  %v550 = vld [vmem:[%s1 + $0x70] sm:$0xff]
  %v551 = vld [vmem:[%s1 + $0x78] sm:$0xff]
  %553 = vset.pattern.permute.xlu0 0
  %554 = vperm.xlu0 %553, %v536
  %v555 = vpop.permute.xlu0 %554
  %558 = vset.pattern.permute.xlu0 0
  %559 = vperm.xlu0 %558, %v537
  %v560 = vpop.permute.xlu0 %559
  %563 = vset.pattern.permute.xlu0 0
  %564 = vperm.xlu0 %563, %v538
  %v565 = vpop.permute.xlu0 %564
  %568 = vset.pattern.permute.xlu0 0
  %569 = vperm.xlu0 %568, %v539
  %v570 = vpop.permute.xlu0 %569
  %573 = vset.pattern.permute.xlu0 0
  %574 = vperm.xlu0 %573, %v540
  %v575 = vpop.permute.xlu0 %574
  %578 = vset.pattern.permute.xlu0 0
  %579 = vperm.xlu0 %578, %v541
  %v580 = vpop.permute.xlu0 %579
  %583 = vset.pattern.permute.xlu0 0
  %584 = vperm.xlu0 %583, %v542
  %v585 = vpop.permute.xlu0 %584
  %588 = vset.pattern.permute.xlu0 0
  %589 = vperm.xlu0 %588, %v543
  %v590 = vpop.permute.xlu0 %589
  %593 = vset.pattern.permute.xlu0 0
  %594 = vperm.xlu0 %593, %v544
  %v595 = vpop.permute.xlu0 %594
  %598 = vset.pattern.permute.xlu0 0
  %599 = vperm.xlu0 %598, %v545
  %v600 = vpop.permute.xlu0 %599
  %603 = vset.pattern.permute.xlu0 0
  %604 = vperm.xlu0 %603, %v546
  %v605 = vpop.permute.xlu0 %604
  %608 = vset.pattern.permute.xlu0 0
  %609 = vperm.xlu0 %608, %v547
  %v610 = vpop.permute.xlu0 %609
  %613 = vset.pattern.permute.xlu0 0
  %614 = vperm.xlu0 %613, %v548
  %v615 = vpop.permute.xlu0 %614
  %618 = vset.pattern.permute.xlu0 0
  %619 = vperm.xlu0 %618, %v549
  %v620 = vpop.permute.xlu0 %619
  %623 = vset.pattern.permute.xlu0 0
  %624 = vperm.xlu0 %623, %v550
  %v625 = vpop.permute.xlu0 %624
  %628 = vset.pattern.permute.xlu0 0
  %629 = vperm.xlu0 %628, %v551
  %v630 = vpop.permute.xlu0 %629
  %v632 = vmul.f32 %v555, %v497
  %v633 = vmul.f32 %v560, %v499
  %v634 = vmul.f32 %v565, %v502
  %v635 = vmul.f32 %v570, %v504
  %v636 = vmul.f32 %v575, %v507
  %v637 = vmul.f32 %v580, %v509
  %v638 = vmul.f32 %v585, %v512
  %v639 = vmul.f32 %v590, %v514
  %v640 = vmul.f32 %v595, %v517
  %v641 = vmul.f32 %v600, %v519
  %v642 = vmul.f32 %v605, %v522
  %v643 = vmul.f32 %v610, %v524
  %v644 = vmul.f32 %v615, %v527
  %v645 = vmul.f32 %v620, %v529
  %v646 = vmul.f32 %v625, %v532
  %v647 = vmul.f32 %v630, %v534
  %v648 = vxor.u32 %v497, 2147483648
  %v649 = vxor.u32 %v499, 2147483648
  %v650 = vxor.u32 %v502, 2147483648
  %v651 = vxor.u32 %v504, 2147483648
  %v652 = vxor.u32 %v507, 2147483648
  %v653 = vxor.u32 %v509, 2147483648
  %v654 = vxor.u32 %v512, 2147483648
  %v655 = vxor.u32 %v514, 2147483648
  %v656 = vxor.u32 %v517, 2147483648
  %v657 = vxor.u32 %v519, 2147483648
  %v658 = vxor.u32 %v522, 2147483648
  %v659 = vxor.u32 %v524, 2147483648
  %v660 = vxor.u32 %v527, 2147483648
  %v661 = vxor.u32 %v529, 2147483648
  %v662 = vxor.u32 %v532, 2147483648
  %v663 = vxor.u32 %v534, 2147483648
  %v664 = vmul.f32 %v648, 1.442695
  %v665 = vpow.pop %v664
  %v666 = vmul.f32 %v649, 1.442695
  %v667 = vpow.pop %v666
  %v668 = vmul.f32 %v650, 1.442695
  %v669 = vpow.pop %v668
  %v670 = vmul.f32 %v651, 1.442695
  %v671 = vpow.pop %v670
  %v672 = vmul.f32 %v652, 1.442695
  %v673 = vpow.pop %v672
  %v674 = vmul.f32 %v653, 1.442695
  %v675 = vpow.pop %v674
  %v676 = vmul.f32 %v654, 1.442695
  %v677 = vpow.pop %v676
  %v678 = vmul.f32 %v655, 1.442695
  %v679 = vpow.pop %v678
  %v680 = vmul.f32 %v656, 1.442695
  %v681 = vpow.pop %v680
  %v682 = vmul.f32 %v657, 1.442695
  %v683 = vpow.pop %v682
  %v684 = vmul.f32 %v658, 1.442695
  %v685 = vpow.pop %v684
  %v686 = vmul.f32 %v659, 1.442695
  %v687 = vpow.pop %v686
  %v688 = vmul.f32 %v660, 1.442695
  %v689 = vpow.pop %v688
  %v690 = vmul.f32 %v661, 1.442695
  %v691 = vpow.pop %v690
  %v692 = vmul.f32 %v662, 1.442695
  %v693 = vpow.pop %v692
  %v694 = vmul.f32 %v663, 1.442695
  %v695 = vpow.pop %v694
  %v696 = vadd.f32 %v665, 1.0
  %v697 = vadd.f32 %v667, 1.0
  %v698 = vadd.f32 %v669, 1.0
  %v699 = vadd.f32 %v671, 1.0
  %v700 = vadd.f32 %v673, 1.0
  %v701 = vadd.f32 %v675, 1.0
  %v702 = vadd.f32 %v677, 1.0
  %v703 = vadd.f32 %v679, 1.0
  %v704 = vadd.f32 %v681, 1.0
  %v705 = vadd.f32 %v683, 1.0
  %v706 = vadd.f32 %v685, 1.0
  %v707 = vadd.f32 %v687, 1.0
  %v708 = vadd.f32 %v689, 1.0
  %v709 = vadd.f32 %v691, 1.0
  %v710 = vadd.f32 %v693, 1.0
  %v711 = vadd.f32 %v695, 1.0
  %v712 = vrcp.pop %v696
  %v713 = vmul.f32 %v696, %v712
  %v714 = vsub.f32 1.0, %v713
  %v715 = vmul.f32 %v712, %v714
  %v716 = vadd.f32 %v712, %v715
  %vm717 = vweird.f32 %v696
  %vm718 = vweird.f32 %v712
  %vm719 = vmor %vm717, %vm718
  %v720 = vsel %vm719, %v712, %v716
  %v721 = vand.u32 2147483647, %v696
  %vm722 = vcmp.eq.f32.partialorder %v721, 8.507059e+37
  %v723 = vand.u32 %v696, 2147483648
  %v724 = vor.u32 1.1754944e-38, %v723
  %v725 = vsel %vm722, %v724, %v720
  %v726 = vmul.f32 1.0, %v725
  %v727 = vrcp.pop %v697
  %v728 = vmul.f32 %v697, %v727
  %v729 = vsub.f32 1.0, %v728
  %v730 = vmul.f32 %v727, %v729
  %v731 = vadd.f32 %v727, %v730
  %vm732 = vweird.f32 %v697
  %vm733 = vweird.f32 %v727
  %vm734 = vmor %vm732, %vm733
  %v735 = vsel %vm734, %v727, %v731
  %v736 = vand.u32 2147483647, %v697
  %vm737 = vcmp.eq.f32.partialorder %v736, 8.507059e+37
  %v738 = vand.u32 %v697, 2147483648
  %v739 = vor.u32 1.1754944e-38, %v738
  %v740 = vsel %vm737, %v739, %v735
  %v741 = vmul.f32 1.0, %v740
  %v742 = vrcp.pop %v698
  %v743 = vmul.f32 %v698, %v742
  %v744 = vsub.f32 1.0, %v743
  %v745 = vmul.f32 %v742, %v744
  %v746 = vadd.f32 %v742, %v745
  %vm747 = vweird.f32 %v698
  %vm748 = vweird.f32 %v742
  %vm749 = vmor %vm747, %vm748
  %v750 = vsel %vm749, %v742, %v746
  %v751 = vand.u32 2147483647, %v698
  %vm752 = vcmp.eq.f32.partialorder %v751, 8.507059e+37
  %v753 = vand.u32 %v698, 2147483648
  %v754 = vor.u32 1.1754944e-38, %v753
  %v755 = vsel %vm752, %v754, %v750
  %v756 = vmul.f32 1.0, %v755
  %v757 = vrcp.pop %v699
  %v758 = vmul.f32 %v699, %v757
  %v759 = vsub.f32 1.0, %v758
  %v760 = vmul.f32 %v757, %v759
  %v761 = vadd.f32 %v757, %v760
  %vm762 = vweird.f32 %v699
  %vm763 = vweird.f32 %v757
  %vm764 = vmor %vm762, %vm763
  %v765 = vsel %vm764, %v757, %v761
  %v766 = vand.u32 2147483647, %v699
  %vm767 = vcmp.eq.f32.partialorder %v766, 8.507059e+37
  %v768 = vand.u32 %v699, 2147483648
  %v769 = vor.u32 1.1754944e-38, %v768
  %v770 = vsel %vm767, %v769, %v765
  %v771 = vmul.f32 1.0, %v770
  %v772 = vrcp.pop %v700
  %v773 = vmul.f32 %v700, %v772
  %v774 = vsub.f32 1.0, %v773
  %v775 = vmul.f32 %v772, %v774
  %v776 = vadd.f32 %v772, %v775
  %vm777 = vweird.f32 %v700
  %vm778 = vweird.f32 %v772
  %vm779 = vmor %vm777, %vm778
  %v780 = vsel %vm779, %v772, %v776
  %v781 = vand.u32 2147483647, %v700
  %vm782 = vcmp.eq.f32.partialorder %v781, 8.507059e+37
  %v783 = vand.u32 %v700, 2147483648
  %v784 = vor.u32 1.1754944e-38, %v783
  %v785 = vsel %vm782, %v784, %v780
  %v786 = vmul.f32 1.0, %v785
  %v787 = vrcp.pop %v701
  %v788 = vmul.f32 %v701, %v787
  %v789 = vsub.f32 1.0, %v788
  %v790 = vmul.f32 %v787, %v789
  %v791 = vadd.f32 %v787, %v790
  %vm792 = vweird.f32 %v701
  %vm793 = vweird.f32 %v787
  %vm794 = vmor %vm792, %vm793
  %v795 = vsel %vm794, %v787, %v791
  %v796 = vand.u32 2147483647, %v701
  %vm797 = vcmp.eq.f32.partialorder %v796, 8.507059e+37
  %v798 = vand.u32 %v701, 2147483648
  %v799 = vor.u32 1.1754944e-38, %v798
  %v800 = vsel %vm797, %v799, %v795
  %v801 = vmul.f32 1.0, %v800
  %v802 = vrcp.pop %v702
  %v803 = vmul.f32 %v702, %v802
  %v804 = vsub.f32 1.0, %v803
  %v805 = vmul.f32 %v802, %v804
  %v806 = vadd.f32 %v802, %v805
  %vm807 = vweird.f32 %v702
  %vm808 = vweird.f32 %v802
  %vm809 = vmor %vm807, %vm808
  %v810 = vsel %vm809, %v802, %v806
  %v811 = vand.u32 2147483647, %v702
  %vm812 = vcmp.eq.f32.partialorder %v811, 8.507059e+37
  %v813 = vand.u32 %v702, 2147483648
  %v814 = vor.u32 1.1754944e-38, %v813
  %v815 = vsel %vm812, %v814, %v810
  %v816 = vmul.f32 1.0, %v815
  %v817 = vrcp.pop %v703
  %v818 = vmul.f32 %v703, %v817
  %v819 = vsub.f32 1.0, %v818
  %v820 = vmul.f32 %v817, %v819
  %v821 = vadd.f32 %v817, %v820
  %vm822 = vweird.f32 %v703
  %vm823 = vweird.f32 %v817
  %vm824 = vmor %vm822, %vm823
  %v825 = vsel %vm824, %v817, %v821
  %v826 = vand.u32 2147483647, %v703
  %vm827 = vcmp.eq.f32.partialorder %v826, 8.507059e+37
  %v828 = vand.u32 %v703, 2147483648
  %v829 = vor.u32 1.1754944e-38, %v828
  %v830 = vsel %vm827, %v829, %v825
  %v831 = vmul.f32 1.0, %v830
  %v832 = vrcp.pop %v704
  %v833 = vmul.f32 %v704, %v832
  %v834 = vsub.f32 1.0, %v833
  %v835 = vmul.f32 %v832, %v834
  %v836 = vadd.f32 %v832, %v835
  %vm837 = vweird.f32 %v704
  %vm838 = vweird.f32 %v832
  %vm839 = vmor %vm837, %vm838
  %v840 = vsel %vm839, %v832, %v836
  %v841 = vand.u32 2147483647, %v704
  %vm842 = vcmp.eq.f32.partialorder %v841, 8.507059e+37
  %v843 = vand.u32 %v704, 2147483648
  %v844 = vor.u32 1.1754944e-38, %v843
  %v845 = vsel %vm842, %v844, %v840
  %v846 = vmul.f32 1.0, %v845
  %v847 = vrcp.pop %v705
  %v848 = vmul.f32 %v705, %v847
  %v849 = vsub.f32 1.0, %v848
  %v850 = vmul.f32 %v847, %v849
  %v851 = vadd.f32 %v847, %v850
  %vm852 = vweird.f32 %v705
  %vm853 = vweird.f32 %v847
  %vm854 = vmor %vm852, %vm853
  %v855 = vsel %vm854, %v847, %v851
  %v856 = vand.u32 2147483647, %v705
  %vm857 = vcmp.eq.f32.partialorder %v856, 8.507059e+37
  %v858 = vand.u32 %v705, 2147483648
  %v859 = vor.u32 1.1754944e-38, %v858
  %v860 = vsel %vm857, %v859, %v855
  %v861 = vmul.f32 1.0, %v860
  %v862 = vrcp.pop %v706
  %v863 = vmul.f32 %v706, %v862
  %v864 = vsub.f32 1.0, %v863
  %v865 = vmul.f32 %v862, %v864
  %v866 = vadd.f32 %v862, %v865
  %vm867 = vweird.f32 %v706
  %vm868 = vweird.f32 %v862
  %vm869 = vmor %vm867, %vm868
  %v870 = vsel %vm869, %v862, %v866
  %v871 = vand.u32 2147483647, %v706
  %vm872 = vcmp.eq.f32.partialorder %v871, 8.507059e+37
  %v873 = vand.u32 %v706, 2147483648
  %v874 = vor.u32 1.1754944e-38, %v873
  %v875 = vsel %vm872, %v874, %v870
  %v876 = vmul.f32 1.0, %v875
  %v877 = vrcp.pop %v707
  %v878 = vmul.f32 %v707, %v877
  %v879 = vsub.f32 1.0, %v878
  %v880 = vmul.f32 %v877, %v879
  %v881 = vadd.f32 %v877, %v880
  %vm882 = vweird.f32 %v707
  %vm883 = vweird.f32 %v877
  %vm884 = vmor %vm882, %vm883
  %v885 = vsel %vm884, %v877, %v881
  %v886 = vand.u32 2147483647, %v707
  %vm887 = vcmp.eq.f32.partialorder %v886, 8.507059e+37
  %v888 = vand.u32 %v707, 2147483648
  %v889 = vor.u32 1.1754944e-38, %v888
  %v890 = vsel %vm887, %v889, %v885
  %v891 = vmul.f32 1.0, %v890
  %v892 = vrcp.pop %v708
  %v893 = vmul.f32 %v708, %v892
  %v894 = vsub.f32 1.0, %v893
  %v895 = vmul.f32 %v892, %v894
  %v896 = vadd.f32 %v892, %v895
  %vm897 = vweird.f32 %v708
  %vm898 = vweird.f32 %v892
  %vm899 = vmor %vm897, %vm898
  %v900 = vsel %vm899, %v892, %v896
  %v901 = vand.u32 2147483647, %v708
  %vm902 = vcmp.eq.f32.partialorder %v901, 8.507059e+37
  %v903 = vand.u32 %v708, 2147483648
  %v904 = vor.u32 1.1754944e-38, %v903
  %v905 = vsel %vm902, %v904, %v900
  %v906 = vmul.f32 1.0, %v905
  %v907 = vrcp.pop %v709
  %v908 = vmul.f32 %v709, %v907
  %v909 = vsub.f32 1.0, %v908
  %v910 = vmul.f32 %v907, %v909
  %v911 = vadd.f32 %v907, %v910
  %vm912 = vweird.f32 %v709
  %vm913 = vweird.f32 %v907
  %vm914 = vmor %vm912, %vm913
  %v915 = vsel %vm914, %v907, %v911
  %v916 = vand.u32 2147483647, %v709
  %vm917 = vcmp.eq.f32.partialorder %v916, 8.507059e+37
  %v918 = vand.u32 %v709, 2147483648
  %v919 = vor.u32 1.1754944e-38, %v918
  %v920 = vsel %vm917, %v919, %v915
  %v921 = vmul.f32 1.0, %v920
  %v922 = vrcp.pop %v710
  %v923 = vmul.f32 %v710, %v922
  %v924 = vsub.f32 1.0, %v923
  %v925 = vmul.f32 %v922, %v924
  %v926 = vadd.f32 %v922, %v925
  %vm927 = vweird.f32 %v710
  %vm928 = vweird.f32 %v922
  %vm929 = vmor %vm927, %vm928
  %v930 = vsel %vm929, %v922, %v926
  %v931 = vand.u32 2147483647, %v710
  %vm932 = vcmp.eq.f32.partialorder %v931, 8.507059e+37
  %v933 = vand.u32 %v710, 2147483648
  %v934 = vor.u32 1.1754944e-38, %v933
  %v935 = vsel %vm932, %v934, %v930
  %v936 = vmul.f32 1.0, %v935
  %v937 = vrcp.pop %v711
  %v938 = vmul.f32 %v711, %v937
  %v939 = vsub.f32 1.0, %v938
  %v940 = vmul.f32 %v937, %v939
  %v941 = vadd.f32 %v937, %v940
  %vm942 = vweird.f32 %v711
  %vm943 = vweird.f32 %v937
  %vm944 = vmor %vm942, %vm943
  %v945 = vsel %vm944, %v937, %v941
  %v946 = vand.u32 2147483647, %v711
  %vm947 = vcmp.eq.f32.partialorder %v946, 8.507059e+37
  %v948 = vand.u32 %v711, 2147483648
  %v949 = vor.u32 1.1754944e-38, %v948
  %v950 = vsel %vm947, %v949, %v945
  %v951 = vmul.f32 1.0, %v950
  %968 = vrot.lane.b32.xlu0 %v726, 120
  %v969 = vpop.permute.xlu0 %968
  %970 = vrot.lane.b32.xlu0 %v741, 120
  %v971 = vpop.permute.xlu0 %970
  %972 = vrot.lane.b32.xlu0 %v756, 120
  %v973 = vpop.permute.xlu0 %972
  %974 = vrot.lane.b32.xlu0 %v771, 120
  %v975 = vpop.permute.xlu0 %974
  %976 = vrot.lane.b32.xlu0 %v786, 120
  %v977 = vpop.permute.xlu0 %976
  %978 = vrot.lane.b32.xlu0 %v801, 120
  %v979 = vpop.permute.xlu0 %978
  %980 = vrot.lane.b32.xlu0 %v816, 120
  %v981 = vpop.permute.xlu0 %980
  %982 = vrot.lane.b32.xlu0 %v831, 120
  %v983 = vpop.permute.xlu0 %982
  %984 = vrot.lane.b32.xlu0 %v846, 120
  %v985 = vpop.permute.xlu0 %984
  %986 = vrot.lane.b32.xlu0 %v861, 120
  %v987 = vpop.permute.xlu0 %986
  %988 = vrot.lane.b32.xlu0 %v876, 120
  %v989 = vpop.permute.xlu0 %988
  %990 = vrot.lane.b32.xlu0 %v891, 120
  %v991 = vpop.permute.xlu0 %990
  %992 = vrot.lane.b32.xlu0 %v906, 120
  %v993 = vpop.permute.xlu0 %992
  %994 = vrot.lane.b32.xlu0 %v921, 120
  %v995 = vpop.permute.xlu0 %994
  %996 = vrot.lane.b32.xlu0 %v936, 120
  %v997 = vpop.permute.xlu0 %996
  %998 = vrot.lane.b32.xlu0 %v951, 120
  %v999 = vpop.permute.xlu0 %998
  %v1016 = vmul.f32 %v632, %v969
  %v1017 = vmul.f32 %v633, %v971
  %v1018 = vmul.f32 %v634, %v973
  %v1019 = vmul.f32 %v635, %v975
  %v1020 = vmul.f32 %v636, %v977
  %v1021 = vmul.f32 %v637, %v979
  %v1022 = vmul.f32 %v638, %v981
  %v1023 = vmul.f32 %v639, %v983
  %v1024 = vmul.f32 %v640, %v985
  %v1025 = vmul.f32 %v641, %v987
  %v1026 = vmul.f32 %v642, %v989
  %v1027 = vmul.f32 %v643, %v991
  %v1028 = vmul.f32 %v644, %v993
  %v1029 = vmul.f32 %v645, %v995
  %v1030 = vmul.f32 %v646, %v997
  %v1031 = vmul.f32 %v647, %v999
  %vm1032 = vcmask 64512
  %1033 = vst.msk [vmem:[%s6] sm:$0xff] %vm1032, %v1016
  %1034 = vst.msk [vmem:[%s6 + $0x8] sm:$0xff] %vm1032, %v1017
  %1035 = vst.msk [vmem:[%s6 + $0x10] sm:$0xff] %vm1032, %v1018
  %1036 = vst.msk [vmem:[%s6 + $0x18] sm:$0xff] %vm1032, %v1019
  %1037 = vst.msk [vmem:[%s6 + $0x20] sm:$0xff] %vm1032, %v1020
  %1038 = vst.msk [vmem:[%s6 + $0x28] sm:$0xff] %vm1032, %v1021
  %1039 = vst.msk [vmem:[%s6 + $0x30] sm:$0xff] %vm1032, %v1022
  %1040 = vst.msk [vmem:[%s6 + $0x38] sm:$0xff] %vm1032, %v1023
  %1041 = vst.msk [vmem:[%s6 + $0x40] sm:$0xff] %vm1032, %v1024
  %1042 = vst.msk [vmem:[%s6 + $0x48] sm:$0xff] %vm1032, %v1025
  %1043 = vst.msk [vmem:[%s6 + $0x50] sm:$0xff] %vm1032, %v1026
  %1044 = vst.msk [vmem:[%s6 + $0x58] sm:$0xff] %vm1032, %v1027
  %1045 = vst.msk [vmem:[%s6 + $0x60] sm:$0xff] %vm1032, %v1028
  %1046 = vst.msk [vmem:[%s6 + $0x68] sm:$0xff] %vm1032, %v1029
  %1047 = vst.msk [vmem:[%s6 + $0x70] sm:$0xff] %vm1032, %v1030
  %1048 = vst.msk [vmem:[%s6 + $0x78] sm:$0xff] %vm1032, %v1031
  %1065 = vrot.lane.b32.xlu0 %v1016, 112
  %v1066 = vpop.permute.xlu0 %1065
  %1067 = vrot.lane.b32.xlu0 %v1017, 112
  %v1068 = vpop.permute.xlu0 %1067
  %1069 = vrot.lane.b32.xlu0 %v1018, 112
  %v1070 = vpop.permute.xlu0 %1069
  %1071 = vrot.lane.b32.xlu0 %v1019, 112
  %v1072 = vpop.permute.xlu0 %1071
  %1073 = vrot.lane.b32.xlu0 %v1020, 112
  %v1074 = vpop.permute.xlu0 %1073
  %1075 = vrot.lane.b32.xlu0 %v1021, 112
  %v1076 = vpop.permute.xlu0 %1075
  %1077 = vrot.lane.b32.xlu0 %v1022, 112
  %v1078 = vpop.permute.xlu0 %1077
  %1079 = vrot.lane.b32.xlu0 %v1023, 112
  %v1080 = vpop.permute.xlu0 %1079
  %1081 = vrot.lane.b32.xlu0 %v1024, 112
  %v1082 = vpop.permute.xlu0 %1081
  %1083 = vrot.lane.b32.xlu0 %v1025, 112
  %v1084 = vpop.permute.xlu0 %1083
  %1085 = vrot.lane.b32.xlu0 %v1026, 112
  %v1086 = vpop.permute.xlu0 %1085
  %1087 = vrot.lane.b32.xlu0 %v1027, 112
  %v1088 = vpop.permute.xlu0 %1087
  %1089 = vrot.lane.b32.xlu0 %v1028, 112
  %v1090 = vpop.permute.xlu0 %1089
  %1091 = vrot.lane.b32.xlu0 %v1029, 112
  %v1092 = vpop.permute.xlu0 %1091
  %1093 = vrot.lane.b32.xlu0 %v1030, 112
  %v1094 = vpop.permute.xlu0 %1093
  %1095 = vrot.lane.b32.xlu0 %v1031, 112
  %v1096 = vpop.permute.xlu0 %1095
  %1113 = vst.msk [vmem:[%s7] sm:$0xff] %vm1032, %v1066
  %1114 = vst.msk [vmem:[%s7 + $0x8] sm:$0xff] %vm1032, %v1068
  %1115 = vst.msk [vmem:[%s7 + $0x10] sm:$0xff] %vm1032, %v1070
  %1116 = vst.msk [vmem:[%s7 + $0x18] sm:$0xff] %vm1032, %v1072
  %1117 = vst.msk [vmem:[%s7 + $0x20] sm:$0xff] %vm1032, %v1074
  %1118 = vst.msk [vmem:[%s7 + $0x28] sm:$0xff] %vm1032, %v1076
  %1119 = vst.msk [vmem:[%s7 + $0x30] sm:$0xff] %vm1032, %v1078
  %1120 = vst.msk [vmem:[%s7 + $0x38] sm:$0xff] %vm1032, %v1080
  %1121 = vst.msk [vmem:[%s7 + $0x40] sm:$0xff] %vm1032, %v1082
  %1122 = vst.msk [vmem:[%s7 + $0x48] sm:$0xff] %vm1032, %v1084
  %1123 = vst.msk [vmem:[%s7 + $0x50] sm:$0xff] %vm1032, %v1086
  %1124 = vst.msk [vmem:[%s7 + $0x58] sm:$0xff] %vm1032, %v1088
  %1125 = vst.msk [vmem:[%s7 + $0x60] sm:$0xff] %vm1032, %v1090
  %1126 = vst.msk [vmem:[%s7 + $0x68] sm:$0xff] %vm1032, %v1092
  %1127 = vst.msk [vmem:[%s7 + $0x70] sm:$0xff] %vm1032, %v1094
  %1128 = vst.msk [vmem:[%s7 + $0x78] sm:$0xff] %vm1032, %v1096
  %1129 = vrot.lane.b32.xlu0 %v726, 96
  %v1130 = vpop.permute.xlu0 %1129
  %1131 = vrot.lane.b32.xlu0 %v741, 96
  %v1132 = vpop.permute.xlu0 %1131
  %1133 = vrot.lane.b32.xlu0 %v756, 96
  %v1134 = vpop.permute.xlu0 %1133
  %1135 = vrot.lane.b32.xlu0 %v771, 96
  %v1136 = vpop.permute.xlu0 %1135
  %1137 = vrot.lane.b32.xlu0 %v786, 96
  %v1138 = vpop.permute.xlu0 %1137
  %1139 = vrot.lane.b32.xlu0 %v801, 96
  %v1140 = vpop.permute.xlu0 %1139
  %1141 = vrot.lane.b32.xlu0 %v816, 96
  %v1142 = vpop.permute.xlu0 %1141
  %1143 = vrot.lane.b32.xlu0 %v831, 96
  %v1144 = vpop.permute.xlu0 %1143
  %1145 = vrot.lane.b32.xlu0 %v846, 96
  %v1146 = vpop.permute.xlu0 %1145
  %1147 = vrot.lane.b32.xlu0 %v861, 96
  %v1148 = vpop.permute.xlu0 %1147
  %1149 = vrot.lane.b32.xlu0 %v876, 96
  %v1150 = vpop.permute.xlu0 %1149
  %1151 = vrot.lane.b32.xlu0 %v891, 96
  %v1152 = vpop.permute.xlu0 %1151
  %1153 = vrot.lane.b32.xlu0 %v906, 96
  %v1154 = vpop.permute.xlu0 %1153
  %1155 = vrot.lane.b32.xlu0 %v921, 96
  %v1156 = vpop.permute.xlu0 %1155
  %1157 = vrot.lane.b32.xlu0 %v936, 96
  %v1158 = vpop.permute.xlu0 %1157
  %1159 = vrot.lane.b32.xlu0 %v951, 96
  %v1160 = vpop.permute.xlu0 %1159
  %1177 = vst.msk [vmem:[%s8] sm:$0xff] %vm43, %v1130
  %1178 = vst.msk [vmem:[%s8 + $0x8] sm:$0xff] %vm43, %v1132
  %1179 = vst.msk [vmem:[%s8 + $0x10] sm:$0xff] %vm43, %v1134
  %1180 = vst.msk [vmem:[%s8 + $0x18] sm:$0xff] %vm43, %v1136
  %1181 = vst.msk [vmem:[%s8 + $0x20] sm:$0xff] %vm43, %v1138
  %1182 = vst.msk [vmem:[%s8 + $0x28] sm:$0xff] %vm43, %v1140
  %1183 = vst.msk [vmem:[%s8 + $0x30] sm:$0xff] %vm43, %v1142
  %1184 = vst.msk [vmem:[%s8 + $0x38] sm:$0xff] %vm43, %v1144
  %1185 = vst.msk [vmem:[%s8 + $0x40] sm:$0xff] %vm43, %v1146
  %1186 = vst.msk [vmem:[%s8 + $0x48] sm:$0xff] %vm43, %v1148
  %1187 = vst.msk [vmem:[%s8 + $0x50] sm:$0xff] %vm43, %v1150
  %1188 = vst.msk [vmem:[%s8 + $0x58] sm:$0xff] %vm43, %v1152
  %1189 = vst.msk [vmem:[%s8 + $0x60] sm:$0xff] %vm43, %v1154
  %1190 = vst.msk [vmem:[%s8 + $0x68] sm:$0xff] %vm43, %v1156
  %1191 = vst.msk [vmem:[%s8 + $0x70] sm:$0xff] %vm43, %v1158
  %1192 = vst.msk [vmem:[%s8 + $0x78] sm:$0xff] %vm43, %v1160
  // Predicated region
  $region26: #{forward.35} parent=0 // pred_check
    _
  $region27: #{forward.35} parent=0 // pred_check_branch
    %1194 = sbr.rel (0) target = $region29
  $region28: #{forward.35} parent=0 // pred_region
    _
  $region29: #{forward.35} parent=0 // pred_fallthru
    _
  // Predicated region
  $region30: #{forward.35} parent=0 // pred_check
    _
  $region31: #{forward.35} parent=0 // pred_check_branch
    %1196 = sbr.rel (0) target = $region33
  $region32: #{forward.35} parent=0 // pred_region
    _
  $region33: #{forward.35} parent=0 // pred_fallthru
    _
  // Predicated region
  $region34: #{forward.35} parent=0 // pred_check
    _
  $region35: #{forward.35} parent=0 // pred_check_branch
    %1198 = sbr.rel (0) target = $region37
  $region36: #{forward.35} parent=0 // pred_region
    _
  $region37: #{forward.35} parent=0 // pred_fallthru
    _
  // Predicated region
  $region38: #{forward.35} parent=0 // pred_check
    _
  $region39: #{forward.35} parent=0 // pred_check_branch
    %1200 = sbr.rel (0) target = $region41
  $region40: #{forward.35} parent=0 // pred_region
    _
  $region41: #{forward.35} parent=0 // pred_fallthru
    _
  // Predicated region
  $region42: #{forward.35} parent=0 // pred_check
    _
  $region43: #{forward.35} parent=0 // pred_check_branch
    %1202 = sbr.rel (0) target = $region45
  $region44: #{forward.35} parent=0 // pred_region
    _
  $region45: #{forward.35} parent=0 // pred_fallthru
    _
  // Predicated region
  $region46: #{forward.35} parent=0 // pred_check
    _
  $region47: #{forward.35} parent=0 // pred_check_branch
    %1204 = sbr.rel (0) target = $region49
  $region48: #{forward.35} parent=0 // pred_region
    _
  $region49: #{forward.35} parent=0 // pred_fallthru
    _

// kernel: forward.36
$region0: #{forward.36}
  #allocation0 [shape = 'u32[]', space=smem, size = 0x4, offset = 0x4, fixed_abs, tag = 'smem constant byte address 0x4 - core index']
  #allocation1 [shape = 'u32[72,128]{1,0:T(1,128)}', space=vmem, size = 0x9000, scoped, tag = 'internal scratch']
  %s0 = inlined_call_operand.vmem [shape: bf16[16,8,8], index: 0, kind: input, shape index: {}]
  %s1 = inlined_call_operand.vmem [shape: bf16[16,8,8], index: 1, kind: input, shape index: {}]
  %s2 = inlined_call_operand.vmem [shape: f32[16,8,8], index: 2, kind: output, shape index: {}]
  %s3 = sld [smem:[#allocation0]]
  $region18: #{forward.36} parent=0
    _
  %s5 = ssub.s32 1, %s3
  %s6 = scalar_select 0, %s5, %s3
  // Predicated region
  $region2: #{forward.36} parent=0 // pred_check
    _
  $region3: #{forward.36} parent=0 // pred_check_branch
    %8 = sbr.rel (0) target = $region5
  $region4: #{forward.36} parent=0 // pred_region
    _
  $region5: #{forward.36} parent=0 // pred_fallthru
    _
  // Predicated region
  $region6: #{forward.36} parent=0 // pred_check
    _
  $region7: #{forward.36} parent=0 // pred_check_branch
    %10 = sbr.rel (0) target = $region9
  $region8: #{forward.36} parent=0 // pred_region
    _
  $region9: #{forward.36} parent=0 // pred_fallthru
    _
  %v12 = vld [vmem:[%s0] sm:$0xf]
  %v13 = vld [vmem:[%s1] sm:$0xf]
  %vm14 = vcmask 64512
  %v16 = vsel %vm14, %v12, 0
  %v19 = vsel %vm14, %v13, 0
  %21 = vmatpush.bf16.xpose.msra.mxu0 0
  %22 = vmatpush.bf16.xpose.msra.mxu0 0
  %23 = vmatpush.bf16.xpose.msra.mxu0 0
  %24 = vmatpush.bf16.xpose.msra.mxu0 0
  %25 = vmatpush.bf16.xpose.msra.mxu0 0
  %26 = vmatpush.bf16.xpose.msra.mxu0 0
  %27 = vmatpush.bf16.xpose.msra.mxu0 0
  %28 = vmatpush.bf16.xpose.msra.mxu0 %v19
  %29 = vmatmul.bf16.gmra.mxu0 %v16
  %v30 = vpop.f32.mrf.mxu0
  %v31 = vadd.f32 0.0, %v30
  %v32 = vpop.f32.mrf.mxu0
  %33 = vdwg.mxu0
  %34 = vst.msk [vmem:[%s2] sm:$0xff] %vm14, %v31
  %s35 = scalar_lea.vmem %s0, 4
  %v36 = vld [vmem:[%s35] sm:$0xf]
  %s37 = scalar_lea.vmem %s1, 4
  %v38 = vld [vmem:[%s37] sm:$0xf]
  %v40 = vsel %vm14, %v36, 0
  %v43 = vsel %vm14, %v38, 0
  %45 = vmatpush.bf16.xpose.msra.mxu0 0
  %46 = vmatpush.bf16.xpose.msra.mxu0 0
  %47 = vmatpush.bf16.xpose.msra.mxu0 0
  %48 = vmatpush.bf16.xpose.msra.mxu0 0
  %49 = vmatpush.bf16.xpose.msra.mxu0 0
  %50 = vmatpush.bf16.xpose.msra.mxu0 0
  %51 = vmatpush.bf16.xpose.msra.mxu0 0
  %52 = vmatpush.bf16.xpose.msra.mxu0 %v43
  %53 = vmatmul.bf16.gmra.mxu0 %v40
  %v54 = vpop.f32.mrf.mxu0
  %v55 = vadd.f32 0.0, %v54
  %v56 = vpop.f32.mrf.mxu0
  %57 = vdwg.mxu0
  %s58 = scalar_lea.vmem %s2, 8
  %59 = vst.msk [vmem:[%s58] sm:$0xff] %vm14, %v55
  %s60 = scalar_lea.vmem %s0, 8
  %v61 = vld [vmem:[%s60] sm:$0xf]
  %s62 = scalar_lea.vmem %s1, 8
  %v63 = vld [vmem:[%s62] sm:$0xf]
  %v65 = vsel %vm14, %v61, 0
  %v68 = vsel %vm14, %v63, 0
  %70 = vmatpush.bf16.xpose.msra.mxu0 0
  %71 = vmatpush.bf16.xpose.msra.mxu0 0
  %72 = vmatpush.bf16.xpose.msra.mxu0 0
  %73 = vmatpush.bf16.xpose.msra.mxu0 0
  %74 = vmatpush.bf16.xpose.msra.mxu0 0
  %75 = vmatpush.bf16.xpose.msra.mxu0 0
  %76 = vmatpush.bf16.xpose.msra.mxu0 0
  %77 = vmatpush.bf16.xpose.msra.mxu0 %v68
  %78 = vmatmul.bf16.gmra.mxu0 %v65
  %v79 = vpop.f32.mrf.mxu0
  %v80 = vadd.f32 0.0, %v79
  %v81 = vpop.f32.mrf.mxu0
  %82 = vdwg.mxu0
  %s83 = scalar_lea.vmem %s2, 16
  %84 = vst.msk [vmem:[%s83] sm:$0xff] %vm14, %v80
  %s85 = scalar_lea.vmem %s0, 12
  %v86 = vld [vmem:[%s85] sm:$0xf]
  %s87 = scalar_lea.vmem %s1, 12
  %v88 = vld [vmem:[%s87] sm:$0xf]
  %v90 = vsel %vm14, %v86, 0
  %v93 = vsel %vm14, %v88, 0
  %95 = vmatpush.bf16.xpose.msra.mxu0 0
  %96 = vmatpush.bf16.xpose.msra.mxu0 0
  %97 = vmatpush.bf16.xpose.msra.mxu0 0
  %98 = vmatpush.bf16.xpose.msra.mxu0 0
  %99 = vmatpush.bf16.xpose.msra.mxu0 0
  %100 = vmatpush.bf16.xpose.msra.mxu0 0
  %101 = vmatpush.bf16.xpose.msra.mxu0 0
  %102 = vmatpush.bf16.xpose.msra.mxu0 %v93
  %103 = vmatmul.bf16.gmra.mxu0 %v90
  %v104 = vpop.f32.mrf.mxu0
  %v105 = vadd.f32 0.0, %v104
  %v106 = vpop.f32.mrf.mxu0
  %107 = vdwg.mxu0
  %s108 = scalar_lea.vmem %s2, 24
  %109 = vst.msk [vmem:[%s108] sm:$0xff] %vm14, %v105
  %s110 = scalar_lea.vmem %s0, 16
  %v111 = vld [vmem:[%s110] sm:$0xf]
  %s112 = scalar_lea.vmem %s1, 16
  %v113 = vld [vmem:[%s112] sm:$0xf]
  %v115 = vsel %vm14, %v111, 0
  %v118 = vsel %vm14, %v113, 0
  %120 = vmatpush.bf16.xpose.msra.mxu0 0
  %121 = vmatpush.bf16.xpose.msra.mxu0 0
  %122 = vmatpush.bf16.xpose.msra.mxu0 0
  %123 = vmatpush.bf16.xpose.msra.mxu0 0
  %124 = vmatpush.bf16.xpose.msra.mxu0 0
  %125 = vmatpush.bf16.xpose.msra.mxu0 0
  %126 = vmatpush.bf16.xpose.msra.mxu0 0
  %127 = vmatpush.bf16.xpose.msra.mxu0 %v118
  %128 = vmatmul.bf16.gmra.mxu0 %v115
  %v129 = vpop.f32.mrf.mxu0
  %v130 = vadd.f32 0.0, %v129
  %v131 = vpop.f32.mrf.mxu0
  %132 = vdwg.mxu0
  %s133 = scalar_lea.vmem %s2, 32
  %134 = vst.msk [vmem:[%s133] sm:$0xff] %vm14, %v130
  %s135 = scalar_lea.vmem %s0, 20
  %v136 = vld [vmem:[%s135] sm:$0xf]
  %s137 = scalar_lea.vmem %s1, 20
  %v138 = vld [vmem:[%s137] sm:$0xf]
  %v140 = vsel %vm14, %v136, 0
  %v143 = vsel %vm14, %v138, 0
  %145 = vmatpush.bf16.xpose.msra.mxu0 0
  %146 = vmatpush.bf16.xpose.msra.mxu0 0
  %147 = vmatpush.bf16.xpose.msra.mxu0 0
  %148 = vmatpush.bf16.xpose.msra.mxu0 0
  %149 = vmatpush.bf16.xpose.msra.mxu0 0
  %150 = vmatpush.bf16.xpose.msra.mxu0 0
  %151 = vmatpush.bf16.xpose.msra.mxu0 0
  %152 = vmatpush.bf16.xpose.msra.mxu0 %v143
  %153 = vmatmul.bf16.gmra.mxu0 %v140
  %v154 = vpop.f32.mrf.mxu0
  %v155 = vadd.f32 0.0, %v154
  %v156 = vpop.f32.mrf.mxu0
  %157 = vdwg.mxu0
  %s158 = scalar_lea.vmem %s2, 40
  %159 = vst.msk [vmem:[%s158] sm:$0xff] %vm14, %v155
  %s160 = scalar_lea.vmem %s0, 24
  %v161 = vld [vmem:[%s160] sm:$0xf]
  %s162 = scalar_lea.vmem %s1, 24
  %v163 = vld [vmem:[%s162] sm:$0xf]
  %v165 = vsel %vm14, %v161, 0
  %v168 = vsel %vm14, %v163, 0
  %170 = vmatpush.bf16.xpose.msra.mxu0 0
  %171 = vmatpush.bf16.xpose.msra.mxu0 0
  %172 = vmatpush.bf16.xpose.msra.mxu0 0
  %173 = vmatpush.bf16.xpose.msra.mxu0 0
  %174 = vmatpush.bf16.xpose.msra.mxu0 0
  %175 = vmatpush.bf16.xpose.msra.mxu0 0
  %176 = vmatpush.bf16.xpose.msra.mxu0 0
  %177 = vmatpush.bf16.xpose.msra.mxu0 %v168
  %178 = vmatmul.bf16.gmra.mxu0 %v165
  %v179 = vpop.f32.mrf.mxu0
  %v180 = vadd.f32 0.0, %v179
  %v181 = vpop.f32.mrf.mxu0
  %182 = vdwg.mxu0
  %s183 = scalar_lea.vmem %s2, 48
  %184 = vst.msk [vmem:[%s183] sm:$0xff] %vm14, %v180
  %s185 = scalar_lea.vmem %s0, 28
  %v186 = vld [vmem:[%s185] sm:$0xf]
  %s187 = scalar_lea.vmem %s1, 28
  %v188 = vld [vmem:[%s187] sm:$0xf]
  %v190 = vsel %vm14, %v186, 0
  %v193 = vsel %vm14, %v188, 0
  %195 = vmatpush.bf16.xpose.msra.mxu0 0
  %196 = vmatpush.bf16.xpose.msra.mxu0 0
  %197 = vmatpush.bf16.xpose.msra.mxu0 0
  %198 = vmatpush.bf16.xpose.msra.mxu0 0
  %199 = vmatpush.bf16.xpose.msra.mxu0 0
  %200 = vmatpush.bf16.xpose.msra.mxu0 0
  %201 = vmatpush.bf16.xpose.msra.mxu0 0
  %202 = vmatpush.bf16.xpose.msra.mxu0 %v193
  %203 = vmatmul.bf16.gmra.mxu0 %v190
  %v204 = vpop.f32.mrf.mxu0
  %v205 = vadd.f32 0.0, %v204
  %v206 = vpop.f32.mrf.mxu0
  %207 = vdwg.mxu0
  %s208 = scalar_lea.vmem %s2, 56
  %209 = vst.msk [vmem:[%s208] sm:$0xff] %vm14, %v205
  %s210 = scalar_lea.vmem %s0, 32
  %v211 = vld [vmem:[%s210] sm:$0xf]
  %s212 = scalar_lea.vmem %s1, 32
  %v213 = vld [vmem:[%s212] sm:$0xf]
  %v215 = vsel %vm14, %v211, 0
  %v218 = vsel %vm14, %v213, 0
  %220 = vmatpush.bf16.xpose.msra.mxu0 0
  %221 = vmatpush.bf16.xpose.msra.mxu0 0
  %222 = vmatpush.bf16.xpose.msra.mxu0 0
  %223 = vmatpush.bf16.xpose.msra.mxu0 0
  %224 = vmatpush.bf16.xpose.msra.mxu0 0
  %225 = vmatpush.bf16.xpose.msra.mxu0 0
  %226 = vmatpush.bf16.xpose.msra.mxu0 0
  %227 = vmatpush.bf16.xpose.msra.mxu0 %v218
  %228 = vmatmul.bf16.gmra.mxu0 %v215
  %v229 = vpop.f32.mrf.mxu0
  %v230 = vadd.f32 0.0, %v229
  %v231 = vpop.f32.mrf.mxu0
  %232 = vdwg.mxu0
  %s233 = scalar_lea.vmem %s2, 64
  %234 = vst.msk [vmem:[%s233] sm:$0xff] %vm14, %v230
  %s235 = scalar_lea.vmem %s0, 36
  %v236 = vld [vmem:[%s235] sm:$0xf]
  %s237 = scalar_lea.vmem %s1, 36
  %v238 = vld [vmem:[%s237] sm:$0xf]
  %v240 = vsel %vm14, %v236, 0
  %v243 = vsel %vm14, %v238, 0
  %245 = vmatpush.bf16.xpose.msra.mxu0 0
  %246 = vmatpush.bf16.xpose.msra.mxu0 0
  %247 = vmatpush.bf16.xpose.msra.mxu0 0
  %248 = vmatpush.bf16.xpose.msra.mxu0 0
  %249 = vmatpush.bf16.xpose.msra.mxu0 0
  %250 = vmatpush.bf16.xpose.msra.mxu0 0
  %251 = vmatpush.bf16.xpose.msra.mxu0 0
  %252 = vmatpush.bf16.xpose.msra.mxu0 %v243
  %253 = vmatmul.bf16.gmra.mxu0 %v240
  %v254 = vpop.f32.mrf.mxu0
  %v255 = vadd.f32 0.0, %v254
  %v256 = vpop.f32.mrf.mxu0
  %257 = vdwg.mxu0
  %s258 = scalar_lea.vmem %s2, 72
  %259 = vst.msk [vmem:[%s258] sm:$0xff] %vm14, %v255
  %s260 = scalar_lea.vmem %s0, 40
  %v261 = vld [vmem:[%s260] sm:$0xf]
  %s262 = scalar_lea.vmem %s1, 40
  %v263 = vld [vmem:[%s262] sm:$0xf]
  %v265 = vsel %vm14, %v261, 0
  %v268 = vsel %vm14, %v263, 0
  %270 = vmatpush.bf16.xpose.msra.mxu0 0
  %271 = vmatpush.bf16.xpose.msra.mxu0 0
  %272 = vmatpush.bf16.xpose.msra.mxu0 0
  %273 = vmatpush.bf16.xpose.msra.mxu0 0
  %274 = vmatpush.bf16.xpose.msra.mxu0 0
  %275 = vmatpush.bf16.xpose.msra.mxu0 0
  %276 = vmatpush.bf16.xpose.msra.mxu0 0
  %277 = vmatpush.bf16.xpose.msra.mxu0 %v268
  %278 = vmatmul.bf16.gmra.mxu0 %v265
  %v279 = vpop.f32.mrf.mxu0
  %v280 = vadd.f32 0.0, %v279
  %v281 = vpop.f32.mrf.mxu0
  %282 = vdwg.mxu0
  %s283 = scalar_lea.vmem %s2, 80
  %284 = vst.msk [vmem:[%s283] sm:$0xff] %vm14, %v280
  %s285 = scalar_lea.vmem %s0, 44
  %v286 = vld [vmem:[%s285] sm:$0xf]
  %s287 = scalar_lea.vmem %s1, 44
  %v288 = vld [vmem:[%s287] sm:$0xf]
  %v290 = vsel %vm14, %v286, 0
  %v293 = vsel %vm14, %v288, 0
  %295 = vmatpush.bf16.xpose.msra.mxu0 0
  %296 = vmatpush.bf16.xpose.msra.mxu0 0
  %297 = vmatpush.bf16.xpose.msra.mxu0 0
  %298 = vmatpush.bf16.xpose.msra.mxu0 0
  %299 = vmatpush.bf16.xpose.msra.mxu0 0
  %300 = vmatpush.bf16.xpose.msra.mxu0 0
  %301 = vmatpush.bf16.xpose.msra.mxu0 0
  %302 = vmatpush.bf16.xpose.msra.mxu0 %v293
  %303 = vmatmul.bf16.gmra.mxu0 %v290
  %v304 = vpop.f32.mrf.mxu0
  %v305 = vadd.f32 0.0, %v304
  %v306 = vpop.f32.mrf.mxu0
  %307 = vdwg.mxu0
  %s308 = scalar_lea.vmem %s2, 88
  %309 = vst.msk [vmem:[%s308] sm:$0xff] %vm14, %v305
  %s310 = scalar_lea.vmem %s0, 48
  %v311 = vld [vmem:[%s310] sm:$0xf]
  %s312 = scalar_lea.vmem %s1, 48
  %v313 = vld [vmem:[%s312] sm:$0xf]
  %v315 = vsel %vm14, %v311, 0
  %v318 = vsel %vm14, %v313, 0
  %320 = vmatpush.bf16.xpose.msra.mxu0 0
  %321 = vmatpush.bf16.xpose.msra.mxu0 0
  %322 = vmatpush.bf16.xpose.msra.mxu0 0
  %323 = vmatpush.bf16.xpose.msra.mxu0 0
  %324 = vmatpush.bf16.xpose.msra.mxu0 0
  %325 = vmatpush.bf16.xpose.msra.mxu0 0
  %326 = vmatpush.bf16.xpose.msra.mxu0 0
  %327 = vmatpush.bf16.xpose.msra.mxu0 %v318
  %328 = vmatmul.bf16.gmra.mxu0 %v315
  %v329 = vpop.f32.mrf.mxu0
  %v330 = vadd.f32 0.0, %v329
  %v331 = vpop.f32.mrf.mxu0
  %332 = vdwg.mxu0
  %s333 = scalar_lea.vmem %s2, 96
  %334 = vst.msk [vmem:[%s333] sm:$0xff] %vm14, %v330
  %s335 = scalar_lea.vmem %s0, 52
  %v336 = vld [vmem:[%s335] sm:$0xf]
  %s337 = scalar_lea.vmem %s1, 52
  %v338 = vld [vmem:[%s337] sm:$0xf]
  %v340 = vsel %vm14, %v336, 0
  %v343 = vsel %vm14, %v338, 0
  %345 = vmatpush.bf16.xpose.msra.mxu0 0
  %346 = vmatpush.bf16.xpose.msra.mxu0 0
  %347 = vmatpush.bf16.xpose.msra.mxu0 0
  %348 = vmatpush.bf16.xpose.msra.mxu0 0
  %349 = vmatpush.bf16.xpose.msra.mxu0 0
  %350 = vmatpush.bf16.xpose.msra.mxu0 0
  %351 = vmatpush.bf16.xpose.msra.mxu0 0
  %352 = vmatpush.bf16.xpose.msra.mxu0 %v343
  %353 = vmatmul.bf16.gmra.mxu0 %v340
  %v354 = vpop.f32.mrf.mxu0
  %v355 = vadd.f32 0.0, %v354
  %v356 = vpop.f32.mrf.mxu0
  %357 = vdwg.mxu0
  %s358 = scalar_lea.vmem %s2, 104
  %359 = vst.msk [vmem:[%s358] sm:$0xff] %vm14, %v355
  %s360 = scalar_lea.vmem %s0, 56
  %v361 = vld [vmem:[%s360] sm:$0xf]
  %s362 = scalar_lea.vmem %s1, 56
  %v363 = vld [vmem:[%s362] sm:$0xf]
  %v365 = vsel %vm14, %v361, 0
  %v368 = vsel %vm14, %v363, 0
  %370 = vmatpush.bf16.xpose.msra.mxu0 0
  %371 = vmatpush.bf16.xpose.msra.mxu0 0
  %372 = vmatpush.bf16.xpose.msra.mxu0 0
  %373 = vmatpush.bf16.xpose.msra.mxu0 0
  %374 = vmatpush.bf16.xpose.msra.mxu0 0
  %375 = vmatpush.bf16.xpose.msra.mxu0 0
  %376 = vmatpush.bf16.xpose.msra.mxu0 0
  %377 = vmatpush.bf16.xpose.msra.mxu0 %v368
  %378 = vmatmul.bf16.gmra.mxu0 %v365
  %v379 = vpop.f32.mrf.mxu0
  %v380 = vadd.f32 0.0, %v379
  %v381 = vpop.f32.mrf.mxu0
  %382 = vdwg.mxu0
  %s383 = scalar_lea.vmem %s2, 112
  %384 = vst.msk [vmem:[%s383] sm:$0xff] %vm14, %v380
  %s385 = scalar_lea.vmem %s0, 60
  %v386 = vld [vmem:[%s385] sm:$0xf]
  %s387 = scalar_lea.vmem %s1, 60
  %v388 = vld [vmem:[%s387] sm:$0xf]
  %v390 = vsel %vm14, %v386, 0
  %v393 = vsel %vm14, %v388, 0
  %395 = vmatpush.bf16.xpose.msra.mxu0 0
  %396 = vmatpush.bf16.xpose.msra.mxu0 0
  %397 = vmatpush.bf16.xpose.msra.mxu0 0
  %398 = vmatpush.bf16.xpose.msra.mxu0 0
  %399 = vmatpush.bf16.xpose.msra.mxu0 0
  %400 = vmatpush.bf16.xpose.msra.mxu0 0
  %401 = vmatpush.bf16.xpose.msra.mxu0 0
  %402 = vmatpush.bf16.xpose.msra.mxu0 %v393
  %403 = vmatmul.bf16.gmra.mxu0 %v390
  %v404 = vpop.f32.mrf.mxu0
  %v405 = vadd.f32 0.0, %v404
  %v406 = vpop.f32.mrf.mxu0
  %407 = vdwg.mxu0
  %s408 = scalar_lea.vmem %s2, 120
  %409 = vst.msk [vmem:[%s408] sm:$0xff] %vm14, %v405
  // Predicated region
  $region10: #{forward.36} parent=0 // pred_check
    _
  $region11: #{forward.36} parent=0 // pred_check_branch
    %411 = sbr.rel (0) target = $region13
  $region12: #{forward.36} parent=0 // pred_region
    _
  $region13: #{forward.36} parent=0 // pred_fallthru
    _
  // Predicated region
  $region14: #{forward.36} parent=0 // pred_check
    _
  $region15: #{forward.36} parent=0 // pred_check_branch
    %413 = sbr.rel (0) target = $region17
  $region16: #{forward.36} parent=0 // pred_region
    _
  $region17: #{forward.36} parent=0 // pred_fallthru
    _

// kernel: forward.37
$region0: #{forward.37}
  #allocation0 [shape = 'u32[]', space=smem, size = 0x4, offset = 0x4, fixed_abs, tag = 'smem constant byte address 0x4 - core index']
  #allocation1 [shape = 'u32[72,128]{1,0:T(1,128)}', space=vmem, size = 0x9000, scoped, tag = 'internal scratch']
  %s0 = inlined_call_operand.vmem [shape: f32[128,8], index: 0, kind: input, shape index: {}]
  %s1 = inlined_call_operand.vmem [shape: f32[1,8], index: 1, kind: input, shape index: {}]
  %s2 = inlined_call_operand.vmem [shape: f32[1,8], index: 2, kind: input, shape index: {}]
  %s3 = inlined_call_operand.vmem [shape: bf16[8,16], index: 3, kind: input, shape index: {}]
  %s4 = inlined_call_operand.vmem [shape: f32[1,16], index: 4, kind: input, shape index: {}]
  %s5 = inlined_call_operand.vmem [shape: f32[128,16], index: 5, kind: input, shape index: {}]
  %s6 = inlined_call_operand.vmem [shape: f32[128,16], index: 6, kind: input, shape index: {}]
  %s7 = inlined_call_operand.vmem [shape: f32[128,16], index: 7, kind: output, shape index: {}]
  %s8 = sld [smem:[#allocation0]]
  $region38: #{forward.37} parent=0
    _
  %s10 = ssub.s32 1, %s8
  %s11 = scalar_select 0, %s10, %s8
  // Predicated region
  $region2: #{forward.37} parent=0 // pred_check
    _
  $region3: #{forward.37} parent=0 // pred_check_branch
    %13 = sbr.rel (0) target = $region5
  $region4: #{forward.37} parent=0 // pred_region
    _
  $region5: #{forward.37} parent=0 // pred_fallthru
    _
  // Predicated region
  $region6: #{forward.37} parent=0 // pred_check
    _
  $region7: #{forward.37} parent=0 // pred_check_branch
    %15 = sbr.rel (0) target = $region9
  $region8: #{forward.37} parent=0 // pred_region
    _
  $region9: #{forward.37} parent=0 // pred_fallthru
    _
  // Predicated region
  $region10: #{forward.37} parent=0 // pred_check
    _
  $region11: #{forward.37} parent=0 // pred_check_branch
    %17 = sbr.rel (0) target = $region13
  $region12: #{forward.37} parent=0 // pred_region
    _
  $region13: #{forward.37} parent=0 // pred_fallthru
    _
  // Predicated region
  $region14: #{forward.37} parent=0 // pred_check
    _
  $region15: #{forward.37} parent=0 // pred_check_branch
    %19 = sbr.rel (0) target = $region17
  $region16: #{forward.37} parent=0 // pred_region
    _
  $region17: #{forward.37} parent=0 // pred_fallthru
    _
  // Predicated region
  $region18: #{forward.37} parent=0 // pred_check
    _
  $region19: #{forward.37} parent=0 // pred_check_branch
    %21 = sbr.rel (0) target = $region21
  $region20: #{forward.37} parent=0 // pred_region
    _
  $region21: #{forward.37} parent=0 // pred_fallthru
    _
  // Predicated region
  $region22: #{forward.37} parent=0 // pred_check
    _
  $region23: #{forward.37} parent=0 // pred_check_branch
    %23 = sbr.rel (0) target = $region25
  $region24: #{forward.37} parent=0 // pred_region
    _
  $region25: #{forward.37} parent=0 // pred_fallthru
    _
  // Predicated region
  $region26: #{forward.37} parent=0 // pred_check
    _
  $region27: #{forward.37} parent=0 // pred_check_branch
    %25 = sbr.rel (0) target = $region29
  $region28: #{forward.37} parent=0 // pred_region
    _
  $region29: #{forward.37} parent=0 // pred_fallthru
    _
  %v27 = vld [vmem:[%s0] sm:$0xff]
  %v28 = vld [vmem:[%s0 + $0x8] sm:$0xff]
  %v29 = vld [vmem:[%s0 + $0x10] sm:$0xff]
  %v30 = vld [vmem:[%s0 + $0x18] sm:$0xff]
  %v31 = vld [vmem:[%s0 + $0x20] sm:$0xff]
  %v32 = vld [vmem:[%s0 + $0x28] sm:$0xff]
  %v33 = vld [vmem:[%s0 + $0x30] sm:$0xff]
  %v34 = vld [vmem:[%s0 + $0x38] sm:$0xff]
  %v35 = vld [vmem:[%s0 + $0x40] sm:$0xff]
  %v36 = vld [vmem:[%s0 + $0x48] sm:$0xff]
  %v37 = vld [vmem:[%s0 + $0x50] sm:$0xff]
  %v38 = vld [vmem:[%s0 + $0x58] sm:$0xff]
  %v39 = vld [vmem:[%s0 + $0x60] sm:$0xff]
  %v40 = vld [vmem:[%s0 + $0x68] sm:$0xff]
  %v41 = vld [vmem:[%s0 + $0x70] sm:$0xff]
  %v42 = vld [vmem:[%s0 + $0x78] sm:$0xff]
  %v43 = vld [vmem:[%s1] sm:$0x1]
  %v44 = vld [vmem:[%s2] sm:$0x1]
  %vm45 = vcmask 64512
  %v46 = vsel %vm45, %v27, 0.0
  %47 = vadd.xlane.f32.xlu0 %v46
  %v48 = vpop.xlane.xlu0 %47
  %v49 = vsel %vm45, %v28, 0.0
  %50 = vadd.xlane.f32.xlu0 %v49
  %v51 = vpop.xlane.xlu0 %50
  %v52 = vsel %vm45, %v29, 0.0
  %53 = vadd.xlane.f32.xlu0 %v52
  %v54 = vpop.xlane.xlu0 %53
  %v55 = vsel %vm45, %v30, 0.0
  %56 = vadd.xlane.f32.xlu0 %v55
  %v57 = vpop.xlane.xlu0 %56
  %v58 = vsel %vm45, %v31, 0.0
  %59 = vadd.xlane.f32.xlu0 %v58
  %v60 = vpop.xlane.xlu0 %59
  %v61 = vsel %vm45, %v32, 0.0
  %62 = vadd.xlane.f32.xlu0 %v61
  %v63 = vpop.xlane.xlu0 %62
  %v64 = vsel %vm45, %v33, 0.0
  %65 = vadd.xlane.f32.xlu0 %v64
  %v66 = vpop.xlane.xlu0 %65
  %v67 = vsel %vm45, %v34, 0.0
  %68 = vadd.xlane.f32.xlu0 %v67
  %v69 = vpop.xlane.xlu0 %68
  %v70 = vsel %vm45, %v35, 0.0
  %71 = vadd.xlane.f32.xlu0 %v70
  %v72 = vpop.xlane.xlu0 %71
  %v73 = vsel %vm45, %v36, 0.0
  %74 = vadd.xlane.f32.xlu0 %v73
  %v75 = vpop.xlane.xlu0 %74
  %v76 = vsel %vm45, %v37, 0.0
  %77 = vadd.xlane.f32.xlu0 %v76
  %v78 = vpop.xlane.xlu0 %77
  %v79 = vsel %vm45, %v38, 0.0
  %80 = vadd.xlane.f32.xlu0 %v79
  %v81 = vpop.xlane.xlu0 %80
  %v82 = vsel %vm45, %v39, 0.0
  %83 = vadd.xlane.f32.xlu0 %v82
  %v84 = vpop.xlane.xlu0 %83
  %v85 = vsel %vm45, %v40, 0.0
  %86 = vadd.xlane.f32.xlu0 %v85
  %v87 = vpop.xlane.xlu0 %86
  %v88 = vsel %vm45, %v41, 0.0
  %89 = vadd.xlane.f32.xlu0 %v88
  %v90 = vpop.xlane.xlu0 %89
  %v91 = vsel %vm45, %v42, 0.0
  %92 = vadd.xlane.f32.xlu0 %v91
  %v93 = vpop.xlane.xlu0 %92
  %v94 = vrcp.pop 8.0
  %v95 = vmul.f32 8.0, %v94
  %v96 = vsub.f32 1.0, %v95
  %v97 = vmul.f32 %v94, %v96
  %v98 = vadd.f32 %v94, %v97
  %vm99 = vweird.f32 %v94
  %v100 = vsel %vm99, %v94, %v98
  %v101 = vmul.f32 %v48, %v100
  %v102 = vmul.f32 %v51, %v100
  %v103 = vmul.f32 %v54, %v100
  %v104 = vmul.f32 %v57, %v100
  %v105 = vmul.f32 %v60, %v100
  %v106 = vmul.f32 %v63, %v100
  %v107 = vmul.f32 %v66, %v100
  %v108 = vmul.f32 %v69, %v100
  %v109 = vmul.f32 %v72, %v100
  %v110 = vmul.f32 %v75, %v100
  %v111 = vmul.f32 %v78, %v100
  %v112 = vmul.f32 %v81, %v100
  %v113 = vmul.f32 %v84, %v100
  %v114 = vmul.f32 %v87, %v100
  %v115 = vmul.f32 %v90, %v100
  %v116 = vmul.f32 %v93, %v100
  %v117 = vsub.f32 %v27, %v101
  %v118 = vsub.f32 %v28, %v102
  %v119 = vsub.f32 %v29, %v103
  %v120 = vsub.f32 %v30, %v104
  %v121 = vsub.f32 %v31, %v105
  %v122 = vsub.f32 %v32, %v106
  %v123 = vsub.f32 %v33, %v107
  %v124 = vsub.f32 %v34, %v108
  %v125 = vsub.f32 %v35, %v109
  %v126 = vsub.f32 %v36, %v110
  %v127 = vsub.f32 %v37, %v111
  %v128 = vsub.f32 %v38, %v112
  %v129 = vsub.f32 %v39, %v113
  %v130 = vsub.f32 %v40, %v114
  %v131 = vsub.f32 %v41, %v115
  %v132 = vsub.f32 %v42, %v116
  %v133 = vmul.f32 %v117, %v117
  %v134 = vmul.f32 %v118, %v118
  %v135 = vmul.f32 %v119, %v119
  %v136 = vmul.f32 %v120, %v120
  %v137 = vmul.f32 %v121, %v121
  %v138 = vmul.f32 %v122, %v122
  %v139 = vmul.f32 %v123, %v123
  %v140 = vmul.f32 %v124, %v124
  %v141 = vmul.f32 %v125, %v125
  %v142 = vmul.f32 %v126, %v126
  %v143 = vmul.f32 %v127, %v127
  %v144 = vmul.f32 %v128, %v128
  %v145 = vmul.f32 %v129, %v129
  %v146 = vmul.f32 %v130, %v130
  %v147 = vmul.f32 %v131, %v131
  %v148 = vmul.f32 %v132, %v132
  %v149 = vsel %vm45, %v133, 0.0
  %150 = vadd.xlane.f32.xlu0 %v149
  %v151 = vpop.xlane.xlu0 %150
  %v152 = vsel %vm45, %v134, 0.0
  %153 = vadd.xlane.f32.xlu0 %v152
  %v154 = vpop.xlane.xlu0 %153
  %v155 = vsel %vm45, %v135, 0.0
  %156 = vadd.xlane.f32.xlu0 %v155
  %v157 = vpop.xlane.xlu0 %156
  %v158 = vsel %vm45, %v136, 0.0
  %159 = vadd.xlane.f32.xlu0 %v158
  %v160 = vpop.xlane.xlu0 %159
  %v161 = vsel %vm45, %v137, 0.0
  %162 = vadd.xlane.f32.xlu0 %v161
  %v163 = vpop.xlane.xlu0 %162
  %v164 = vsel %vm45, %v138, 0.0
  %165 = vadd.xlane.f32.xlu0 %v164
  %v166 = vpop.xlane.xlu0 %165
  %v167 = vsel %vm45, %v139, 0.0
  %168 = vadd.xlane.f32.xlu0 %v167
  %v169 = vpop.xlane.xlu0 %168
  %v170 = vsel %vm45, %v140, 0.0
  %171 = vadd.xlane.f32.xlu0 %v170
  %v172 = vpop.xlane.xlu0 %171
  %v173 = vsel %vm45, %v141, 0.0
  %174 = vadd.xlane.f32.xlu0 %v173
  %v175 = vpop.xlane.xlu0 %174
  %v176 = vsel %vm45, %v142, 0.0
  %177 = vadd.xlane.f32.xlu0 %v176
  %v178 = vpop.xlane.xlu0 %177
  %v179 = vsel %vm45, %v143, 0.0
  %180 = vadd.xlane.f32.xlu0 %v179
  %v181 = vpop.xlane.xlu0 %180
  %v182 = vsel %vm45, %v144, 0.0
  %183 = vadd.xlane.f32.xlu0 %v182
  %v184 = vpop.xlane.xlu0 %183
  %v185 = vsel %vm45, %v145, 0.0
  %186 = vadd.xlane.f32.xlu0 %v185
  %v187 = vpop.xlane.xlu0 %186
  %v188 = vsel %vm45, %v146, 0.0
  %189 = vadd.xlane.f32.xlu0 %v188
  %v190 = vpop.xlane.xlu0 %189
  %v191 = vsel %vm45, %v147, 0.0
  %192 = vadd.xlane.f32.xlu0 %v191
  %v193 = vpop.xlane.xlu0 %192
  %v194 = vsel %vm45, %v148, 0.0
  %195 = vadd.xlane.f32.xlu0 %v194
  %v196 = vpop.xlane.xlu0 %195
  %v197 = vmul.f32 %v151, %v100
  %v198 = vmul.f32 %v154, %v100
  %v199 = vmul.f32 %v157, %v100
  %v200 = vmul.f32 %v160, %v100
  %v201 = vmul.f32 %v163, %v100
  %v202 = vmul.f32 %v166, %v100
  %v203 = vmul.f32 %v169, %v100
  %v204 = vmul.f32 %v172, %v100
  %v205 = vmul.f32 %v175, %v100
  %v206 = vmul.f32 %v178, %v100
  %v207 = vmul.f32 %v181, %v100
  %v208 = vmul.f32 %v184, %v100
  %v209 = vmul.f32 %v187, %v100
  %v210 = vmul.f32 %v190, %v100
  %v211 = vmul.f32 %v193, %v100
  %v212 = vmul.f32 %v196, %v100
  %v213 = vadd.f32 %v197, 1e-05
  %v214 = vadd.f32 %v198, 1e-05
  %v215 = vadd.f32 %v199, 1e-05
  %v216 = vadd.f32 %v200, 1e-05
  %v217 = vadd.f32 %v201, 1e-05
  %v218 = vadd.f32 %v202, 1e-05
  %v219 = vadd.f32 %v203, 1e-05
  %v220 = vadd.f32 %v204, 1e-05
  %v221 = vadd.f32 %v205, 1e-05
  %v222 = vadd.f32 %v206, 1e-05
  %v223 = vadd.f32 %v207, 1e-05
  %v224 = vadd.f32 %v208, 1e-05
  %v225 = vadd.f32 %v209, 1e-05
  %v226 = vadd.f32 %v210, 1e-05
  %v227 = vadd.f32 %v211, 1e-05
  %v228 = vadd.f32 %v212, 1e-05
  %v229 = vrsqrt.pop %v213
  %v230 = vmul.f32 %v229, %v213
  %v231 = vmul.f32 %v230, %v229
  %v232 = vmul.f32 0.5, %v231
  %v233 = vsub.f32 1.5, %v232
  %v234 = vmul.f32 %v229, %v233
  %vm235 = vweird.f32 %v213
  %vm236 = vweird.f32 %v229
  %vm237 = vmor %vm235, %vm236
  %v238 = vsel %vm237, %v229, %v234
  %v239 = vrsqrt.pop %v214
  %v240 = vmul.f32 %v239, %v214
  %v241 = vmul.f32 %v240, %v239
  %v242 = vmul.f32 0.5, %v241
  %v243 = vsub.f32 1.5, %v242
  %v244 = vmul.f32 %v239, %v243
  %vm245 = vweird.f32 %v214
  %vm246 = vweird.f32 %v239
  %vm247 = vmor %vm245, %vm246
  %v248 = vsel %vm247, %v239, %v244
  %v249 = vrsqrt.pop %v215
  %v250 = vmul.f32 %v249, %v215
  %v251 = vmul.f32 %v250, %v249
  %v252 = vmul.f32 0.5, %v251
  %v253 = vsub.f32 1.5, %v252
  %v254 = vmul.f32 %v249, %v253
  %vm255 = vweird.f32 %v215
  %vm256 = vweird.f32 %v249
  %vm257 = vmor %vm255, %vm256
  %v258 = vsel %vm257, %v249, %v254
  %v259 = vrsqrt.pop %v216
  %v260 = vmul.f32 %v259, %v216
  %v261 = vmul.f32 %v260, %v259
  %v262 = vmul.f32 0.5, %v261
  %v263 = vsub.f32 1.5, %v262
  %v264 = vmul.f32 %v259, %v263
  %vm265 = vweird.f32 %v216
  %vm266 = vweird.f32 %v259
  %vm267 = vmor %vm265, %vm266
  %v268 = vsel %vm267, %v259, %v264
  %v269 = vrsqrt.pop %v217
  %v270 = vmul.f32 %v269, %v217
  %v271 = vmul.f32 %v270, %v269
  %v272 = vmul.f32 0.5, %v271
  %v273 = vsub.f32 1.5, %v272
  %v274 = vmul.f32 %v269, %v273
  %vm275 = vweird.f32 %v217
  %vm276 = vweird.f32 %v269
  %vm277 = vmor %vm275, %vm276
  %v278 = vsel %vm277, %v269, %v274
  %v279 = vrsqrt.pop %v218
  %v280 = vmul.f32 %v279, %v218
  %v281 = vmul.f32 %v280, %v279
  %v282 = vmul.f32 0.5, %v281
  %v283 = vsub.f32 1.5, %v282
  %v284 = vmul.f32 %v279, %v283
  %vm285 = vweird.f32 %v218
  %vm286 = vweird.f32 %v279
  %vm287 = vmor %vm285, %vm286
  %v288 = vsel %vm287, %v279, %v284
  %v289 = vrsqrt.pop %v219
  %v290 = vmul.f32 %v289, %v219
  %v291 = vmul.f32 %v290, %v289
  %v292 = vmul.f32 0.5, %v291
  %v293 = vsub.f32 1.5, %v292
  %v294 = vmul.f32 %v289, %v293
  %vm295 = vweird.f32 %v219
  %vm296 = vweird.f32 %v289
  %vm297 = vmor %vm295, %vm296
  %v298 = vsel %vm297, %v289, %v294
  %v299 = vrsqrt.pop %v220
  %v300 = vmul.f32 %v299, %v220
  %v301 = vmul.f32 %v300, %v299
  %v302 = vmul.f32 0.5, %v301
  %v303 = vsub.f32 1.5, %v302
  %v304 = vmul.f32 %v299, %v303
  %vm305 = vweird.f32 %v220
  %vm306 = vweird.f32 %v299
  %vm307 = vmor %vm305, %vm306
  %v308 = vsel %vm307, %v299, %v304
  %v309 = vrsqrt.pop %v221
  %v310 = vmul.f32 %v309, %v221
  %v311 = vmul.f32 %v310, %v309
  %v312 = vmul.f32 0.5, %v311
  %v313 = vsub.f32 1.5, %v312
  %v314 = vmul.f32 %v309, %v313
  %vm315 = vweird.f32 %v221
  %vm316 = vweird.f32 %v309
  %vm317 = vmor %vm315, %vm316
  %v318 = vsel %vm317, %v309, %v314
  %v319 = vrsqrt.pop %v222
  %v320 = vmul.f32 %v319, %v222
  %v321 = vmul.f32 %v320, %v319
  %v322 = vmul.f32 0.5, %v321
  %v323 = vsub.f32 1.5, %v322
  %v324 = vmul.f32 %v319, %v323
  %vm325 = vweird.f32 %v222
  %vm326 = vweird.f32 %v319
  %vm327 = vmor %vm325, %vm326
  %v328 = vsel %vm327, %v319, %v324
  %v329 = vrsqrt.pop %v223
  %v330 = vmul.f32 %v329, %v223
  %v331 = vmul.f32 %v330, %v329
  %v332 = vmul.f32 0.5, %v331
  %v333 = vsub.f32 1.5, %v332
  %v334 = vmul.f32 %v329, %v333
  %vm335 = vweird.f32 %v223
  %vm336 = vweird.f32 %v329
  %vm337 = vmor %vm335, %vm336
  %v338 = vsel %vm337, %v329, %v334
  %v339 = vrsqrt.pop %v224
  %v340 = vmul.f32 %v339, %v224
  %v341 = vmul.f32 %v340, %v339
  %v342 = vmul.f32 0.5, %v341
  %v343 = vsub.f32 1.5, %v342
  %v344 = vmul.f32 %v339, %v343
  %vm345 = vweird.f32 %v224
  %vm346 = vweird.f32 %v339
  %vm347 = vmor %vm345, %vm346
  %v348 = vsel %vm347, %v339, %v344
  %v349 = vrsqrt.pop %v225
  %v350 = vmul.f32 %v349, %v225
  %v351 = vmul.f32 %v350, %v349
  %v352 = vmul.f32 0.5, %v351
  %v353 = vsub.f32 1.5, %v352
  %v354 = vmul.f32 %v349, %v353
  %vm355 = vweird.f32 %v225
  %vm356 = vweird.f32 %v349
  %vm357 = vmor %vm355, %vm356
  %v358 = vsel %vm357, %v349, %v354
  %v359 = vrsqrt.pop %v226
  %v360 = vmul.f32 %v359, %v226
  %v361 = vmul.f32 %v360, %v359
  %v362 = vmul.f32 0.5, %v361
  %v363 = vsub.f32 1.5, %v362
  %v364 = vmul.f32 %v359, %v363
  %vm365 = vweird.f32 %v226
  %vm366 = vweird.f32 %v359
  %vm367 = vmor %vm365, %vm366
  %v368 = vsel %vm367, %v359, %v364
  %v369 = vrsqrt.pop %v227
  %v370 = vmul.f32 %v369, %v227
  %v371 = vmul.f32 %v370, %v369
  %v372 = vmul.f32 0.5, %v371
  %v373 = vsub.f32 1.5, %v372
  %v374 = vmul.f32 %v369, %v373
  %vm375 = vweird.f32 %v227
  %vm376 = vweird.f32 %v369
  %vm377 = vmor %vm375, %vm376
  %v378 = vsel %vm377, %v369, %v374
  %v379 = vrsqrt.pop %v228
  %v380 = vmul.f32 %v379, %v228
  %v381 = vmul.f32 %v380, %v379
  %v382 = vmul.f32 0.5, %v381
  %v383 = vsub.f32 1.5, %v382
  %v384 = vmul.f32 %v379, %v383
  %vm385 = vweird.f32 %v228
  %vm386 = vweird.f32 %v379
  %vm387 = vmor %vm385, %vm386
  %v388 = vsel %vm387, %v379, %v384
  %v389 = vmul.f32 %v117, %v238
  %v390 = vmul.f32 %v118, %v248
  %v391 = vmul.f32 %v119, %v258
  %v392 = vmul.f32 %v120, %v268
  %v393 = vmul.f32 %v121, %v278
  %v394 = vmul.f32 %v122, %v288
  %v395 = vmul.f32 %v123, %v298
  %v396 = vmul.f32 %v124, %v308
  %v397 = vmul.f32 %v125, %v318
  %v398 = vmul.f32 %v126, %v328
  %v399 = vmul.f32 %v127, %v338
  %v400 = vmul.f32 %v128, %v348
  %v401 = vmul.f32 %v129, %v358
  %v402 = vmul.f32 %v130, %v368
  %v403 = vmul.f32 %v131, %v378
  %v404 = vmul.f32 %v132, %v388
  %v406 = vperm.slane %v43, 0
  %v408 = vmul.f32 %v389, %v406
  %v409 = vmul.f32 %v390, %v406
  %v410 = vmul.f32 %v391, %v406
  %v411 = vmul.f32 %v392, %v406
  %v412 = vmul.f32 %v393, %v406
  %v413 = vmul.f32 %v394, %v406
  %v414 = vmul.f32 %v395, %v406
  %v415 = vmul.f32 %v396, %v406
  %v416 = vmul.f32 %v397, %v406
  %v417 = vmul.f32 %v398, %v406
  %v418 = vmul.f32 %v399, %v406
  %v419 = vmul.f32 %v400, %v406
  %v420 = vmul.f32 %v401, %v406
  %v421 = vmul.f32 %v402, %v406
  %v422 = vmul.f32 %v403, %v406
  %v423 = vmul.f32 %v404, %v406
  %v425 = vperm.slane %v44, 0
  %v427 = vadd.f32 %v408, %v425
  %v428 = vadd.f32 %v409, %v425
  %v429 = vadd.f32 %v410, %v425
  %v430 = vadd.f32 %v411, %v425
  %v431 = vadd.f32 %v412, %v425
  %v432 = vadd.f32 %v413, %v425
  %v433 = vadd.f32 %v414, %v425
  %v434 = vadd.f32 %v415, %v425
  %v435 = vadd.f32 %v416, %v425
  %v436 = vadd.f32 %v417, %v425
  %v437 = vadd.f32 %v418, %v425
  %v438 = vadd.f32 %v419, %v425
  %v439 = vadd.f32 %v420, %v425
  %v440 = vadd.f32 %v421, %v425
  %v441 = vadd.f32 %v422, %v425
  %v442 = vadd.f32 %v423, %v425
  %v443 = vld [vmem:[%s3] sm:$0xf]
  %v444 = vld [vmem:[%s4] sm:$0x1]
  %v445 = vpack.c.bf16 %v428, %v427
  %v446 = vpack.c.bf16 %v430, %v429
  %v447 = vpack.c.bf16 %v432, %v431
  %v448 = vpack.c.bf16 %v434, %v433
  %v449 = vpack.c.bf16 %v436, %v435
  %v450 = vpack.c.bf16 %v438, %v437
  %v451 = vpack.c.bf16 %v440, %v439
  %v452 = vpack.c.bf16 %v442, %v441
  %v454 = vperm.slane %v444, 0
  %v457 = vsel %vm45, %v445, 0
  %v460 = vsel %vm45, %v446, 0
  %v463 = vsel %vm45, %v447, 0
  %v466 = vsel %vm45, %v448, 0
  %v469 = vsel %vm45, %v449, 0
  %v472 = vsel %vm45, %v450, 0
  %v475 = vsel %vm45, %v451, 0
  %v478 = vsel %vm45, %v452, 0
  %vm480 = vcmask 1043456
  %v482 = vsel %vm480, %v443, 0
  %484 = vmatpush.bf16.msra.mxu0 0
  %485 = vmatpush.bf16.msra.mxu0 0
  %486 = vmatpush.bf16.msra.mxu0 0
  %487 = vmatpush.bf16.msra.mxu0 0
  %488 = vmatpush.bf16.msra.mxu0 0
  %489 = vmatpush.bf16.msra.mxu0 0
  %490 = vmatpush.bf16.msra.mxu0 0
  %491 = vmatpush.bf16.msra.mxu0 %v482
  %492 = vmatmul.bf16.gmra.mxu0 %v457
  %v493 = vpop.f32.mrf.mxu0
  %v494 = vadd.f32 %v454, %v493
  %v495 = vpop.f32.mrf.mxu0
  %v496 = vadd.f32 %v454, %v495
  %497 = vmatmul.bf16.gmra.mxu0 %v460
  %v498 = vpop.f32.mrf.mxu0
  %v499 = vadd.f32 %v454, %v498
  %v500 = vpop.f32.mrf.mxu0
  %v501 = vadd.f32 %v454, %v500
  %502 = vmatmul.bf16.gmra.mxu0 %v463
  %v503 = vpop.f32.mrf.mxu0
  %v504 = vadd.f32 %v454, %v503
  %v505 = vpop.f32.mrf.mxu0
  %v506 = vadd.f32 %v454, %v505
  %507 = vmatmul.bf16.gmra.mxu0 %v466
  %v508 = vpop.f32.mrf.mxu0
  %v509 = vadd.f32 %v454, %v508
  %v510 = vpop.f32.mrf.mxu0
  %v511 = vadd.f32 %v454, %v510
  %512 = vmatmul.bf16.gmra.mxu0 %v469
  %v513 = vpop.f32.mrf.mxu0
  %v514 = vadd.f32 %v454, %v513
  %v515 = vpop.f32.mrf.mxu0
  %v516 = vadd.f32 %v454, %v515
  %517 = vmatmul.bf16.gmra.mxu0 %v472
  %v518 = vpop.f32.mrf.mxu0
  %v519 = vadd.f32 %v454, %v518
  %v520 = vpop.f32.mrf.mxu0
  %v521 = vadd.f32 %v454, %v520
  %522 = vmatmul.bf16.gmra.mxu0 %v475
  %v523 = vpop.f32.mrf.mxu0
  %v524 = vadd.f32 %v454, %v523
  %v525 = vpop.f32.mrf.mxu0
  %v526 = vadd.f32 %v454, %v525
  %527 = vmatmul.bf16.gmra.mxu0 %v478
  %v528 = vpop.f32.mrf.mxu0
  %v529 = vadd.f32 %v454, %v528
  %v530 = vpop.f32.mrf.mxu0
  %v531 = vadd.f32 %v454, %v530
  %532 = vdwg.mxu0
  %v533 = vld [vmem:[%s5] sm:$0xff]
  %v534 = vld [vmem:[%s5 + $0x8] sm:$0xff]
  %v535 = vld [vmem:[%s5 + $0x10] sm:$0xff]
  %v536 = vld [vmem:[%s5 + $0x18] sm:$0xff]
  %v537 = vld [vmem:[%s5 + $0x20] sm:$0xff]
  %v538 = vld [vmem:[%s5 + $0x28] sm:$0xff]
  %v539 = vld [vmem:[%s5 + $0x30] sm:$0xff]
  %v540 = vld [vmem:[%s5 + $0x38] sm:$0xff]
  %v541 = vld [vmem:[%s5 + $0x40] sm:$0xff]
  %v542 = vld [vmem:[%s5 + $0x48] sm:$0xff]
  %v543 = vld [vmem:[%s5 + $0x50] sm:$0xff]
  %v544 = vld [vmem:[%s5 + $0x58] sm:$0xff]
  %v545 = vld [vmem:[%s5 + $0x60] sm:$0xff]
  %v546 = vld [vmem:[%s5 + $0x68] sm:$0xff]
  %v547 = vld [vmem:[%s5 + $0x70] sm:$0xff]
  %v548 = vld [vmem:[%s5 + $0x78] sm:$0xff]
  %v549 = vmul.f32 %v494, %v533
  %v550 = vmul.f32 %v496, %v534
  %v551 = vmul.f32 %v499, %v535
  %v552 = vmul.f32 %v501, %v536
  %v553 = vmul.f32 %v504, %v537
  %v554 = vmul.f32 %v506, %v538
  %v555 = vmul.f32 %v509, %v539
  %v556 = vmul.f32 %v511, %v540
  %v557 = vmul.f32 %v514, %v541
  %v558 = vmul.f32 %v516, %v542
  %v559 = vmul.f32 %v519, %v543
  %v560 = vmul.f32 %v521, %v544
  %v561 = vmul.f32 %v524, %v545
  %v562 = vmul.f32 %v526, %v546
  %v563 = vmul.f32 %v529, %v547
  %v564 = vmul.f32 %v531, %v548
  %v565 = vld [vmem:[%s6] sm:$0xff]
  %v566 = vld [vmem:[%s6 + $0x8] sm:$0xff]
  %v567 = vld [vmem:[%s6 + $0x10] sm:$0xff]
  %v568 = vld [vmem:[%s6 + $0x18] sm:$0xff]
  %v569 = vld [vmem:[%s6 + $0x20] sm:$0xff]
  %v570 = vld [vmem:[%s6 + $0x28] sm:$0xff]
  %v571 = vld [vmem:[%s6 + $0x30] sm:$0xff]
  %v572 = vld [vmem:[%s6 + $0x38] sm:$0xff]
  %v573 = vld [vmem:[%s6 + $0x40] sm:$0xff]
  %v574 = vld [vmem:[%s6 + $0x48] sm:$0xff]
  %v575 = vld [vmem:[%s6 + $0x50] sm:$0xff]
  %v576 = vld [vmem:[%s6 + $0x58] sm:$0xff]
  %v577 = vld [vmem:[%s6 + $0x60] sm:$0xff]
  %v578 = vld [vmem:[%s6 + $0x68] sm:$0xff]
  %v579 = vld [vmem:[%s6 + $0x70] sm:$0xff]
  %v580 = vld [vmem:[%s6 + $0x78] sm:$0xff]
  %v581 = vadd.f32 %v549, %v565
  %v582 = vadd.f32 %v550, %v566
  %v583 = vadd.f32 %v551, %v567
  %v584 = vadd.f32 %v552, %v568
  %v585 = vadd.f32 %v553, %v569
  %v586 = vadd.f32 %v554, %v570
  %v587 = vadd.f32 %v555, %v571
  %v588 = vadd.f32 %v556, %v572
  %v589 = vadd.f32 %v557, %v573
  %v590 = vadd.f32 %v558, %v574
  %v591 = vadd.f32 %v559, %v575
  %v592 = vadd.f32 %v560, %v576
  %v593 = vadd.f32 %v561, %v577
  %v594 = vadd.f32 %v562, %v578
  %v595 = vadd.f32 %v563, %v579
  %v596 = vadd.f32 %v564, %v580
  %vm597 = vcmask 130048
  %598 = vst.msk [vmem:[%s7] sm:$0xff] %vm597, %v581
  %599 = vst.msk [vmem:[%s7 + $0x8] sm:$0xff] %vm597, %v582
  %600 = vst.msk [vmem:[%s7 + $0x10] sm:$0xff] %vm597, %v583
  %601 = vst.msk [vmem:[%s7 + $0x18] sm:$0xff] %vm597, %v584
  %602 = vst.msk [vmem:[%s7 + $0x20] sm:$0xff] %vm597, %v585
  %603 = vst.msk [vmem:[%s7 + $0x28] sm:$0xff] %vm597, %v586
  %604 = vst.msk [vmem:[%s7 + $0x30] sm:$0xff] %vm597, %v587
  %605 = vst.msk [vmem:[%s7 + $0x38] sm:$0xff] %vm597, %v588
  %606 = vst.msk [vmem:[%s7 + $0x40] sm:$0xff] %vm597, %v589
  %607 = vst.msk [vmem:[%s7 + $0x48] sm:$0xff] %vm597, %v590
  %608 = vst.msk [vmem:[%s7 + $0x50] sm:$0xff] %vm597, %v591
  %609 = vst.msk [vmem:[%s7 + $0x58] sm:$0xff] %vm597, %v592
  %610 = vst.msk [vmem:[%s7 + $0x60] sm:$0xff] %vm597, %v593
  %611 = vst.msk [vmem:[%s7 + $0x68] sm:$0xff] %vm597, %v594
  %612 = vst.msk [vmem:[%s7 + $0x70] sm:$0xff] %vm597, %v595
  %613 = vst.msk [vmem:[%s7 + $0x78] sm:$0xff] %vm597, %v596
  // Predicated region
  $region30: #{forward.37} parent=0 // pred_check
    _
  $region31: #{forward.37} parent=0 // pred_check_branch
    %615 = sbr.rel (0) target = $region33
  $region32: #{forward.37} parent=0 // pred_region
    _
  $region33: #{forward.37} parent=0 // pred_fallthru
    _
  // Predicated region
  $region34: #{forward.37} parent=0 // pred_check
    _
  $region35: #{forward.37} parent=0 // pred_check_branch
    %617 = sbr.rel (0) target = $region37
  $region36: #{forward.37} parent=0 // pred_region
    _
  $region37: #{forward.37} parent=0 // pred_fallthru
    _

// kernel: forward.41
$region0: #{forward.41}
  #allocation0 [shape = 'u32[]', space=smem, size = 0x4, offset = 0x4, fixed_abs, tag = 'smem constant byte address 0x4 - core index']
  #allocation1 [shape = 'u32[72,128]{1,0:T(1,128)}', space=vmem, size = 0x9000, scoped, tag = 'internal scratch']
  %s0 = inlined_call_operand.vmem [shape: f32[128,16], index: 0, kind: input, shape index: {}]
  %s1 = inlined_call_operand.vmem [shape: f32[1,16], index: 1, kind: input, shape index: {}]
  %s2 = inlined_call_operand.vmem [shape: f32[1,16], index: 2, kind: input, shape index: {}]
  %s3 = inlined_call_operand.vmem [shape: bf16[16,66], index: 3, kind: input, shape index: {}]
  %s4 = inlined_call_operand.vmem [shape: f32[1,66], index: 4, kind: input, shape index: {}]
  %s5 = inlined_call_operand.vmem [shape: f32[128,48], index: 5, kind: output, shape index: {0}]
  %s6 = inlined_call_operand.vmem [shape: f32[128,2], index: 6, kind: output, shape index: {1}]
  %s7 = inlined_call_operand.vmem [shape: f32[128,16], index: 7, kind: output, shape index: {2}]
  %8 = xla_tuple %s5, %s6, %s7
  %s9 = sld [smem:[#allocation0]]
  $region46: #{forward.41} parent=0
    _
  %s11 = ssub.s32 1, %s9
  %s12 = scalar_select 0, %s11, %s9
  // Predicated region
  $region2: #{forward.41} parent=0 // pred_check
    _
  $region3: #{forward.41} parent=0 // pred_check_branch
    %14 = sbr.rel (0) target = $region5
  $region4: #{forward.41} parent=0 // pred_region
    _
  $region5: #{forward.41} parent=0 // pred_fallthru
    _
  // Predicated region
  $region6: #{forward.41} parent=0 // pred_check
    _
  $region7: #{forward.41} parent=0 // pred_check_branch
    %16 = sbr.rel (0) target = $region9
  $region8: #{forward.41} parent=0 // pred_region
    _
  $region9: #{forward.41} parent=0 // pred_fallthru
    _
  // Predicated region
  $region10: #{forward.41} parent=0 // pred_check
    _
  $region11: #{forward.41} parent=0 // pred_check_branch
    %18 = sbr.rel (0) target = $region13
  $region12: #{forward.41} parent=0 // pred_region
    _
  $region13: #{forward.41} parent=0 // pred_fallthru
    _
  // Predicated region
  $region14: #{forward.41} parent=0 // pred_check
    _
  $region15: #{forward.41} parent=0 // pred_check_branch
    %20 = sbr.rel (0) target = $region17
  $region16: #{forward.41} parent=0 // pred_region
    _
  $region17: #{forward.41} parent=0 // pred_fallthru
    _
  // Predicated region
  $region18: #{forward.41} parent=0 // pred_check
    _
  $region19: #{forward.41} parent=0 // pred_check_branch
    %22 = sbr.rel (0) target = $region21
  $region20: #{forward.41} parent=0 // pred_region
    _
  $region21: #{forward.41} parent=0 // pred_fallthru
    _
  %v24 = vld [vmem:[%s0] sm:$0xff]
  %v25 = vld [vmem:[%s0 + $0x8] sm:$0xff]
  %v26 = vld [vmem:[%s0 + $0x10] sm:$0xff]
  %v27 = vld [vmem:[%s0 + $0x18] sm:$0xff]
  %v28 = vld [vmem:[%s0 + $0x20] sm:$0xff]
  %v29 = vld [vmem:[%s0 + $0x28] sm:$0xff]
  %v30 = vld [vmem:[%s0 + $0x30] sm:$0xff]
  %v31 = vld [vmem:[%s0 + $0x38] sm:$0xff]
  %v32 = vld [vmem:[%s0 + $0x40] sm:$0xff]
  %v33 = vld [vmem:[%s0 + $0x48] sm:$0xff]
  %v34 = vld [vmem:[%s0 + $0x50] sm:$0xff]
  %v35 = vld [vmem:[%s0 + $0x58] sm:$0xff]
  %v36 = vld [vmem:[%s0 + $0x60] sm:$0xff]
  %v37 = vld [vmem:[%s0 + $0x68] sm:$0xff]
  %v38 = vld [vmem:[%s0 + $0x70] sm:$0xff]
  %v39 = vld [vmem:[%s0 + $0x78] sm:$0xff]
  %vm40 = vcmask 130048
  %v41 = vsel %vm40, %v24, 0.0
  %42 = vadd.xlane.f32.xlu0 %v41
  %v43 = vpop.xlane.xlu0 %42
  %v44 = vsel %vm40, %v25, 0.0
  %45 = vadd.xlane.f32.xlu0 %v44
  %v46 = vpop.xlane.xlu0 %45
  %v47 = vsel %vm40, %v26, 0.0
  %48 = vadd.xlane.f32.xlu0 %v47
  %v49 = vpop.xlane.xlu0 %48
  %v50 = vsel %vm40, %v27, 0.0
  %51 = vadd.xlane.f32.xlu0 %v50
  %v52 = vpop.xlane.xlu0 %51
  %v53 = vsel %vm40, %v28, 0.0
  %54 = vadd.xlane.f32.xlu0 %v53
  %v55 = vpop.xlane.xlu0 %54
  %v56 = vsel %vm40, %v29, 0.0
  %57 = vadd.xlane.f32.xlu0 %v56
  %v58 = vpop.xlane.xlu0 %57
  %v59 = vsel %vm40, %v30, 0.0
  %60 = vadd.xlane.f32.xlu0 %v59
  %v61 = vpop.xlane.xlu0 %60
  %v62 = vsel %vm40, %v31, 0.0
  %63 = vadd.xlane.f32.xlu0 %v62
  %v64 = vpop.xlane.xlu0 %63
  %v65 = vsel %vm40, %v32, 0.0
  %66 = vadd.xlane.f32.xlu0 %v65
  %v67 = vpop.xlane.xlu0 %66
  %v68 = vsel %vm40, %v33, 0.0
  %69 = vadd.xlane.f32.xlu0 %v68
  %v70 = vpop.xlane.xlu0 %69
  %v71 = vsel %vm40, %v34, 0.0
  %72 = vadd.xlane.f32.xlu0 %v71
  %v73 = vpop.xlane.xlu0 %72
  %v74 = vsel %vm40, %v35, 0.0
  %75 = vadd.xlane.f32.xlu0 %v74
  %v76 = vpop.xlane.xlu0 %75
  %v77 = vsel %vm40, %v36, 0.0
  %78 = vadd.xlane.f32.xlu0 %v77
  %v79 = vpop.xlane.xlu0 %78
  %v80 = vsel %vm40, %v37, 0.0
  %81 = vadd.xlane.f32.xlu0 %v80
  %v82 = vpop.xlane.xlu0 %81
  %v83 = vsel %vm40, %v38, 0.0
  %84 = vadd.xlane.f32.xlu0 %v83
  %v85 = vpop.xlane.xlu0 %84
  %v86 = vsel %vm40, %v39, 0.0
  %87 = vadd.xlane.f32.xlu0 %v86
  %v88 = vpop.xlane.xlu0 %87
  %v89 = vrcp.pop 16.0
  %v90 = vmul.f32 16.0, %v89
  %v91 = vsub.f32 1.0, %v90
  %v92 = vmul.f32 %v89, %v91
  %v93 = vadd.f32 %v89, %v92
  %vm94 = vweird.f32 %v89
  %v95 = vsel %vm94, %v89, %v93
  %v96 = vmul.f32 %v43, %v95
  %v97 = vmul.f32 %v46, %v95
  %v98 = vmul.f32 %v49, %v95
  %v99 = vmul.f32 %v52, %v95
  %v100 = vmul.f32 %v55, %v95
  %v101 = vmul.f32 %v58, %v95
  %v102 = vmul.f32 %v61, %v95
  %v103 = vmul.f32 %v64, %v95
  %v104 = vmul.f32 %v67, %v95
  %v105 = vmul.f32 %v70, %v95
  %v106 = vmul.f32 %v73, %v95
  %v107 = vmul.f32 %v76, %v95
  %v108 = vmul.f32 %v79, %v95
  %v109 = vmul.f32 %v82, %v95
  %v110 = vmul.f32 %v85, %v95
  %v111 = vmul.f32 %v88, %v95
  %v112 = vsub.f32 %v24, %v96
  %v113 = vsub.f32 %v25, %v97
  %v114 = vsub.f32 %v26, %v98
  %v115 = vsub.f32 %v27, %v99
  %v116 = vsub.f32 %v28, %v100
  %v117 = vsub.f32 %v29, %v101
  %v118 = vsub.f32 %v30, %v102
  %v119 = vsub.f32 %v31, %v103
  %v120 = vsub.f32 %v32, %v104
  %v121 = vsub.f32 %v33, %v105
  %v122 = vsub.f32 %v34, %v106
  %v123 = vsub.f32 %v35, %v107
  %v124 = vsub.f32 %v36, %v108
  %v125 = vsub.f32 %v37, %v109
  %v126 = vsub.f32 %v38, %v110
  %v127 = vsub.f32 %v39, %v111
  %v128 = vmul.f32 %v112, %v112
  %v129 = vmul.f32 %v113, %v113
  %v130 = vmul.f32 %v114, %v114
  %v131 = vmul.f32 %v115, %v115
  %v132 = vmul.f32 %v116, %v116
  %v133 = vmul.f32 %v117, %v117
  %v134 = vmul.f32 %v118, %v118
  %v135 = vmul.f32 %v119, %v119
  %v136 = vmul.f32 %v120, %v120
  %v137 = vmul.f32 %v121, %v121
  %v138 = vmul.f32 %v122, %v122
  %v139 = vmul.f32 %v123, %v123
  %v140 = vmul.f32 %v124, %v124
  %v141 = vmul.f32 %v125, %v125
  %v142 = vmul.f32 %v126, %v126
  %v143 = vmul.f32 %v127, %v127
  %v144 = vsel %vm40, %v128, 0.0
  %145 = vadd.xlane.f32.xlu0 %v144
  %v146 = vpop.xlane.xlu0 %145
  %v147 = vsel %vm40, %v129, 0.0
  %148 = vadd.xlane.f32.xlu0 %v147
  %v149 = vpop.xlane.xlu0 %148
  %v150 = vsel %vm40, %v130, 0.0
  %151 = vadd.xlane.f32.xlu0 %v150
  %v152 = vpop.xlane.xlu0 %151
  %v153 = vsel %vm40, %v131, 0.0
  %154 = vadd.xlane.f32.xlu0 %v153
  %v155 = vpop.xlane.xlu0 %154
  %v156 = vsel %vm40, %v132, 0.0
  %157 = vadd.xlane.f32.xlu0 %v156
  %v158 = vpop.xlane.xlu0 %157
  %v159 = vsel %vm40, %v133, 0.0
  %160 = vadd.xlane.f32.xlu0 %v159
  %v161 = vpop.xlane.xlu0 %160
  %v162 = vsel %vm40, %v134, 0.0
  %163 = vadd.xlane.f32.xlu0 %v162
  %v164 = vpop.xlane.xlu0 %163
  %v165 = vsel %vm40, %v135, 0.0
  %166 = vadd.xlane.f32.xlu0 %v165
  %v167 = vpop.xlane.xlu0 %166
  %v168 = vsel %vm40, %v136, 0.0
  %169 = vadd.xlane.f32.xlu0 %v168
  %v170 = vpop.xlane.xlu0 %169
  %v171 = vsel %vm40, %v137, 0.0
  %172 = vadd.xlane.f32.xlu0 %v171
  %v173 = vpop.xlane.xlu0 %172
  %v174 = vsel %vm40, %v138, 0.0
  %175 = vadd.xlane.f32.xlu0 %v174
  %v176 = vpop.xlane.xlu0 %175
  %v177 = vsel %vm40, %v139, 0.0
  %178 = vadd.xlane.f32.xlu0 %v177
  %v179 = vpop.xlane.xlu0 %178
  %v180 = vsel %vm40, %v140, 0.0
  %181 = vadd.xlane.f32.xlu0 %v180
  %v182 = vpop.xlane.xlu0 %181
  %v183 = vsel %vm40, %v141, 0.0
  %184 = vadd.xlane.f32.xlu0 %v183
  %v185 = vpop.xlane.xlu0 %184
  %v186 = vsel %vm40, %v142, 0.0
  %187 = vadd.xlane.f32.xlu0 %v186
  %v188 = vpop.xlane.xlu0 %187
  %v189 = vsel %vm40, %v143, 0.0
  %190 = vadd.xlane.f32.xlu0 %v189
  %v191 = vpop.xlane.xlu0 %190
  %v192 = vmul.f32 %v146, %v95
  %v193 = vmul.f32 %v149, %v95
  %v194 = vmul.f32 %v152, %v95
  %v195 = vmul.f32 %v155, %v95
  %v196 = vmul.f32 %v158, %v95
  %v197 = vmul.f32 %v161, %v95
  %v198 = vmul.f32 %v164, %v95
  %v199 = vmul.f32 %v167, %v95
  %v200 = vmul.f32 %v170, %v95
  %v201 = vmul.f32 %v173, %v95
  %v202 = vmul.f32 %v176, %v95
  %v203 = vmul.f32 %v179, %v95
  %v204 = vmul.f32 %v182, %v95
  %v205 = vmul.f32 %v185, %v95
  %v206 = vmul.f32 %v188, %v95
  %v207 = vmul.f32 %v191, %v95
  %v208 = vadd.f32 %v192, 1e-05
  %v209 = vadd.f32 %v193, 1e-05
  %v210 = vadd.f32 %v194, 1e-05
  %v211 = vadd.f32 %v195, 1e-05
  %v212 = vadd.f32 %v196, 1e-05
  %v213 = vadd.f32 %v197, 1e-05
  %v214 = vadd.f32 %v198, 1e-05
  %v215 = vadd.f32 %v199, 1e-05
  %v216 = vadd.f32 %v200, 1e-05
  %v217 = vadd.f32 %v201, 1e-05
  %v218 = vadd.f32 %v202, 1e-05
  %v219 = vadd.f32 %v203, 1e-05
  %v220 = vadd.f32 %v204, 1e-05
  %v221 = vadd.f32 %v205, 1e-05
  %v222 = vadd.f32 %v206, 1e-05
  %v223 = vadd.f32 %v207, 1e-05
  %v224 = vrsqrt.pop %v208
  %v225 = vmul.f32 %v224, %v208
  %v226 = vmul.f32 %v225, %v224
  %v227 = vmul.f32 0.5, %v226
  %v228 = vsub.f32 1.5, %v227
  %v229 = vmul.f32 %v224, %v228
  %vm230 = vweird.f32 %v208
  %vm231 = vweird.f32 %v224
  %vm232 = vmor %vm230, %vm231
  %v233 = vsel %vm232, %v224, %v229
  %v234 = vrsqrt.pop %v209
  %v235 = vmul.f32 %v234, %v209
  %v236 = vmul.f32 %v235, %v234
  %v237 = vmul.f32 0.5, %v236
  %v238 = vsub.f32 1.5, %v237
  %v239 = vmul.f32 %v234, %v238
  %vm240 = vweird.f32 %v209
  %vm241 = vweird.f32 %v234
  %vm242 = vmor %vm240, %vm241
  %v243 = vsel %vm242, %v234, %v239
  %v244 = vrsqrt.pop %v210
  %v245 = vmul.f32 %v244, %v210
  %v246 = vmul.f32 %v245, %v244
  %v247 = vmul.f32 0.5, %v246
  %v248 = vsub.f32 1.5, %v247
  %v249 = vmul.f32 %v244, %v248
  %vm250 = vweird.f32 %v210
  %vm251 = vweird.f32 %v244
  %vm252 = vmor %vm250, %vm251
  %v253 = vsel %vm252, %v244, %v249
  %v254 = vrsqrt.pop %v211
  %v255 = vmul.f32 %v254, %v211
  %v256 = vmul.f32 %v255, %v254
  %v257 = vmul.f32 0.5, %v256
  %v258 = vsub.f32 1.5, %v257
  %v259 = vmul.f32 %v254, %v258
  %vm260 = vweird.f32 %v211
  %vm261 = vweird.f32 %v254
  %vm262 = vmor %vm260, %vm261
  %v263 = vsel %vm262, %v254, %v259
  %v264 = vrsqrt.pop %v212
  %v265 = vmul.f32 %v264, %v212
  %v266 = vmul.f32 %v265, %v264
  %v267 = vmul.f32 0.5, %v266
  %v268 = vsub.f32 1.5, %v267
  %v269 = vmul.f32 %v264, %v268
  %vm270 = vweird.f32 %v212
  %vm271 = vweird.f32 %v264
  %vm272 = vmor %vm270, %vm271
  %v273 = vsel %vm272, %v264, %v269
  %v274 = vrsqrt.pop %v213
  %v275 = vmul.f32 %v274, %v213
  %v276 = vmul.f32 %v275, %v274
  %v277 = vmul.f32 0.5, %v276
  %v278 = vsub.f32 1.5, %v277
  %v279 = vmul.f32 %v274, %v278
  %vm280 = vweird.f32 %v213
  %vm281 = vweird.f32 %v274
  %vm282 = vmor %vm280, %vm281
  %v283 = vsel %vm282, %v274, %v279
  %v284 = vrsqrt.pop %v214
  %v285 = vmul.f32 %v284, %v214
  %v286 = vmul.f32 %v285, %v284
  %v287 = vmul.f32 0.5, %v286
  %v288 = vsub.f32 1.5, %v287
  %v289 = vmul.f32 %v284, %v288
  %vm290 = vweird.f32 %v214
  %vm291 = vweird.f32 %v284
  %vm292 = vmor %vm290, %vm291
  %v293 = vsel %vm292, %v284, %v289
  %v294 = vrsqrt.pop %v215
  %v295 = vmul.f32 %v294, %v215
  %v296 = vmul.f32 %v295, %v294
  %v297 = vmul.f32 0.5, %v296
  %v298 = vsub.f32 1.5, %v297
  %v299 = vmul.f32 %v294, %v298
  %vm300 = vweird.f32 %v215
  %vm301 = vweird.f32 %v294
  %vm302 = vmor %vm300, %vm301
  %v303 = vsel %vm302, %v294, %v299
  %v304 = vrsqrt.pop %v216
  %v305 = vmul.f32 %v304, %v216
  %v306 = vmul.f32 %v305, %v304
  %v307 = vmul.f32 0.5, %v306
  %v308 = vsub.f32 1.5, %v307
  %v309 = vmul.f32 %v304, %v308
  %vm310 = vweird.f32 %v216
  %vm311 = vweird.f32 %v304
  %vm312 = vmor %vm310, %vm311
  %v313 = vsel %vm312, %v304, %v309
  %v314 = vrsqrt.pop %v217
  %v315 = vmul.f32 %v314, %v217
  %v316 = vmul.f32 %v315, %v314
  %v317 = vmul.f32 0.5, %v316
  %v318 = vsub.f32 1.5, %v317
  %v319 = vmul.f32 %v314, %v318
  %vm320 = vweird.f32 %v217
  %vm321 = vweird.f32 %v314
  %vm322 = vmor %vm320, %vm321
  %v323 = vsel %vm322, %v314, %v319
  %v324 = vrsqrt.pop %v218
  %v325 = vmul.f32 %v324, %v218
  %v326 = vmul.f32 %v325, %v324
  %v327 = vmul.f32 0.5, %v326
  %v328 = vsub.f32 1.5, %v327
  %v329 = vmul.f32 %v324, %v328
  %vm330 = vweird.f32 %v218
  %vm331 = vweird.f32 %v324
  %vm332 = vmor %vm330, %vm331
  %v333 = vsel %vm332, %v324, %v329
  %v334 = vrsqrt.pop %v219
  %v335 = vmul.f32 %v334, %v219
  %v336 = vmul.f32 %v335, %v334
  %v337 = vmul.f32 0.5, %v336
  %v338 = vsub.f32 1.5, %v337
  %v339 = vmul.f32 %v334, %v338
  %vm340 = vweird.f32 %v219
  %vm341 = vweird.f32 %v334
  %vm342 = vmor %vm340, %vm341
  %v343 = vsel %vm342, %v334, %v339
  %v344 = vrsqrt.pop %v220
  %v345 = vmul.f32 %v344, %v220
  %v346 = vmul.f32 %v345, %v344
  %v347 = vmul.f32 0.5, %v346
  %v348 = vsub.f32 1.5, %v347
  %v349 = vmul.f32 %v344, %v348
  %vm350 = vweird.f32 %v220
  %vm351 = vweird.f32 %v344
  %vm352 = vmor %vm350, %vm351
  %v353 = vsel %vm352, %v344, %v349
  %v354 = vrsqrt.pop %v221
  %v355 = vmul.f32 %v354, %v221
  %v356 = vmul.f32 %v355, %v354
  %v357 = vmul.f32 0.5, %v356
  %v358 = vsub.f32 1.5, %v357
  %v359 = vmul.f32 %v354, %v358
  %vm360 = vweird.f32 %v221
  %vm361 = vweird.f32 %v354
  %vm362 = vmor %vm360, %vm361
  %v363 = vsel %vm362, %v354, %v359
  %v364 = vrsqrt.pop %v222
  %v365 = vmul.f32 %v364, %v222
  %v366 = vmul.f32 %v365, %v364
  %v367 = vmul.f32 0.5, %v366
  %v368 = vsub.f32 1.5, %v367
  %v369 = vmul.f32 %v364, %v368
  %vm370 = vweird.f32 %v222
  %vm371 = vweird.f32 %v364
  %vm372 = vmor %vm370, %vm371
  %v373 = vsel %vm372, %v364, %v369
  %v374 = vrsqrt.pop %v223
  %v375 = vmul.f32 %v374, %v223
  %v376 = vmul.f32 %v375, %v374
  %v377 = vmul.f32 0.5, %v376
  %v378 = vsub.f32 1.5, %v377
  %v379 = vmul.f32 %v374, %v378
  %vm380 = vweird.f32 %v223
  %vm381 = vweird.f32 %v374
  %vm382 = vmor %vm380, %vm381
  %v383 = vsel %vm382, %v374, %v379
  %v384 = vmul.f32 %v112, %v233
  %v385 = vmul.f32 %v113, %v243
  %v386 = vmul.f32 %v114, %v253
  %v387 = vmul.f32 %v115, %v263
  %v388 = vmul.f32 %v116, %v273
  %v389 = vmul.f32 %v117, %v283
  %v390 = vmul.f32 %v118, %v293
  %v391 = vmul.f32 %v119, %v303
  %v392 = vmul.f32 %v120, %v313
  %v393 = vmul.f32 %v121, %v323
  %v394 = vmul.f32 %v122, %v333
  %v395 = vmul.f32 %v123, %v343
  %v396 = vmul.f32 %v124, %v353
  %v397 = vmul.f32 %v125, %v363
  %v398 = vmul.f32 %v126, %v373
  %v399 = vmul.f32 %v127, %v383
  %v400 = vld [vmem:[%s1] sm:$0x1]
  %v402 = vperm.slane %v400, 0
  %v404 = vmul.f32 %v384, %v402
  %v405 = vmul.f32 %v385, %v402
  %v406 = vmul.f32 %v386, %v402
  %v407 = vmul.f32 %v387, %v402
  %v408 = vmul.f32 %v388, %v402
  %v409 = vmul.f32 %v389, %v402
  %v410 = vmul.f32 %v390, %v402
  %v411 = vmul.f32 %v391, %v402
  %v412 = vmul.f32 %v392, %v402
  %v413 = vmul.f32 %v393, %v402
  %v414 = vmul.f32 %v394, %v402
  %v415 = vmul.f32 %v395, %v402
  %v416 = vmul.f32 %v396, %v402
  %v417 = vmul.f32 %v397, %v402
  %v418 = vmul.f32 %v398, %v402
  %v419 = vmul.f32 %v399, %v402
  %v420 = vld [vmem:[%s2] sm:$0x1]
  %v422 = vperm.slane %v420, 0
  %v424 = vadd.f32 %v404, %v422
  %v425 = vadd.f32 %v405, %v422
  %v426 = vadd.f32 %v406, %v422
  %v427 = vadd.f32 %v407, %v422
  %v428 = vadd.f32 %v408, %v422
  %v429 = vadd.f32 %v409, %v422
  %v430 = vadd.f32 %v410, %v422
  %v431 = vadd.f32 %v411, %v422
  %v432 = vadd.f32 %v412, %v422
  %v433 = vadd.f32 %v413, %v422
  %v434 = vadd.f32 %v414, %v422
  %v435 = vadd.f32 %v415, %v422
  %v436 = vadd.f32 %v416, %v422
  %v437 = vadd.f32 %v417, %v422
  %v438 = vadd.f32 %v418, %v422
  %v439 = vadd.f32 %v419, %v422
  %v440 = vpack.c.bf16 %v425, %v424
  %v441 = vpack.c.bf16 %v427, %v426
  %v442 = vpack.c.bf16 %v429, %v428
  %v443 = vpack.c.bf16 %v431, %v430
  %v444 = vpack.c.bf16 %v433, %v432
  %v445 = vpack.c.bf16 %v435, %v434
  %v446 = vpack.c.bf16 %v437, %v436
  %v447 = vpack.c.bf16 %v439, %v438
  %v448 = vld [vmem:[%s3] sm:$0xf]
  %v449 = vld [vmem:[%s3 + $0x4] sm:$0xf]
  %v450 = vld [vmem:[%s4] sm:$0x1]
  %v452 = vperm.slane %v450, 0
  %v456 = vunpack.c.l.b16 %v448
  %v457 = vunpack.c.l.b16 %v449
  %v458 = vpack.c.b16 %v457, %v456
  %v461 = vsel %vm40, %v440, 0
  %v464 = vsel %vm40, %v441, 0
  %v467 = vsel %vm40, %v442, 0
  %v470 = vsel %vm40, %v443, 0
  %v473 = vsel %vm40, %v444, 0
  %v476 = vsel %vm40, %v445, 0
  %v479 = vsel %vm40, %v446, 0
  %v482 = vsel %vm40, %v447, 0
  %484 = vmatpush.bf16.msra.mxu0 0
  %485 = vmatpush.bf16.msra.mxu0 0
  %486 = vmatpush.bf16.msra.mxu0 0
  %487 = vmatpush.bf16.msra.mxu0 0
  %488 = vmatpush.bf16.msra.mxu0 0
  %489 = vmatpush.bf16.msra.mxu0 0
  %490 = vmatpush.bf16.msra.mxu0 0
  %491 = vmatpush.bf16.msra.mxu0 %v458
  %492 = vmatmul.bf16.gmra.mxu0 %v461
  %v493 = vpop.f32.mrf.mxu0
  %v494 = vadd.f32 %v452, %v493
  %v495 = vpop.f32.mrf.mxu0
  %v496 = vadd.f32 %v452, %v495
  %497 = vmatmul.bf16.gmra.mxu0 %v464
  %v498 = vpop.f32.mrf.mxu0
  %v499 = vadd.f32 %v452, %v498
  %v500 = vpop.f32.mrf.mxu0
  %v501 = vadd.f32 %v452, %v500
  %502 = vmatmul.bf16.gmra.mxu0 %v467
  %v503 = vpop.f32.mrf.mxu0
  %v504 = vadd.f32 %v452, %v503
  %v505 = vpop.f32.mrf.mxu0
  %v506 = vadd.f32 %v452, %v505
  %507 = vmatmul.bf16.gmra.mxu0 %v470
  %v508 = vpop.f32.mrf.mxu0
  %v509 = vadd.f32 %v452, %v508
  %v510 = vpop.f32.mrf.mxu0
  %v511 = vadd.f32 %v452, %v510
  %512 = vmatmul.bf16.gmra.mxu0 %v473
  %v513 = vpop.f32.mrf.mxu0
  %v514 = vadd.f32 %v452, %v513
  %v515 = vpop.f32.mrf.mxu0
  %v516 = vadd.f32 %v452, %v515
  %517 = vmatmul.bf16.gmra.mxu0 %v476
  %v518 = vpop.f32.mrf.mxu0
  %v519 = vadd.f32 %v452, %v518
  %v520 = vpop.f32.mrf.mxu0
  %v521 = vadd.f32 %v452, %v520
  %522 = vmatmul.bf16.gmra.mxu0 %v479
  %v523 = vpop.f32.mrf.mxu0
  %v524 = vadd.f32 %v452, %v523
  %v525 = vpop.f32.mrf.mxu0
  %v526 = vadd.f32 %v452, %v525
  %527 = vmatmul.bf16.gmra.mxu0 %v482
  %v528 = vpop.f32.mrf.mxu0
  %v529 = vadd.f32 %v452, %v528
  %v530 = vpop.f32.mrf.mxu0
  %v531 = vadd.f32 %v452, %v530
  %532 = vdwg.mxu0
  %vm533 = vcmask 392192
  %534 = vst.msk [vmem:[%s5] sm:$0xff] %vm533, %v494
  %535 = vst.msk [vmem:[%s5 + $0x8] sm:$0xff] %vm533, %v496
  %536 = vst.msk [vmem:[%s5 + $0x10] sm:$0xff] %vm533, %v499
  %537 = vst.msk [vmem:[%s5 + $0x18] sm:$0xff] %vm533, %v501
  %538 = vst.msk [vmem:[%s5 + $0x20] sm:$0xff] %vm533, %v504
  %539 = vst.msk [vmem:[%s5 + $0x28] sm:$0xff] %vm533, %v506
  %540 = vst.msk [vmem:[%s5 + $0x30] sm:$0xff] %vm533, %v509
  %541 = vst.msk [vmem:[%s5 + $0x38] sm:$0xff] %vm533, %v511
  %542 = vst.msk [vmem:[%s5 + $0x40] sm:$0xff] %vm533, %v514
  %543 = vst.msk [vmem:[%s5 + $0x48] sm:$0xff] %vm533, %v516
  %544 = vst.msk [vmem:[%s5 + $0x50] sm:$0xff] %vm533, %v519
  %545 = vst.msk [vmem:[%s5 + $0x58] sm:$0xff] %vm533, %v521
  %546 = vst.msk [vmem:[%s5 + $0x60] sm:$0xff] %vm533, %v524
  %547 = vst.msk [vmem:[%s5 + $0x68] sm:$0xff] %vm533, %v526
  %548 = vst.msk [vmem:[%s5 + $0x70] sm:$0xff] %vm533, %v529
  %549 = vst.msk [vmem:[%s5 + $0x78] sm:$0xff] %vm533, %v531
  %566 = vrot.lane.b32.xlu0 %v494, 80
  %v567 = vpop.permute.xlu0 %566
  %568 = vrot.lane.b32.xlu0 %v496, 80
  %v569 = vpop.permute.xlu0 %568
  %570 = vrot.lane.b32.xlu0 %v499, 80
  %v571 = vpop.permute.xlu0 %570
  %572 = vrot.lane.b32.xlu0 %v501, 80
  %v573 = vpop.permute.xlu0 %572
  %574 = vrot.lane.b32.xlu0 %v504, 80
  %v575 = vpop.permute.xlu0 %574
  %576 = vrot.lane.b32.xlu0 %v506, 80
  %v577 = vpop.permute.xlu0 %576
  %578 = vrot.lane.b32.xlu0 %v509, 80
  %v579 = vpop.permute.xlu0 %578
  %580 = vrot.lane.b32.xlu0 %v511, 80
  %v581 = vpop.permute.xlu0 %580
  %582 = vrot.lane.b32.xlu0 %v514, 80
  %v583 = vpop.permute.xlu0 %582
  %584 = vrot.lane.b32.xlu0 %v516, 80
  %v585 = vpop.permute.xlu0 %584
  %586 = vrot.lane.b32.xlu0 %v519, 80
  %v587 = vpop.permute.xlu0 %586
  %588 = vrot.lane.b32.xlu0 %v521, 80
  %v589 = vpop.permute.xlu0 %588
  %590 = vrot.lane.b32.xlu0 %v524, 80
  %v591 = vpop.permute.xlu0 %590
  %592 = vrot.lane.b32.xlu0 %v526, 80
  %v593 = vpop.permute.xlu0 %592
  %594 = vrot.lane.b32.xlu0 %v529, 80
  %v595 = vpop.permute.xlu0 %594
  %596 = vrot.lane.b32.xlu0 %v531, 80
  %v597 = vpop.permute.xlu0 %596
  %vm614 = vcmask 15360
  %615 = vst.msk [vmem:[%s6] sm:$0xff] %vm614, %v567
  %616 = vst.msk [vmem:[%s6 + $0x8] sm:$0xff] %vm614, %v569
  %617 = vst.msk [vmem:[%s6 + $0x10] sm:$0xff] %vm614, %v571
  %618 = vst.msk [vmem:[%s6 + $0x18] sm:$0xff] %vm614, %v573
  %619 = vst.msk [vmem:[%s6 + $0x20] sm:$0xff] %vm614, %v575
  %620 = vst.msk [vmem:[%s6 + $0x28] sm:$0xff] %vm614, %v577
  %621 = vst.msk [vmem:[%s6 + $0x30] sm:$0xff] %vm614, %v579
  %622 = vst.msk [vmem:[%s6 + $0x38] sm:$0xff] %vm614, %v581
  %623 = vst.msk [vmem:[%s6 + $0x40] sm:$0xff] %vm614, %v583
  %624 = vst.msk [vmem:[%s6 + $0x48] sm:$0xff] %vm614, %v585
  %625 = vst.msk [vmem:[%s6 + $0x50] sm:$0xff] %vm614, %v587
  %626 = vst.msk [vmem:[%s6 + $0x58] sm:$0xff] %vm614, %v589
  %627 = vst.msk [vmem:[%s6 + $0x60] sm:$0xff] %vm614, %v591
  %628 = vst.msk [vmem:[%s6 + $0x68] sm:$0xff] %vm614, %v593
  %629 = vst.msk [vmem:[%s6 + $0x70] sm:$0xff] %vm614, %v595
  %630 = vst.msk [vmem:[%s6 + $0x78] sm:$0xff] %vm614, %v597
  %v631 = vxor.u32 %v494, 2147483648
  %v632 = vxor.u32 %v496, 2147483648
  %v633 = vxor.u32 %v499, 2147483648
  %v634 = vxor.u32 %v501, 2147483648
  %v635 = vxor.u32 %v504, 2147483648
  %v636 = vxor.u32 %v506, 2147483648
  %v637 = vxor.u32 %v509, 2147483648
  %v638 = vxor.u32 %v511, 2147483648
  %v639 = vxor.u32 %v514, 2147483648
  %v640 = vxor.u32 %v516, 2147483648
  %v641 = vxor.u32 %v519, 2147483648
  %v642 = vxor.u32 %v521, 2147483648
  %v643 = vxor.u32 %v524, 2147483648
  %v644 = vxor.u32 %v526, 2147483648
  %v645 = vxor.u32 %v529, 2147483648
  %v646 = vxor.u32 %v531, 2147483648
  %v647 = vmul.f32 %v631, 1.442695
  %v648 = vpow.pop %v647
  %v649 = vmul.f32 %v632, 1.442695
  %v650 = vpow.pop %v649
  %v651 = vmul.f32 %v633, 1.442695
  %v652 = vpow.pop %v651
  %v653 = vmul.f32 %v634, 1.442695
  %v654 = vpow.pop %v653
  %v655 = vmul.f32 %v635, 1.442695
  %v656 = vpow.pop %v655
  %v657 = vmul.f32 %v636, 1.442695
  %v658 = vpow.pop %v657
  %v659 = vmul.f32 %v637, 1.442695
  %v660 = vpow.pop %v659
  %v661 = vmul.f32 %v638, 1.442695
  %v662 = vpow.pop %v661
  %v663 = vmul.f32 %v639, 1.442695
  %v664 = vpow.pop %v663
  %v665 = vmul.f32 %v640, 1.442695
  %v666 = vpow.pop %v665
  %v667 = vmul.f32 %v641, 1.442695
  %v668 = vpow.pop %v667
  %v669 = vmul.f32 %v642, 1.442695
  %v670 = vpow.pop %v669
  %v671 = vmul.f32 %v643, 1.442695
  %v672 = vpow.pop %v671
  %v673 = vmul.f32 %v644, 1.442695
  %v674 = vpow.pop %v673
  %v675 = vmul.f32 %v645, 1.442695
  %v676 = vpow.pop %v675
  %v677 = vmul.f32 %v646, 1.442695
  %v678 = vpow.pop %v677
  %v679 = vadd.f32 %v648, 1.0
  %v680 = vadd.f32 %v650, 1.0
  %v681 = vadd.f32 %v652, 1.0
  %v682 = vadd.f32 %v654, 1.0
  %v683 = vadd.f32 %v656, 1.0
  %v684 = vadd.f32 %v658, 1.0
  %v685 = vadd.f32 %v660, 1.0
  %v686 = vadd.f32 %v662, 1.0
  %v687 = vadd.f32 %v664, 1.0
  %v688 = vadd.f32 %v666, 1.0
  %v689 = vadd.f32 %v668, 1.0
  %v690 = vadd.f32 %v670, 1.0
  %v691 = vadd.f32 %v672, 1.0
  %v692 = vadd.f32 %v674, 1.0
  %v693 = vadd.f32 %v676, 1.0
  %v694 = vadd.f32 %v678, 1.0
  %v695 = vrcp.pop %v679
  %v696 = vmul.f32 %v679, %v695
  %v697 = vsub.f32 1.0, %v696
  %v698 = vmul.f32 %v695, %v697
  %v699 = vadd.f32 %v695, %v698
  %vm700 = vweird.f32 %v679
  %vm701 = vweird.f32 %v695
  %vm702 = vmor %vm700, %vm701
  %v703 = vsel %vm702, %v695, %v699
  %v704 = vand.u32 2147483647, %v679
  %vm705 = vcmp.eq.f32.partialorder %v704, 8.507059e+37
  %v706 = vand.u32 %v679, 2147483648
  %v707 = vor.u32 1.1754944e-38, %v706
  %v708 = vsel %vm705, %v707, %v703
  %v709 = vmul.f32 1.0, %v708
  %v710 = vrcp.pop %v680
  %v711 = vmul.f32 %v680, %v710
  %v712 = vsub.f32 1.0, %v711
  %v713 = vmul.f32 %v710, %v712
  %v714 = vadd.f32 %v710, %v713
  %vm715 = vweird.f32 %v680
  %vm716 = vweird.f32 %v710
  %vm717 = vmor %vm715, %vm716
  %v718 = vsel %vm717, %v710, %v714
  %v719 = vand.u32 2147483647, %v680
  %vm720 = vcmp.eq.f32.partialorder %v719, 8.507059e+37
  %v721 = vand.u32 %v680, 2147483648
  %v722 = vor.u32 1.1754944e-38, %v721
  %v723 = vsel %vm720, %v722, %v718
  %v724 = vmul.f32 1.0, %v723
  %v725 = vrcp.pop %v681
  %v726 = vmul.f32 %v681, %v725
  %v727 = vsub.f32 1.0, %v726
  %v728 = vmul.f32 %v725, %v727
  %v729 = vadd.f32 %v725, %v728
  %vm730 = vweird.f32 %v681
  %vm731 = vweird.f32 %v725
  %vm732 = vmor %vm730, %vm731
  %v733 = vsel %vm732, %v725, %v729
  %v734 = vand.u32 2147483647, %v681
  %vm735 = vcmp.eq.f32.partialorder %v734, 8.507059e+37
  %v736 = vand.u32 %v681, 2147483648
  %v737 = vor.u32 1.1754944e-38, %v736
  %v738 = vsel %vm735, %v737, %v733
  %v739 = vmul.f32 1.0, %v738
  %v740 = vrcp.pop %v682
  %v741 = vmul.f32 %v682, %v740
  %v742 = vsub.f32 1.0, %v741
  %v743 = vmul.f32 %v740, %v742
  %v744 = vadd.f32 %v740, %v743
  %vm745 = vweird.f32 %v682
  %vm746 = vweird.f32 %v740
  %vm747 = vmor %vm745, %vm746
  %v748 = vsel %vm747, %v740, %v744
  %v749 = vand.u32 2147483647, %v682
  %vm750 = vcmp.eq.f32.partialorder %v749, 8.507059e+37
  %v751 = vand.u32 %v682, 2147483648
  %v752 = vor.u32 1.1754944e-38, %v751
  %v753 = vsel %vm750, %v752, %v748
  %v754 = vmul.f32 1.0, %v753
  %v755 = vrcp.pop %v683
  %v756 = vmul.f32 %v683, %v755
  %v757 = vsub.f32 1.0, %v756
  %v758 = vmul.f32 %v755, %v757
  %v759 = vadd.f32 %v755, %v758
  %vm760 = vweird.f32 %v683
  %vm761 = vweird.f32 %v755
  %vm762 = vmor %vm760, %vm761
  %v763 = vsel %vm762, %v755, %v759
  %v764 = vand.u32 2147483647, %v683
  %vm765 = vcmp.eq.f32.partialorder %v764, 8.507059e+37
  %v766 = vand.u32 %v683, 2147483648
  %v767 = vor.u32 1.1754944e-38, %v766
  %v768 = vsel %vm765, %v767, %v763
  %v769 = vmul.f32 1.0, %v768
  %v770 = vrcp.pop %v684
  %v771 = vmul.f32 %v684, %v770
  %v772 = vsub.f32 1.0, %v771
  %v773 = vmul.f32 %v770, %v772
  %v774 = vadd.f32 %v770, %v773
  %vm775 = vweird.f32 %v684
  %vm776 = vweird.f32 %v770
  %vm777 = vmor %vm775, %vm776
  %v778 = vsel %vm777, %v770, %v774
  %v779 = vand.u32 2147483647, %v684
  %vm780 = vcmp.eq.f32.partialorder %v779, 8.507059e+37
  %v781 = vand.u32 %v684, 2147483648
  %v782 = vor.u32 1.1754944e-38, %v781
  %v783 = vsel %vm780, %v782, %v778
  %v784 = vmul.f32 1.0, %v783
  %v785 = vrcp.pop %v685
  %v786 = vmul.f32 %v685, %v785
  %v787 = vsub.f32 1.0, %v786
  %v788 = vmul.f32 %v785, %v787
  %v789 = vadd.f32 %v785, %v788
  %vm790 = vweird.f32 %v685
  %vm791 = vweird.f32 %v785
  %vm792 = vmor %vm790, %vm791
  %v793 = vsel %vm792, %v785, %v789
  %v794 = vand.u32 2147483647, %v685
  %vm795 = vcmp.eq.f32.partialorder %v794, 8.507059e+37
  %v796 = vand.u32 %v685, 2147483648
  %v797 = vor.u32 1.1754944e-38, %v796
  %v798 = vsel %vm795, %v797, %v793
  %v799 = vmul.f32 1.0, %v798
  %v800 = vrcp.pop %v686
  %v801 = vmul.f32 %v686, %v800
  %v802 = vsub.f32 1.0, %v801
  %v803 = vmul.f32 %v800, %v802
  %v804 = vadd.f32 %v800, %v803
  %vm805 = vweird.f32 %v686
  %vm806 = vweird.f32 %v800
  %vm807 = vmor %vm805, %vm806
  %v808 = vsel %vm807, %v800, %v804
  %v809 = vand.u32 2147483647, %v686
  %vm810 = vcmp.eq.f32.partialorder %v809, 8.507059e+37
  %v811 = vand.u32 %v686, 2147483648
  %v812 = vor.u32 1.1754944e-38, %v811
  %v813 = vsel %vm810, %v812, %v808
  %v814 = vmul.f32 1.0, %v813
  %v815 = vrcp.pop %v687
  %v816 = vmul.f32 %v687, %v815
  %v817 = vsub.f32 1.0, %v816
  %v818 = vmul.f32 %v815, %v817
  %v819 = vadd.f32 %v815, %v818
  %vm820 = vweird.f32 %v687
  %vm821 = vweird.f32 %v815
  %vm822 = vmor %vm820, %vm821
  %v823 = vsel %vm822, %v815, %v819
  %v824 = vand.u32 2147483647, %v687
  %vm825 = vcmp.eq.f32.partialorder %v824, 8.507059e+37
  %v826 = vand.u32 %v687, 2147483648
  %v827 = vor.u32 1.1754944e-38, %v826
  %v828 = vsel %vm825, %v827, %v823
  %v829 = vmul.f32 1.0, %v828
  %v830 = vrcp.pop %v688
  %v831 = vmul.f32 %v688, %v830
  %v832 = vsub.f32 1.0, %v831
  %v833 = vmul.f32 %v830, %v832
  %v834 = vadd.f32 %v830, %v833
  %vm835 = vweird.f32 %v688
  %vm836 = vweird.f32 %v830
  %vm837 = vmor %vm835, %vm836
  %v838 = vsel %vm837, %v830, %v834
  %v839 = vand.u32 2147483647, %v688
  %vm840 = vcmp.eq.f32.partialorder %v839, 8.507059e+37
  %v841 = vand.u32 %v688, 2147483648
  %v842 = vor.u32 1.1754944e-38, %v841
  %v843 = vsel %vm840, %v842, %v838
  %v844 = vmul.f32 1.0, %v843
  %v845 = vrcp.pop %v689
  %v846 = vmul.f32 %v689, %v845
  %v847 = vsub.f32 1.0, %v846
  %v848 = vmul.f32 %v845, %v847
  %v849 = vadd.f32 %v845, %v848
  %vm850 = vweird.f32 %v689
  %vm851 = vweird.f32 %v845
  %vm852 = vmor %vm850, %vm851
  %v853 = vsel %vm852, %v845, %v849
  %v854 = vand.u32 2147483647, %v689
  %vm855 = vcmp.eq.f32.partialorder %v854, 8.507059e+37
  %v856 = vand.u32 %v689, 2147483648
  %v857 = vor.u32 1.1754944e-38, %v856
  %v858 = vsel %vm855, %v857, %v853
  %v859 = vmul.f32 1.0, %v858
  %v860 = vrcp.pop %v690
  %v861 = vmul.f32 %v690, %v860
  %v862 = vsub.f32 1.0, %v861
  %v863 = vmul.f32 %v860, %v862
  %v864 = vadd.f32 %v860, %v863
  %vm865 = vweird.f32 %v690
  %vm866 = vweird.f32 %v860
  %vm867 = vmor %vm865, %vm866
  %v868 = vsel %vm867, %v860, %v864
  %v869 = vand.u32 2147483647, %v690
  %vm870 = vcmp.eq.f32.partialorder %v869, 8.507059e+37
  %v871 = vand.u32 %v690, 2147483648
  %v872 = vor.u32 1.1754944e-38, %v871
  %v873 = vsel %vm870, %v872, %v868
  %v874 = vmul.f32 1.0, %v873
  %v875 = vrcp.pop %v691
  %v876 = vmul.f32 %v691, %v875
  %v877 = vsub.f32 1.0, %v876
  %v878 = vmul.f32 %v875, %v877
  %v879 = vadd.f32 %v875, %v878
  %vm880 = vweird.f32 %v691
  %vm881 = vweird.f32 %v875
  %vm882 = vmor %vm880, %vm881
  %v883 = vsel %vm882, %v875, %v879
  %v884 = vand.u32 2147483647, %v691
  %vm885 = vcmp.eq.f32.partialorder %v884, 8.507059e+37
  %v886 = vand.u32 %v691, 2147483648
  %v887 = vor.u32 1.1754944e-38, %v886
  %v888 = vsel %vm885, %v887, %v883
  %v889 = vmul.f32 1.0, %v888
  %v890 = vrcp.pop %v692
  %v891 = vmul.f32 %v692, %v890
  %v892 = vsub.f32 1.0, %v891
  %v893 = vmul.f32 %v890, %v892
  %v894 = vadd.f32 %v890, %v893
  %vm895 = vweird.f32 %v692
  %vm896 = vweird.f32 %v890
  %vm897 = vmor %vm895, %vm896
  %v898 = vsel %vm897, %v890, %v894
  %v899 = vand.u32 2147483647, %v692
  %vm900 = vcmp.eq.f32.partialorder %v899, 8.507059e+37
  %v901 = vand.u32 %v692, 2147483648
  %v902 = vor.u32 1.1754944e-38, %v901
  %v903 = vsel %vm900, %v902, %v898
  %v904 = vmul.f32 1.0, %v903
  %v905 = vrcp.pop %v693
  %v906 = vmul.f32 %v693, %v905
  %v907 = vsub.f32 1.0, %v906
  %v908 = vmul.f32 %v905, %v907
  %v909 = vadd.f32 %v905, %v908
  %vm910 = vweird.f32 %v693
  %vm911 = vweird.f32 %v905
  %vm912 = vmor %vm910, %vm911
  %v913 = vsel %vm912, %v905, %v909
  %v914 = vand.u32 2147483647, %v693
  %vm915 = vcmp.eq.f32.partialorder %v914, 8.507059e+37
  %v916 = vand.u32 %v693, 2147483648
  %v917 = vor.u32 1.1754944e-38, %v916
  %v918 = vsel %vm915, %v917, %v913
  %v919 = vmul.f32 1.0, %v918
  %v920 = vrcp.pop %v694
  %v921 = vmul.f32 %v694, %v920
  %v922 = vsub.f32 1.0, %v921
  %v923 = vmul.f32 %v920, %v922
  %v924 = vadd.f32 %v920, %v923
  %vm925 = vweird.f32 %v694
  %vm926 = vweird.f32 %v920
  %vm927 = vmor %vm925, %vm926
  %v928 = vsel %vm927, %v920, %v924
  %v929 = vand.u32 2147483647, %v694
  %vm930 = vcmp.eq.f32.partialorder %v929, 8.507059e+37
  %v931 = vand.u32 %v694, 2147483648
  %v932 = vor.u32 1.1754944e-38, %v931
  %v933 = vsel %vm930, %v932, %v928
  %v934 = vmul.f32 1.0, %v933
  %951 = vrot.lane.b32.xlu0 %v709, 78
  %v952 = vpop.permute.xlu0 %951
  %953 = vrot.lane.b32.xlu0 %v724, 78
  %v954 = vpop.permute.xlu0 %953
  %955 = vrot.lane.b32.xlu0 %v739, 78
  %v956 = vpop.permute.xlu0 %955
  %957 = vrot.lane.b32.xlu0 %v754, 78
  %v958 = vpop.permute.xlu0 %957
  %959 = vrot.lane.b32.xlu0 %v769, 78
  %v960 = vpop.permute.xlu0 %959
  %961 = vrot.lane.b32.xlu0 %v784, 78
  %v962 = vpop.permute.xlu0 %961
  %963 = vrot.lane.b32.xlu0 %v799, 78
  %v964 = vpop.permute.xlu0 %963
  %965 = vrot.lane.b32.xlu0 %v814, 78
  %v966 = vpop.permute.xlu0 %965
  %967 = vrot.lane.b32.xlu0 %v829, 78
  %v968 = vpop.permute.xlu0 %967
  %969 = vrot.lane.b32.xlu0 %v844, 78
  %v970 = vpop.permute.xlu0 %969
  %971 = vrot.lane.b32.xlu0 %v859, 78
  %v972 = vpop.permute.xlu0 %971
  %973 = vrot.lane.b32.xlu0 %v874, 78
  %v974 = vpop.permute.xlu0 %973
  %975 = vrot.lane.b32.xlu0 %v889, 78
  %v976 = vpop.permute.xlu0 %975
  %977 = vrot.lane.b32.xlu0 %v904, 78
  %v978 = vpop.permute.xlu0 %977
  %979 = vrot.lane.b32.xlu0 %v919, 78
  %v980 = vpop.permute.xlu0 %979
  %981 = vrot.lane.b32.xlu0 %v934, 78
  %v982 = vpop.permute.xlu0 %981
  %999 = vst.msk [vmem:[%s7] sm:$0xff] %vm40, %v952
  %1000 = vst.msk [vmem:[%s7 + $0x8] sm:$0xff] %vm40, %v954
  %1001 = vst.msk [vmem:[%s7 + $0x10] sm:$0xff] %vm40, %v956
  %1002 = vst.msk [vmem:[%s7 + $0x18] sm:$0xff] %vm40, %v958
  %1003 = vst.msk [vmem:[%s7 + $0x20] sm:$0xff] %vm40, %v960
  %1004 = vst.msk [vmem:[%s7 + $0x28] sm:$0xff] %vm40, %v962
  %1005 = vst.msk [vmem:[%s7 + $0x30] sm:$0xff] %vm40, %v964
  %1006 = vst.msk [vmem:[%s7 + $0x38] sm:$0xff] %vm40, %v966
  %1007 = vst.msk [vmem:[%s7 + $0x40] sm:$0xff] %vm40, %v968
  %1008 = vst.msk [vmem:[%s7 + $0x48] sm:$0xff] %vm40, %v970
  %1009 = vst.msk [vmem:[%s7 + $0x50] sm:$0xff] %vm40, %v972
  %1010 = vst.msk [vmem:[%s7 + $0x58] sm:$0xff] %vm40, %v974
  %1011 = vst.msk [vmem:[%s7 + $0x60] sm:$0xff] %vm40, %v976
  %1012 = vst.msk [vmem:[%s7 + $0x68] sm:$0xff] %vm40, %v978
  %1013 = vst.msk [vmem:[%s7 + $0x70] sm:$0xff] %vm40, %v980
  %1014 = vst.msk [vmem:[%s7 + $0x78] sm:$0xff] %vm40, %v982
  // Predicated region
  $region22: #{forward.41} parent=0 // pred_check
    _
  $region23: #{forward.41} parent=0 // pred_check_branch
    %1016 = sbr.rel (0) target = $region25
  $region24: #{forward.41} parent=0 // pred_region
    _
  $region25: #{forward.41} parent=0 // pred_fallthru
    _
  // Predicated region
  $region26: #{forward.41} parent=0 // pred_check
    _
  $region27: #{forward.41} parent=0 // pred_check_branch
    %1018 = sbr.rel (0) target = $region29
  $region28: #{forward.41} parent=0 // pred_region
    _
  $region29: #{forward.41} parent=0 // pred_fallthru
    _
  // Predicated region
  $region30: #{forward.41} parent=0 // pred_check
    _
  $region31: #{forward.41} parent=0 // pred_check_branch
    %1020 = sbr.rel (0) target = $region33
  $region32: #{forward.41} parent=0 // pred_region
    _
  $region33: #{forward.41} parent=0 // pred_fallthru
    _
  // Predicated region
  $region34: #{forward.41} parent=0 // pred_check
    _
  $region35: #{forward.41} parent=0 // pred_check_branch
    %1022 = sbr.rel (0) target = $region37
  $region36: #{forward.41} parent=0 // pred_region
    _
  $region37: #{forward.41} parent=0 // pred_fallthru
    _
  // Predicated region
  $region38: #{forward.41} parent=0 // pred_check
    _
  $region39: #{forward.41} parent=0 // pred_check_branch
    %1024 = sbr.rel (0) target = $region41
  $region40: #{forward.41} parent=0 // pred_region
    _
  $region41: #{forward.41} parent=0 // pred_fallthru
    _
  // Predicated region
  $region42: #{forward.41} parent=0 // pred_check
    _
  $region43: #{forward.41} parent=0 // pred_check_branch
    %1026 = sbr.rel (0) target = $region45
  $region44: #{forward.41} parent=0 // pred_region
    _
  $region45: #{forward.41} parent=0 // pred_fallthru
    _

// kernel: forward.43
$region0: #{forward.43}
  #allocation0 [shape = 'u32[]', space=smem, size = 0x4, offset = 0x4, fixed_abs, tag = 'smem constant byte address 0x4 - core index']
  #allocation1 [shape = 'u32[72,128]{1,0:T(1,128)}', space=vmem, size = 0x9000, scoped, tag = 'internal scratch']
  %s0 = inlined_call_operand.vmem [shape: f32[128,16], index: 0, kind: input, shape index: {}]
  %s1 = inlined_call_operand.vmem [shape: bf16[16,16], index: 1, kind: input, shape index: {}]
  %s2 = inlined_call_operand.vmem [shape: f32[1,16], index: 2, kind: input, shape index: {}]
  %s3 = inlined_call_operand.vmem [shape: f32[128,16], index: 3, kind: input, shape index: {}]
  %s4 = inlined_call_operand.vmem [shape: f32[128,16], index: 4, kind: output, shape index: {}]
  %s5 = sld [smem:[#allocation0]]
  $region26: #{forward.43} parent=0
    _
  %s7 = ssub.s32 1, %s5
  %s8 = scalar_select 0, %s7, %s5
  // Predicated region
  $region2: #{forward.43} parent=0 // pred_check
    _
  $region3: #{forward.43} parent=0 // pred_check_branch
    %10 = sbr.rel (0) target = $region5
  $region4: #{forward.43} parent=0 // pred_region
    _
  $region5: #{forward.43} parent=0 // pred_fallthru
    _
  // Predicated region
  $region6: #{forward.43} parent=0 // pred_check
    _
  $region7: #{forward.43} parent=0 // pred_check_branch
    %12 = sbr.rel (0) target = $region9
  $region8: #{forward.43} parent=0 // pred_region
    _
  $region9: #{forward.43} parent=0 // pred_fallthru
    _
  // Predicated region
  $region10: #{forward.43} parent=0 // pred_check
    _
  $region11: #{forward.43} parent=0 // pred_check_branch
    %14 = sbr.rel (0) target = $region13
  $region12: #{forward.43} parent=0 // pred_region
    _
  $region13: #{forward.43} parent=0 // pred_fallthru
    _
  // Predicated region
  $region14: #{forward.43} parent=0 // pred_check
    _
  $region15: #{forward.43} parent=0 // pred_check_branch
    %16 = sbr.rel (0) target = $region17
  $region16: #{forward.43} parent=0 // pred_region
    _
  $region17: #{forward.43} parent=0 // pred_fallthru
    _
  %v18 = vld [vmem:[%s0] sm:$0xff]
  %v19 = vld [vmem:[%s0 + $0x8] sm:$0xff]
  %v20 = vld [vmem:[%s0 + $0x10] sm:$0xff]
  %v21 = vld [vmem:[%s0 + $0x18] sm:$0xff]
  %v22 = vld [vmem:[%s0 + $0x20] sm:$0xff]
  %v23 = vld [vmem:[%s0 + $0x28] sm:$0xff]
  %v24 = vld [vmem:[%s0 + $0x30] sm:$0xff]
  %v25 = vld [vmem:[%s0 + $0x38] sm:$0xff]
  %v26 = vld [vmem:[%s0 + $0x40] sm:$0xff]
  %v27 = vld [vmem:[%s0 + $0x48] sm:$0xff]
  %v28 = vld [vmem:[%s0 + $0x50] sm:$0xff]
  %v29 = vld [vmem:[%s0 + $0x58] sm:$0xff]
  %v30 = vld [vmem:[%s0 + $0x60] sm:$0xff]
  %v31 = vld [vmem:[%s0 + $0x68] sm:$0xff]
  %v32 = vld [vmem:[%s0 + $0x70] sm:$0xff]
  %v33 = vld [vmem:[%s0 + $0x78] sm:$0xff]
  %v34 = vld [vmem:[%s1] sm:$0xf]
  %v35 = vld [vmem:[%s1 + $0x4] sm:$0xf]
  %v36 = vld [vmem:[%s2] sm:$0x1]
  %v37 = vpack.c.bf16 %v19, %v18
  %v38 = vpack.c.bf16 %v21, %v20
  %v39 = vpack.c.bf16 %v23, %v22
  %v40 = vpack.c.bf16 %v25, %v24
  %v41 = vpack.c.bf16 %v27, %v26
  %v42 = vpack.c.bf16 %v29, %v28
  %v43 = vpack.c.bf16 %v31, %v30
  %v44 = vpack.c.bf16 %v33, %v32
  %v46 = vperm.slane %v36, 0
  %v50 = vunpack.c.l.b16 %v34
  %v51 = vunpack.c.l.b16 %v35
  %v52 = vpack.c.b16 %v51, %v50
  %vm54 = vcmask 130048
  %v56 = vsel %vm54, %v37, 0
  %v59 = vsel %vm54, %v38, 0
  %v62 = vsel %vm54, %v39, 0
  %v65 = vsel %vm54, %v40, 0
  %v68 = vsel %vm54, %v41, 0
  %v71 = vsel %vm54, %v42, 0
  %v74 = vsel %vm54, %v43, 0
  %v77 = vsel %vm54, %v44, 0
  %79 = vmatpush.bf16.msra.mxu0 0
  %80 = vmatpush.bf16.msra.mxu0 0
  %81 = vmatpush.bf16.msra.mxu0 0
  %82 = vmatpush.bf16.msra.mxu0 0
  %83 = vmatpush.bf16.msra.mxu0 0
  %84 = vmatpush.bf16.msra.mxu0 0
  %85 = vmatpush.bf16.msra.mxu0 0
  %86 = vmatpush.bf16.msra.mxu0 %v52
  %87 = vmatmul.bf16.gmra.mxu0 %v56
  %v88 = vpop.f32.mrf.mxu0
  %v89 = vadd.f32 %v46, %v88
  %v90 = vpop.f32.mrf.mxu0
  %v91 = vadd.f32 %v46, %v90
  %92 = vmatmul.bf16.gmra.mxu0 %v59
  %v93 = vpop.f32.mrf.mxu0
  %v94 = vadd.f32 %v46, %v93
  %v95 = vpop.f32.mrf.mxu0
  %v96 = vadd.f32 %v46, %v95
  %97 = vmatmul.bf16.gmra.mxu0 %v62
  %v98 = vpop.f32.mrf.mxu0
  %v99 = vadd.f32 %v46, %v98
  %v100 = vpop.f32.mrf.mxu0
  %v101 = vadd.f32 %v46, %v100
  %102 = vmatmul.bf16.gmra.mxu0 %v65
  %v103 = vpop.f32.mrf.mxu0
  %v104 = vadd.f32 %v46, %v103
  %v105 = vpop.f32.mrf.mxu0
  %v106 = vadd.f32 %v46, %v105
  %107 = vmatmul.bf16.gmra.mxu0 %v68
  %v108 = vpop.f32.mrf.mxu0
  %v109 = vadd.f32 %v46, %v108
  %v110 = vpop.f32.mrf.mxu0
  %v111 = vadd.f32 %v46, %v110
  %112 = vmatmul.bf16.gmra.mxu0 %v71
  %v113 = vpop.f32.mrf.mxu0
  %v114 = vadd.f32 %v46, %v113
  %v115 = vpop.f32.mrf.mxu0
  %v116 = vadd.f32 %v46, %v115
  %117 = vmatmul.bf16.gmra.mxu0 %v74
  %v118 = vpop.f32.mrf.mxu0
  %v119 = vadd.f32 %v46, %v118
  %v120 = vpop.f32.mrf.mxu0
  %v121 = vadd.f32 %v46, %v120
  %122 = vmatmul.bf16.gmra.mxu0 %v77
  %v123 = vpop.f32.mrf.mxu0
  %v124 = vadd.f32 %v46, %v123
  %v125 = vpop.f32.mrf.mxu0
  %v126 = vadd.f32 %v46, %v125
  %127 = vdwg.mxu0
  %v128 = vld [vmem:[%s3] sm:$0xff]
  %v129 = vld [vmem:[%s3 + $0x8] sm:$0xff]
  %v130 = vld [vmem:[%s3 + $0x10] sm:$0xff]
  %v131 = vld [vmem:[%s3 + $0x18] sm:$0xff]
  %v132 = vld [vmem:[%s3 + $0x20] sm:$0xff]
  %v133 = vld [vmem:[%s3 + $0x28] sm:$0xff]
  %v134 = vld [vmem:[%s3 + $0x30] sm:$0xff]
  %v135 = vld [vmem:[%s3 + $0x38] sm:$0xff]
  %v136 = vld [vmem:[%s3 + $0x40] sm:$0xff]
  %v137 = vld [vmem:[%s3 + $0x48] sm:$0xff]
  %v138 = vld [vmem:[%s3 + $0x50] sm:$0xff]
  %v139 = vld [vmem:[%s3 + $0x58] sm:$0xff]
  %v140 = vld [vmem:[%s3 + $0x60] sm:$0xff]
  %v141 = vld [vmem:[%s3 + $0x68] sm:$0xff]
  %v142 = vld [vmem:[%s3 + $0x70] sm:$0xff]
  %v143 = vld [vmem:[%s3 + $0x78] sm:$0xff]
  %v144 = vadd.f32 %v89, %v128
  %v145 = vadd.f32 %v91, %v129
  %v146 = vadd.f32 %v94, %v130
  %v147 = vadd.f32 %v96, %v131
  %v148 = vadd.f32 %v99, %v132
  %v149 = vadd.f32 %v101, %v133
  %v150 = vadd.f32 %v104, %v134
  %v151 = vadd.f32 %v106, %v135
  %v152 = vadd.f32 %v109, %v136
  %v153 = vadd.f32 %v111, %v137
  %v154 = vadd.f32 %v114, %v138
  %v155 = vadd.f32 %v116, %v139
  %v156 = vadd.f32 %v119, %v140
  %v157 = vadd.f32 %v121, %v141
  %v158 = vadd.f32 %v124, %v142
  %v159 = vadd.f32 %v126, %v143
  %160 = vst.msk [vmem:[%s4] sm:$0xff] %vm54, %v144
  %161 = vst.msk [vmem:[%s4 + $0x8] sm:$0xff] %vm54, %v145
  %162 = vst.msk [vmem:[%s4 + $0x10] sm:$0xff] %vm54, %v146
  %163 = vst.msk [vmem:[%s4 + $0x18] sm:$0xff] %vm54, %v147
  %164 = vst.msk [vmem:[%s4 + $0x20] sm:$0xff] %vm54, %v148
  %165 = vst.msk [vmem:[%s4 + $0x28] sm:$0xff] %vm54, %v149
  %166 = vst.msk [vmem:[%s4 + $0x30] sm:$0xff] %vm54, %v150
  %167 = vst.msk [vmem:[%s4 + $0x38] sm:$0xff] %vm54, %v151
  %168 = vst.msk [vmem:[%s4 + $0x40] sm:$0xff] %vm54, %v152
  %169 = vst.msk [vmem:[%s4 + $0x48] sm:$0xff] %vm54, %v153
  %170 = vst.msk [vmem:[%s4 + $0x50] sm:$0xff] %vm54, %v154
  %171 = vst.msk [vmem:[%s4 + $0x58] sm:$0xff] %vm54, %v155
  %172 = vst.msk [vmem:[%s4 + $0x60] sm:$0xff] %vm54, %v156
  %173 = vst.msk [vmem:[%s4 + $0x68] sm:$0xff] %vm54, %v157
  %174 = vst.msk [vmem:[%s4 + $0x70] sm:$0xff] %vm54, %v158
  %175 = vst.msk [vmem:[%s4 + $0x78] sm:$0xff] %vm54, %v159
  // Predicated region
  $region18: #{forward.43} parent=0 // pred_check
    _
  $region19: #{forward.43} parent=0 // pred_check_branch
    %177 = sbr.rel (0) target = $region21
  $region20: #{forward.43} parent=0 // pred_region
    _
  $region21: #{forward.43} parent=0 // pred_fallthru
    _
  // Predicated region
  $region22: #{forward.43} parent=0 // pred_check
    _
  $region23: #{forward.43} parent=0 // pred_check_branch
    %179 = sbr.rel (0) target = $region25
  $region24: #{forward.43} parent=0 // pred_region
    _
  $region25: #{forward.43} parent=0 // pred_fallthru
    _

// kernel: forward.42
$region0: #{forward.42}
  #allocation0 [shape = 'u32[]', space=smem, size = 0x4, offset = 0x4, fixed_abs, tag = 'smem constant byte address 0x4 - core index']
  #allocation1 [shape = 'u32[72,128]{1,0:T(1,128)}', space=vmem, size = 0x9000, scoped, tag = 'internal scratch']
  %s0 = inlined_call_operand.vmem [shape: f32[2,8,8,48], index: 0, kind: input, shape index: {}]
  %s1 = inlined_call_operand.vmem [shape: f32[2,8,8,16], index: 1, kind: input, shape index: {}]
  %s2 = inlined_call_operand.vmem [shape: f32[2,8,8,2], index: 2, kind: input, shape index: {}]
  %s3 = inlined_call_operand.vmem [shape: f32[2,8,1,8], index: 3, kind: input, shape index: {}]
  %s4 = inlined_call_operand.vmem [shape: f32[2,8,8,16], index: 4, kind: output, shape index: {}]
  %s5 = sld [smem:[#allocation0]]
  $region49: #{forward.42} parent=0
    _
  %s7 = ssub.s32 1, %s5
  %s8 = scalar_select 0, %s7, %s5
  loop: start=0, step=1, limit=18
  $region2: #{forward.42} parent=0 // loop_pre_header
    _
  $region3: #{forward.42} parent=0 // loop_header
    %s10 = sphi 0, %s14
    %p11 = scmp.ge.s32.totalorder %s10, 18
    %s17 = sphi 0, %s29
    %s18 = sphi 0, %s25
    %s19 = sphi 0, %s17
    %s20 = sphi 0, %s18
    %s21 = sphi 0, %s19
    %s22 = sphi 0, %s20
    %s34 = sphi 0, %s36
    %s37 = sphi 0, %s34
    %s38 = sphi 0, %s37
    %s54 = sphi 0, %s38
    %s62 = sphi 0, %s64
    %s65 = sphi 0, %s62
    %s66 = sphi 0, %s65
    %s82 = sphi 0, %s66
    %s88 = sphi 0, %s90
    %s91 = sphi 0, %s88
    %s92 = sphi 0, %s91
    %s108 = sphi 0, %s92
    %s116 = sphi 0, %s118
    %s119 = sphi 0, %s116
    %s120 = sphi 0, %s119
    %s136 = sphi 0, %s120
    %s144 = sphi 0, %s146
    %s147 = sphi 0, %s144
    %s148 = sphi 0, %s147
    %s164 = sphi 0, %s148
  $region4: #{forward.42} parent=0 // loop_header_branch
    %13 = sbr.rel (%p11) target = $region8
  $region5: #{forward.42} parent=0 // loop_body
    %s15 = ssub.s32 %s10, 1
    %s16 = ssub.s32 %s10, 2
    %s23 = sadd.s32 1, %s18
    %p24 = scmp.ge.s32.totalorder %s23, 8
    %s25 = scalar_select %p24, 0, %s23
    %s26 = sadd.s32 1, %s17
    %s27 = scalar_select %p24, %s26, %s17
    %p28 = scmp.ge.s32.totalorder %s27, 2
    %s29 = scalar_select %p28, 0, %s27
    %s30 = ssub.s32 %s17, %s29
    %s31 = ssub.s32 %s18, %s25
    %s32 = sor.u32 %s30, %s31
    %p33 = scmp.eq.s32.totalorder %s32, 0
    %s35 = sadd.s32 %s34, 1
    %s36 = scalar_select %p33, %s34, %s35
    %p39 = pneg %p33
    %p40 = scmp.eq.s32.totalorder %s10, 15
    %p41 = por %p39, %p40
    %p42 = scmp.ne.s32.totalorder %s34, %s37
    %p43 = scmp.eq.s32.totalorder %s10, 0
    %p44 = por %p42, %p43
    %p45 = scmp.ne.s32.totalorder %s34, %s37
    %p46 = scmp.eq.s32.totalorder %s15, 15
    %p47 = por %p45, %p46
    %p48 = scmp.ne.s32.totalorder %s37, %s38
    %p49 = scmp.eq.s32.totalorder %s15, 0
    %p50 = por %p48, %p49
    %p51 = scmp.ne.s32.totalorder %s37, %s38
    %p52 = scmp.eq.s32.totalorder %s16, 15
    %p53 = por %p51, %p52
    %p55 = scmp.ne.s32.totalorder %s38, %s54
    %p56 = scmp.eq.s32.totalorder %s16, 0
    %p57 = por %p55, %p56
    %s58 = ssub.s32 %s17, %s29
    %s59 = ssub.s32 %s18, %s25
    %s60 = sor.u32 %s58, %s59
    %p61 = scmp.eq.s32.totalorder %s60, 0
    %s63 = sadd.s32 %s62, 1
    %s64 = scalar_select %p61, %s62, %s63
    %p67 = pneg %p61
    %p68 = scmp.eq.s32.totalorder %s10, 15
    %p69 = por %p67, %p68
    %p70 = scmp.ne.s32.totalorder %s62, %s65
    %p71 = scmp.eq.s32.totalorder %s10, 0
    %p72 = por %p70, %p71
    %p73 = scmp.ne.s32.totalorder %s62, %s65
    %p74 = scmp.eq.s32.totalorder %s15, 15
    %p75 = por %p73, %p74
    %p76 = scmp.ne.s32.totalorder %s65, %s66
    %p77 = scmp.eq.s32.totalorder %s15, 0
    %p78 = por %p76, %p77
    %p79 = scmp.ne.s32.totalorder %s65, %s66
    %p80 = scmp.eq.s32.totalorder %s16, 15
    %p81 = por %p79, %p80
    %p83 = scmp.ne.s32.totalorder %s66, %s82
    %p84 = scmp.eq.s32.totalorder %s16, 0
    %p85 = por %p83, %p84
    %s86 = ssub.s32 %s17, %s29
    %p87 = scmp.eq.s32.totalorder %s86, 0
    %s89 = sadd.s32 %s88, 1
    %s90 = scalar_select %p87, %s88, %s89
    %p93 = pneg %p87
    %p94 = scmp.eq.s32.totalorder %s10, 15
    %p95 = por %p93, %p94
    %p96 = scmp.ne.s32.totalorder %s88, %s91
    %p97 = scmp.eq.s32.totalorder %s10, 0
    %p98 = por %p96, %p97
    %p99 = scmp.ne.s32.totalorder %s88, %s91
    %p100 = scmp.eq.s32.totalorder %s15, 15
    %p101 = por %p99, %p100
    %p102 = scmp.ne.s32.totalorder %s91, %s92
    %p103 = scmp.eq.s32.totalorder %s15, 0
    %p104 = por %p102, %p103
    %p105 = scmp.ne.s32.totalorder %s91, %s92
    %p106 = scmp.eq.s32.totalorder %s16, 15
    %p107 = por %p105, %p106
    %p109 = scmp.ne.s32.totalorder %s92, %s108
    %p110 = scmp.eq.s32.totalorder %s16, 0
    %p111 = por %p109, %p110
    %s112 = ssub.s32 %s17, %s29
    %s113 = ssub.s32 %s18, %s25
    %s114 = sor.u32 %s112, %s113
    %p115 = scmp.eq.s32.totalorder %s114, 0
    %s117 = sadd.s32 %s116, 1
    %s118 = scalar_select %p115, %s116, %s117
    %p121 = pneg %p115
    %p122 = scmp.eq.s32.totalorder %s10, 15
    %p123 = por %p121, %p122
    %p124 = scmp.ne.s32.totalorder %s116, %s119
    %p125 = scmp.eq.s32.totalorder %s10, 0
    %p126 = por %p124, %p125
    %p127 = scmp.ne.s32.totalorder %s116, %s119
    %p128 = scmp.eq.s32.totalorder %s15, 15
    %p129 = por %p127, %p128
    %p130 = scmp.ne.s32.totalorder %s119, %s120
    %p131 = scmp.eq.s32.totalorder %s15, 0
    %p132 = por %p130, %p131
    %p133 = scmp.ne.s32.totalorder %s119, %s120
    %p134 = scmp.eq.s32.totalorder %s16, 15
    %p135 = por %p133, %p134
    %p137 = scmp.ne.s32.totalorder %s120, %s136
    %p138 = scmp.eq.s32.totalorder %s16, 0
    %p139 = por %p137, %p138
    %s140 = ssub.s32 %s17, %s29
    %s141 = ssub.s32 %s18, %s25
    %s142 = sor.u32 %s140, %s141
    %p143 = scmp.eq.s32.totalorder %s142, 0
    %s145 = sadd.s32 %s144, 1
    %s146 = scalar_select %p143, %s144, %s145
    %p149 = pneg %p143
    %p150 = scmp.eq.s32.totalorder %s10, 15
    %p151 = por %p149, %p150
    %p152 = scmp.ne.s32.totalorder %s144, %s147
    %p153 = scmp.eq.s32.totalorder %s10, 0
    %p154 = por %p152, %p153
    %p155 = scmp.ne.s32.totalorder %s144, %s147
    %p156 = scmp.eq.s32.totalorder %s15, 15
    %p157 = por %p155, %p156
    %p158 = scmp.ne.s32.totalorder %s147, %s148
    %p159 = scmp.eq.s32.totalorder %s15, 0
    %p160 = por %p158, %p159
    %p161 = scmp.ne.s32.totalorder %s147, %s148
    %p162 = scmp.eq.s32.totalorder %s16, 15
    %p163 = por %p161, %p162
    %p165 = scmp.ne.s32.totalorder %s148, %s164
    %p166 = scmp.eq.s32.totalorder %s16, 0
    %p167 = por %p165, %p166
    %p168 = scmp.le.s32.totalorder 1, %s10
    %p169 = scmp.lt.s32.totalorder %s10, 17
    %p170 = pnand %p168, %p169
    %p171 = pneg %p170
    // Predicated region
    $region9: #{forward.42} parent=5 // pred_check
      _
    $region10: #{forward.42} parent=5 // pred_check_branch
      %173 = sbr.rel (%p170) target = $region12
    $region11: #{forward.42} parent=5 // pred_region
      %s174 = ssub.s32 %s10, 1
    $region12: #{forward.42} parent=5 // pred_fallthru
      _
    %p175 = scmp.lt.s32.totalorder %s10, 16
    // Predicated region
    $region13: #{forward.42} parent=5 // pred_check
      %p176 = pneg %p175
    $region14: #{forward.42} parent=5 // pred_check_branch
      %178 = sbr.rel (%p176) target = $region16
    $region15: #{forward.42} parent=5 // pred_region
      // Predicated region
      $region17: #{forward.42} parent=15 // pred_check
        %p179 = pneg %p44
      $region18: #{forward.42} parent=15 // pred_check_branch
        %181 = sbr.rel (%p179) target = $region20
      $region19: #{forward.42} parent=15 // pred_region
        %p182 = scmp.lt.s32.totalorder %s17, 1
        %s183 = scalar_select %p182, %s17, 1
        %p184 = scmp.lt.s32.totalorder %s18, 7
        %s185 = scalar_select %p184, %s18, 7
        %s186 = smul.addr %s183, 8
        %s187 = sadd.s32 %s185, %s186
        %s188 = smul.addr %s187, 8
        %s189 = scalar_lea.vmem %s0, %s188
      $region20: #{forward.42} parent=15 // pred_fallthru
        _
      // Predicated region
      $region21: #{forward.42} parent=15 // pred_check
        %p190 = pneg %p72
      $region22: #{forward.42} parent=15 // pred_check_branch
        %192 = sbr.rel (%p190) target = $region24
      $region23: #{forward.42} parent=15 // pred_region
        %p193 = scmp.lt.s32.totalorder %s17, 1
        %s194 = scalar_select %p193, %s17, 1
        %p195 = scmp.lt.s32.totalorder %s18, 7
        %s196 = scalar_select %p195, %s18, 7
        %s197 = smul.addr %s194, 8
        %s198 = sadd.s32 %s196, %s197
        %s199 = smul.addr %s198, 8
        %s200 = scalar_lea.vmem %s1, %s199
      $region24: #{forward.42} parent=15 // pred_fallthru
        _
      // Predicated region
      $region25: #{forward.42} parent=15 // pred_check
        %p201 = pneg %p98
      $region26: #{forward.42} parent=15 // pred_check_branch
        %203 = sbr.rel (%p201) target = $region28
      $region27: #{forward.42} parent=15 // pred_region
        %p204 = scmp.lt.s32.totalorder %s17, 1
        %s205 = scalar_select %p204, %s17, 1
        %s206 = smul.addr %s205, 8
        %s207 = smul.addr %s206, 8
        %s208 = scalar_lea.vmem %s2, %s207
      $region28: #{forward.42} parent=15 // pred_fallthru
        _
      // Predicated region
      $region29: #{forward.42} parent=15 // pred_check
        %p209 = pneg %p126
      $region30: #{forward.42} parent=15 // pred_check_branch
        %211 = sbr.rel (%p209) target = $region32
      $region31: #{forward.42} parent=15 // pred_region
        %p212 = scmp.lt.s32.totalorder %s17, 1
        %s213 = scalar_select %p212, %s17, 1
        %p214 = scmp.lt.s32.totalorder %s18, 7
        %s215 = scalar_select %p214, %s18, 7
        %s216 = smul.addr %s213, 8
        %s217 = sadd.s32 %s215, %s216
        %s218 = scalar_lea.vmem %s3, %s217
      $region32: #{forward.42} parent=15 // pred_fallthru
        _
    $region16: #{forward.42} parent=5 // pred_fallthru
      _
    %p219 = scmp.le.s32.totalorder 1, %s10
    %p220 = scmp.lt.s32.totalorder %s10, 17
    %p221 = pnand %p219, %p220
    %p222 = pneg %p221
    // Predicated region
    $region33: #{forward.42} parent=5 // pred_check
      _
    $region34: #{forward.42} parent=5 // pred_check_branch
      %224 = sbr.rel (%p221) target = $region36
    $region35: #{forward.42} parent=5 // pred_region
      %s225 = ssub.s32 %s10, 1
      %p226 = scmp.lt.s32.totalorder %s19, 1
      %s227 = scalar_select %p226, %s19, 1
      %p228 = scmp.lt.s32.totalorder %s20, 7
      %s229 = scalar_select %p228, %s20, 7
      %s230 = smul.addr %s227, 8
      %s231 = sadd.s32 %s229, %s230
      %s232 = smul.addr %s231, 8
      %s233 = scalar_lea.vmem %s0, %s232
      %p234 = pneg %p50
      %p235 = pneg %p47
      %p236 = scmp.lt.s32.totalorder %s19, 1
      %s237 = scalar_select %p236, %s19, 1
      %p238 = scmp.lt.s32.totalorder %s20, 7
      %s239 = scalar_select %p238, %s20, 7
      %s240 = smul.addr %s237, 8
      %s241 = sadd.s32 %s239, %s240
      %s242 = smul.addr %s241, 8
      %s243 = scalar_lea.vmem %s1, %s242
      %p244 = pneg %p78
      %p245 = pneg %p75
      %p246 = scmp.lt.s32.totalorder %s19, 1
      %s247 = scalar_select %p246, %s19, 1
      %s248 = smul.addr %s247, 8
      %s249 = smul.addr %s248, 8
      %s250 = scalar_lea.vmem %s2, %s249
      %p251 = pneg %p104
      %p252 = pneg %p101
      %p253 = scmp.lt.s32.totalorder %s19, 1
      %s254 = scalar_select %p253, %s19, 1
      %p255 = scmp.lt.s32.totalorder %s20, 7
      %s256 = scalar_select %p255, %s20, 7
      %s257 = smul.addr %s254, 8
      %s258 = sadd.s32 %s256, %s257
      %s259 = scalar_lea.vmem %s3, %s258
      %p260 = pneg %p132
      %p261 = pneg %p129
      %p262 = pneg %p160
      %p263 = pneg %p157
      %p264 = scmp.lt.s32.totalorder %s19, 1
      %s265 = scalar_select %p264, %s19, 1
      %p266 = scmp.lt.s32.totalorder %s20, 7
      %s267 = scalar_select %p266, %s20, 7
      %s268 = smul.addr %s265, 8
      %s269 = sadd.s32 %s267, %s268
      %s270 = smul.addr %s269, 8
      %s271 = scalar_lea.vmem %s4, %s270
      %p272 = scmp.lt.s32.totalorder %s19, 1
      %s273 = scalar_select %p272, %s19, 1
      %p274 = scmp.lt.s32.totalorder %s20, 7
      %s275 = scalar_select %p274, %s20, 7
      %s276 = smul.addr %s273, 8
      %s277 = sadd.s32 %s275, %s276
      %s278 = smul.addr %s277, 8
      %s279 = scalar_lea.vmem %s0, %s278
      %p280 = scmp.lt.s32.totalorder %s19, 1
      %s281 = scalar_select %p280, %s19, 1
      %p282 = scmp.lt.s32.totalorder %s20, 7
      %s283 = scalar_select %p282, %s20, 7
      %s284 = smul.addr %s281, 8
      %s285 = sadd.s32 %s283, %s284
      %s286 = smul.addr %s285, 8
      %s287 = scalar_lea.vmem %s1, %s286
      %p288 = scmp.lt.s32.totalorder %s19, 1
      %s289 = scalar_select %p288, %s19, 1
      %s290 = smul.addr %s289, 8
      %s291 = smul.addr %s290, 8
      %s292 = scalar_lea.vmem %s2, %s291
      %p293 = scmp.lt.s32.totalorder %s19, 1
      %s294 = scalar_select %p293, %s19, 1
      %p295 = scmp.lt.s32.totalorder %s20, 7
      %s296 = scalar_select %p295, %s20, 7
      %s297 = smul.addr %s294, 8
      %s298 = sadd.s32 %s296, %s297
      %s299 = scalar_lea.vmem %s3, %s298
      %p300 = scmp.lt.s32.totalorder %s19, 1
      %s301 = scalar_select %p300, %s19, 1
      %p302 = scmp.lt.s32.totalorder %s20, 7
      %s303 = scalar_select %p302, %s20, 7
      %s304 = smul.addr %s301, 8
      %s305 = sadd.s32 %s303, %s304
      %s306 = smul.addr %s305, 8
      %s307 = scalar_lea.vmem %s4, %s306
      %v309 = vld [vmem:[%s279] sm:$0xff]
      %v310 = vld [vmem:[%s287] sm:$0xff]
      %v311 = vld [vmem:[%s299] sm:$0x1]
      %v312 = vld [vmem:[%s292] sm:$0xff]
      %v313 = vld [vmem:[%s292 + $0x8] sm:$0xff]
      %v314 = vld [vmem:[%s292 + $0x10] sm:$0xff]
      %v315 = vld [vmem:[%s292 + $0x18] sm:$0xff]
      %v316 = vld [vmem:[%s292 + $0x20] sm:$0xff]
      %v317 = vld [vmem:[%s292 + $0x28] sm:$0xff]
      %v318 = vld [vmem:[%s292 + $0x30] sm:$0xff]
      %v319 = vld [vmem:[%s292 + $0x38] sm:$0xff]
      %v320 = vpack.c.bf16 %v309, %v309
      %322 = vrot.lane.b32.xlu0 %v320, 112
      %v323 = vpop.permute.xlu0 %322
      %vm324 = vcmask 64512
      %v326 = vsel %vm324, %v320, 0
      %v329 = vsel %vm324, %v323, 0
      %331 = vmatpush.bf16.xpose.msra.mxu0 0
      %332 = vmatpush.bf16.xpose.msra.mxu0 0
      %333 = vmatpush.bf16.xpose.msra.mxu0 0
      %334 = vmatpush.bf16.xpose.msra.mxu0 0
      %335 = vmatpush.bf16.xpose.msra.mxu0 0
      %336 = vmatpush.bf16.xpose.msra.mxu0 0
      %337 = vmatpush.bf16.xpose.msra.mxu0 0
      %338 = vmatpush.bf16.xpose.msra.mxu0 %v329
      %339 = vmatmul.bf16.gmra.mxu0 %v326
      %v340 = vpop.f32.mrf.mxu0
      %v341 = vadd.f32 0.0, %v340
      %v342 = vpop.f32.mrf.mxu0
      %343 = vdwg.mxu0
      %v344 = vmul.f32 %v341, 0.35355338
      %353 = vset.pattern.permute.xlu0 0
      %354 = vperm.xlu0 %353, %v312
      %v355 = vpop.permute.xlu0 %354
      %356 = vset.pattern.permute.xlu0 0
      %357 = vperm.xlu0 %356, %v313
      %v358 = vpop.permute.xlu0 %357
      %359 = vset.pattern.permute.xlu0 0
      %360 = vperm.xlu0 %359, %v314
      %v361 = vpop.permute.xlu0 %360
      %362 = vset.pattern.permute.xlu0 0
      %363 = vperm.xlu0 %362, %v315
      %v364 = vpop.permute.xlu0 %363
      %365 = vset.pattern.permute.xlu0 0
      %366 = vperm.xlu0 %365, %v316
      %v367 = vpop.permute.xlu0 %366
      %368 = vset.pattern.permute.xlu0 0
      %369 = vperm.xlu0 %368, %v317
      %v370 = vpop.permute.xlu0 %369
      %371 = vset.pattern.permute.xlu0 0
      %372 = vperm.xlu0 %371, %v318
      %v373 = vpop.permute.xlu0 %372
      %374 = vset.pattern.permute.xlu0 0
      %375 = vperm.xlu0 %374, %v319
      %v376 = vpop.permute.xlu0 %375
      %v377 = vlaneseq
      %v378 = vand.u32 %v377, 127
      %v379 = vperm.slane %v355, %v378
      %v380 = vperm.slane %v358, %v378
      %v381 = vperm.slane %v361, %v378
      %v382 = vperm.slane %v364, %v378
      %v383 = vperm.slane %v367, %v378
      %v384 = vperm.slane %v370, %v378
      %v385 = vperm.slane %v373, %v378
      %v386 = vperm.slane %v376, %v378
      %vm387 = vcmask 1041409
      %v388 = vsel %vm387, %v380, %v379
      %vm389 = vcmask 1042434
      %v390 = vsel %vm389, %v381, %v388
      %vm391 = vcmask 1043459
      %v392 = vsel %vm391, %v382, %v390
      %vm393 = vcmask 1044484
      %v394 = vsel %vm393, %v383, %v392
      %vm395 = vcmask 1045509
      %v396 = vsel %vm395, %v384, %v394
      %vm397 = vcmask 1046534
      %v398 = vsel %vm397, %v385, %v396
      %vm399 = vcmask 1047559
      %v400 = vsel %vm399, %v386, %v398
      %v402 = vadd.f32 %v344, %v400
      %v404 = vperm.slane %v311, 0
      %v406 = vadd.f32 %v402, %v404
      %v407 = vsel %vm324, %v406, -inf
      %408 = vmax.xlane.f32.xlu0 %v407
      %v409 = vpop.xlane.xlu0 %408
      %v410 = vsub.f32 %v406, %v409
      %v411 = vmul.f32 %v410, 1.442695
      %v412 = vpow.pop %v411
      %v413 = vsel %vm324, %v412, 0.0
      %414 = vadd.xlane.f32.xlu0 %v413
      %v415 = vpop.xlane.xlu0 %414
      %v416 = vrcp.pop %v415
      %v417 = vmul.f32 %v415, %v416
      %v418 = vsub.f32 1.0, %v417
      %v419 = vmul.f32 %v416, %v418
      %v420 = vadd.f32 %v416, %v419
      %vm421 = vweird.f32 %v415
      %vm422 = vweird.f32 %v416
      %vm423 = vmor %vm421, %vm422
      %v424 = vsel %vm423, %v416, %v420
      %v425 = vand.u32 2147483647, %v415
      %vm426 = vcmp.eq.f32.partialorder %v425, 8.507059e+37
      %v427 = vand.u32 %v415, 2147483648
      %v428 = vor.u32 1.1754944e-38, %v427
      %v429 = vsel %vm426, %v428, %v424
      %v430 = vmul.f32 %v412, %v429
      %v431 = vpack.c.bf16 %v430, %v430
      %432 = vrot.lane.b32.xlu0 %v320, 96
      %v433 = vpop.permute.xlu0 %432
      %v435 = vsel %vm324, %v431, 0
      %vm437 = vcmask 1043456
      %v439 = vsel %vm437, %v433, 0
      %441 = vmatpush.bf16.msra.mxu0 0
      %442 = vmatpush.bf16.msra.mxu0 0
      %443 = vmatpush.bf16.msra.mxu0 0
      %444 = vmatpush.bf16.msra.mxu0 0
      %445 = vmatpush.bf16.msra.mxu0 0
      %446 = vmatpush.bf16.msra.mxu0 0
      %447 = vmatpush.bf16.msra.mxu0 0
      %448 = vmatpush.bf16.msra.mxu0 %v439
      %449 = vmatmul.bf16.gmra.mxu0 %v435
      %v450 = vpop.f32.mrf.mxu0
      %v451 = vadd.f32 0.0, %v450
      %v452 = vpop.f32.mrf.mxu0
      %453 = vdwg.mxu0
      %v454 = vmul.f32 %v451, %v310
      %455 = vst.msk [vmem:[%s307] sm:$0xff] %vm324, %v454
      %456 = vrot.lane.b32.xlu0 %v320, 120
      %v457 = vpop.permute.xlu0 %456
      %458 = vrot.lane.b32.xlu0 %v320, 104
      %v459 = vpop.permute.xlu0 %458
      %v461 = vsel %vm324, %v457, 0
      %v464 = vsel %vm324, %v459, 0
      %466 = vmatpush.bf16.xpose.msra.mxu0 0
      %467 = vmatpush.bf16.xpose.msra.mxu0 0
      %468 = vmatpush.bf16.xpose.msra.mxu0 0
      %469 = vmatpush.bf16.xpose.msra.mxu0 0
      %470 = vmatpush.bf16.xpose.msra.mxu0 0
      %471 = vmatpush.bf16.xpose.msra.mxu0 0
      %472 = vmatpush.bf16.xpose.msra.mxu0 0
      %473 = vmatpush.bf16.xpose.msra.mxu0 %v464
      %474 = vmatmul.bf16.gmra.mxu0 %v461
      %v475 = vpop.f32.mrf.mxu0
      %v476 = vadd.f32 0.0, %v475
      %v477 = vpop.f32.mrf.mxu0
      %478 = vdwg.mxu0
      %v479 = vmul.f32 %v476, 0.35355338
      %480 = vset.pattern.permute.xlu0 1
      %481 = vperm.xlu0 %480, %v312
      %v482 = vpop.permute.xlu0 %481
      %483 = vset.pattern.permute.xlu0 1
      %484 = vperm.xlu0 %483, %v313
      %v485 = vpop.permute.xlu0 %484
      %486 = vset.pattern.permute.xlu0 1
      %487 = vperm.xlu0 %486, %v314
      %v488 = vpop.permute.xlu0 %487
      %489 = vset.pattern.permute.xlu0 1
      %490 = vperm.xlu0 %489, %v315
      %v491 = vpop.permute.xlu0 %490
      %492 = vset.pattern.permute.xlu0 1
      %493 = vperm.xlu0 %492, %v316
      %v494 = vpop.permute.xlu0 %493
      %495 = vset.pattern.permute.xlu0 1
      %496 = vperm.xlu0 %495, %v317
      %v497 = vpop.permute.xlu0 %496
      %498 = vset.pattern.permute.xlu0 1
      %499 = vperm.xlu0 %498, %v318
      %v500 = vpop.permute.xlu0 %499
      %501 = vset.pattern.permute.xlu0 1
      %502 = vperm.xlu0 %501, %v319
      %v503 = vpop.permute.xlu0 %502
      %v504 = vperm.slane %v482, %v378
      %v505 = vperm.slane %v485, %v378
      %v506 = vperm.slane %v488, %v378
      %v507 = vperm.slane %v491, %v378
      %v508 = vperm.slane %v494, %v378
      %v509 = vperm.slane %v497, %v378
      %v510 = vperm.slane %v500, %v378
      %v511 = vperm.slane %v503, %v378
      %v512 = vsel %vm387, %v505, %v504
      %v513 = vsel %vm389, %v506, %v512
      %v514 = vsel %vm391, %v507, %v513
      %v515 = vsel %vm393, %v508, %v514
      %v516 = vsel %vm395, %v509, %v515
      %v517 = vsel %vm397, %v510, %v516
      %v518 = vsel %vm399, %v511, %v517
      %v520 = vadd.f32 %v479, %v518
      %v521 = vadd.f32 %v520, %v404
      %v522 = vsel %vm324, %v521, -inf
      %523 = vmax.xlane.f32.xlu0 %v522
      %v524 = vpop.xlane.xlu0 %523
      %v525 = vsub.f32 %v521, %v524
      %v526 = vmul.f32 %v525, 1.442695
      %v527 = vpow.pop %v526
      %v528 = vsel %vm324, %v527, 0.0
      %529 = vadd.xlane.f32.xlu0 %v528
      %v530 = vpop.xlane.xlu0 %529
      %v531 = vrcp.pop %v530
      %v532 = vmul.f32 %v530, %v531
      %v533 = vsub.f32 1.0, %v532
      %v534 = vmul.f32 %v531, %v533
      %v535 = vadd.f32 %v531, %v534
      %vm536 = vweird.f32 %v530
      %vm537 = vweird.f32 %v531
      %vm538 = vmor %vm536, %vm537
      %v539 = vsel %vm538, %v531, %v535
      %v540 = vand.u32 2147483647, %v530
      %vm541 = vcmp.eq.f32.partialorder %v540, 8.507059e+37
      %v542 = vand.u32 %v530, 2147483648
      %v543 = vor.u32 1.1754944e-38, %v542
      %v544 = vsel %vm541, %v543, %v539
      %v545 = vmul.f32 %v527, %v544
      %v546 = vpack.c.bf16 %v545, %v545
      %547 = vrot.lane.b32.xlu0 %v320, 88
      %v548 = vpop.permute.xlu0 %547
      %v550 = vsel %vm324, %v546, 0
      %v553 = vsel %vm437, %v548, 0
      %555 = vmatpush.bf16.msra.mxu0 0
      %556 = vmatpush.bf16.msra.mxu0 0
      %557 = vmatpush.bf16.msra.mxu0 0
      %558 = vmatpush.bf16.msra.mxu0 0
      %559 = vmatpush.bf16.msra.mxu0 0
      %560 = vmatpush.bf16.msra.mxu0 0
      %561 = vmatpush.bf16.msra.mxu0 0
      %562 = vmatpush.bf16.msra.mxu0 %v553
      %563 = vmatmul.bf16.gmra.mxu0 %v550
      %v564 = vpop.f32.mrf.mxu0
      %v565 = vadd.f32 0.0, %v564
      %v566 = vpop.f32.mrf.mxu0
      %567 = vdwg.mxu0
      %569 = vrot.lane.b32.xlu0 %v310, 120
      %v570 = vpop.permute.xlu0 %569
      %v572 = vmul.f32 %v565, %v570
      %574 = vrot.lane.b32.xlu0 %v572, 8
      %v575 = vpop.permute.xlu0 %574
      %vm577 = vcmask 130112
      %578 = vst.msk [vmem:[%s307] sm:$0xff] %vm577, %v575
      %p579 = scmp.lt.s32.totalorder %s19, 1
      %s580 = scalar_select %p579, %s19, 1
      %p581 = scmp.lt.s32.totalorder %s20, 7
      %s582 = scalar_select %p581, %s20, 7
      %s583 = smul.addr %s580, 8
      %s584 = sadd.s32 %s582, %s583
      %s585 = smul.addr %s584, 8
      %s586 = scalar_lea.vmem %s4, %s585
      // Predicated region
      $region37: #{forward.42} parent=35 // pred_check
        %p587 = pneg %p157
      $region38: #{forward.42} parent=35 // pred_check_branch
        %589 = sbr.rel (%p587) target = $region40
      $region39: #{forward.42} parent=35 // pred_region
        _
      $region40: #{forward.42} parent=35 // pred_fallthru
        _
    $region36: #{forward.42} parent=5 // pred_fallthru
      _
    %p590 = scmp.le.s32.totalorder 2, %s10
    // Predicated region
    $region41: #{forward.42} parent=5 // pred_check
      %p591 = pneg %p590
    $region42: #{forward.42} parent=5 // pred_check_branch
      %593 = sbr.rel (%p591) target = $region44
    $region43: #{forward.42} parent=5 // pred_region
      %s594 = ssub.s32 %s10, 2
      // Predicated region
      $region45: #{forward.42} parent=43 // pred_check
        %p595 = pneg %p163
      $region46: #{forward.42} parent=43 // pred_check_branch
        %597 = sbr.rel (%p595) target = $region48
      $region47: #{forward.42} parent=43 // pred_region
        %p598 = scmp.lt.s32.totalorder %s21, 1
        %s599 = scalar_select %p598, %s21, 1
        %p600 = scmp.lt.s32.totalorder %s22, 7
        %s601 = scalar_select %p600, %s22, 7
        %s602 = smul.addr %s599, 8
        %s603 = sadd.s32 %s601, %s602
        %s604 = smul.addr %s603, 8
        %s605 = scalar_lea.vmem %s4, %s604
      $region48: #{forward.42} parent=43 // pred_fallthru
        _
    $region44: #{forward.42} parent=5 // pred_fallthru
      _
  $region6: #{forward.42} parent=0 // loop_footer
    %s14 = sadd.s32 1, %s10
  $region7: #{forward.42} parent=0 // loop_footer_branch
    %9 = sbr.rel target = $region3
  $region8: #{forward.42} parent=0 // loop_exit
    _

// kernel: forward.47
$region0: #{forward.47}
  #allocation0 [shape = 'u32[]', space=smem, size = 0x4, offset = 0x4, fixed_abs, tag = 'smem constant byte address 0x4 - core index']
  #allocation1 [shape = 'u32[72,128]{1,0:T(1,128)}', space=vmem, size = 0x9000, scoped, tag = 'internal scratch']
  %s0 = inlined_call_operand.vmem [shape: f32[128,16], index: 0, kind: input, shape index: {}]
  %s1 = inlined_call_operand.vmem [shape: f32[128,1], index: 1, kind: input, shape index: {}]
  %s2 = inlined_call_operand.vmem [shape: f32[1,16], index: 2, kind: input, shape index: {}]
  %s3 = inlined_call_operand.vmem [shape: f32[1,16], index: 3, kind: input, shape index: {}, may-alias: {3,7}]
  %s4 = inlined_call_operand.vmem [shape: bf16[16,32], index: 4, kind: input, shape index: {}]
  %s5 = inlined_call_operand.vmem [shape: f32[1,32], index: 5, kind: input, shape index: {}]
  %s6 = inlined_call_operand.vmem [shape: bf16[32,16], index: 6, kind: input, shape index: {}]
  %s7 = inlined_call_operand.vmem [shape: f32[1,16], index: 7, kind: input, shape index: {}, may-alias: {3,7}]
  %s8 = inlined_call_operand.vmem [shape: f32[128,16], index: 8, kind: output, shape index: {}]
  %s9 = sld [smem:[#allocation0]]
  $region42: #{forward.47} parent=0
    _
  %s11 = ssub.s32 1, %s9
  %s12 = scalar_select 0, %s11, %s9
  // Predicated region
  $region2: #{forward.47} parent=0 // pred_check
    _
  $region3: #{forward.47} parent=0 // pred_check_branch
    %14 = sbr.rel (0) target = $region5
  $region4: #{forward.47} parent=0 // pred_region
    _
  $region5: #{forward.47} parent=0 // pred_fallthru
    _
  // Predicated region
  $region6: #{forward.47} parent=0 // pred_check
    _
  $region7: #{forward.47} parent=0 // pred_check_branch
    %16 = sbr.rel (0) target = $region9
  $region8: #{forward.47} parent=0 // pred_region
    _
  $region9: #{forward.47} parent=0 // pred_fallthru
    _
  // Predicated region
  $region10: #{forward.47} parent=0 // pred_check
    _
  $region11: #{forward.47} parent=0 // pred_check_branch
    %18 = sbr.rel (0) target = $region13
  $region12: #{forward.47} parent=0 // pred_region
    _
  $region13: #{forward.47} parent=0 // pred_fallthru
    _
  // Predicated region
  $region14: #{forward.47} parent=0 // pred_check
    _
  $region15: #{forward.47} parent=0 // pred_check_branch
    %20 = sbr.rel (0) target = $region17
  $region16: #{forward.47} parent=0 // pred_region
    _
  $region17: #{forward.47} parent=0 // pred_fallthru
    _
  // Predicated region
  $region18: #{forward.47} parent=0 // pred_check
    _
  $region19: #{forward.47} parent=0 // pred_check_branch
    %22 = sbr.rel (0) target = $region21
  $region20: #{forward.47} parent=0 // pred_region
    _
  $region21: #{forward.47} parent=0 // pred_fallthru
    _
  // Predicated region
  $region22: #{forward.47} parent=0 // pred_check
    _
  $region23: #{forward.47} parent=0 // pred_check_branch
    %24 = sbr.rel (0) target = $region25
  $region24: #{forward.47} parent=0 // pred_region
    _
  $region25: #{forward.47} parent=0 // pred_fallthru
    _
  // Predicated region
  $region26: #{forward.47} parent=0 // pred_check
    _
  $region27: #{forward.47} parent=0 // pred_check_branch
    %26 = sbr.rel (0) target = $region29
  $region28: #{forward.47} parent=0 // pred_region
    _
  $region29: #{forward.47} parent=0 // pred_fallthru
    _
  // Predicated region
  $region30: #{forward.47} parent=0 // pred_check
    _
  $region31: #{forward.47} parent=0 // pred_check_branch
    %28 = sbr.rel (0) target = $region33
  $region32: #{forward.47} parent=0 // pred_region
    _
  $region33: #{forward.47} parent=0 // pred_fallthru
    _
  %v30 = vld [vmem:[%s0] sm:$0xff]
  %v31 = vld [vmem:[%s0 + $0x8] sm:$0xff]
  %v32 = vld [vmem:[%s0 + $0x10] sm:$0xff]
  %v33 = vld [vmem:[%s0 + $0x18] sm:$0xff]
  %v34 = vld [vmem:[%s0 + $0x20] sm:$0xff]
  %v35 = vld [vmem:[%s0 + $0x28] sm:$0xff]
  %v36 = vld [vmem:[%s0 + $0x30] sm:$0xff]
  %v37 = vld [vmem:[%s0 + $0x38] sm:$0xff]
  %v38 = vld [vmem:[%s0 + $0x40] sm:$0xff]
  %v39 = vld [vmem:[%s0 + $0x48] sm:$0xff]
  %v40 = vld [vmem:[%s0 + $0x50] sm:$0xff]
  %v41 = vld [vmem:[%s0 + $0x58] sm:$0xff]
  %v42 = vld [vmem:[%s0 + $0x60] sm:$0xff]
  %v43 = vld [vmem:[%s0 + $0x68] sm:$0xff]
  %v44 = vld [vmem:[%s0 + $0x70] sm:$0xff]
  %v45 = vld [vmem:[%s0 + $0x78] sm:$0xff]
  %vm46 = vcmask 130048
  %v47 = vsel %vm46, %v30, 0.0
  %48 = vadd.xlane.f32.xlu0 %v47
  %v49 = vpop.xlane.xlu0 %48
  %v50 = vsel %vm46, %v31, 0.0
  %51 = vadd.xlane.f32.xlu0 %v50
  %v52 = vpop.xlane.xlu0 %51
  %v53 = vsel %vm46, %v32, 0.0
  %54 = vadd.xlane.f32.xlu0 %v53
  %v55 = vpop.xlane.xlu0 %54
  %v56 = vsel %vm46, %v33, 0.0
  %57 = vadd.xlane.f32.xlu0 %v56
  %v58 = vpop.xlane.xlu0 %57
  %v59 = vsel %vm46, %v34, 0.0
  %60 = vadd.xlane.f32.xlu0 %v59
  %v61 = vpop.xlane.xlu0 %60
  %v62 = vsel %vm46, %v35, 0.0
  %63 = vadd.xlane.f32.xlu0 %v62
  %v64 = vpop.xlane.xlu0 %63
  %v65 = vsel %vm46, %v36, 0.0
  %66 = vadd.xlane.f32.xlu0 %v65
  %v67 = vpop.xlane.xlu0 %66
  %v68 = vsel %vm46, %v37, 0.0
  %69 = vadd.xlane.f32.xlu0 %v68
  %v70 = vpop.xlane.xlu0 %69
  %v71 = vsel %vm46, %v38, 0.0
  %72 = vadd.xlane.f32.xlu0 %v71
  %v73 = vpop.xlane.xlu0 %72
  %v74 = vsel %vm46, %v39, 0.0
  %75 = vadd.xlane.f32.xlu0 %v74
  %v76 = vpop.xlane.xlu0 %75
  %v77 = vsel %vm46, %v40, 0.0
  %78 = vadd.xlane.f32.xlu0 %v77
  %v79 = vpop.xlane.xlu0 %78
  %v80 = vsel %vm46, %v41, 0.0
  %81 = vadd.xlane.f32.xlu0 %v80
  %v82 = vpop.xlane.xlu0 %81
  %v83 = vsel %vm46, %v42, 0.0
  %84 = vadd.xlane.f32.xlu0 %v83
  %v85 = vpop.xlane.xlu0 %84
  %v86 = vsel %vm46, %v43, 0.0
  %87 = vadd.xlane.f32.xlu0 %v86
  %v88 = vpop.xlane.xlu0 %87
  %v89 = vsel %vm46, %v44, 0.0
  %90 = vadd.xlane.f32.xlu0 %v89
  %v91 = vpop.xlane.xlu0 %90
  %v92 = vsel %vm46, %v45, 0.0
  %93 = vadd.xlane.f32.xlu0 %v92
  %v94 = vpop.xlane.xlu0 %93
  %v95 = vrcp.pop 16.0
  %v96 = vmul.f32 16.0, %v95
  %v97 = vsub.f32 1.0, %v96
  %v98 = vmul.f32 %v95, %v97
  %v99 = vadd.f32 %v95, %v98
  %vm100 = vweird.f32 %v95
  %v101 = vsel %vm100, %v95, %v99
  %v102 = vmul.f32 %v49, %v101
  %v103 = vmul.f32 %v52, %v101
  %v104 = vmul.f32 %v55, %v101
  %v105 = vmul.f32 %v58, %v101
  %v106 = vmul.f32 %v61, %v101
  %v107 = vmul.f32 %v64, %v101
  %v108 = vmul.f32 %v67, %v101
  %v109 = vmul.f32 %v70, %v101
  %v110 = vmul.f32 %v73, %v101
  %v111 = vmul.f32 %v76, %v101
  %v112 = vmul.f32 %v79, %v101
  %v113 = vmul.f32 %v82, %v101
  %v114 = vmul.f32 %v85, %v101
  %v115 = vmul.f32 %v88, %v101
  %v116 = vmul.f32 %v91, %v101
  %v117 = vmul.f32 %v94, %v101
  %v118 = vsub.f32 %v30, %v102
  %v119 = vsub.f32 %v31, %v103
  %v120 = vsub.f32 %v32, %v104
  %v121 = vsub.f32 %v33, %v105
  %v122 = vsub.f32 %v34, %v106
  %v123 = vsub.f32 %v35, %v107
  %v124 = vsub.f32 %v36, %v108
  %v125 = vsub.f32 %v37, %v109
  %v126 = vsub.f32 %v38, %v110
  %v127 = vsub.f32 %v39, %v111
  %v128 = vsub.f32 %v40, %v112
  %v129 = vsub.f32 %v41, %v113
  %v130 = vsub.f32 %v42, %v114
  %v131 = vsub.f32 %v43, %v115
  %v132 = vsub.f32 %v44, %v116
  %v133 = vsub.f32 %v45, %v117
  %v134 = vmul.f32 %v118, %v118
  %v135 = vmul.f32 %v119, %v119
  %v136 = vmul.f32 %v120, %v120
  %v137 = vmul.f32 %v121, %v121
  %v138 = vmul.f32 %v122, %v122
  %v139 = vmul.f32 %v123, %v123
  %v140 = vmul.f32 %v124, %v124
  %v141 = vmul.f32 %v125, %v125
  %v142 = vmul.f32 %v126, %v126
  %v143 = vmul.f32 %v127, %v127
  %v144 = vmul.f32 %v128, %v128
  %v145 = vmul.f32 %v129, %v129
  %v146 = vmul.f32 %v130, %v130
  %v147 = vmul.f32 %v131, %v131
  %v148 = vmul.f32 %v132, %v132
  %v149 = vmul.f32 %v133, %v133
  %v150 = vsel %vm46, %v134, 0.0
  %151 = vadd.xlane.f32.xlu0 %v150
  %v152 = vpop.xlane.xlu0 %151
  %v153 = vsel %vm46, %v135, 0.0
  %154 = vadd.xlane.f32.xlu0 %v153
  %v155 = vpop.xlane.xlu0 %154
  %v156 = vsel %vm46, %v136, 0.0
  %157 = vadd.xlane.f32.xlu0 %v156
  %v158 = vpop.xlane.xlu0 %157
  %v159 = vsel %vm46, %v137, 0.0
  %160 = vadd.xlane.f32.xlu0 %v159
  %v161 = vpop.xlane.xlu0 %160
  %v162 = vsel %vm46, %v138, 0.0
  %163 = vadd.xlane.f32.xlu0 %v162
  %v164 = vpop.xlane.xlu0 %163
  %v165 = vsel %vm46, %v139, 0.0
  %166 = vadd.xlane.f32.xlu0 %v165
  %v167 = vpop.xlane.xlu0 %166
  %v168 = vsel %vm46, %v140, 0.0
  %169 = vadd.xlane.f32.xlu0 %v168
  %v170 = vpop.xlane.xlu0 %169
  %v171 = vsel %vm46, %v141, 0.0
  %172 = vadd.xlane.f32.xlu0 %v171
  %v173 = vpop.xlane.xlu0 %172
  %v174 = vsel %vm46, %v142, 0.0
  %175 = vadd.xlane.f32.xlu0 %v174
  %v176 = vpop.xlane.xlu0 %175
  %v177 = vsel %vm46, %v143, 0.0
  %178 = vadd.xlane.f32.xlu0 %v177
  %v179 = vpop.xlane.xlu0 %178
  %v180 = vsel %vm46, %v144, 0.0
  %181 = vadd.xlane.f32.xlu0 %v180
  %v182 = vpop.xlane.xlu0 %181
  %v183 = vsel %vm46, %v145, 0.0
  %184 = vadd.xlane.f32.xlu0 %v183
  %v185 = vpop.xlane.xlu0 %184
  %v186 = vsel %vm46, %v146, 0.0
  %187 = vadd.xlane.f32.xlu0 %v186
  %v188 = vpop.xlane.xlu0 %187
  %v189 = vsel %vm46, %v147, 0.0
  %190 = vadd.xlane.f32.xlu0 %v189
  %v191 = vpop.xlane.xlu0 %190
  %v192 = vsel %vm46, %v148, 0.0
  %193 = vadd.xlane.f32.xlu0 %v192
  %v194 = vpop.xlane.xlu0 %193
  %v195 = vsel %vm46, %v149, 0.0
  %196 = vadd.xlane.f32.xlu0 %v195
  %v197 = vpop.xlane.xlu0 %196
  %v198 = vmul.f32 %v152, %v101
  %v199 = vmul.f32 %v155, %v101
  %v200 = vmul.f32 %v158, %v101
  %v201 = vmul.f32 %v161, %v101
  %v202 = vmul.f32 %v164, %v101
  %v203 = vmul.f32 %v167, %v101
  %v204 = vmul.f32 %v170, %v101
  %v205 = vmul.f32 %v173, %v101
  %v206 = vmul.f32 %v176, %v101
  %v207 = vmul.f32 %v179, %v101
  %v208 = vmul.f32 %v182, %v101
  %v209 = vmul.f32 %v185, %v101
  %v210 = vmul.f32 %v188, %v101
  %v211 = vmul.f32 %v191, %v101
  %v212 = vmul.f32 %v194, %v101
  %v213 = vmul.f32 %v197, %v101
  %v214 = vadd.f32 %v198, 1e-05
  %v215 = vadd.f32 %v199, 1e-05
  %v216 = vadd.f32 %v200, 1e-05
  %v217 = vadd.f32 %v201, 1e-05
  %v218 = vadd.f32 %v202, 1e-05
  %v219 = vadd.f32 %v203, 1e-05
  %v220 = vadd.f32 %v204, 1e-05
  %v221 = vadd.f32 %v205, 1e-05
  %v222 = vadd.f32 %v206, 1e-05
  %v223 = vadd.f32 %v207, 1e-05
  %v224 = vadd.f32 %v208, 1e-05
  %v225 = vadd.f32 %v209, 1e-05
  %v226 = vadd.f32 %v210, 1e-05
  %v227 = vadd.f32 %v211, 1e-05
  %v228 = vadd.f32 %v212, 1e-05
  %v229 = vadd.f32 %v213, 1e-05
  %v230 = vrsqrt.pop %v214
  %v231 = vmul.f32 %v230, %v214
  %v232 = vmul.f32 %v231, %v230
  %v233 = vmul.f32 0.5, %v232
  %v234 = vsub.f32 1.5, %v233
  %v235 = vmul.f32 %v230, %v234
  %vm236 = vweird.f32 %v214
  %vm237 = vweird.f32 %v230
  %vm238 = vmor %vm236, %vm237
  %v239 = vsel %vm238, %v230, %v235
  %v240 = vrsqrt.pop %v215
  %v241 = vmul.f32 %v240, %v215
  %v242 = vmul.f32 %v241, %v240
  %v243 = vmul.f32 0.5, %v242
  %v244 = vsub.f32 1.5, %v243
  %v245 = vmul.f32 %v240, %v244
  %vm246 = vweird.f32 %v215
  %vm247 = vweird.f32 %v240
  %vm248 = vmor %vm246, %vm247
  %v249 = vsel %vm248, %v240, %v245
  %v250 = vrsqrt.pop %v216
  %v251 = vmul.f32 %v250, %v216
  %v252 = vmul.f32 %v251, %v250
  %v253 = vmul.f32 0.5, %v252
  %v254 = vsub.f32 1.5, %v253
  %v255 = vmul.f32 %v250, %v254
  %vm256 = vweird.f32 %v216
  %vm257 = vweird.f32 %v250
  %vm258 = vmor %vm256, %vm257
  %v259 = vsel %vm258, %v250, %v255
  %v260 = vrsqrt.pop %v217
  %v261 = vmul.f32 %v260, %v217
  %v262 = vmul.f32 %v261, %v260
  %v263 = vmul.f32 0.5, %v262
  %v264 = vsub.f32 1.5, %v263
  %v265 = vmul.f32 %v260, %v264
  %vm266 = vweird.f32 %v217
  %vm267 = vweird.f32 %v260
  %vm268 = vmor %vm266, %vm267
  %v269 = vsel %vm268, %v260, %v265
  %v270 = vrsqrt.pop %v218
  %v271 = vmul.f32 %v270, %v218
  %v272 = vmul.f32 %v271, %v270
  %v273 = vmul.f32 0.5, %v272
  %v274 = vsub.f32 1.5, %v273
  %v275 = vmul.f32 %v270, %v274
  %vm276 = vweird.f32 %v218
  %vm277 = vweird.f32 %v270
  %vm278 = vmor %vm276, %vm277
  %v279 = vsel %vm278, %v270, %v275
  %v280 = vrsqrt.pop %v219
  %v281 = vmul.f32 %v280, %v219
  %v282 = vmul.f32 %v281, %v280
  %v283 = vmul.f32 0.5, %v282
  %v284 = vsub.f32 1.5, %v283
  %v285 = vmul.f32 %v280, %v284
  %vm286 = vweird.f32 %v219
  %vm287 = vweird.f32 %v280
  %vm288 = vmor %vm286, %vm287
  %v289 = vsel %vm288, %v280, %v285
  %v290 = vrsqrt.pop %v220
  %v291 = vmul.f32 %v290, %v220
  %v292 = vmul.f32 %v291, %v290
  %v293 = vmul.f32 0.5, %v292
  %v294 = vsub.f32 1.5, %v293
  %v295 = vmul.f32 %v290, %v294
  %vm296 = vweird.f32 %v220
  %vm297 = vweird.f32 %v290
  %vm298 = vmor %vm296, %vm297
  %v299 = vsel %vm298, %v290, %v295
  %v300 = vrsqrt.pop %v221
  %v301 = vmul.f32 %v300, %v221
  %v302 = vmul.f32 %v301, %v300
  %v303 = vmul.f32 0.5, %v302
  %v304 = vsub.f32 1.5, %v303
  %v305 = vmul.f32 %v300, %v304
  %vm306 = vweird.f32 %v221
  %vm307 = vweird.f32 %v300
  %vm308 = vmor %vm306, %vm307
  %v309 = vsel %vm308, %v300, %v305
  %v310 = vrsqrt.pop %v222
  %v311 = vmul.f32 %v310, %v222
  %v312 = vmul.f32 %v311, %v310
  %v313 = vmul.f32 0.5, %v312
  %v314 = vsub.f32 1.5, %v313
  %v315 = vmul.f32 %v310, %v314
  %vm316 = vweird.f32 %v222
  %vm317 = vweird.f32 %v310
  %vm318 = vmor %vm316, %vm317
  %v319 = vsel %vm318, %v310, %v315
  %v320 = vrsqrt.pop %v223
  %v321 = vmul.f32 %v320, %v223
  %v322 = vmul.f32 %v321, %v320
  %v323 = vmul.f32 0.5, %v322
  %v324 = vsub.f32 1.5, %v323
  %v325 = vmul.f32 %v320, %v324
  %vm326 = vweird.f32 %v223
  %vm327 = vweird.f32 %v320
  %vm328 = vmor %vm326, %vm327
  %v329 = vsel %vm328, %v320, %v325
  %v330 = vrsqrt.pop %v224
  %v331 = vmul.f32 %v330, %v224
  %v332 = vmul.f32 %v331, %v330
  %v333 = vmul.f32 0.5, %v332
  %v334 = vsub.f32 1.5, %v333
  %v335 = vmul.f32 %v330, %v334
  %vm336 = vweird.f32 %v224
  %vm337 = vweird.f32 %v330
  %vm338 = vmor %vm336, %vm337
  %v339 = vsel %vm338, %v330, %v335
  %v340 = vrsqrt.pop %v225
  %v341 = vmul.f32 %v340, %v225
  %v342 = vmul.f32 %v341, %v340
  %v343 = vmul.f32 0.5, %v342
  %v344 = vsub.f32 1.5, %v343
  %v345 = vmul.f32 %v340, %v344
  %vm346 = vweird.f32 %v225
  %vm347 = vweird.f32 %v340
  %vm348 = vmor %vm346, %vm347
  %v349 = vsel %vm348, %v340, %v345
  %v350 = vrsqrt.pop %v226
  %v351 = vmul.f32 %v350, %v226
  %v352 = vmul.f32 %v351, %v350
  %v353 = vmul.f32 0.5, %v352
  %v354 = vsub.f32 1.5, %v353
  %v355 = vmul.f32 %v350, %v354
  %vm356 = vweird.f32 %v226
  %vm357 = vweird.f32 %v350
  %vm358 = vmor %vm356, %vm357
  %v359 = vsel %vm358, %v350, %v355
  %v360 = vrsqrt.pop %v227
  %v361 = vmul.f32 %v360, %v227
  %v362 = vmul.f32 %v361, %v360
  %v363 = vmul.f32 0.5, %v362
  %v364 = vsub.f32 1.5, %v363
  %v365 = vmul.f32 %v360, %v364
  %vm366 = vweird.f32 %v227
  %vm367 = vweird.f32 %v360
  %vm368 = vmor %vm366, %vm367
  %v369 = vsel %vm368, %v360, %v365
  %v370 = vrsqrt.pop %v228
  %v371 = vmul.f32 %v370, %v228
  %v372 = vmul.f32 %v371, %v370
  %v373 = vmul.f32 0.5, %v372
  %v374 = vsub.f32 1.5, %v373
  %v375 = vmul.f32 %v370, %v374
  %vm376 = vweird.f32 %v228
  %vm377 = vweird.f32 %v370
  %vm378 = vmor %vm376, %vm377
  %v379 = vsel %vm378, %v370, %v375
  %v380 = vrsqrt.pop %v229
  %v381 = vmul.f32 %v380, %v229
  %v382 = vmul.f32 %v381, %v380
  %v383 = vmul.f32 0.5, %v382
  %v384 = vsub.f32 1.5, %v383
  %v385 = vmul.f32 %v380, %v384
  %vm386 = vweird.f32 %v229
  %vm387 = vweird.f32 %v380
  %vm388 = vmor %vm386, %vm387
  %v389 = vsel %vm388, %v380, %v385
  %v390 = vmul.f32 %v118, %v239
  %v391 = vmul.f32 %v119, %v249
  %v392 = vmul.f32 %v120, %v259
  %v393 = vmul.f32 %v121, %v269
  %v394 = vmul.f32 %v122, %v279
  %v395 = vmul.f32 %v123, %v289
  %v396 = vmul.f32 %v124, %v299
  %v397 = vmul.f32 %v125, %v309
  %v398 = vmul.f32 %v126, %v319
  %v399 = vmul.f32 %v127, %v329
  %v400 = vmul.f32 %v128, %v339
  %v401 = vmul.f32 %v129, %v349
  %v402 = vmul.f32 %v130, %v359
  %v403 = vmul.f32 %v131, %v369
  %v404 = vmul.f32 %v132, %v379
  %v405 = vmul.f32 %v133, %v389
  %v406 = vld [vmem:[%s2] sm:$0x1]
  %v408 = vperm.slane %v406, 0
  %v410 = vmul.f32 %v390, %v408
  %v411 = vmul.f32 %v391, %v408
  %v412 = vmul.f32 %v392, %v408
  %v413 = vmul.f32 %v393, %v408
  %v414 = vmul.f32 %v394, %v408
  %v415 = vmul.f32 %v395, %v408
  %v416 = vmul.f32 %v396, %v408
  %v417 = vmul.f32 %v397, %v408
  %v418 = vmul.f32 %v398, %v408
  %v419 = vmul.f32 %v399, %v408
  %v420 = vmul.f32 %v400, %v408
  %v421 = vmul.f32 %v401, %v408
  %v422 = vmul.f32 %v402, %v408
  %v423 = vmul.f32 %v403, %v408
  %v424 = vmul.f32 %v404, %v408
  %v425 = vmul.f32 %v405, %v408
  %v426 = vld [vmem:[%s3] sm:$0x1]
  %v428 = vperm.slane %v426, 0
  %v430 = vadd.f32 %v410, %v428
  %v431 = vadd.f32 %v411, %v428
  %v432 = vadd.f32 %v412, %v428
  %v433 = vadd.f32 %v413, %v428
  %v434 = vadd.f32 %v414, %v428
  %v435 = vadd.f32 %v415, %v428
  %v436 = vadd.f32 %v416, %v428
  %v437 = vadd.f32 %v417, %v428
  %v438 = vadd.f32 %v418, %v428
  %v439 = vadd.f32 %v419, %v428
  %v440 = vadd.f32 %v420, %v428
  %v441 = vadd.f32 %v421, %v428
  %v442 = vadd.f32 %v422, %v428
  %v443 = vadd.f32 %v423, %v428
  %v444 = vadd.f32 %v424, %v428
  %v445 = vadd.f32 %v425, %v428
  %v446 = vpack.c.bf16 %v431, %v430
  %v447 = vpack.c.bf16 %v433, %v432
  %v448 = vpack.c.bf16 %v435, %v434
  %v449 = vpack.c.bf16 %v437, %v436
  %v450 = vpack.c.bf16 %v439, %v438
  %v451 = vpack.c.bf16 %v441, %v440
  %v452 = vpack.c.bf16 %v443, %v442
  %v453 = vpack.c.bf16 %v445, %v444
  %v454 = vld [vmem:[%s4] sm:$0xf]
  %v455 = vld [vmem:[%s4 + $0x4] sm:$0xf]
  %v456 = vld [vmem:[%s5] sm:$0x1]
  %v458 = vperm.slane %v456, 0
  %v462 = vunpack.c.l.b16 %v454
  %v463 = vunpack.c.l.b16 %v455
  %v464 = vpack.c.b16 %v463, %v462
  %v467 = vsel %vm46, %v446, 0
  %v470 = vsel %vm46, %v447, 0
  %v473 = vsel %vm46, %v448, 0
  %v476 = vsel %vm46, %v449, 0
  %v479 = vsel %vm46, %v450, 0
  %v482 = vsel %vm46, %v451, 0
  %v485 = vsel %vm46, %v452, 0
  %v488 = vsel %vm46, %v453, 0
  %490 = vmatpush.bf16.msra.mxu0 0
  %491 = vmatpush.bf16.msra.mxu0 0
  %492 = vmatpush.bf16.msra.mxu0 0
  %493 = vmatpush.bf16.msra.mxu0 0
  %494 = vmatpush.bf16.msra.mxu0 0
  %495 = vmatpush.bf16.msra.mxu0 0
  %496 = vmatpush.bf16.msra.mxu0 0
  %497 = vmatpush.bf16.msra.mxu0 %v464
  %498 = vmatmul.bf16.gmra.mxu0 %v467
  %v499 = vpop.f32.mrf.mxu0
  %v500 = vadd.f32 %v458, %v499
  %v501 = vpop.f32.mrf.mxu0
  %v502 = vadd.f32 %v458, %v501
  %503 = vmatmul.bf16.gmra.mxu0 %v470
  %v504 = vpop.f32.mrf.mxu0
  %v505 = vadd.f32 %v458, %v504
  %v506 = vpop.f32.mrf.mxu0
  %v507 = vadd.f32 %v458, %v506
  %508 = vmatmul.bf16.gmra.mxu0 %v473
  %v509 = vpop.f32.mrf.mxu0
  %v510 = vadd.f32 %v458, %v509
  %v511 = vpop.f32.mrf.mxu0
  %v512 = vadd.f32 %v458, %v511
  %513 = vmatmul.bf16.gmra.mxu0 %v476
  %v514 = vpop.f32.mrf.mxu0
  %v515 = vadd.f32 %v458, %v514
  %v516 = vpop.f32.mrf.mxu0
  %v517 = vadd.f32 %v458, %v516
  %518 = vmatmul.bf16.gmra.mxu0 %v479
  %v519 = vpop.f32.mrf.mxu0
  %v520 = vadd.f32 %v458, %v519
  %v521 = vpop.f32.mrf.mxu0
  %v522 = vadd.f32 %v458, %v521
  %523 = vmatmul.bf16.gmra.mxu0 %v482
  %v524 = vpop.f32.mrf.mxu0
  %v525 = vadd.f32 %v458, %v524
  %v526 = vpop.f32.mrf.mxu0
  %v527 = vadd.f32 %v458, %v526
  %528 = vmatmul.bf16.gmra.mxu0 %v485
  %v529 = vpop.f32.mrf.mxu0
  %v530 = vadd.f32 %v458, %v529
  %v531 = vpop.f32.mrf.mxu0
  %v532 = vadd.f32 %v458, %v531
  %533 = vmatmul.bf16.gmra.mxu0 %v488
  %v534 = vpop.f32.mrf.mxu0
  %v535 = vadd.f32 %v458, %v534
  %v536 = vpop.f32.mrf.mxu0
  %v537 = vadd.f32 %v458, %v536
  %538 = vdwg.mxu0
  %v539 = vmax.f32 %v500, 0.0
  %v540 = vmax.f32 %v502, 0.0
  %v541 = vmax.f32 %v505, 0.0
  %v542 = vmax.f32 %v507, 0.0
  %v543 = vmax.f32 %v510, 0.0
  %v544 = vmax.f32 %v512, 0.0
  %v545 = vmax.f32 %v515, 0.0
  %v546 = vmax.f32 %v517, 0.0
  %v547 = vmax.f32 %v520, 0.0
  %v548 = vmax.f32 %v522, 0.0
  %v549 = vmax.f32 %v525, 0.0
  %v550 = vmax.f32 %v527, 0.0
  %v551 = vmax.f32 %v530, 0.0
  %v552 = vmax.f32 %v532, 0.0
  %v553 = vmax.f32 %v535, 0.0
  %v554 = vmax.f32 %v537, 0.0
  %v555 = vpack.c.bf16 %v540, %v539
  %v556 = vpack.c.bf16 %v542, %v541
  %v557 = vpack.c.bf16 %v544, %v543
  %v558 = vpack.c.bf16 %v546, %v545
  %v559 = vpack.c.bf16 %v548, %v547
  %v560 = vpack.c.bf16 %v550, %v549
  %v561 = vpack.c.bf16 %v552, %v551
  %v562 = vpack.c.bf16 %v554, %v553
  %v563 = vld [vmem:[%s6] sm:$0xf]
  %v564 = vld [vmem:[%s6 + $0x4] sm:$0xf]
  %v565 = vld [vmem:[%s6 + $0x8] sm:$0xf]
  %v566 = vld [vmem:[%s6 + $0xc] sm:$0xf]
  %v567 = vld [vmem:[%s7] sm:$0x1]
  %v569 = vperm.slane %v567, 0
  %v575 = vunpack.c.l.b16 %v563
  %v576 = vunpack.c.l.b16 %v564
  %v577 = vunpack.c.l.b16 %v565
  %v578 = vunpack.c.l.b16 %v566
  %v579 = vpack.c.b16 %v576, %v575
  %v580 = vpack.c.b16 %v578, %v577
  %vm583 = vcmask 261120
  %v585 = vsel %vm583, %v555, 0
  %v588 = vsel %vm583, %v556, 0
  %v591 = vsel %vm583, %v557, 0
  %v594 = vsel %vm583, %v558, 0
  %v597 = vsel %vm583, %v559, 0
  %v600 = vsel %vm583, %v560, 0
  %v603 = vsel %vm583, %v561, 0
  %v606 = vsel %vm583, %v562, 0
  %608 = vmatpush.bf16.msra.mxu0 0
  %609 = vmatpush.bf16.msra.mxu0 0
  %610 = vmatpush.bf16.msra.mxu0 0
  %611 = vmatpush.bf16.msra.mxu0 0
  %612 = vmatpush.bf16.msra.mxu0 0
  %613 = vmatpush.bf16.msra.mxu0 0
  %614 = vmatpush.bf16.msra.mxu0 %v580
  %615 = vmatpush.bf16.msra.mxu0 %v579
  %616 = vmatmul.bf16.gmra.mxu0 %v585
  %v617 = vpop.f32.mrf.mxu0
  %v618 = vadd.f32 %v569, %v617
  %v619 = vpop.f32.mrf.mxu0
  %v620 = vadd.f32 %v569, %v619
  %621 = vmatmul.bf16.gmra.mxu0 %v588
  %v622 = vpop.f32.mrf.mxu0
  %v623 = vadd.f32 %v569, %v622
  %v624 = vpop.f32.mrf.mxu0
  %v625 = vadd.f32 %v569, %v624
  %626 = vmatmul.bf16.gmra.mxu0 %v591
  %v627 = vpop.f32.mrf.mxu0
  %v628 = vadd.f32 %v569, %v627
  %v629 = vpop.f32.mrf.mxu0
  %v630 = vadd.f32 %v569, %v629
  %631 = vmatmul.bf16.gmra.mxu0 %v594
  %v632 = vpop.f32.mrf.mxu0
  %v633 = vadd.f32 %v569, %v632
  %v634 = vpop.f32.mrf.mxu0
  %v635 = vadd.f32 %v569, %v634
  %636 = vmatmul.bf16.gmra.mxu0 %v597
  %v637 = vpop.f32.mrf.mxu0
  %v638 = vadd.f32 %v569, %v637
  %v639 = vpop.f32.mrf.mxu0
  %v640 = vadd.f32 %v569, %v639
  %641 = vmatmul.bf16.gmra.mxu0 %v600
  %v642 = vpop.f32.mrf.mxu0
  %v643 = vadd.f32 %v569, %v642
  %v644 = vpop.f32.mrf.mxu0
  %v645 = vadd.f32 %v569, %v644
  %646 = vmatmul.bf16.gmra.mxu0 %v603
  %v647 = vpop.f32.mrf.mxu0
  %v648 = vadd.f32 %v569, %v647
  %v649 = vpop.f32.mrf.mxu0
  %v650 = vadd.f32 %v569, %v649
  %651 = vmatmul.bf16.gmra.mxu0 %v606
  %v652 = vpop.f32.mrf.mxu0
  %v653 = vadd.f32 %v569, %v652
  %v654 = vpop.f32.mrf.mxu0
  %v655 = vadd.f32 %v569, %v654
  %656 = vdwg.mxu0
  %v657 = vld [vmem:[%s1] sm:$0xff]
  %v658 = vld [vmem:[%s1 + $0x8] sm:$0xff]
  %v659 = vld [vmem:[%s1 + $0x10] sm:$0xff]
  %v660 = vld [vmem:[%s1 + $0x18] sm:$0xff]
  %v661 = vld [vmem:[%s1 + $0x20] sm:$0xff]
  %v662 = vld [vmem:[%s1 + $0x28] sm:$0xff]
  %v663 = vld [vmem:[%s1 + $0x30] sm:$0xff]
  %v664 = vld [vmem:[%s1 + $0x38] sm:$0xff]
  %v665 = vld [vmem:[%s1 + $0x40] sm:$0xff]
  %v666 = vld [vmem:[%s1 + $0x48] sm:$0xff]
  %v667 = vld [vmem:[%s1 + $0x50] sm:$0xff]
  %v668 = vld [vmem:[%s1 + $0x58] sm:$0xff]
  %v669 = vld [vmem:[%s1 + $0x60] sm:$0xff]
  %v670 = vld [vmem:[%s1 + $0x68] sm:$0xff]
  %v671 = vld [vmem:[%s1 + $0x70] sm:$0xff]
  %v672 = vld [vmem:[%s1 + $0x78] sm:$0xff]
  %674 = vset.pattern.permute.xlu0 0
  %675 = vperm.xlu0 %674, %v657
  %v676 = vpop.permute.xlu0 %675
  %679 = vset.pattern.permute.xlu0 0
  %680 = vperm.xlu0 %679, %v658
  %v681 = vpop.permute.xlu0 %680
  %684 = vset.pattern.permute.xlu0 0
  %685 = vperm.xlu0 %684, %v659
  %v686 = vpop.permute.xlu0 %685
  %689 = vset.pattern.permute.xlu0 0
  %690 = vperm.xlu0 %689, %v660
  %v691 = vpop.permute.xlu0 %690
  %694 = vset.pattern.permute.xlu0 0
  %695 = vperm.xlu0 %694, %v661
  %v696 = vpop.permute.xlu0 %695
  %699 = vset.pattern.permute.xlu0 0
  %700 = vperm.xlu0 %699, %v662
  %v701 = vpop.permute.xlu0 %700
  %704 = vset.pattern.permute.xlu0 0
  %705 = vperm.xlu0 %704, %v663
  %v706 = vpop.permute.xlu0 %705
  %709 = vset.pattern.permute.xlu0 0
  %710 = vperm.xlu0 %709, %v664
  %v711 = vpop.permute.xlu0 %710
  %714 = vset.pattern.permute.xlu0 0
  %715 = vperm.xlu0 %714, %v665
  %v716 = vpop.permute.xlu0 %715
  %719 = vset.pattern.permute.xlu0 0
  %720 = vperm.xlu0 %719, %v666
  %v721 = vpop.permute.xlu0 %720
  %724 = vset.pattern.permute.xlu0 0
  %725 = vperm.xlu0 %724, %v667
  %v726 = vpop.permute.xlu0 %725
  %729 = vset.pattern.permute.xlu0 0
  %730 = vperm.xlu0 %729, %v668
  %v731 = vpop.permute.xlu0 %730
  %734 = vset.pattern.permute.xlu0 0
  %735 = vperm.xlu0 %734, %v669
  %v736 = vpop.permute.xlu0 %735
  %739 = vset.pattern.permute.xlu0 0
  %740 = vperm.xlu0 %739, %v670
  %v741 = vpop.permute.xlu0 %740
  %744 = vset.pattern.permute.xlu0 0
  %745 = vperm.xlu0 %744, %v671
  %v746 = vpop.permute.xlu0 %745
  %749 = vset.pattern.permute.xlu0 0
  %750 = vperm.xlu0 %749, %v672
  %v751 = vpop.permute.xlu0 %750
  %v753 = vmul.f32 %v618, %v676
  %v754 = vmul.f32 %v620, %v681
  %v755 = vmul.f32 %v623, %v686
  %v756 = vmul.f32 %v625, %v691
  %v757 = vmul.f32 %v628, %v696
  %v758 = vmul.f32 %v630, %v701
  %v759 = vmul.f32 %v633, %v706
  %v760 = vmul.f32 %v635, %v711
  %v761 = vmul.f32 %v638, %v716
  %v762 = vmul.f32 %v640, %v721
  %v763 = vmul.f32 %v643, %v726
  %v764 = vmul.f32 %v645, %v731
  %v765 = vmul.f32 %v648, %v736
  %v766 = vmul.f32 %v650, %v741
  %v767 = vmul.f32 %v653, %v746
  %v768 = vmul.f32 %v655, %v751
  %v769 = vadd.f32 %v30, %v753
  %v770 = vadd.f32 %v31, %v754
  %v771 = vadd.f32 %v32, %v755
  %v772 = vadd.f32 %v33, %v756
  %v773 = vadd.f32 %v34, %v757
  %v774 = vadd.f32 %v35, %v758
  %v775 = vadd.f32 %v36, %v759
  %v776 = vadd.f32 %v37, %v760
  %v777 = vadd.f32 %v38, %v761
  %v778 = vadd.f32 %v39, %v762
  %v779 = vadd.f32 %v40, %v763
  %v780 = vadd.f32 %v41, %v764
  %v781 = vadd.f32 %v42, %v765
  %v782 = vadd.f32 %v43, %v766
  %v783 = vadd.f32 %v44, %v767
  %v784 = vadd.f32 %v45, %v768
  %v785 = vmul.f32 %v769, %v676
  %v786 = vmul.f32 %v770, %v681
  %v787 = vmul.f32 %v771, %v686
  %v788 = vmul.f32 %v772, %v691
  %v789 = vmul.f32 %v773, %v696
  %v790 = vmul.f32 %v774, %v701
  %v791 = vmul.f32 %v775, %v706
  %v792 = vmul.f32 %v776, %v711
  %v793 = vmul.f32 %v777, %v716
  %v794 = vmul.f32 %v778, %v721
  %v795 = vmul.f32 %v779, %v726
  %v796 = vmul.f32 %v780, %v731
  %v797 = vmul.f32 %v781, %v736
  %v798 = vmul.f32 %v782, %v741
  %v799 = vmul.f32 %v783, %v746
  %v800 = vmul.f32 %v784, %v751
  %801 = vst.msk [vmem:[%s8] sm:$0xff] %vm46, %v785
  %802 = vst.msk [vmem:[%s8 + $0x8] sm:$0xff] %vm46, %v786
  %803 = vst.msk [vmem:[%s8 + $0x10] sm:$0xff] %vm46, %v787
  %804 = vst.msk [vmem:[%s8 + $0x18] sm:$0xff] %vm46, %v788
  %805 = vst.msk [vmem:[%s8 + $0x20] sm:$0xff] %vm46, %v789
  %806 = vst.msk [vmem:[%s8 + $0x28] sm:$0xff] %vm46, %v790
  %807 = vst.msk [vmem:[%s8 + $0x30] sm:$0xff] %vm46, %v791
  %808 = vst.msk [vmem:[%s8 + $0x38] sm:$0xff] %vm46, %v792
  %809 = vst.msk [vmem:[%s8 + $0x40] sm:$0xff] %vm46, %v793
  %810 = vst.msk [vmem:[%s8 + $0x48] sm:$0xff] %vm46, %v794
  %811 = vst.msk [vmem:[%s8 + $0x50] sm:$0xff] %vm46, %v795
  %812 = vst.msk [vmem:[%s8 + $0x58] sm:$0xff] %vm46, %v796
  %813 = vst.msk [vmem:[%s8 + $0x60] sm:$0xff] %vm46, %v797
  %814 = vst.msk [vmem:[%s8 + $0x68] sm:$0xff] %vm46, %v798
  %815 = vst.msk [vmem:[%s8 + $0x70] sm:$0xff] %vm46, %v799
  %816 = vst.msk [vmem:[%s8 + $0x78] sm:$0xff] %vm46, %v800
  // Predicated region
  $region34: #{forward.47} parent=0 // pred_check
    _
  $region35: #{forward.47} parent=0 // pred_check_branch
    %818 = sbr.rel (0) target = $region37
  $region36: #{forward.47} parent=0 // pred_region
    _
  $region37: #{forward.47} parent=0 // pred_fallthru
    _
  // Predicated region
  $region38: #{forward.47} parent=0 // pred_check
    _
  $region39: #{forward.47} parent=0 // pred_check_branch
    %820 = sbr.rel (0) target = $region41
  $region40: #{forward.47} parent=0 // pred_region
    _
  $region41: #{forward.47} parent=0 // pred_fallthru
    _

// kernel: forward.48
$region0: #{forward.48}
  #allocation0 [shape = 'u32[]', space=smem, size = 0x4, offset = 0x4, fixed_abs, tag = 'smem constant byte address 0x4 - core index']
  #allocation1 [shape = 'u32[72,128]{1,0:T(1,128)}', space=vmem, size = 0x9000, scoped, tag = 'internal scratch']
  %s0 = inlined_call_operand.vmem [shape: f32[16,32], index: 0, kind: input, shape index: {}]
  %s1 = inlined_call_operand.vmem [shape: bf16[32,120], index: 1, kind: input, shape index: {}]
  %s2 = inlined_call_operand.vmem [shape: f32[1,120], index: 2, kind: input, shape index: {}]
  %s3 = inlined_call_operand.vmem [shape: f32[16,120], index: 3, kind: output, shape index: {}]
  %s4 = sld [smem:[#allocation0]]
  $region22: #{forward.48} parent=0
    _
  %s6 = ssub.s32 1, %s4
  %s7 = scalar_select 0, %s6, %s4
  // Predicated region
  $region2: #{forward.48} parent=0 // pred_check
    _
  $region3: #{forward.48} parent=0 // pred_check_branch
    %9 = sbr.rel (0) target = $region5
  $region4: #{forward.48} parent=0 // pred_region
    _
  $region5: #{forward.48} parent=0 // pred_fallthru
    _
  // Predicated region
  $region6: #{forward.48} parent=0 // pred_check
    _
  $region7: #{forward.48} parent=0 // pred_check_branch
    %11 = sbr.rel (0) target = $region9
  $region8: #{forward.48} parent=0 // pred_region
    _
  $region9: #{forward.48} parent=0 // pred_fallthru
    _
  // Predicated region
  $region10: #{forward.48} parent=0 // pred_check
    _
  $region11: #{forward.48} parent=0 // pred_check_branch
    %13 = sbr.rel (0) target = $region13
  $region12: #{forward.48} parent=0 // pred_region
    _
  $region13: #{forward.48} parent=0 // pred_fallthru
    _
  %v15 = vld [vmem:[%s0] sm:$0xff]
  %v16 = vld [vmem:[%s0 + $0x8] sm:$0xff]
  %v17 = vld [vmem:[%s1] sm:$0xf]
  %v18 = vld [vmem:[%s1 + $0x4] sm:$0xf]
  %v19 = vld [vmem:[%s1 + $0x8] sm:$0xf]
  %v20 = vld [vmem:[%s1 + $0xc] sm:$0xf]
  %v21 = vld [vmem:[%s2] sm:$0x1]
  %v22 = vpack.c.bf16 %v16, %v15
  %v24 = vperm.slane %v21, 0
  %v30 = vunpack.c.l.b16 %v17
  %v31 = vunpack.c.l.b16 %v18
  %v32 = vunpack.c.l.b16 %v19
  %v33 = vunpack.c.l.b16 %v20
  %v34 = vpack.c.b16 %v31, %v30
  %v35 = vpack.c.b16 %v33, %v32
  %vm38 = vcmask 261120
  %v40 = vsel %vm38, %v22, 0
  %42 = vmatpush.bf16.msra.mxu0 0
  %43 = vmatpush.bf16.msra.mxu0 0
  %44 = vmatpush.bf16.msra.mxu0 0
  %45 = vmatpush.bf16.msra.mxu0 0
  %46 = vmatpush.bf16.msra.mxu0 0
  %47 = vmatpush.bf16.msra.mxu0 0
  %48 = vmatpush.bf16.msra.mxu0 %v35
  %49 = vmatpush.bf16.msra.mxu0 %v34
  %50 = vmatmul.bf16.gmra.mxu0 %v40
  %v51 = vpop.f32.mrf.mxu0
  %v52 = vadd.f32 %v24, %v51
  %v53 = vpop.f32.mrf.mxu0
  %v54 = vadd.f32 %v24, %v53
  %55 = vdwg.mxu0
  %vm56 = vcmask 982016
  %57 = vst.msk [vmem:[%s3] sm:$0xff] %vm56, %v52
  %58 = vst.msk [vmem:[%s3 + $0x8] sm:$0xff] %vm56, %v54
  // Predicated region
  $region14: #{forward.48} parent=0 // pred_check
    _
  $region15: #{forward.48} parent=0 // pred_check_branch
    %60 = sbr.rel (0) target = $region17
  $region16: #{forward.48} parent=0 // pred_region
    _
  $region17: #{forward.48} parent=0 // pred_fallthru
    _
  // Predicated region
  $region18: #{forward.48} parent=0 // pred_check
    _
  $region19: #{forward.48} parent=0 // pred_check_branch
    %62 = sbr.rel (0) target = $region21
  $region20: #{forward.48} parent=0 // pred_region
    _
  $region21: #{forward.48} parent=0 // pred_fallthru
    _

// kernel: forward.49
$region0: #{forward.49}
  #allocation0 [shape = 'u32[]', space=smem, size = 0x4, offset = 0x4, fixed_abs, tag = 'smem constant byte address 0x4 - core index']
  #allocation1 [shape = 'u32[72,128]{1,0:T(1,128)}', space=vmem, size = 0x9000, scoped, tag = 'internal scratch']
  %s0 = inlined_call_operand.vmem [shape: f32[128,16], index: 0, kind: input, shape index: {}]
  %s1 = inlined_call_operand.vmem [shape: bf16[16,2], index: 1, kind: input, shape index: {}]
  %s2 = inlined_call_operand.vmem [shape: f32[1,2], index: 2, kind: input, shape index: {}]
  %s3 = inlined_call_operand.vmem [shape: f32[128,1], index: 3, kind: input, shape index: {}]
  %s4 = inlined_call_operand.vmem [shape: f32[128,2], index: 4, kind: output, shape index: {}]
  %s5 = sld [smem:[#allocation0]]
  $region26: #{forward.49} parent=0
    _
  %s7 = ssub.s32 1, %s5
  %s8 = scalar_select 0, %s7, %s5
  // Predicated region
  $region2: #{forward.49} parent=0 // pred_check
    _
  $region3: #{forward.49} parent=0 // pred_check_branch
    %10 = sbr.rel (0) target = $region5
  $region4: #{forward.49} parent=0 // pred_region
    _
  $region5: #{forward.49} parent=0 // pred_fallthru
    _
  // Predicated region
  $region6: #{forward.49} parent=0 // pred_check
    _
  $region7: #{forward.49} parent=0 // pred_check_branch
    %12 = sbr.rel (0) target = $region9
  $region8: #{forward.49} parent=0 // pred_region
    _
  $region9: #{forward.49} parent=0 // pred_fallthru
    _
  // Predicated region
  $region10: #{forward.49} parent=0 // pred_check
    _
  $region11: #{forward.49} parent=0 // pred_check_branch
    %14 = sbr.rel (0) target = $region13
  $region12: #{forward.49} parent=0 // pred_region
    _
  $region13: #{forward.49} parent=0 // pred_fallthru
    _
  // Predicated region
  $region14: #{forward.49} parent=0 // pred_check
    _
  $region15: #{forward.49} parent=0 // pred_check_branch
    %16 = sbr.rel (0) target = $region17
  $region16: #{forward.49} parent=0 // pred_region
    _
  $region17: #{forward.49} parent=0 // pred_fallthru
    _
  %v18 = vld [vmem:[%s0] sm:$0xff]
  %v19 = vld [vmem:[%s0 + $0x8] sm:$0xff]
  %v20 = vld [vmem:[%s0 + $0x10] sm:$0xff]
  %v21 = vld [vmem:[%s0 + $0x18] sm:$0xff]
  %v22 = vld [vmem:[%s0 + $0x20] sm:$0xff]
  %v23 = vld [vmem:[%s0 + $0x28] sm:$0xff]
  %v24 = vld [vmem:[%s0 + $0x30] sm:$0xff]
  %v25 = vld [vmem:[%s0 + $0x38] sm:$0xff]
  %v26 = vld [vmem:[%s0 + $0x40] sm:$0xff]
  %v27 = vld [vmem:[%s0 + $0x48] sm:$0xff]
  %v28 = vld [vmem:[%s0 + $0x50] sm:$0xff]
  %v29 = vld [vmem:[%s0 + $0x58] sm:$0xff]
  %v30 = vld [vmem:[%s0 + $0x60] sm:$0xff]
  %v31 = vld [vmem:[%s0 + $0x68] sm:$0xff]
  %v32 = vld [vmem:[%s0 + $0x70] sm:$0xff]
  %v33 = vld [vmem:[%s0 + $0x78] sm:$0xff]
  %v34 = vld [vmem:[%s1] sm:$0xf]
  %v35 = vld [vmem:[%s1 + $0x4] sm:$0xf]
  %v36 = vld [vmem:[%s2] sm:$0x1]
  %v37 = vpack.c.bf16 %v19, %v18
  %v38 = vpack.c.bf16 %v21, %v20
  %v39 = vpack.c.bf16 %v23, %v22
  %v40 = vpack.c.bf16 %v25, %v24
  %v41 = vpack.c.bf16 %v27, %v26
  %v42 = vpack.c.bf16 %v29, %v28
  %v43 = vpack.c.bf16 %v31, %v30
  %v44 = vpack.c.bf16 %v33, %v32
  %v46 = vperm.slane %v36, 0
  %v50 = vunpack.c.l.b16 %v34
  %v51 = vunpack.c.l.b16 %v35
  %v52 = vpack.c.b16 %v51, %v50
  %vm54 = vcmask 130048
  %v56 = vsel %vm54, %v37, 0
  %v59 = vsel %vm54, %v38, 0
  %v62 = vsel %vm54, %v39, 0
  %v65 = vsel %vm54, %v40, 0
  %v68 = vsel %vm54, %v41, 0
  %v71 = vsel %vm54, %v42, 0
  %v74 = vsel %vm54, %v43, 0
  %v77 = vsel %vm54, %v44, 0
  %79 = vmatpush.bf16.msra.mxu0 0
  %80 = vmatpush.bf16.msra.mxu0 0
  %81 = vmatpush.bf16.msra.mxu0 0
  %82 = vmatpush.bf16.msra.mxu0 0
  %83 = vmatpush.bf16.msra.mxu0 0
  %84 = vmatpush.bf16.msra.mxu0 0
  %85 = vmatpush.bf16.msra.mxu0 0
  %86 = vmatpush.bf16.msra.mxu0 %v52
  %87 = vmatmul.bf16.gmra.mxu0 %v56
  %v88 = vpop.f32.mrf.mxu0
  %v89 = vadd.f32 %v46, %v88
  %v90 = vpop.f32.mrf.mxu0
  %v91 = vadd.f32 %v46, %v90
  %92 = vmatmul.bf16.gmra.mxu0 %v59
  %v93 = vpop.f32.mrf.mxu0
  %v94 = vadd.f32 %v46, %v93
  %v95 = vpop.f32.mrf.mxu0
  %v96 = vadd.f32 %v46, %v95
  %97 = vmatmul.bf16.gmra.mxu0 %v62
  %v98 = vpop.f32.mrf.mxu0
  %v99 = vadd.f32 %v46, %v98
  %v100 = vpop.f32.mrf.mxu0
  %v101 = vadd.f32 %v46, %v100
  %102 = vmatmul.bf16.gmra.mxu0 %v65
  %v103 = vpop.f32.mrf.mxu0
  %v104 = vadd.f32 %v46, %v103
  %v105 = vpop.f32.mrf.mxu0
  %v106 = vadd.f32 %v46, %v105
  %107 = vmatmul.bf16.gmra.mxu0 %v68
  %v108 = vpop.f32.mrf.mxu0
  %v109 = vadd.f32 %v46, %v108
  %v110 = vpop.f32.mrf.mxu0
  %v111 = vadd.f32 %v46, %v110
  %112 = vmatmul.bf16.gmra.mxu0 %v71
  %v113 = vpop.f32.mrf.mxu0
  %v114 = vadd.f32 %v46, %v113
  %v115 = vpop.f32.mrf.mxu0
  %v116 = vadd.f32 %v46, %v115
  %117 = vmatmul.bf16.gmra.mxu0 %v74
  %v118 = vpop.f32.mrf.mxu0
  %v119 = vadd.f32 %v46, %v118
  %v120 = vpop.f32.mrf.mxu0
  %v121 = vadd.f32 %v46, %v120
  %122 = vmatmul.bf16.gmra.mxu0 %v77
  %v123 = vpop.f32.mrf.mxu0
  %v124 = vadd.f32 %v46, %v123
  %v125 = vpop.f32.mrf.mxu0
  %v126 = vadd.f32 %v46, %v125
  %127 = vdwg.mxu0
  %v128 = vld [vmem:[%s3] sm:$0xff]
  %v129 = vld [vmem:[%s3 + $0x8] sm:$0xff]
  %v130 = vld [vmem:[%s3 + $0x10] sm:$0xff]
  %v131 = vld [vmem:[%s3 + $0x18] sm:$0xff]
  %v132 = vld [vmem:[%s3 + $0x20] sm:$0xff]
  %v133 = vld [vmem:[%s3 + $0x28] sm:$0xff]
  %v134 = vld [vmem:[%s3 + $0x30] sm:$0xff]
  %v135 = vld [vmem:[%s3 + $0x38] sm:$0xff]
  %v136 = vld [vmem:[%s3 + $0x40] sm:$0xff]
  %v137 = vld [vmem:[%s3 + $0x48] sm:$0xff]
  %v138 = vld [vmem:[%s3 + $0x50] sm:$0xff]
  %v139 = vld [vmem:[%s3 + $0x58] sm:$0xff]
  %v140 = vld [vmem:[%s3 + $0x60] sm:$0xff]
  %v141 = vld [vmem:[%s3 + $0x68] sm:$0xff]
  %v142 = vld [vmem:[%s3 + $0x70] sm:$0xff]
  %v143 = vld [vmem:[%s3 + $0x78] sm:$0xff]
  %145 = vset.pattern.permute.xlu0 0
  %146 = vperm.xlu0 %145, %v128
  %v147 = vpop.permute.xlu0 %146
  %150 = vset.pattern.permute.xlu0 0
  %151 = vperm.xlu0 %150, %v129
  %v152 = vpop.permute.xlu0 %151
  %155 = vset.pattern.permute.xlu0 0
  %156 = vperm.xlu0 %155, %v130
  %v157 = vpop.permute.xlu0 %156
  %160 = vset.pattern.permute.xlu0 0
  %161 = vperm.xlu0 %160, %v131
  %v162 = vpop.permute.xlu0 %161
  %165 = vset.pattern.permute.xlu0 0
  %166 = vperm.xlu0 %165, %v132
  %v167 = vpop.permute.xlu0 %166
  %170 = vset.pattern.permute.xlu0 0
  %171 = vperm.xlu0 %170, %v133
  %v172 = vpop.permute.xlu0 %171
  %175 = vset.pattern.permute.xlu0 0
  %176 = vperm.xlu0 %175, %v134
  %v177 = vpop.permute.xlu0 %176
  %180 = vset.pattern.permute.xlu0 0
  %181 = vperm.xlu0 %180, %v135
  %v182 = vpop.permute.xlu0 %181
  %185 = vset.pattern.permute.xlu0 0
  %186 = vperm.xlu0 %185, %v136
  %v187 = vpop.permute.xlu0 %186
  %190 = vset.pattern.permute.xlu0 0
  %191 = vperm.xlu0 %190, %v137
  %v192 = vpop.permute.xlu0 %191
  %195 = vset.pattern.permute.xlu0 0
  %196 = vperm.xlu0 %195, %v138
  %v197 = vpop.permute.xlu0 %196
  %200 = vset.pattern.permute.xlu0 0
  %201 = vperm.xlu0 %200, %v139
  %v202 = vpop.permute.xlu0 %201
  %205 = vset.pattern.permute.xlu0 0
  %206 = vperm.xlu0 %205, %v140
  %v207 = vpop.permute.xlu0 %206
  %210 = vset.pattern.permute.xlu0 0
  %211 = vperm.xlu0 %210, %v141
  %v212 = vpop.permute.xlu0 %211
  %215 = vset.pattern.permute.xlu0 0
  %216 = vperm.xlu0 %215, %v142
  %v217 = vpop.permute.xlu0 %216
  %220 = vset.pattern.permute.xlu0 0
  %221 = vperm.xlu0 %220, %v143
  %v222 = vpop.permute.xlu0 %221
  %v224 = vadd.f32 %v89, %v147
  %v225 = vadd.f32 %v91, %v152
  %v226 = vadd.f32 %v94, %v157
  %v227 = vadd.f32 %v96, %v162
  %v228 = vadd.f32 %v99, %v167
  %v229 = vadd.f32 %v101, %v172
  %v230 = vadd.f32 %v104, %v177
  %v231 = vadd.f32 %v106, %v182
  %v232 = vadd.f32 %v109, %v187
  %v233 = vadd.f32 %v111, %v192
  %v234 = vadd.f32 %v114, %v197
  %v235 = vadd.f32 %v116, %v202
  %v236 = vadd.f32 %v119, %v207
  %v237 = vadd.f32 %v121, %v212
  %v238 = vadd.f32 %v124, %v217
  %v239 = vadd.f32 %v126, %v222
  %vm240 = vcmask 15360
  %241 = vst.msk [vmem:[%s4] sm:$0xff] %vm240, %v224
  %242 = vst.msk [vmem:[%s4 + $0x8] sm:$0xff] %vm240, %v225
  %243 = vst.msk [vmem:[%s4 + $0x10] sm:$0xff] %vm240, %v226
  %244 = vst.msk [vmem:[%s4 + $0x18] sm:$0xff] %vm240, %v227
  %245 = vst.msk [vmem:[%s4 + $0x20] sm:$0xff] %vm240, %v228
  %246 = vst.msk [vmem:[%s4 + $0x28] sm:$0xff] %vm240, %v229
  %247 = vst.msk [vmem:[%s4 + $0x30] sm:$0xff] %vm240, %v230
  %248 = vst.msk [vmem:[%s4 + $0x38] sm:$0xff] %vm240, %v231
  %249 = vst.msk [vmem:[%s4 + $0x40] sm:$0xff] %vm240, %v232
  %250 = vst.msk [vmem:[%s4 + $0x48] sm:$0xff] %vm240, %v233
  %251 = vst.msk [vmem:[%s4 + $0x50] sm:$0xff] %vm240, %v234
  %252 = vst.msk [vmem:[%s4 + $0x58] sm:$0xff] %vm240, %v235
  %253 = vst.msk [vmem:[%s4 + $0x60] sm:$0xff] %vm240, %v236
  %254 = vst.msk [vmem:[%s4 + $0x68] sm:$0xff] %vm240, %v237
  %255 = vst.msk [vmem:[%s4 + $0x70] sm:$0xff] %vm240, %v238
  %256 = vst.msk [vmem:[%s4 + $0x78] sm:$0xff] %vm240, %v239
  // Predicated region
  $region18: #{forward.49} parent=0 // pred_check
    _
  $region19: #{forward.49} parent=0 // pred_check_branch
    %258 = sbr.rel (0) target = $region21
  $region20: #{forward.49} parent=0 // pred_region
    _
  $region21: #{forward.49} parent=0 // pred_fallthru
    _
  // Predicated region
  $region22: #{forward.49} parent=0 // pred_check
    _
  $region23: #{forward.49} parent=0 // pred_check_branch
    %260 = sbr.rel (0) target = $region25
  $region24: #{forward.49} parent=0 // pred_region
    _
  $region25: #{forward.49} parent=0 // pred_fallthru
    _

// kernel: forward.51
$region0: #{forward.51}
  #allocation0 [shape = 'u32[]', space=smem, size = 0x4, offset = 0x4, fixed_abs, tag = 'smem constant byte address 0x4 - core index']
  #allocation1 [shape = 'u32[72,128]{1,0:T(1,128)}', space=vmem, size = 0x9000, scoped, tag = 'internal scratch']
  %s0 = inlined_call_operand.vmem [shape: f32[16,80], index: 0, kind: input, shape index: {}]
  %s1 = inlined_call_operand.vmem [shape: bf16[80,32], index: 1, kind: input, shape index: {}]
  %s2 = inlined_call_operand.vmem [shape: f32[1,32], index: 2, kind: input, shape index: {}]
  %s3 = inlined_call_operand.vmem [shape: f32[16,32], index: 3, kind: output, shape index: {}]
  %s4 = sld [smem:[#allocation0]]
  $region22: #{forward.51} parent=0
    _
  %s6 = ssub.s32 1, %s4
  %s7 = scalar_select 0, %s6, %s4
  // Predicated region
  $region2: #{forward.51} parent=0 // pred_check
    _
  $region3: #{forward.51} parent=0 // pred_check_branch
    %9 = sbr.rel (0) target = $region5
  $region4: #{forward.51} parent=0 // pred_region
    _
  $region5: #{forward.51} parent=0 // pred_fallthru
    _
  // Predicated region
  $region6: #{forward.51} parent=0 // pred_check
    _
  $region7: #{forward.51} parent=0 // pred_check_branch
    %11 = sbr.rel (0) target = $region9
  $region8: #{forward.51} parent=0 // pred_region
    _
  $region9: #{forward.51} parent=0 // pred_fallthru
    _
  // Predicated region
  $region10: #{forward.51} parent=0 // pred_check
    _
  $region11: #{forward.51} parent=0 // pred_check_branch
    %13 = sbr.rel (0) target = $region13
  $region12: #{forward.51} parent=0 // pred_region
    _
  $region13: #{forward.51} parent=0 // pred_fallthru
    _
  %v15 = vld [vmem:[%s0] sm:$0xff]
  %v16 = vld [vmem:[%s0 + $0x8] sm:$0xff]
  %v17 = vld [vmem:[%s1] sm:$0xf]
  %v18 = vld [vmem:[%s1 + $0x4] sm:$0xf]
  %v19 = vld [vmem:[%s1 + $0x8] sm:$0xf]
  %v20 = vld [vmem:[%s1 + $0xc] sm:$0xf]
  %v21 = vld [vmem:[%s1 + $0x10] sm:$0xf]
  %v22 = vld [vmem:[%s1 + $0x14] sm:$0xf]
  %v23 = vld [vmem:[%s1 + $0x18] sm:$0xf]
  %v24 = vld [vmem:[%s1 + $0x1c] sm:$0xf]
  %v25 = vld [vmem:[%s1 + $0x20] sm:$0xf]
  %v26 = vld [vmem:[%s1 + $0x24] sm:$0xf]
  %v27 = vld [vmem:[%s2] sm:$0x1]
  %v28 = vpack.c.bf16 %v16, %v15
  %v30 = vperm.slane %v27, 0
  %v42 = vunpack.c.l.b16 %v17
  %v43 = vunpack.c.l.b16 %v18
  %v44 = vunpack.c.l.b16 %v19
  %v45 = vunpack.c.l.b16 %v20
  %v46 = vunpack.c.l.b16 %v21
  %v47 = vunpack.c.l.b16 %v22
  %v48 = vunpack.c.l.b16 %v23
  %v49 = vunpack.c.l.b16 %v24
  %v50 = vunpack.c.l.b16 %v25
  %v51 = vunpack.c.l.b16 %v26
  %v52 = vpack.c.b16 %v43, %v42
  %v53 = vpack.c.b16 %v45, %v44
  %v54 = vpack.c.b16 %v47, %v46
  %v55 = vpack.c.b16 %v49, %v48
  %v56 = vpack.c.b16 %v51, %v50
  %vm62 = vcmask 654336
  %v64 = vsel %vm62, %v28, 0
  %66 = vmatpush.bf16.msra.mxu0 0
  %67 = vmatpush.bf16.msra.mxu0 0
  %68 = vmatpush.bf16.msra.mxu0 0
  %69 = vmatpush.bf16.msra.mxu0 %v56
  %70 = vmatpush.bf16.msra.mxu0 %v55
  %71 = vmatpush.bf16.msra.mxu0 %v54
  %72 = vmatpush.bf16.msra.mxu0 %v53
  %73 = vmatpush.bf16.msra.mxu0 %v52
  %74 = vmatmul.bf16.gmra.mxu0 %v64
  %v75 = vpop.f32.mrf.mxu0
  %v76 = vadd.f32 %v30, %v75
  %v77 = vpop.f32.mrf.mxu0
  %v78 = vadd.f32 %v30, %v77
  %79 = vdwg.mxu0
  %vm80 = vcmask 261120
  %81 = vst.msk [vmem:[%s3] sm:$0xff] %vm80, %v76
  %82 = vst.msk [vmem:[%s3 + $0x8] sm:$0xff] %vm80, %v78
  // Predicated region
  $region14: #{forward.51} parent=0 // pred_check
    _
  $region15: #{forward.51} parent=0 // pred_check_branch
    %84 = sbr.rel (0) target = $region17
  $region16: #{forward.51} parent=0 // pred_region
    _
  $region17: #{forward.51} parent=0 // pred_fallthru
    _
  // Predicated region
  $region18: #{forward.51} parent=0 // pred_check
    _
  $region19: #{forward.51} parent=0 // pred_check_branch
    %86 = sbr.rel (0) target = $region21
  $region20: #{forward.51} parent=0 // pred_region
    _
  $region21: #{forward.51} parent=0 // pred_fallthru
    _

// kernel: forward.52
$region0: #{forward.52}
  #allocation0 [shape = 'u32[]', space=smem, size = 0x4, offset = 0x4, fixed_abs, tag = 'smem constant byte address 0x4 - core index']
  #allocation1 [shape = 'u32[72,128]{1,0:T(1,128)}', space=vmem, size = 0x9000, scoped, tag = 'internal scratch']
  %s0 = inlined_call_operand.vmem [shape: f32[16,32], index: 0, kind: input, shape index: {}]
  %s1 = inlined_call_operand.vmem [shape: f32[16,32], index: 1, kind: input, shape index: {}]
  %s2 = inlined_call_operand.vmem [shape: f32[1,32], index: 2, kind: input, shape index: {}]
  %s3 = inlined_call_operand.vmem [shape: f32[1,32], index: 3, kind: input, shape index: {}]
  %s4 = inlined_call_operand.vmem [shape: f32[16,32], index: 4, kind: output, shape index: {}]
  %s5 = sld [smem:[#allocation0]]
  $region26: #{forward.52} parent=0
    _
  %s7 = ssub.s32 1, %s5
  %s8 = scalar_select 0, %s7, %s5
  // Predicated region
  $region2: #{forward.52} parent=0 // pred_check
    _
  $region3: #{forward.52} parent=0 // pred_check_branch
    %10 = sbr.rel (0) target = $region5
  $region4: #{forward.52} parent=0 // pred_region
    _
  $region5: #{forward.52} parent=0 // pred_fallthru
    _
  // Predicated region
  $region6: #{forward.52} parent=0 // pred_check
    _
  $region7: #{forward.52} parent=0 // pred_check_branch
    %12 = sbr.rel (0) target = $region9
  $region8: #{forward.52} parent=0 // pred_region
    _
  $region9: #{forward.52} parent=0 // pred_fallthru
    _
  // Predicated region
  $region10: #{forward.52} parent=0 // pred_check
    _
  $region11: #{forward.52} parent=0 // pred_check_branch
    %14 = sbr.rel (0) target = $region13
  $region12: #{forward.52} parent=0 // pred_region
    _
  $region13: #{forward.52} parent=0 // pred_fallthru
    _
  // Predicated region
  $region14: #{forward.52} parent=0 // pred_check
    _
  $region15: #{forward.52} parent=0 // pred_check_branch
    %16 = sbr.rel (0) target = $region17
  $region16: #{forward.52} parent=0 // pred_region
    _
  $region17: #{forward.52} parent=0 // pred_fallthru
    _
  %v17 = vld [vmem:[%s0] sm:$0xff]
  %v18 = vld [vmem:[%s0 + $0x8] sm:$0xff]
  %v19 = vld [vmem:[%s1] sm:$0xff]
  %v20 = vld [vmem:[%s1 + $0x8] sm:$0xff]
  %v21 = vadd.f32 %v17, %v19
  %v22 = vadd.f32 %v18, %v20
  %vm23 = vcmask 261120
  %v24 = vsel %vm23, %v21, 0.0
  %25 = vadd.xlane.f32.xlu0 %v24
  %v26 = vpop.xlane.xlu0 %25
  %v27 = vsel %vm23, %v22, 0.0
  %28 = vadd.xlane.f32.xlu0 %v27
  %v29 = vpop.xlane.xlu0 %28
  %v30 = vrcp.pop 32.0
  %v31 = vmul.f32 32.0, %v30
  %v32 = vsub.f32 1.0, %v31
  %v33 = vmul.f32 %v30, %v32
  %v34 = vadd.f32 %v30, %v33
  %vm35 = vweird.f32 %v30
  %v36 = vsel %vm35, %v30, %v34
  %v37 = vmul.f32 %v26, %v36
  %v38 = vmul.f32 %v29, %v36
  %v39 = vsub.f32 %v21, %v37
  %v40 = vsub.f32 %v22, %v38
  %v41 = vmul.f32 %v39, %v39
  %v42 = vmul.f32 %v40, %v40
  %v43 = vsel %vm23, %v41, 0.0
  %44 = vadd.xlane.f32.xlu0 %v43
  %v45 = vpop.xlane.xlu0 %44
  %v46 = vsel %vm23, %v42, 0.0
  %47 = vadd.xlane.f32.xlu0 %v46
  %v48 = vpop.xlane.xlu0 %47
  %v49 = vmul.f32 %v45, %v36
  %v50 = vmul.f32 %v48, %v36
  %v51 = vadd.f32 %v49, 1e-05
  %v52 = vadd.f32 %v50, 1e-05
  %v53 = vrsqrt.pop %v51
  %v54 = vmul.f32 %v53, %v51
  %v55 = vmul.f32 %v54, %v53
  %v56 = vmul.f32 0.5, %v55
  %v57 = vsub.f32 1.5, %v56
  %v58 = vmul.f32 %v53, %v57
  %vm59 = vweird.f32 %v51
  %vm60 = vweird.f32 %v53
  %vm61 = vmor %vm59, %vm60
  %v62 = vsel %vm61, %v53, %v58
  %v63 = vrsqrt.pop %v52
  %v64 = vmul.f32 %v63, %v52
  %v65 = vmul.f32 %v64, %v63
  %v66 = vmul.f32 0.5, %v65
  %v67 = vsub.f32 1.5, %v66
  %v68 = vmul.f32 %v63, %v67
  %vm69 = vweird.f32 %v52
  %vm70 = vweird.f32 %v63
  %vm71 = vmor %vm69, %vm70
  %v72 = vsel %vm71, %v63, %v68
  %v73 = vmul.f32 %v39, %v62
  %v74 = vmul.f32 %v40, %v72
  %v75 = vld [vmem:[%s2] sm:$0x1]
  %v77 = vperm.slane %v75, 0
  %v79 = vmul.f32 %v73, %v77
  %v80 = vmul.f32 %v74, %v77
  %v81 = vld [vmem:[%s3] sm:$0x1]
  %v83 = vperm.slane %v81, 0
  %v85 = vadd.f32 %v79, %v83
  %v86 = vadd.f32 %v80, %v83
  %87 = vst.msk [vmem:[%s4] sm:$0xff] %vm23, %v85
  %88 = vst.msk [vmem:[%s4 + $0x8] sm:$0xff] %vm23, %v86
  // Predicated region
  $region18: #{forward.52} parent=0 // pred_check
    _
  $region19: #{forward.52} parent=0 // pred_check_branch
    %90 = sbr.rel (0) target = $region21
  $region20: #{forward.52} parent=0 // pred_region
    _
  $region21: #{forward.52} parent=0 // pred_fallthru
    _
  // Predicated region
  $region22: #{forward.52} parent=0 // pred_check
    _
  $region23: #{forward.52} parent=0 // pred_check_branch
    %92 = sbr.rel (0) target = $region25
  $region24: #{forward.52} parent=0 // pred_region
    _
  $region25: #{forward.52} parent=0 // pred_fallthru
    _

// kernel: forward.50
$region0: #{forward.50}
  #allocation0 [shape = 'u32[]', space=smem, size = 0x4, offset = 0x4, fixed_abs, tag = 'smem constant byte address 0x4 - core index']
  #allocation1 [shape = 'u32[72,128]{1,0:T(1,128)}', space=vmem, size = 0x9000, scoped, tag = 'internal scratch']
  %s0 = inlined_call_operand.vmem [shape: f32[2,8,16], index: 0, kind: input, shape index: {}]
  %s1 = inlined_call_operand.vmem [shape: f32[2,8,16], index: 1, kind: input, shape index: {}]
  %s2 = inlined_call_operand.vmem [shape: f32[2,8,16], index: 2, kind: input, shape index: {}]
  %s3 = inlined_call_operand.vmem [shape: f32[2,8,24], index: 3, kind: input, shape index: {}]
  %s4 = inlined_call_operand.vmem [shape: f32[2,8,24], index: 4, kind: input, shape index: {}]
  %s5 = inlined_call_operand.vmem [shape: f32[2,8,24], index: 5, kind: input, shape index: {}]
  %s6 = inlined_call_operand.vmem [shape: f32[2,8,8,2], index: 6, kind: input, shape index: {}]
  %s7 = inlined_call_operand.vmem [shape: f32[2,8,8,16], index: 7, kind: input, shape index: {}]
  %s8 = inlined_call_operand.vmem [shape: f32[2,8,16], index: 8, kind: output, shape index: {0}]
  %s9 = inlined_call_operand.vmem [shape: f32[2,8,24], index: 9, kind: output, shape index: {1}]
  %s10 = inlined_call_operand.vmem [shape: f32[2,8,32], index: 10, kind: output, shape index: {2}]
  %11 = xla_tuple %s8, %s9, %s10
  %s12 = sld [smem:[#allocation0]]
  $region81: #{forward.50} parent=0
    _
  %s14 = ssub.s32 1, %s12
  %s15 = scalar_select 0, %s14, %s12
  loop: start=0, step=1, limit=4
  $region2: #{forward.50} parent=0 // loop_pre_header
    _
  $region3: #{forward.50} parent=0 // loop_header
    %s17 = sphi 0, %s21
    %p18 = scmp.ge.s32.totalorder %s17, 4
    %s27 = sphi 0, %s29
    %s30 = sphi 0, %s27
    %s31 = sphi 0, %s30
    %s47 = sphi 0, %s31
    %s53 = sphi 0, %s55
    %s56 = sphi 0, %s53
    %s57 = sphi 0, %s56
    %s73 = sphi 0, %s57
    %s79 = sphi 0, %s81
    %s82 = sphi 0, %s79
    %s83 = sphi 0, %s82
    %s99 = sphi 0, %s83
    %s105 = sphi 0, %s107
    %s108 = sphi 0, %s105
    %s109 = sphi 0, %s108
    %s125 = sphi 0, %s109
    %s131 = sphi 0, %s133
    %s134 = sphi 0, %s131
    %s135 = sphi 0, %s134
    %s151 = sphi 0, %s135
    %s157 = sphi 0, %s159
    %s160 = sphi 0, %s157
    %s161 = sphi 0, %s160
    %s177 = sphi 0, %s161
    %s183 = sphi 0, %s185
    %s186 = sphi 0, %s183
    %s187 = sphi 0, %s186
    %s203 = sphi 0, %s187
    %s209 = sphi 0, %s211
    %s212 = sphi 0, %s209
    %s213 = sphi 0, %s212
    %s229 = sphi 0, %s213
    %s235 = sphi 0, %s237
    %s238 = sphi 0, %s235
    %s239 = sphi 0, %s238
    %s255 = sphi 0, %s239
    %s261 = sphi 0, %s263
    %s264 = sphi 0, %s261
    %s265 = sphi 0, %s264
    %s281 = sphi 0, %s265
    %s287 = sphi 0, %s289
    %s290 = sphi 0, %s287
    %s291 = sphi 0, %s290
    %s307 = sphi 0, %s291
  $region4: #{forward.50} parent=0 // loop_header_branch
    %20 = sbr.rel (%p18) target = $region8
  $region5: #{forward.50} parent=0 // loop_body
    %s22 = ssub.s32 %s17, 1
    %s23 = ssub.s32 %s17, 2
    %s24 = sadd.s32 %s17, 1
    %s25 = ssub.s32 %s17, %s24
    %p26 = scmp.eq.s32.totalorder %s25, 0
    %s28 = sadd.s32 %s27, 1
    %s29 = scalar_select %p26, %s27, %s28
    %p32 = pneg %p26
    %p33 = scmp.eq.s32.totalorder %s17, 1
    %p34 = por %p32, %p33
    %p35 = scmp.ne.s32.totalorder %s27, %s30
    %p36 = scmp.eq.s32.totalorder %s17, 0
    %p37 = por %p35, %p36
    %p38 = scmp.ne.s32.totalorder %s27, %s30
    %p39 = scmp.eq.s32.totalorder %s22, 1
    %p40 = por %p38, %p39
    %p41 = scmp.ne.s32.totalorder %s30, %s31
    %p42 = scmp.eq.s32.totalorder %s22, 0
    %p43 = por %p41, %p42
    %p44 = scmp.ne.s32.totalorder %s30, %s31
    %p45 = scmp.eq.s32.totalorder %s23, 1
    %p46 = por %p44, %p45
    %p48 = scmp.ne.s32.totalorder %s31, %s47
    %p49 = scmp.eq.s32.totalorder %s23, 0
    %p50 = por %p48, %p49
    %s51 = ssub.s32 %s17, %s24
    %p52 = scmp.eq.s32.totalorder %s51, 0
    %s54 = sadd.s32 %s53, 1
    %s55 = scalar_select %p52, %s53, %s54
    %p58 = pneg %p52
    %p59 = scmp.eq.s32.totalorder %s17, 1
    %p60 = por %p58, %p59
    %p61 = scmp.ne.s32.totalorder %s53, %s56
    %p62 = scmp.eq.s32.totalorder %s17, 0
    %p63 = por %p61, %p62
    %p64 = scmp.ne.s32.totalorder %s53, %s56
    %p65 = scmp.eq.s32.totalorder %s22, 1
    %p66 = por %p64, %p65
    %p67 = scmp.ne.s32.totalorder %s56, %s57
    %p68 = scmp.eq.s32.totalorder %s22, 0
    %p69 = por %p67, %p68
    %p70 = scmp.ne.s32.totalorder %s56, %s57
    %p71 = scmp.eq.s32.totalorder %s23, 1
    %p72 = por %p70, %p71
    %p74 = scmp.ne.s32.totalorder %s57, %s73
    %p75 = scmp.eq.s32.totalorder %s23, 0
    %p76 = por %p74, %p75
    %s77 = ssub.s32 %s17, %s24
    %p78 = scmp.eq.s32.totalorder %s77, 0
    %s80 = sadd.s32 %s79, 1
    %s81 = scalar_select %p78, %s79, %s80
    %p84 = pneg %p78
    %p85 = scmp.eq.s32.totalorder %s17, 1
    %p86 = por %p84, %p85
    %p87 = scmp.ne.s32.totalorder %s79, %s82
    %p88 = scmp.eq.s32.totalorder %s17, 0
    %p89 = por %p87, %p88
    %p90 = scmp.ne.s32.totalorder %s79, %s82
    %p91 = scmp.eq.s32.totalorder %s22, 1
    %p92 = por %p90, %p91
    %p93 = scmp.ne.s32.totalorder %s82, %s83
    %p94 = scmp.eq.s32.totalorder %s22, 0
    %p95 = por %p93, %p94
    %p96 = scmp.ne.s32.totalorder %s82, %s83
    %p97 = scmp.eq.s32.totalorder %s23, 1
    %p98 = por %p96, %p97
    %p100 = scmp.ne.s32.totalorder %s83, %s99
    %p101 = scmp.eq.s32.totalorder %s23, 0
    %p102 = por %p100, %p101
    %s103 = ssub.s32 %s17, %s24
    %p104 = scmp.eq.s32.totalorder %s103, 0
    %s106 = sadd.s32 %s105, 1
    %s107 = scalar_select %p104, %s105, %s106
    %p110 = pneg %p104
    %p111 = scmp.eq.s32.totalorder %s17, 1
    %p112 = por %p110, %p111
    %p113 = scmp.ne.s32.totalorder %s105, %s108
    %p114 = scmp.eq.s32.totalorder %s17, 0
    %p115 = por %p113, %p114
    %p116 = scmp.ne.s32.totalorder %s105, %s108
    %p117 = scmp.eq.s32.totalorder %s22, 1
    %p118 = por %p116, %p117
    %p119 = scmp.ne.s32.totalorder %s108, %s109
    %p120 = scmp.eq.s32.totalorder %s22, 0
    %p121 = por %p119, %p120
    %p122 = scmp.ne.s32.totalorder %s108, %s109
    %p123 = scmp.eq.s32.totalorder %s23, 1
    %p124 = por %p122, %p123
    %p126 = scmp.ne.s32.totalorder %s109, %s125
    %p127 = scmp.eq.s32.totalorder %s23, 0
    %p128 = por %p126, %p127
    %s129 = ssub.s32 %s17, %s24
    %p130 = scmp.eq.s32.totalorder %s129, 0
    %s132 = sadd.s32 %s131, 1
    %s133 = scalar_select %p130, %s131, %s132
    %p136 = pneg %p130
    %p137 = scmp.eq.s32.totalorder %s17, 1
    %p138 = por %p136, %p137
    %p139 = scmp.ne.s32.totalorder %s131, %s134
    %p140 = scmp.eq.s32.totalorder %s17, 0
    %p141 = por %p139, %p140
    %p142 = scmp.ne.s32.totalorder %s131, %s134
    %p143 = scmp.eq.s32.totalorder %s22, 1
    %p144 = por %p142, %p143
    %p145 = scmp.ne.s32.totalorder %s134, %s135
    %p146 = scmp.eq.s32.totalorder %s22, 0
    %p147 = por %p145, %p146
    %p148 = scmp.ne.s32.totalorder %s134, %s135
    %p149 = scmp.eq.s32.totalorder %s23, 1
    %p150 = por %p148, %p149
    %p152 = scmp.ne.s32.totalorder %s135, %s151
    %p153 = scmp.eq.s32.totalorder %s23, 0
    %p154 = por %p152, %p153
    %s155 = ssub.s32 %s17, %s24
    %p156 = scmp.eq.s32.totalorder %s155, 0
    %s158 = sadd.s32 %s157, 1
    %s159 = scalar_select %p156, %s157, %s158
    %p162 = pneg %p156
    %p163 = scmp.eq.s32.totalorder %s17, 1
    %p164 = por %p162, %p163
    %p165 = scmp.ne.s32.totalorder %s157, %s160
    %p166 = scmp.eq.s32.totalorder %s17, 0
    %p167 = por %p165, %p166
    %p168 = scmp.ne.s32.totalorder %s157, %s160
    %p169 = scmp.eq.s32.totalorder %s22, 1
    %p170 = por %p168, %p169
    %p171 = scmp.ne.s32.totalorder %s160, %s161
    %p172 = scmp.eq.s32.totalorder %s22, 0
    %p173 = por %p171, %p172
    %p174 = scmp.ne.s32.totalorder %s160, %s161
    %p175 = scmp.eq.s32.totalorder %s23, 1
    %p176 = por %p174, %p175
    %p178 = scmp.ne.s32.totalorder %s161, %s177
    %p179 = scmp.eq.s32.totalorder %s23, 0
    %p180 = por %p178, %p179
    %s181 = ssub.s32 %s17, %s24
    %p182 = scmp.eq.s32.totalorder %s181, 0
    %s184 = sadd.s32 %s183, 1
    %s185 = scalar_select %p182, %s183, %s184
    %p188 = pneg %p182
    %p189 = scmp.eq.s32.totalorder %s17, 1
    %p190 = por %p188, %p189
    %p191 = scmp.ne.s32.totalorder %s183, %s186
    %p192 = scmp.eq.s32.totalorder %s17, 0
    %p193 = por %p191, %p192
    %p194 = scmp.ne.s32.totalorder %s183, %s186
    %p195 = scmp.eq.s32.totalorder %s22, 1
    %p196 = por %p194, %p195
    %p197 = scmp.ne.s32.totalorder %s186, %s187
    %p198 = scmp.eq.s32.totalorder %s22, 0
    %p199 = por %p197, %p198
    %p200 = scmp.ne.s32.totalorder %s186, %s187
    %p201 = scmp.eq.s32.totalorder %s23, 1
    %p202 = por %p200, %p201
    %p204 = scmp.ne.s32.totalorder %s187, %s203
    %p205 = scmp.eq.s32.totalorder %s23, 0
    %p206 = por %p204, %p205
    %s207 = ssub.s32 %s17, %s24
    %p208 = scmp.eq.s32.totalorder %s207, 0
    %s210 = sadd.s32 %s209, 1
    %s211 = scalar_select %p208, %s209, %s210
    %p214 = pneg %p208
    %p215 = scmp.eq.s32.totalorder %s17, 1
    %p216 = por %p214, %p215
    %p217 = scmp.ne.s32.totalorder %s209, %s212
    %p218 = scmp.eq.s32.totalorder %s17, 0
    %p219 = por %p217, %p218
    %p220 = scmp.ne.s32.totalorder %s209, %s212
    %p221 = scmp.eq.s32.totalorder %s22, 1
    %p222 = por %p220, %p221
    %p223 = scmp.ne.s32.totalorder %s212, %s213
    %p224 = scmp.eq.s32.totalorder %s22, 0
    %p225 = por %p223, %p224
    %p226 = scmp.ne.s32.totalorder %s212, %s213
    %p227 = scmp.eq.s32.totalorder %s23, 1
    %p228 = por %p226, %p227
    %p230 = scmp.ne.s32.totalorder %s213, %s229
    %p231 = scmp.eq.s32.totalorder %s23, 0
    %p232 = por %p230, %p231
    %s233 = ssub.s32 %s17, %s24
    %p234 = scmp.eq.s32.totalorder %s233, 0
    %s236 = sadd.s32 %s235, 1
    %s237 = scalar_select %p234, %s235, %s236
    %p240 = pneg %p234
    %p241 = scmp.eq.s32.totalorder %s17, 1
    %p242 = por %p240, %p241
    %p243 = scmp.ne.s32.totalorder %s235, %s238
    %p244 = scmp.eq.s32.totalorder %s17, 0
    %p245 = por %p243, %p244
    %p246 = scmp.ne.s32.totalorder %s235, %s238
    %p247 = scmp.eq.s32.totalorder %s22, 1
    %p248 = por %p246, %p247
    %p249 = scmp.ne.s32.totalorder %s238, %s239
    %p250 = scmp.eq.s32.totalorder %s22, 0
    %p251 = por %p249, %p250
    %p252 = scmp.ne.s32.totalorder %s238, %s239
    %p253 = scmp.eq.s32.totalorder %s23, 1
    %p254 = por %p252, %p253
    %p256 = scmp.ne.s32.totalorder %s239, %s255
    %p257 = scmp.eq.s32.totalorder %s23, 0
    %p258 = por %p256, %p257
    %s259 = ssub.s32 %s17, %s24
    %p260 = scmp.eq.s32.totalorder %s259, 0
    %s262 = sadd.s32 %s261, 1
    %s263 = scalar_select %p260, %s261, %s262
    %p266 = pneg %p260
    %p267 = scmp.eq.s32.totalorder %s17, 1
    %p268 = por %p266, %p267
    %p269 = scmp.ne.s32.totalorder %s261, %s264
    %p270 = scmp.eq.s32.totalorder %s17, 0
    %p271 = por %p269, %p270
    %p272 = scmp.ne.s32.totalorder %s261, %s264
    %p273 = scmp.eq.s32.totalorder %s22, 1
    %p274 = por %p272, %p273
    %p275 = scmp.ne.s32.totalorder %s264, %s265
    %p276 = scmp.eq.s32.totalorder %s22, 0
    %p277 = por %p275, %p276
    %p278 = scmp.ne.s32.totalorder %s264, %s265
    %p279 = scmp.eq.s32.totalorder %s23, 1
    %p280 = por %p278, %p279
    %p282 = scmp.ne.s32.totalorder %s265, %s281
    %p283 = scmp.eq.s32.totalorder %s23, 0
    %p284 = por %p282, %p283
    %s285 = ssub.s32 %s17, %s24
    %p286 = scmp.eq.s32.totalorder %s285, 0
    %s288 = sadd.s32 %s287, 1
    %s289 = scalar_select %p286, %s287, %s288
    %p292 = pneg %p286
    %p293 = scmp.eq.s32.totalorder %s17, 1
    %p294 = por %p292, %p293
    %p295 = scmp.ne.s32.totalorder %s287, %s290
    %p296 = scmp.eq.s32.totalorder %s17, 0
    %p297 = por %p295, %p296
    %p298 = scmp.ne.s32.totalorder %s287, %s290
    %p299 = scmp.eq.s32.totalorder %s22, 1
    %p300 = por %p298, %p299
    %p301 = scmp.ne.s32.totalorder %s290, %s291
    %p302 = scmp.eq.s32.totalorder %s22, 0
    %p303 = por %p301, %p302
    %p304 = scmp.ne.s32.totalorder %s290, %s291
    %p305 = scmp.eq.s32.totalorder %s23, 1
    %p306 = por %p304, %p305
    %p308 = scmp.ne.s32.totalorder %s291, %s307
    %p309 = scmp.eq.s32.totalorder %s23, 0
    %p310 = por %p308, %p309
    %p311 = scmp.le.s32.totalorder 1, %s17
    %p312 = scmp.lt.s32.totalorder %s17, 3
    %p313 = pnand %p311, %p312
    %p314 = pneg %p313
    // Predicated region
    $region9: #{forward.50} parent=5 // pred_check
      _
    $region10: #{forward.50} parent=5 // pred_check_branch
      %316 = sbr.rel (%p313) target = $region12
    $region11: #{forward.50} parent=5 // pred_region
      %s317 = ssub.s32 %s17, 1
    $region12: #{forward.50} parent=5 // pred_fallthru
      _
    %p318 = scmp.lt.s32.totalorder %s17, 2
    // Predicated region
    $region13: #{forward.50} parent=5 // pred_check
      %p319 = pneg %p318
    $region14: #{forward.50} parent=5 // pred_check_branch
      %321 = sbr.rel (%p319) target = $region16
    $region15: #{forward.50} parent=5 // pred_region
      // Predicated region
      $region17: #{forward.50} parent=15 // pred_check
        %p322 = pneg %p37
      $region18: #{forward.50} parent=15 // pred_check_branch
        %324 = sbr.rel (%p322) target = $region20
      $region19: #{forward.50} parent=15 // pred_region
        %p325 = scmp.lt.s32.totalorder %s17, 1
        %s326 = scalar_select %p325, %s17, 1
        %s327 = smul.addr %s326, 8
        %s328 = scalar_lea.vmem %s0, %s327
      $region20: #{forward.50} parent=15 // pred_fallthru
        _
      // Predicated region
      $region21: #{forward.50} parent=15 // pred_check
        %p329 = pneg %p63
      $region22: #{forward.50} parent=15 // pred_check_branch
        %331 = sbr.rel (%p329) target = $region24
      $region23: #{forward.50} parent=15 // pred_region
        %p332 = scmp.lt.s32.totalorder %s17, 1
        %s333 = scalar_select %p332, %s17, 1
        %s334 = smul.addr %s333, 8
        %s335 = scalar_lea.vmem %s1, %s334
      $region24: #{forward.50} parent=15 // pred_fallthru
        _
      // Predicated region
      $region25: #{forward.50} parent=15 // pred_check
        %p336 = pneg %p89
      $region26: #{forward.50} parent=15 // pred_check_branch
        %338 = sbr.rel (%p336) target = $region28
      $region27: #{forward.50} parent=15 // pred_region
        %p339 = scmp.lt.s32.totalorder %s17, 1
        %s340 = scalar_select %p339, %s17, 1
        %s341 = smul.addr %s340, 8
        %s342 = scalar_lea.vmem %s2, %s341
      $region28: #{forward.50} parent=15 // pred_fallthru
        _
      // Predicated region
      $region29: #{forward.50} parent=15 // pred_check
        %p343 = pneg %p115
      $region30: #{forward.50} parent=15 // pred_check_branch
        %345 = sbr.rel (%p343) target = $region32
      $region31: #{forward.50} parent=15 // pred_region
        %p346 = scmp.lt.s32.totalorder %s17, 1
        %s347 = scalar_select %p346, %s17, 1
        %s348 = smul.addr %s347, 8
        %s349 = scalar_lea.vmem %s3, %s348
      $region32: #{forward.50} parent=15 // pred_fallthru
        _
      // Predicated region
      $region33: #{forward.50} parent=15 // pred_check
        %p350 = pneg %p141
      $region34: #{forward.50} parent=15 // pred_check_branch
        %352 = sbr.rel (%p350) target = $region36
      $region35: #{forward.50} parent=15 // pred_region
        %p353 = scmp.lt.s32.totalorder %s17, 1
        %s354 = scalar_select %p353, %s17, 1
        %s355 = smul.addr %s354, 8
        %s356 = scalar_lea.vmem %s4, %s355
      $region36: #{forward.50} parent=15 // pred_fallthru
        _
      // Predicated region
      $region37: #{forward.50} parent=15 // pred_check
        %p357 = pneg %p167
      $region38: #{forward.50} parent=15 // pred_check_branch
        %359 = sbr.rel (%p357) target = $region40
      $region39: #{forward.50} parent=15 // pred_region
        %p360 = scmp.lt.s32.totalorder %s17, 1
        %s361 = scalar_select %p360, %s17, 1
        %s362 = smul.addr %s361, 8
        %s363 = scalar_lea.vmem %s5, %s362
      $region40: #{forward.50} parent=15 // pred_fallthru
        _
      // Predicated region
      $region41: #{forward.50} parent=15 // pred_check
        %p364 = pneg %p193
      $region42: #{forward.50} parent=15 // pred_check_branch
        %366 = sbr.rel (%p364) target = $region44
      $region43: #{forward.50} parent=15 // pred_region
        %p367 = scmp.lt.s32.totalorder %s17, 1
        %s368 = scalar_select %p367, %s17, 1
        %s369 = smul.addr %s368, 8
        %s370 = smul.addr %s369, 8
        %s371 = scalar_lea.vmem %s6, %s370
      $region44: #{forward.50} parent=15 // pred_fallthru
        _
      // Predicated region
      $region45: #{forward.50} parent=15 // pred_check
        %p372 = pneg %p219
      $region46: #{forward.50} parent=15 // pred_check_branch
        %374 = sbr.rel (%p372) target = $region48
      $region47: #{forward.50} parent=15 // pred_region
        %p375 = scmp.lt.s32.totalorder %s17, 1
        %s376 = scalar_select %p375, %s17, 1
        %s377 = smul.addr %s376, 8
        %s378 = smul.addr %s377, 8
        %s379 = scalar_lea.vmem %s7, %s378
      $region48: #{forward.50} parent=15 // pred_fallthru
        _
    $region16: #{forward.50} parent=5 // pred_fallthru
      _
    %p380 = scmp.le.s32.totalorder 1, %s17
    %p381 = scmp.lt.s32.totalorder %s17, 3
    %p382 = pnand %p380, %p381
    %p383 = pneg %p382
    // Predicated region
    $region49: #{forward.50} parent=5 // pred_check
      _
    $region50: #{forward.50} parent=5 // pred_check_branch
      %385 = sbr.rel (%p382) target = $region52
    $region51: #{forward.50} parent=5 // pred_region
      %s386 = ssub.s32 %s17, 1
      %p387 = scmp.lt.s32.totalorder %s22, 1
      %s388 = scalar_select %p387, %s22, 1
      %s389 = smul.addr %s388, 8
      %s390 = scalar_lea.vmem %s0, %s389
      %p391 = pneg %p43
      %p392 = pneg %p40
      %p393 = scmp.lt.s32.totalorder %s22, 1
      %s394 = scalar_select %p393, %s22, 1
      %s395 = smul.addr %s394, 8
      %s396 = scalar_lea.vmem %s1, %s395
      %p397 = pneg %p69
      %p398 = pneg %p66
      %p399 = scmp.lt.s32.totalorder %s22, 1
      %s400 = scalar_select %p399, %s22, 1
      %s401 = smul.addr %s400, 8
      %s402 = scalar_lea.vmem %s2, %s401
      %p403 = pneg %p95
      %p404 = pneg %p92
      %p405 = scmp.lt.s32.totalorder %s22, 1
      %s406 = scalar_select %p405, %s22, 1
      %s407 = smul.addr %s406, 8
      %s408 = scalar_lea.vmem %s3, %s407
      %p409 = pneg %p121
      %p410 = pneg %p118
      %p411 = scmp.lt.s32.totalorder %s22, 1
      %s412 = scalar_select %p411, %s22, 1
      %s413 = smul.addr %s412, 8
      %s414 = scalar_lea.vmem %s4, %s413
      %p415 = pneg %p147
      %p416 = pneg %p144
      %p417 = scmp.lt.s32.totalorder %s22, 1
      %s418 = scalar_select %p417, %s22, 1
      %s419 = smul.addr %s418, 8
      %s420 = scalar_lea.vmem %s5, %s419
      %p421 = pneg %p173
      %p422 = pneg %p170
      %p423 = scmp.lt.s32.totalorder %s22, 1
      %s424 = scalar_select %p423, %s22, 1
      %s425 = smul.addr %s424, 8
      %s426 = smul.addr %s425, 8
      %s427 = scalar_lea.vmem %s6, %s426
      %p428 = pneg %p199
      %p429 = pneg %p196
      %p430 = scmp.lt.s32.totalorder %s22, 1
      %s431 = scalar_select %p430, %s22, 1
      %s432 = smul.addr %s431, 8
      %s433 = smul.addr %s432, 8
      %s434 = scalar_lea.vmem %s7, %s433
      %p435 = pneg %p225
      %p436 = pneg %p222
      %p437 = pneg %p251
      %p438 = pneg %p248
      %p439 = scmp.lt.s32.totalorder %s22, 1
      %s440 = scalar_select %p439, %s22, 1
      %s441 = smul.addr %s440, 8
      %s442 = scalar_lea.vmem %s8, %s441
      %p443 = pneg %p277
      %p444 = pneg %p274
      %p445 = scmp.lt.s32.totalorder %s22, 1
      %s446 = scalar_select %p445, %s22, 1
      %s447 = smul.addr %s446, 8
      %s448 = scalar_lea.vmem %s9, %s447
      %p449 = pneg %p303
      %p450 = pneg %p300
      %p451 = scmp.lt.s32.totalorder %s22, 1
      %s452 = scalar_select %p451, %s22, 1
      %s453 = smul.addr %s452, 8
      %s454 = scalar_lea.vmem %s10, %s453
      %p455 = scmp.lt.s32.totalorder %s22, 1
      %s456 = scalar_select %p455, %s22, 1
      %s457 = smul.addr %s456, 8
      %s458 = scalar_lea.vmem %s0, %s457
      %p459 = scmp.lt.s32.totalorder %s22, 1
      %s460 = scalar_select %p459, %s22, 1
      %s461 = smul.addr %s460, 8
      %s462 = scalar_lea.vmem %s1, %s461
      %p463 = scmp.lt.s32.totalorder %s22, 1
      %s464 = scalar_select %p463, %s22, 1
      %s465 = smul.addr %s464, 8
      %s466 = scalar_lea.vmem %s2, %s465
      %p467 = scmp.lt.s32.totalorder %s22, 1
      %s468 = scalar_select %p467, %s22, 1
      %s469 = smul.addr %s468, 8
      %s470 = scalar_lea.vmem %s3, %s469
      %p471 = scmp.lt.s32.totalorder %s22, 1
      %s472 = scalar_select %p471, %s22, 1
      %s473 = smul.addr %s472, 8
      %s474 = scalar_lea.vmem %s4, %s473
      %p475 = scmp.lt.s32.totalorder %s22, 1
      %s476 = scalar_select %p475, %s22, 1
      %s477 = smul.addr %s476, 8
      %s478 = scalar_lea.vmem %s5, %s477
      %p479 = scmp.lt.s32.totalorder %s22, 1
      %s480 = scalar_select %p479, %s22, 1
      %s481 = smul.addr %s480, 8
      %s482 = smul.addr %s481, 8
      %s483 = scalar_lea.vmem %s6, %s482
      %p484 = scmp.lt.s32.totalorder %s22, 1
      %s485 = scalar_select %p484, %s22, 1
      %s486 = smul.addr %s485, 8
      %s487 = smul.addr %s486, 8
      %s488 = scalar_lea.vmem %s7, %s487
      %p489 = scmp.lt.s32.totalorder %s22, 1
      %s490 = scalar_select %p489, %s22, 1
      %s491 = smul.addr %s490, 8
      %s492 = scalar_lea.vmem %s8, %s491
      %p493 = scmp.lt.s32.totalorder %s22, 1
      %s494 = scalar_select %p493, %s22, 1
      %s495 = smul.addr %s494, 8
      %s496 = scalar_lea.vmem %s9, %s495
      %p497 = scmp.lt.s32.totalorder %s22, 1
      %s498 = scalar_select %p497, %s22, 1
      %s499 = smul.addr %s498, 8
      %s500 = scalar_lea.vmem %s10, %s499
      %v502 = vld [vmem:[%s488] sm:$0xff]
      %v503 = vld [vmem:[%s488 + $0x8] sm:$0xff]
      %v504 = vld [vmem:[%s488 + $0x10] sm:$0xff]
      %v505 = vld [vmem:[%s488 + $0x18] sm:$0xff]
      %v506 = vld [vmem:[%s488 + $0x20] sm:$0xff]
      %v507 = vld [vmem:[%s488 + $0x28] sm:$0xff]
      %v508 = vld [vmem:[%s488 + $0x30] sm:$0xff]
      %v509 = vld [vmem:[%s488 + $0x38] sm:$0xff]
      %v510 = vld [vmem:[%s458] sm:$0xff]
      %v511 = vld [vmem:[%s462] sm:$0xff]
      %v512 = vld [vmem:[%s466] sm:$0xff]
      %v513 = vld [vmem:[%s470] sm:$0xff]
      %v514 = vld [vmem:[%s474] sm:$0xff]
      %v515 = vld [vmem:[%s478] sm:$0xff]
      %v516 = vld [vmem:[%s483] sm:$0xff]
      %v517 = vld [vmem:[%s483 + $0x8] sm:$0xff]
      %v518 = vld [vmem:[%s483 + $0x10] sm:$0xff]
      %v519 = vld [vmem:[%s483 + $0x18] sm:$0xff]
      %v520 = vld [vmem:[%s483 + $0x20] sm:$0xff]
      %v521 = vld [vmem:[%s483 + $0x28] sm:$0xff]
      %v522 = vld [vmem:[%s483 + $0x30] sm:$0xff]
      %v523 = vld [vmem:[%s483 + $0x38] sm:$0xff]
      %v524 = vpack.c.bf16 %v510, %v510
      %v525 = vpack.c.bf16 %v511, %v511
      %vm526 = vcmask 64512
      %v528 = vsel %vm526, %v524, 0
      %v531 = vsel %vm526, %v525, 0
      %533 = vmatpush.bf16.xpose.msra.mxu0 0
      %534 = vmatpush.bf16.xpose.msra.mxu0 0
      %535 = vmatpush.bf16.xpose.msra.mxu0 0
      %536 = vmatpush.bf16.xpose.msra.mxu0 0
      %537 = vmatpush.bf16.xpose.msra.mxu0 0
      %538 = vmatpush.bf16.xpose.msra.mxu0 0
      %539 = vmatpush.bf16.xpose.msra.mxu0 0
      %540 = vmatpush.bf16.xpose.msra.mxu0 %v531
      %541 = vmatmul.bf16.gmra.mxu0 %v528
      %v542 = vpop.f32.mrf.mxu0
      %v543 = vadd.f32 0.0, %v542
      %v544 = vpop.f32.mrf.mxu0
      %545 = vdwg.mxu0
      %v546 = vmul.f32 %v543, 0.20412415
      %v547 = vmul.f32 %v513, %v513
      %vm548 = vcmask 97280
      %v549 = vsel %vm548, %v547, 0.0
      %550 = vadd.xlane.f32.xlu0 %v549
      %v551 = vpop.xlane.xlu0 %550
      %v552 = vmul.f32 %v514, %v514
      %v554 = vsel %vm548, 1.0, 0
      %v557 = vsel %vm548, %v552, 0
      %559 = vmatpush.xpose.msra.mxu0 0.0
      %560 = vmatpush.xpose.msra.mxu0 0.0
      %561 = vmatpush.xpose.msra.mxu0 0.0
      %562 = vmatpush.xpose.msra.mxu0 0.0
      %563 = vmatpush.xpose.msra.mxu0 0.0
      %564 = vmatpush.xpose.msra.mxu0 0.0
      %565 = vmatpush.xpose.msra.mxu0 0.0
      %566 = vmatpush.xpose.msra.mxu0 0.0
      %567 = vmatpush.xpose.msra.mxu0 0.0
      %568 = vmatpush.xpose.msra.mxu0 0.0
      %569 = vmatpush.xpose.msra.mxu0 0.0
      %570 = vmatpush.xpose.msra.mxu0 0.0
      %571 = vmatpush.xpose.msra.mxu0 0.0
      %572 = vmatpush.xpose.msra.mxu0 0.0
      %573 = vmatpush.xpose.msra.mxu0 0.0
      %574 = vmatpush.xpose.msra.mxu0 %v557
      %575 = vmatmul.f32.gmra.mxu0 %v554
      %v576 = vpop.f32.mrf.mxu0
      %v577 = vadd.f32 0.0, %v576
      %578 = vdwg.mxu0
      %v580 = vsel %vm548, %v513, 0
      %v583 = vsel %vm548, %v514, 0
      %585 = vmatpush.xpose.msra.mxu0 0.0
      %586 = vmatpush.xpose.msra.mxu0 0.0
      %587 = vmatpush.xpose.msra.mxu0 0.0
      %588 = vmatpush.xpose.msra.mxu0 0.0
      %589 = vmatpush.xpose.msra.mxu0 0.0
      %590 = vmatpush.xpose.msra.mxu0 0.0
      %591 = vmatpush.xpose.msra.mxu0 0.0
      %592 = vmatpush.xpose.msra.mxu0 0.0
      %593 = vmatpush.xpose.msra.mxu0 0.0
      %594 = vmatpush.xpose.msra.mxu0 0.0
      %595 = vmatpush.xpose.msra.mxu0 0.0
      %596 = vmatpush.xpose.msra.mxu0 0.0
      %597 = vmatpush.xpose.msra.mxu0 0.0
      %598 = vmatpush.xpose.msra.mxu0 0.0
      %599 = vmatpush.xpose.msra.mxu0 0.0
      %600 = vmatpush.xpose.msra.mxu0 %v583
      %601 = vmatmul.f32.gmra.mxu0 %v580
      %v602 = vpop.f32.mrf.mxu0
      %v603 = vadd.f32 0.0, %v602
      %604 = vdwg.mxu0
      %613 = vset.pattern.permute.xlu0 0
      %614 = vperm.xlu0 %613, %v516
      %v615 = vpop.permute.xlu0 %614
      %616 = vset.pattern.permute.xlu0 0
      %617 = vperm.xlu0 %616, %v517
      %v618 = vpop.permute.xlu0 %617
      %619 = vset.pattern.permute.xlu0 0
      %620 = vperm.xlu0 %619, %v518
      %v621 = vpop.permute.xlu0 %620
      %622 = vset.pattern.permute.xlu0 0
      %623 = vperm.xlu0 %622, %v519
      %v624 = vpop.permute.xlu0 %623
      %625 = vset.pattern.permute.xlu0 0
      %626 = vperm.xlu0 %625, %v520
      %v627 = vpop.permute.xlu0 %626
      %628 = vset.pattern.permute.xlu0 0
      %629 = vperm.xlu0 %628, %v521
      %v630 = vpop.permute.xlu0 %629
      %631 = vset.pattern.permute.xlu0 0
      %632 = vperm.xlu0 %631, %v522
      %v633 = vpop.permute.xlu0 %632
      %634 = vset.pattern.permute.xlu0 0
      %635 = vperm.xlu0 %634, %v523
      %v636 = vpop.permute.xlu0 %635
      %v637 = vlaneseq
      %v638 = vand.u32 %v637, 127
      %v639 = vperm.slane %v615, %v638
      %v640 = vperm.slane %v618, %v638
      %v641 = vperm.slane %v621, %v638
      %v642 = vperm.slane %v624, %v638
      %v643 = vperm.slane %v627, %v638
      %v644 = vperm.slane %v630, %v638
      %v645 = vperm.slane %v633, %v638
      %v646 = vperm.slane %v636, %v638
      %vm647 = vcmask 1041409
      %v648 = vsel %vm647, %v640, %v639
      %vm649 = vcmask 1042434
      %v650 = vsel %vm649, %v641, %v648
      %vm651 = vcmask 1043459
      %v652 = vsel %vm651, %v642, %v650
      %vm653 = vcmask 1044484
      %v654 = vsel %vm653, %v643, %v652
      %vm655 = vcmask 1045509
      %v656 = vsel %vm655, %v644, %v654
      %vm657 = vcmask 1046534
      %v658 = vsel %vm657, %v645, %v656
      %vm659 = vcmask 1047559
      %v660 = vsel %vm659, %v646, %v658
      %v662 = vadd.f32 %v546, %v660
      %v663 = vperm.slane %v577, 0
      %v664 = vadd.f32 %v551, %v663
      %v665 = vmul.f32 %v603, 2.0
      %v666 = vsub.f32 %v664, %v665
      %v667 = vsub.f32 %v662, %v666
      %v668 = vsel %vm526, %v667, -inf
      %669 = vmax.xlane.f32.xlu0 %v668
      %v670 = vpop.xlane.xlu0 %669
      %v671 = vsub.f32 %v667, %v670
      %v672 = vmul.f32 %v671, 1.442695
      %v673 = vpow.pop %v672
      %v674 = vsel %vm526, %v673, 0.0
      %675 = vadd.xlane.f32.xlu0 %v674
      %v676 = vpop.xlane.xlu0 %675
      %v677 = vrcp.pop %v676
      %v678 = vmul.f32 %v676, %v677
      %v679 = vsub.f32 1.0, %v678
      %v680 = vmul.f32 %v677, %v679
      %v681 = vadd.f32 %v677, %v680
      %vm682 = vweird.f32 %v676
      %vm683 = vweird.f32 %v677
      %vm684 = vmor %vm682, %vm683
      %v685 = vsel %vm684, %v677, %v681
      %v686 = vand.u32 2147483647, %v676
      %vm687 = vcmp.eq.f32.partialorder %v686, 8.507059e+37
      %v688 = vand.u32 %v676, 2147483648
      %v689 = vor.u32 1.1754944e-38, %v688
      %v690 = vsel %vm687, %v689, %v685
      %v691 = vmul.f32 %v673, %v690
      %v692 = vpack.c.bf16 %v691, %v691
      %v693 = vpack.c.bf16 %v512, %v512
      %v695 = vsel %vm526, %v692, 0
      %vm697 = vcmask 1043456
      %v699 = vsel %vm697, %v693, 0
      %701 = vmatpush.bf16.msra.mxu0 0
      %702 = vmatpush.bf16.msra.mxu0 0
      %703 = vmatpush.bf16.msra.mxu0 0
      %704 = vmatpush.bf16.msra.mxu0 0
      %705 = vmatpush.bf16.msra.mxu0 0
      %706 = vmatpush.bf16.msra.mxu0 0
      %707 = vmatpush.bf16.msra.mxu0 0
      %708 = vmatpush.bf16.msra.mxu0 %v699
      %709 = vmatmul.bf16.gmra.mxu0 %v695
      %v710 = vpop.f32.mrf.mxu0
      %v711 = vadd.f32 0.0, %v710
      %v712 = vpop.f32.mrf.mxu0
      %713 = vdwg.mxu0
      %714 = vst.msk [vmem:[%s492] sm:$0xff] %vm526, %v711
      %v715 = vpack.c.bf16 %v515, %v515
      %v717 = vsel %vm697, %v715, 0
      %719 = vmatpush.bf16.msra.mxu0 0
      %720 = vmatpush.bf16.msra.mxu0 0
      %721 = vmatpush.bf16.msra.mxu0 0
      %722 = vmatpush.bf16.msra.mxu0 0
      %723 = vmatpush.bf16.msra.mxu0 0
      %724 = vmatpush.bf16.msra.mxu0 0
      %725 = vmatpush.bf16.msra.mxu0 0
      %726 = vmatpush.bf16.msra.mxu0 %v717
      %727 = vmatmul.bf16.gmra.mxu0 %v695
      %v728 = vpop.f32.mrf.mxu0
      %v729 = vadd.f32 0.0, %v728
      %v730 = vpop.f32.mrf.mxu0
      %731 = vdwg.mxu0
      %732 = vst.msk [vmem:[%s496] sm:$0xff] %vm548, %v729
      %v733 = vperm.slane %v691, 0
      %v734 = vlaneseq
      %v735 = vshrl.u32 %v734, 7
      %737 = vset.pattern.permute.xlu0 %v735
      %738 = vperm.xlu0 %737, %v733
      %v739 = vpop.permute.xlu0 %738
      %v740 = vperm.slane %v691, 1
      %v741 = vlaneseq
      %v742 = vshrl.u32 %v741, 7
      %744 = vset.pattern.permute.xlu0 %v742
      %745 = vperm.xlu0 %744, %v740
      %v746 = vpop.permute.xlu0 %745
      %v747 = vperm.slane %v691, 2
      %v748 = vlaneseq
      %v749 = vshrl.u32 %v748, 7
      %751 = vset.pattern.permute.xlu0 %v749
      %752 = vperm.xlu0 %751, %v747
      %v753 = vpop.permute.xlu0 %752
      %v754 = vperm.slane %v691, 3
      %v755 = vlaneseq
      %v756 = vshrl.u32 %v755, 7
      %758 = vset.pattern.permute.xlu0 %v756
      %759 = vperm.xlu0 %758, %v754
      %v760 = vpop.permute.xlu0 %759
      %v761 = vperm.slane %v691, 4
      %v762 = vlaneseq
      %v763 = vshrl.u32 %v762, 7
      %765 = vset.pattern.permute.xlu0 %v763
      %766 = vperm.xlu0 %765, %v761
      %v767 = vpop.permute.xlu0 %766
      %v768 = vperm.slane %v691, 5
      %v769 = vlaneseq
      %v770 = vshrl.u32 %v769, 7
      %772 = vset.pattern.permute.xlu0 %v770
      %773 = vperm.xlu0 %772, %v768
      %v774 = vpop.permute.xlu0 %773
      %v775 = vperm.slane %v691, 6
      %v776 = vlaneseq
      %v777 = vshrl.u32 %v776, 7
      %779 = vset.pattern.permute.xlu0 %v777
      %780 = vperm.xlu0 %779, %v775
      %v781 = vpop.permute.xlu0 %780
      %v782 = vperm.slane %v691, 7
      %v783 = vlaneseq
      %v784 = vshrl.u32 %v783, 7
      %786 = vset.pattern.permute.xlu0 %v784
      %787 = vperm.xlu0 %786, %v782
      %v788 = vpop.permute.xlu0 %787
      %v789 = vmul.f32 %v739, %v502
      %v790 = vmul.f32 %v746, %v503
      %v791 = vmul.f32 %v753, %v504
      %v792 = vmul.f32 %v760, %v505
      %v793 = vmul.f32 %v767, %v506
      %v794 = vmul.f32 %v774, %v507
      %v795 = vmul.f32 %v781, %v508
      %v796 = vmul.f32 %v788, %v509
      %vm797 = vcmask 130048
      %v798 = vsel %vm797, %v789, 0.0
      %v799 = vrot.slane %v798, 4
      %v800 = vadd.f32 %v798, %v799
      %v801 = vrot.slane %v800, 2
      %v802 = vadd.f32 %v800, %v801
      %v803 = vrot.slane %v802, 1
      %v804 = vadd.f32 %v802, %v803
      %v805 = vsel %vm797, %v790, 0.0
      %v806 = vrot.slane %v805, 4
      %v807 = vadd.f32 %v805, %v806
      %v808 = vrot.slane %v807, 2
      %v809 = vadd.f32 %v807, %v808
      %v810 = vrot.slane %v809, 1
      %v811 = vadd.f32 %v809, %v810
      %v812 = vsel %vm797, %v791, 0.0
      %v813 = vrot.slane %v812, 4
      %v814 = vadd.f32 %v812, %v813
      %v815 = vrot.slane %v814, 2
      %v816 = vadd.f32 %v814, %v815
      %v817 = vrot.slane %v816, 1
      %v818 = vadd.f32 %v816, %v817
      %v819 = vsel %vm797, %v792, 0.0
      %v820 = vrot.slane %v819, 4
      %v821 = vadd.f32 %v819, %v820
      %v822 = vrot.slane %v821, 2
      %v823 = vadd.f32 %v821, %v822
      %v824 = vrot.slane %v823, 1
      %v825 = vadd.f32 %v823, %v824
      %v826 = vsel %vm797, %v793, 0.0
      %v827 = vrot.slane %v826, 4
      %v828 = vadd.f32 %v826, %v827
      %v829 = vrot.slane %v828, 2
      %v830 = vadd.f32 %v828, %v829
      %v831 = vrot.slane %v830, 1
      %v832 = vadd.f32 %v830, %v831
      %v833 = vsel %vm797, %v794, 0.0
      %v834 = vrot.slane %v833, 4
      %v835 = vadd.f32 %v833, %v834
      %v836 = vrot.slane %v835, 2
      %v837 = vadd.f32 %v835, %v836
      %v838 = vrot.slane %v837, 1
      %v839 = vadd.f32 %v837, %v838
      %v840 = vsel %vm797, %v795, 0.0
      %v841 = vrot.slane %v840, 4
      %v842 = vadd.f32 %v840, %v841
      %v843 = vrot.slane %v842, 2
      %v844 = vadd.f32 %v842, %v843
      %v845 = vrot.slane %v844, 1
      %v846 = vadd.f32 %v844, %v845
      %v847 = vsel %vm797, %v796, 0.0
      %v848 = vrot.slane %v847, 4
      %v849 = vadd.f32 %v847, %v848
      %v850 = vrot.slane %v849, 2
      %v851 = vadd.f32 %v849, %v850
      %v852 = vrot.slane %v851, 1
      %v853 = vadd.f32 %v851, %v852
      %v862 = vsel %vm647, %v811, %v804
      %v863 = vsel %vm649, %v818, %v862
      %v864 = vsel %vm651, %v825, %v863
      %v865 = vsel %vm653, %v832, %v864
      %v866 = vsel %vm655, %v839, %v865
      %v867 = vsel %vm657, %v846, %v866
      %v868 = vsel %vm659, %v853, %v867
      %870 = vst.msk [vmem:[%s500] sm:$0xff] %vm797, %v868
      %v871 = vld [vmem:[%s458] sm:$0xff]
      %v872 = vld [vmem:[%s462] sm:$0xff]
      %v873 = vld [vmem:[%s466] sm:$0xff]
      %v874 = vld [vmem:[%s470] sm:$0xff]
      %v875 = vld [vmem:[%s474] sm:$0xff]
      %v876 = vld [vmem:[%s478] sm:$0xff]
      %v877 = vld [vmem:[%s483] sm:$0xff]
      %v878 = vld [vmem:[%s483 + $0x8] sm:$0xff]
      %v879 = vld [vmem:[%s483 + $0x10] sm:$0xff]
      %v880 = vld [vmem:[%s483 + $0x18] sm:$0xff]
      %v881 = vld [vmem:[%s483 + $0x20] sm:$0xff]
      %v882 = vld [vmem:[%s483 + $0x28] sm:$0xff]
      %v883 = vld [vmem:[%s483 + $0x30] sm:$0xff]
      %v884 = vld [vmem:[%s483 + $0x38] sm:$0xff]
      %v885 = vpack.c.bf16 %v871, %v871
      %v886 = vpack.c.bf16 %v872, %v872
      %888 = vrot.lane.b32.xlu0 %v885, 120
      %v889 = vpop.permute.xlu0 %888
      %891 = vrot.lane.b32.xlu0 %v886, 120
      %v892 = vpop.permute.xlu0 %891
      %v894 = vsel %vm526, %v889, 0
      %v897 = vsel %vm526, %v892, 0
      %899 = vmatpush.bf16.xpose.msra.mxu0 0
      %900 = vmatpush.bf16.xpose.msra.mxu0 0
      %901 = vmatpush.bf16.xpose.msra.mxu0 0
      %902 = vmatpush.bf16.xpose.msra.mxu0 0
      %903 = vmatpush.bf16.xpose.msra.mxu0 0
      %904 = vmatpush.bf16.xpose.msra.mxu0 0
      %905 = vmatpush.bf16.xpose.msra.mxu0 0
      %906 = vmatpush.bf16.xpose.msra.mxu0 %v897
      %907 = vmatmul.bf16.gmra.mxu0 %v894
      %v908 = vpop.f32.mrf.mxu0
      %v909 = vadd.f32 0.0, %v908
      %v910 = vpop.f32.mrf.mxu0
      %911 = vdwg.mxu0
      %v912 = vmul.f32 %v909, 0.20412415
      %v913 = vmul.f32 %v874, %v874
      %915 = vrot.lane.b32.xlu0 %v913, 116
      %v916 = vpop.permute.xlu0 %915
      %v918 = vsel %vm548, %v916, 0.0
      %919 = vadd.xlane.f32.xlu0 %v918
      %v920 = vpop.xlane.xlu0 %919
      %v921 = vmul.f32 %v875, %v875
      %923 = vrot.lane.b32.xlu0 %v921, 116
      %v924 = vpop.permute.xlu0 %923
      %v925 = vsel %vm548, %v924, 0
      %927 = vmatpush.xpose.msra.mxu0 0.0
      %928 = vmatpush.xpose.msra.mxu0 0.0
      %929 = vmatpush.xpose.msra.mxu0 0.0
      %930 = vmatpush.xpose.msra.mxu0 0.0
      %931 = vmatpush.xpose.msra.mxu0 0.0
      %932 = vmatpush.xpose.msra.mxu0 0.0
      %933 = vmatpush.xpose.msra.mxu0 0.0
      %934 = vmatpush.xpose.msra.mxu0 0.0
      %935 = vmatpush.xpose.msra.mxu0 0.0
      %936 = vmatpush.xpose.msra.mxu0 0.0
      %937 = vmatpush.xpose.msra.mxu0 0.0
      %938 = vmatpush.xpose.msra.mxu0 0.0
      %939 = vmatpush.xpose.msra.mxu0 0.0
      %940 = vmatpush.xpose.msra.mxu0 0.0
      %941 = vmatpush.xpose.msra.mxu0 0.0
      %942 = vmatpush.xpose.msra.mxu0 %v925
      %943 = vmatmul.f32.gmra.mxu0 %v554
      %v944 = vpop.f32.mrf.mxu0
      %v945 = vadd.f32 0.0, %v944
      %946 = vdwg.mxu0
      %948 = vrot.lane.b32.xlu0 %v874, 116
      %v949 = vpop.permute.xlu0 %948
      %951 = vrot.lane.b32.xlu0 %v875, 116
      %v952 = vpop.permute.xlu0 %951
      %v953 = vsel %vm548, %v949, 0
      %v955 = vsel %vm548, %v952, 0
      %957 = vmatpush.xpose.msra.mxu0 0.0
      %958 = vmatpush.xpose.msra.mxu0 0.0
      %959 = vmatpush.xpose.msra.mxu0 0.0
      %960 = vmatpush.xpose.msra.mxu0 0.0
      %961 = vmatpush.xpose.msra.mxu0 0.0
      %962 = vmatpush.xpose.msra.mxu0 0.0
      %963 = vmatpush.xpose.msra.mxu0 0.0
      %964 = vmatpush.xpose.msra.mxu0 0.0
      %965 = vmatpush.xpose.msra.mxu0 0.0
      %966 = vmatpush.xpose.msra.mxu0 0.0
      %967 = vmatpush.xpose.msra.mxu0 0.0
      %968 = vmatpush.xpose.msra.mxu0 0.0
      %969 = vmatpush.xpose.msra.mxu0 0.0
      %970 = vmatpush.xpose.msra.mxu0 0.0
      %971 = vmatpush.xpose.msra.mxu0 0.0
      %972 = vmatpush.xpose.msra.mxu0 %v955
      %973 = vmatmul.f32.gmra.mxu0 %v953
      %v974 = vpop.f32.mrf.mxu0
      %v975 = vadd.f32 0.0, %v974
      %976 = vdwg.mxu0
      %985 = vset.pattern.permute.xlu0 1
      %986 = vperm.xlu0 %985, %v877
      %v987 = vpop.permute.xlu0 %986
      %988 = vset.pattern.permute.xlu0 1
      %989 = vperm.xlu0 %988, %v878
      %v990 = vpop.permute.xlu0 %989
      %991 = vset.pattern.permute.xlu0 1
      %992 = vperm.xlu0 %991, %v879
      %v993 = vpop.permute.xlu0 %992
      %994 = vset.pattern.permute.xlu0 1
      %995 = vperm.xlu0 %994, %v880
      %v996 = vpop.permute.xlu0 %995
      %997 = vset.pattern.permute.xlu0 1
      %998 = vperm.xlu0 %997, %v881
      %v999 = vpop.permute.xlu0 %998
      %1000 = vset.pattern.permute.xlu0 1
      %1001 = vperm.xlu0 %1000, %v882
      %v1002 = vpop.permute.xlu0 %1001
      %1003 = vset.pattern.permute.xlu0 1
      %1004 = vperm.xlu0 %1003, %v883
      %v1005 = vpop.permute.xlu0 %1004
      %1006 = vset.pattern.permute.xlu0 1
      %1007 = vperm.xlu0 %1006, %v884
      %v1008 = vpop.permute.xlu0 %1007
      %v1009 = vperm.slane %v987, %v638
      %v1010 = vperm.slane %v990, %v638
      %v1011 = vperm.slane %v993, %v638
      %v1012 = vperm.slane %v996, %v638
      %v1013 = vperm.slane %v999, %v638
      %v1014 = vperm.slane %v1002, %v638
      %v1015 = vperm.slane %v1005, %v638
      %v1016 = vperm.slane %v1008, %v638
      %v1017 = vsel %vm647, %v1010, %v1009
      %v1018 = vsel %vm649, %v1011, %v1017
      %v1019 = vsel %vm651, %v1012, %v1018
      %v1020 = vsel %vm653, %v1013, %v1019
      %v1021 = vsel %vm655, %v1014, %v1020
      %v1022 = vsel %vm657, %v1015, %v1021
      %v1023 = vsel %vm659, %v1016, %v1022
      %v1025 = vadd.f32 %v912, %v1023
      %v1026 = vperm.slane %v945, 0
      %v1027 = vadd.f32 %v920, %v1026
      %v1028 = vmul.f32 %v975, 2.0
      %v1029 = vsub.f32 %v1027, %v1028
      %v1030 = vsub.f32 %v1025, %v1029
      %v1031 = vsel %vm526, %v1030, -inf
      %1032 = vmax.xlane.f32.xlu0 %v1031
      %v1033 = vpop.xlane.xlu0 %1032
      %v1034 = vsub.f32 %v1030, %v1033
      %v1035 = vmul.f32 %v1034, 1.442695
      %v1036 = vpow.pop %v1035
      %v1037 = vsel %vm526, %v1036, 0.0
      %1038 = vadd.xlane.f32.xlu0 %v1037
      %v1039 = vpop.xlane.xlu0 %1038
      %v1040 = vrcp.pop %v1039
      %v1041 = vmul.f32 %v1039, %v1040
      %v1042 = vsub.f32 1.0, %v1041
      %v1043 = vmul.f32 %v1040, %v1042
      %v1044 = vadd.f32 %v1040, %v1043
      %vm1045 = vweird.f32 %v1039
      %vm1046 = vweird.f32 %v1040
      %vm1047 = vmor %vm1045, %vm1046
      %v1048 = vsel %vm1047, %v1040, %v1044
      %v1049 = vand.u32 2147483647, %v1039
      %vm1050 = vcmp.eq.f32.partialorder %v1049, 8.507059e+37
      %v1051 = vand.u32 %v1039, 2147483648
      %v1052 = vor.u32 1.1754944e-38, %v1051
      %v1053 = vsel %vm1050, %v1052, %v1048
      %v1054 = vmul.f32 %v1036, %v1053
      %v1055 = vpack.c.bf16 %v1054, %v1054
      %v1056 = vpack.c.bf16 %v873, %v873
      %1058 = vrot.lane.b32.xlu0 %v1056, 120
      %v1059 = vpop.permute.xlu0 %1058
      %v1061 = vsel %vm526, %v1055, 0
      %v1064 = vsel %vm697, %v1059, 0
      %1066 = vmatpush.bf16.msra.mxu0 0
      %1067 = vmatpush.bf16.msra.mxu0 0
      %1068 = vmatpush.bf16.msra.mxu0 0
      %1069 = vmatpush.bf16.msra.mxu0 0
      %1070 = vmatpush.bf16.msra.mxu0 0
      %1071 = vmatpush.bf16.msra.mxu0 0
      %1072 = vmatpush.bf16.msra.mxu0 0
      %1073 = vmatpush.bf16.msra.mxu0 %v1064
      %1074 = vmatmul.bf16.gmra.mxu0 %v1061
      %v1075 = vpop.f32.mrf.mxu0
      %v1076 = vadd.f32 0.0, %v1075
      %v1077 = vpop.f32.mrf.mxu0
      %1078 = vdwg.mxu0
      %1080 = vrot.lane.b32.xlu0 %v1076, 8
      %v1081 = vpop.permute.xlu0 %1080
      %vm1083 = vcmask 130112
      %1084 = vst.msk [vmem:[%s492] sm:$0xff] %vm1083, %v1081
      %v1085 = vpack.c.bf16 %v876, %v876
      %1087 = vrot.lane.b32.xlu0 %v1085, 116
      %v1088 = vpop.permute.xlu0 %1087
      %v1090 = vsel %vm697, %v1088, 0
      %1092 = vmatpush.bf16.msra.mxu0 0
      %1093 = vmatpush.bf16.msra.mxu0 0
      %1094 = vmatpush.bf16.msra.mxu0 0
      %1095 = vmatpush.bf16.msra.mxu0 0
      %1096 = vmatpush.bf16.msra.mxu0 0
      %1097 = vmatpush.bf16.msra.mxu0 0
      %1098 = vmatpush.bf16.msra.mxu0 0
      %1099 = vmatpush.bf16.msra.mxu0 %v1090
      %1100 = vmatmul.bf16.gmra.mxu0 %v1061
      %v1101 = vpop.f32.mrf.mxu0
      %v1102 = vadd.f32 0.0, %v1101
      %v1103 = vpop.f32.mrf.mxu0
      %1104 = vdwg.mxu0
      %1106 = vrot.lane.b32.xlu0 %v1102, 12
      %v1107 = vpop.permute.xlu0 %1106
      %vm1109 = vcmask 195680
      %1110 = vst.msk [vmem:[%s496] sm:$0xff] %vm1109, %v1107
      %v1111 = vperm.slane %v1054, 0
      %v1112 = vlaneseq
      %v1113 = vshrl.u32 %v1112, 7
      %1115 = vset.pattern.permute.xlu0 %v1113
      %1116 = vperm.xlu0 %1115, %v1111
      %v1117 = vpop.permute.xlu0 %1116
      %v1118 = vperm.slane %v1054, 1
      %v1119 = vlaneseq
      %v1120 = vshrl.u32 %v1119, 7
      %1122 = vset.pattern.permute.xlu0 %v1120
      %1123 = vperm.xlu0 %1122, %v1118
      %v1124 = vpop.permute.xlu0 %1123
      %v1125 = vperm.slane %v1054, 2
      %v1126 = vlaneseq
      %v1127 = vshrl.u32 %v1126, 7
      %1129 = vset.pattern.permute.xlu0 %v1127
      %1130 = vperm.xlu0 %1129, %v1125
      %v1131 = vpop.permute.xlu0 %1130
      %v1132 = vperm.slane %v1054, 3
      %v1133 = vlaneseq
      %v1134 = vshrl.u32 %v1133, 7
      %1136 = vset.pattern.permute.xlu0 %v1134
      %1137 = vperm.xlu0 %1136, %v1132
      %v1138 = vpop.permute.xlu0 %1137
      %v1139 = vperm.slane %v1054, 4
      %v1140 = vlaneseq
      %v1141 = vshrl.u32 %v1140, 7
      %1143 = vset.pattern.permute.xlu0 %v1141
      %1144 = vperm.xlu0 %1143, %v1139
      %v1145 = vpop.permute.xlu0 %1144
      %v1146 = vperm.slane %v1054, 5
      %v1147 = vlaneseq
      %v1148 = vshrl.u32 %v1147, 7
      %1150 = vset.pattern.permute.xlu0 %v1148
      %1151 = vperm.xlu0 %1150, %v1146
      %v1152 = vpop.permute.xlu0 %1151
      %v1153 = vperm.slane %v1054, 6
      %v1154 = vlaneseq
      %v1155 = vshrl.u32 %v1154, 7
      %1157 = vset.pattern.permute.xlu0 %v1155
      %1158 = vperm.xlu0 %1157, %v1153
      %v1159 = vpop.permute.xlu0 %1158
      %v1160 = vperm.slane %v1054, 7
      %v1161 = vlaneseq
      %v1162 = vshrl.u32 %v1161, 7
      %1164 = vset.pattern.permute.xlu0 %v1162
      %1165 = vperm.xlu0 %1164, %v1160
      %v1166 = vpop.permute.xlu0 %1165
      %v1167 = vmul.f32 %v1117, %v502
      %v1168 = vmul.f32 %v1124, %v503
      %v1169 = vmul.f32 %v1131, %v504
      %v1170 = vmul.f32 %v1138, %v505
      %v1171 = vmul.f32 %v1145, %v506
      %v1172 = vmul.f32 %v1152, %v507
      %v1173 = vmul.f32 %v1159, %v508
      %v1174 = vmul.f32 %v1166, %v509
      %v1175 = vsel %vm797, %v1167, 0.0
      %v1176 = vrot.slane %v1175, 4
      %v1177 = vadd.f32 %v1175, %v1176
      %v1178 = vrot.slane %v1177, 2
      %v1179 = vadd.f32 %v1177, %v1178
      %v1180 = vrot.slane %v1179, 1
      %v1181 = vadd.f32 %v1179, %v1180
      %v1182 = vsel %vm797, %v1168, 0.0
      %v1183 = vrot.slane %v1182, 4
      %v1184 = vadd.f32 %v1182, %v1183
      %v1185 = vrot.slane %v1184, 2
      %v1186 = vadd.f32 %v1184, %v1185
      %v1187 = vrot.slane %v1186, 1
      %v1188 = vadd.f32 %v1186, %v1187
      %v1189 = vsel %vm797, %v1169, 0.0
      %v1190 = vrot.slane %v1189, 4
      %v1191 = vadd.f32 %v1189, %v1190
      %v1192 = vrot.slane %v1191, 2
      %v1193 = vadd.f32 %v1191, %v1192
      %v1194 = vrot.slane %v1193, 1
      %v1195 = vadd.f32 %v1193, %v1194
      %v1196 = vsel %vm797, %v1170, 0.0
      %v1197 = vrot.slane %v1196, 4
      %v1198 = vadd.f32 %v1196, %v1197
      %v1199 = vrot.slane %v1198, 2
      %v1200 = vadd.f32 %v1198, %v1199
      %v1201 = vrot.slane %v1200, 1
      %v1202 = vadd.f32 %v1200, %v1201
      %v1203 = vsel %vm797, %v1171, 0.0
      %v1204 = vrot.slane %v1203, 4
      %v1205 = vadd.f32 %v1203, %v1204
      %v1206 = vrot.slane %v1205, 2
      %v1207 = vadd.f32 %v1205, %v1206
      %v1208 = vrot.slane %v1207, 1
      %v1209 = vadd.f32 %v1207, %v1208
      %v1210 = vsel %vm797, %v1172, 0.0
      %v1211 = vrot.slane %v1210, 4
      %v1212 = vadd.f32 %v1210, %v1211
      %v1213 = vrot.slane %v1212, 2
      %v1214 = vadd.f32 %v1212, %v1213
      %v1215 = vrot.slane %v1214, 1
      %v1216 = vadd.f32 %v1214, %v1215
      %v1217 = vsel %vm797, %v1173, 0.0
      %v1218 = vrot.slane %v1217, 4
      %v1219 = vadd.f32 %v1217, %v1218
      %v1220 = vrot.slane %v1219, 2
      %v1221 = vadd.f32 %v1219, %v1220
      %v1222 = vrot.slane %v1221, 1
      %v1223 = vadd.f32 %v1221, %v1222
      %v1224 = vsel %vm797, %v1174, 0.0
      %v1225 = vrot.slane %v1224, 4
      %v1226 = vadd.f32 %v1224, %v1225
      %v1227 = vrot.slane %v1226, 2
      %v1228 = vadd.f32 %v1226, %v1227
      %v1229 = vrot.slane %v1228, 1
      %v1230 = vadd.f32 %v1228, %v1229
      %v1239 = vsel %vm647, %v1188, %v1181
      %v1240 = vsel %vm649, %v1195, %v1239
      %v1241 = vsel %vm651, %v1202, %v1240
      %v1242 = vsel %vm653, %v1209, %v1241
      %v1243 = vsel %vm655, %v1216, %v1242
      %v1244 = vsel %vm657, %v1223, %v1243
      %v1245 = vsel %vm659, %v1230, %v1244
      %1246 = vrot.lane.b32.xlu0 %v1245, 16
      %v1247 = vpop.permute.xlu0 %1246
      %vm1249 = vcmask 261248
      %1250 = vst.msk [vmem:[%s500] sm:$0xff] %vm1249, %v1247
      %p1251 = scmp.lt.s32.totalorder %s22, 1
      %s1252 = scalar_select %p1251, %s22, 1
      %s1253 = smul.addr %s1252, 8
      %s1254 = scalar_lea.vmem %s8, %s1253
      %p1255 = scmp.lt.s32.totalorder %s22, 1
      %s1256 = scalar_select %p1255, %s22, 1
      %s1257 = smul.addr %s1256, 8
      %s1258 = scalar_lea.vmem %s9, %s1257
      %p1259 = scmp.lt.s32.totalorder %s22, 1
      %s1260 = scalar_select %p1259, %s22, 1
      %s1261 = smul.addr %s1260, 8
      %s1262 = scalar_lea.vmem %s10, %s1261
      // Predicated region
      $region53: #{forward.50} parent=51 // pred_check
        %p1263 = pneg %p248
      $region54: #{forward.50} parent=51 // pred_check_branch
        %1265 = sbr.rel (%p1263) target = $region56
      $region55: #{forward.50} parent=51 // pred_region
        _
      $region56: #{forward.50} parent=51 // pred_fallthru
        _
      // Predicated region
      $region57: #{forward.50} parent=51 // pred_check
        %p1266 = pneg %p274
      $region58: #{forward.50} parent=51 // pred_check_branch
        %1268 = sbr.rel (%p1266) target = $region60
      $region59: #{forward.50} parent=51 // pred_region
        _
      $region60: #{forward.50} parent=51 // pred_fallthru
        _
      // Predicated region
      $region61: #{forward.50} parent=51 // pred_check
        %p1269 = pneg %p300
      $region62: #{forward.50} parent=51 // pred_check_branch
        %1271 = sbr.rel (%p1269) target = $region64
      $region63: #{forward.50} parent=51 // pred_region
        _
      $region64: #{forward.50} parent=51 // pred_fallthru
        _
    $region52: #{forward.50} parent=5 // pred_fallthru
      _
    %p1272 = scmp.le.s32.totalorder 2, %s17
    // Predicated region
    $region65: #{forward.50} parent=5 // pred_check
      %p1273 = pneg %p1272
    $region66: #{forward.50} parent=5 // pred_check_branch
      %1275 = sbr.rel (%p1273) target = $region68
    $region67: #{forward.50} parent=5 // pred_region
      %s1276 = ssub.s32 %s17, 2
      // Predicated region
      $region69: #{forward.50} parent=67 // pred_check
        %p1277 = pneg %p254
      $region70: #{forward.50} parent=67 // pred_check_branch
        %1279 = sbr.rel (%p1277) target = $region72
      $region71: #{forward.50} parent=67 // pred_region
        %p1280 = scmp.lt.s32.totalorder %s23, 1
        %s1281 = scalar_select %p1280, %s23, 1
        %s1282 = smul.addr %s1281, 8
        %s1283 = scalar_lea.vmem %s8, %s1282
      $region72: #{forward.50} parent=67 // pred_fallthru
        _
      // Predicated region
      $region73: #{forward.50} parent=67 // pred_check
        %p1284 = pneg %p280
      $region74: #{forward.50} parent=67 // pred_check_branch
        %1286 = sbr.rel (%p1284) target = $region76
      $region75: #{forward.50} parent=67 // pred_region
        %p1287 = scmp.lt.s32.totalorder %s23, 1
        %s1288 = scalar_select %p1287, %s23, 1
        %s1289 = smul.addr %s1288, 8
        %s1290 = scalar_lea.vmem %s9, %s1289
      $region76: #{forward.50} parent=67 // pred_fallthru
        _
      // Predicated region
      $region77: #{forward.50} parent=67 // pred_check
        %p1291 = pneg %p306
      $region78: #{forward.50} parent=67 // pred_check_branch
        %1293 = sbr.rel (%p1291) target = $region80
      $region79: #{forward.50} parent=67 // pred_region
        %p1294 = scmp.lt.s32.totalorder %s23, 1
        %s1295 = scalar_select %p1294, %s23, 1
        %s1296 = smul.addr %s1295, 8
        %s1297 = scalar_lea.vmem %s10, %s1296
      $region80: #{forward.50} parent=67 // pred_fallthru
        _
    $region68: #{forward.50} parent=5 // pred_fallthru
      _
  $region6: #{forward.50} parent=0 // loop_footer
    %s21 = sadd.s32 1, %s17
  $region7: #{forward.50} parent=0 // loop_footer_branch
    %16 = sbr.rel target = $region3
  $region8: #{forward.50} parent=0 // loop_exit
    _

// kernel: forward.53
$region0: #{forward.53}
  #allocation0 [shape = 'u32[]', space=smem, size = 0x4, offset = 0x4, fixed_abs, tag = 'smem constant byte address 0x4 - core index']
  #allocation1 [shape = 'u32[72,128]{1,0:T(1,128)}', space=vmem, size = 0x9000, scoped, tag = 'internal scratch']
  %s0 = inlined_call_operand.vmem [shape: f32[16,32], index: 0, kind: input, shape index: {}]
  %s1 = inlined_call_operand.vmem [shape: bf16[32,32], index: 1, kind: input, shape index: {}]
  %s2 = inlined_call_operand.vmem [shape: f32[1,32], index: 2, kind: input, shape index: {}, may-alias: {2,4,6,8}]
  %s3 = inlined_call_operand.vmem [shape: bf16[32,32], index: 3, kind: input, shape index: {}]
  %s4 = inlined_call_operand.vmem [shape: f32[1,32], index: 4, kind: input, shape index: {}, may-alias: {2,4,6,8}]
  %s5 = inlined_call_operand.vmem [shape: bf16[32,32], index: 5, kind: input, shape index: {}]
  %s6 = inlined_call_operand.vmem [shape: f32[1,32], index: 6, kind: input, shape index: {}, may-alias: {2,4,6,8}]
  %s7 = inlined_call_operand.vmem [shape: f32[1,32], index: 7, kind: input, shape index: {}]
  %s8 = inlined_call_operand.vmem [shape: f32[1,32], index: 8, kind: input, shape index: {}, may-alias: {2,4,6,8}]
  %s9 = inlined_call_operand.vmem [shape: f32[16,32], index: 9, kind: output, shape index: {}]
  %s10 = sld [smem:[#allocation0]]
  $region46: #{forward.53} parent=0
    _
  %s12 = ssub.s32 1, %s10
  %s13 = scalar_select 0, %s12, %s10
  // Predicated region
  $region2: #{forward.53} parent=0 // pred_check
    _
  $region3: #{forward.53} parent=0 // pred_check_branch
    %15 = sbr.rel (0) target = $region5
  $region4: #{forward.53} parent=0 // pred_region
    _
  $region5: #{forward.53} parent=0 // pred_fallthru
    _
  // Predicated region
  $region6: #{forward.53} parent=0 // pred_check
    _
  $region7: #{forward.53} parent=0 // pred_check_branch
    %17 = sbr.rel (0) target = $region9
  $region8: #{forward.53} parent=0 // pred_region
    _
  $region9: #{forward.53} parent=0 // pred_fallthru
    _
  // Predicated region
  $region10: #{forward.53} parent=0 // pred_check
    _
  $region11: #{forward.53} parent=0 // pred_check_branch
    %19 = sbr.rel (0) target = $region13
  $region12: #{forward.53} parent=0 // pred_region
    _
  $region13: #{forward.53} parent=0 // pred_fallthru
    _
  // Predicated region
  $region14: #{forward.53} parent=0 // pred_check
    _
  $region15: #{forward.53} parent=0 // pred_check_branch
    %21 = sbr.rel (0) target = $region17
  $region16: #{forward.53} parent=0 // pred_region
    _
  $region17: #{forward.53} parent=0 // pred_fallthru
    _
  // Predicated region
  $region18: #{forward.53} parent=0 // pred_check
    _
  $region19: #{forward.53} parent=0 // pred_check_branch
    %23 = sbr.rel (0) target = $region21
  $region20: #{forward.53} parent=0 // pred_region
    _
  $region21: #{forward.53} parent=0 // pred_fallthru
    _
  // Predicated region
  $region22: #{forward.53} parent=0 // pred_check
    _
  $region23: #{forward.53} parent=0 // pred_check_branch
    %25 = sbr.rel (0) target = $region25
  $region24: #{forward.53} parent=0 // pred_region
    _
  $region25: #{forward.53} parent=0 // pred_fallthru
    _
  // Predicated region
  $region26: #{forward.53} parent=0 // pred_check
    _
  $region27: #{forward.53} parent=0 // pred_check_branch
    %27 = sbr.rel (0) target = $region29
  $region28: #{forward.53} parent=0 // pred_region
    _
  $region29: #{forward.53} parent=0 // pred_fallthru
    _
  // Predicated region
  $region30: #{forward.53} parent=0 // pred_check
    _
  $region31: #{forward.53} parent=0 // pred_check_branch
    %29 = sbr.rel (0) target = $region33
  $region32: #{forward.53} parent=0 // pred_region
    _
  $region33: #{forward.53} parent=0 // pred_fallthru
    _
  // Predicated region
  $region34: #{forward.53} parent=0 // pred_check
    _
  $region35: #{forward.53} parent=0 // pred_check_branch
    %31 = sbr.rel (0) target = $region37
  $region36: #{forward.53} parent=0 // pred_region
    _
  $region37: #{forward.53} parent=0 // pred_fallthru
    _
  %v33 = vld [vmem:[%s0] sm:$0xff]
  %v34 = vld [vmem:[%s0 + $0x8] sm:$0xff]
  %v35 = vpack.c.bf16 %v34, %v33
  %v36 = vld [vmem:[%s1] sm:$0xf]
  %v37 = vld [vmem:[%s1 + $0x4] sm:$0xf]
  %v38 = vld [vmem:[%s1 + $0x8] sm:$0xf]
  %v39 = vld [vmem:[%s1 + $0xc] sm:$0xf]
  %v40 = vld [vmem:[%s2] sm:$0x1]
  %v42 = vperm.slane %v40, 0
  %v48 = vunpack.c.l.b16 %v36
  %v49 = vunpack.c.l.b16 %v37
  %v50 = vunpack.c.l.b16 %v38
  %v51 = vunpack.c.l.b16 %v39
  %v52 = vpack.c.b16 %v49, %v48
  %v53 = vpack.c.b16 %v51, %v50
  %vm56 = vcmask 261120
  %v58 = vsel %vm56, %v35, 0
  %60 = vmatpush.bf16.msra.mxu0 0
  %61 = vmatpush.bf16.msra.mxu0 0
  %62 = vmatpush.bf16.msra.mxu0 0
  %63 = vmatpush.bf16.msra.mxu0 0
  %64 = vmatpush.bf16.msra.mxu0 0
  %65 = vmatpush.bf16.msra.mxu0 0
  %66 = vmatpush.bf16.msra.mxu0 %v53
  %67 = vmatpush.bf16.msra.mxu0 %v52
  %68 = vmatmul.bf16.gmra.mxu0 %v58
  %v69 = vpop.f32.mrf.mxu0
  %v70 = vadd.f32 %v42, %v69
  %v71 = vpop.f32.mrf.mxu0
  %v72 = vadd.f32 %v42, %v71
  %73 = vdwg.mxu0
  %v74 = vmax.f32 %v70, 0.0
  %v75 = vmax.f32 %v72, 0.0
  %v76 = vpack.c.bf16 %v75, %v74
  %v77 = vld [vmem:[%s3] sm:$0xf]
  %v78 = vld [vmem:[%s3 + $0x4] sm:$0xf]
  %v79 = vld [vmem:[%s3 + $0x8] sm:$0xf]
  %v80 = vld [vmem:[%s3 + $0xc] sm:$0xf]
  %v81 = vld [vmem:[%s4] sm:$0x1]
  %v83 = vperm.slane %v81, 0
  %v89 = vunpack.c.l.b16 %v77
  %v90 = vunpack.c.l.b16 %v78
  %v91 = vunpack.c.l.b16 %v79
  %v92 = vunpack.c.l.b16 %v80
  %v93 = vpack.c.b16 %v90, %v89
  %v94 = vpack.c.b16 %v92, %v91
  %v98 = vsel %vm56, %v76, 0
  %100 = vmatpush.bf16.msra.mxu0 0
  %101 = vmatpush.bf16.msra.mxu0 0
  %102 = vmatpush.bf16.msra.mxu0 0
  %103 = vmatpush.bf16.msra.mxu0 0
  %104 = vmatpush.bf16.msra.mxu0 0
  %105 = vmatpush.bf16.msra.mxu0 0
  %106 = vmatpush.bf16.msra.mxu0 %v94
  %107 = vmatpush.bf16.msra.mxu0 %v93
  %108 = vmatmul.bf16.gmra.mxu0 %v98
  %v109 = vpop.f32.mrf.mxu0
  %v110 = vadd.f32 %v83, %v109
  %v111 = vpop.f32.mrf.mxu0
  %v112 = vadd.f32 %v83, %v111
  %113 = vdwg.mxu0
  %v114 = vmax.f32 %v110, 0.0
  %v115 = vmax.f32 %v112, 0.0
  %v116 = vpack.c.bf16 %v115, %v114
  %v117 = vld [vmem:[%s5] sm:$0xf]
  %v118 = vld [vmem:[%s5 + $0x4] sm:$0xf]
  %v119 = vld [vmem:[%s5 + $0x8] sm:$0xf]
  %v120 = vld [vmem:[%s5 + $0xc] sm:$0xf]
  %v121 = vld [vmem:[%s6] sm:$0x1]
  %v123 = vperm.slane %v121, 0
  %v129 = vunpack.c.l.b16 %v117
  %v130 = vunpack.c.l.b16 %v118
  %v131 = vunpack.c.l.b16 %v119
  %v132 = vunpack.c.l.b16 %v120
  %v133 = vpack.c.b16 %v130, %v129
  %v134 = vpack.c.b16 %v132, %v131
  %v138 = vsel %vm56, %v116, 0
  %140 = vmatpush.bf16.msra.mxu0 0
  %141 = vmatpush.bf16.msra.mxu0 0
  %142 = vmatpush.bf16.msra.mxu0 0
  %143 = vmatpush.bf16.msra.mxu0 0
  %144 = vmatpush.bf16.msra.mxu0 0
  %145 = vmatpush.bf16.msra.mxu0 0
  %146 = vmatpush.bf16.msra.mxu0 %v134
  %147 = vmatpush.bf16.msra.mxu0 %v133
  %148 = vmatmul.bf16.gmra.mxu0 %v138
  %v149 = vpop.f32.mrf.mxu0
  %v150 = vadd.f32 %v123, %v149
  %v151 = vpop.f32.mrf.mxu0
  %v152 = vadd.f32 %v123, %v151
  %153 = vdwg.mxu0
  %v154 = vadd.f32 %v33, %v150
  %v155 = vadd.f32 %v34, %v152
  %v156 = vsel %vm56, %v154, 0.0
  %157 = vadd.xlane.f32.xlu0 %v156
  %v158 = vpop.xlane.xlu0 %157
  %v159 = vsel %vm56, %v155, 0.0
  %160 = vadd.xlane.f32.xlu0 %v159
  %v161 = vpop.xlane.xlu0 %160
  %v162 = vrcp.pop 32.0
  %v163 = vmul.f32 32.0, %v162
  %v164 = vsub.f32 1.0, %v163
  %v165 = vmul.f32 %v162, %v164
  %v166 = vadd.f32 %v162, %v165
  %vm167 = vweird.f32 %v162
  %v168 = vsel %vm167, %v162, %v166
  %v169 = vmul.f32 %v158, %v168
  %v170 = vmul.f32 %v161, %v168
  %v171 = vsub.f32 %v154, %v169
  %v172 = vsub.f32 %v155, %v170
  %v173 = vmul.f32 %v171, %v171
  %v174 = vmul.f32 %v172, %v172
  %v175 = vsel %vm56, %v173, 0.0
  %176 = vadd.xlane.f32.xlu0 %v175
  %v177 = vpop.xlane.xlu0 %176
  %v178 = vsel %vm56, %v174, 0.0
  %179 = vadd.xlane.f32.xlu0 %v178
  %v180 = vpop.xlane.xlu0 %179
  %v181 = vmul.f32 %v177, %v168
  %v182 = vmul.f32 %v180, %v168
  %v183 = vadd.f32 %v181, 1e-05
  %v184 = vadd.f32 %v182, 1e-05
  %v185 = vrsqrt.pop %v183
  %v186 = vmul.f32 %v185, %v183
  %v187 = vmul.f32 %v186, %v185
  %v188 = vmul.f32 0.5, %v187
  %v189 = vsub.f32 1.5, %v188
  %v190 = vmul.f32 %v185, %v189
  %vm191 = vweird.f32 %v183
  %vm192 = vweird.f32 %v185
  %vm193 = vmor %vm191, %vm192
  %v194 = vsel %vm193, %v185, %v190
  %v195 = vrsqrt.pop %v184
  %v196 = vmul.f32 %v195, %v184
  %v197 = vmul.f32 %v196, %v195
  %v198 = vmul.f32 0.5, %v197
  %v199 = vsub.f32 1.5, %v198
  %v200 = vmul.f32 %v195, %v199
  %vm201 = vweird.f32 %v184
  %vm202 = vweird.f32 %v195
  %vm203 = vmor %vm201, %vm202
  %v204 = vsel %vm203, %v195, %v200
  %v205 = vmul.f32 %v171, %v194
  %v206 = vmul.f32 %v172, %v204
  %v207 = vld [vmem:[%s7] sm:$0x1]
  %v209 = vperm.slane %v207, 0
  %v211 = vmul.f32 %v205, %v209
  %v212 = vmul.f32 %v206, %v209
  %v213 = vld [vmem:[%s8] sm:$0x1]
  %v215 = vperm.slane %v213, 0
  %v217 = vadd.f32 %v211, %v215
  %v218 = vadd.f32 %v212, %v215
  %219 = vst.msk [vmem:[%s9] sm:$0xff] %vm56, %v217
  %220 = vst.msk [vmem:[%s9 + $0x8] sm:$0xff] %vm56, %v218
  // Predicated region
  $region38: #{forward.53} parent=0 // pred_check
    _
  $region39: #{forward.53} parent=0 // pred_check_branch
    %222 = sbr.rel (0) target = $region41
  $region40: #{forward.53} parent=0 // pred_region
    _
  $region41: #{forward.53} parent=0 // pred_fallthru
    _
  // Predicated region
  $region42: #{forward.53} parent=0 // pred_check
    _
  $region43: #{forward.53} parent=0 // pred_check_branch
    %224 = sbr.rel (0) target = $region45
  $region44: #{forward.53} parent=0 // pred_region
    _
  $region45: #{forward.53} parent=0 // pred_fallthru
    _

// kernel: forward.54
$region0: #{forward.54}
  #allocation0 [shape = 'u32[]', space=smem, size = 0x4, offset = 0x4, fixed_abs, tag = 'smem constant byte address 0x4 - core index']
  #allocation1 [shape = 'u32[72,128]{1,0:T(1,128)}', space=vmem, size = 0x9000, scoped, tag = 'internal scratch']
  %s0 = inlined_call_operand.vmem [shape: f32[16,32], index: 0, kind: input, shape index: {}]
  %s1 = inlined_call_operand.vmem [shape: bf16[32,6], index: 1, kind: input, shape index: {}]
  %s2 = inlined_call_operand.vmem [shape: f32[1,6], index: 2, kind: input, shape index: {}]
  %s3 = inlined_call_operand.vmem [shape: f32[16,6], index: 3, kind: output, shape index: {}]
  %s4 = sld [smem:[#allocation0]]
  $region22: #{forward.54} parent=0
    _
  %s6 = ssub.s32 1, %s4
  %s7 = scalar_select 0, %s6, %s4
  // Predicated region
  $region2: #{forward.54} parent=0 // pred_check
    _
  $region3: #{forward.54} parent=0 // pred_check_branch
    %9 = sbr.rel (0) target = $region5
  $region4: #{forward.54} parent=0 // pred_region
    _
  $region5: #{forward.54} parent=0 // pred_fallthru
    _
  // Predicated region
  $region6: #{forward.54} parent=0 // pred_check
    _
  $region7: #{forward.54} parent=0 // pred_check_branch
    %11 = sbr.rel (0) target = $region9
  $region8: #{forward.54} parent=0 // pred_region
    _
  $region9: #{forward.54} parent=0 // pred_fallthru
    _
  // Predicated region
  $region10: #{forward.54} parent=0 // pred_check
    _
  $region11: #{forward.54} parent=0 // pred_check_branch
    %13 = sbr.rel (0) target = $region13
  $region12: #{forward.54} parent=0 // pred_region
    _
  $region13: #{forward.54} parent=0 // pred_fallthru
    _
  %v15 = vld [vmem:[%s0] sm:$0xff]
  %v16 = vld [vmem:[%s0 + $0x8] sm:$0xff]
  %v17 = vld [vmem:[%s1] sm:$0xf]
  %v18 = vld [vmem:[%s1 + $0x4] sm:$0xf]
  %v19 = vld [vmem:[%s1 + $0x8] sm:$0xf]
  %v20 = vld [vmem:[%s1 + $0xc] sm:$0xf]
  %v21 = vld [vmem:[%s2] sm:$0x1]
  %v22 = vpack.c.bf16 %v16, %v15
  %v24 = vperm.slane %v21, 0
  %v30 = vunpack.c.l.b16 %v17
  %v31 = vunpack.c.l.b16 %v18
  %v32 = vunpack.c.l.b16 %v19
  %v33 = vunpack.c.l.b16 %v20
  %v34 = vpack.c.b16 %v31, %v30
  %v35 = vpack.c.b16 %v33, %v32
  %vm38 = vcmask 261120
  %v40 = vsel %vm38, %v22, 0
  %42 = vmatpush.bf16.msra.mxu0 0
  %43 = vmatpush.bf16.msra.mxu0 0
  %44 = vmatpush.bf16.msra.mxu0 0
  %45 = vmatpush.bf16.msra.mxu0 0
  %46 = vmatpush.bf16.msra.mxu0 0
  %47 = vmatpush.bf16.msra.mxu0 0
  %48 = vmatpush.bf16.msra.mxu0 %v35
  %49 = vmatpush.bf16.msra.mxu0 %v34
  %50 = vmatmul.bf16.gmra.mxu0 %v40
  %v51 = vpop.f32.mrf.mxu0
  %v52 = vadd.f32 %v24, %v51
  %v53 = vpop.f32.mrf.mxu0
  %v54 = vadd.f32 %v24, %v53
  %55 = vdwg.mxu0
  %vm56 = vcmask 48128
  %57 = vst.msk [vmem:[%s3] sm:$0xff] %vm56, %v52
  %58 = vst.msk [vmem:[%s3 + $0x8] sm:$0xff] %vm56, %v54
  // Predicated region
  $region14: #{forward.54} parent=0 // pred_check
    _
  $region15: #{forward.54} parent=0 // pred_check_branch
    %60 = sbr.rel (0) target = $region17
  $region16: #{forward.54} parent=0 // pred_region
    _
  $region17: #{forward.54} parent=0 // pred_fallthru
    _
  // Predicated region
  $region18: #{forward.54} parent=0 // pred_check
    _
  $region19: #{forward.54} parent=0 // pred_check_branch
    %62 = sbr.rel (0) target = $region21
  $region20: #{forward.54} parent=0 // pred_region
    _
  $region21: #{forward.54} parent=0 // pred_fallthru
    _

</llo_original>
